<compile_context>
chip_gen: v6e
topology: v6e:2x2x1
jax: 0.10.0
libtpu: 0.0.40
codegen_flags: <defaults>
</compile_context>

<pallas_src>
import functools

import numpy as np
import jax
import jax.numpy as jnp
from jax.experimental import pallas as pl
from jax.experimental.pallas import tpu as pltpu

LATENT_DIM = 128
CAPACITY = 4            # C
BATCH = 256             # whole batch processed by one fused kernel invocation
BN_EPS = 1e-5


def _round_up(n, m):
    return ((n + m - 1) // m) * m


# ----------------------------------------------------------------------------
# Parameter setup (plain numpy / JAX glue)
# ----------------------------------------------------------------------------
def _deconv_transfer_matrix(w, hin, win, hout, wout, stride, pad):
    """Dense matrix M s.t. flat_out = flat_in @ M reproduces ConvTranspose2d.

    w: (Cin, Cout, K, K) PyTorch ConvTranspose2d weight layout.
    out[co, ho, wo] += x[ci, hi, wi] * w[ci, co, kh, kw]
        with ho = hi*stride - pad + kh, wo = wi*stride - pad + kw
    (output_padding only enlarges hout/wout; handled by the caller's sizes).
    """
    cin, cout, k, _ = w.shape
    m = np.zeros((cin, hin, win, cout, hout, wout), dtype=np.float32)
    for kh in range(k):
        for kw in range(k):
            for hi in range(hin):
                ho = hi * stride - pad + kh
                if not (0 <= ho < hout):
                    continue
                for wi in range(win):
                    wo = wi * stride - pad + kw
                    if not (0 <= wo < wout):
                        continue
                    m[:, hi, wi, :, ho, wo] = w[:, :, kh, kw]
    return m.reshape(cin * hin * win, cout * hout * wout)


def _pad2(m, rows, cols):
    out = np.zeros((rows, cols), dtype=np.float32)
    out[: m.shape[0], : m.shape[1]] = m
    return out


def _pad_bias(b, reps, cols):
    v = np.repeat(np.asarray(b, dtype=np.float32), reps)
    out = np.zeros((1, cols), dtype=np.float32)
    out[0, : v.shape[0]] = v
    return out


def make_params(key, capacity=CAPACITY):
    C = capacity
    n1 = 4 * 4 * 4 * C      # 256 for C=4 (projection / BN width)
    n2 = 2 * C * 7 * 7      # 392
    n3 = 1 * C * 14 * 14    # 784
    n4 = 1 * 28 * 28        # 784
    n1p, n2p, n3p, n4p = (_round_up(n, 128) for n in (n1, n2, n3, n4))

    ks = jax.random.split(key, 9)

    def randn(k, shape, scale):
        return scale * jax.random.normal(k, shape, dtype=jnp.float32)

    # projection Linear(128 -> 64C).  NOTE: the Linear bias is intentionally
    # omitted: under train-mode BatchNorm1d it is exactly cancelled by the
    # mean subtraction, so it has zero effect on the forward output.
    wp = np.asarray(randn(ks[0], (n1, LATENT_DIM), 0.05))     # PyTorch (out, in)
    gamma = np.asarray(1.0 + randn(ks[1], (n1,), 0.1))
    beta = np.asarray(randn(ks[2], (n1,), 0.1))
    w1 = np.asarray(randn(ks[3], (4 * C, 2 * C, 5, 5), 0.05))
    b1 = np.asarray(randn(ks[4], (2 * C,), 0.05))
    w2 = np.asarray(randn(ks[5], (2 * C, 1 * C, 5, 5), 0.05))
    b2 = np.asarray(randn(ks[6], (1 * C,), 0.05))
    w3 = np.asarray(randn(ks[7], (1 * C, 1, 5, 5), 0.05))
    b3 = np.asarray(randn(ks[8], (1,), 0.05))

    # Spatial sizes: 4 -> 7 -> 14 -> 28 (stride 2, k=5, pad=2, outpad=(0,1,1)).
    m1 = _deconv_transfer_matrix(w1, 4, 4, 7, 7, stride=2, pad=2)      # (n1, n2)
    m2 = _deconv_transfer_matrix(w2, 7, 7, 14, 14, stride=2, pad=2)    # (n2, n3)
    m3 = _deconv_transfer_matrix(w3, 14, 14, 28, 28, stride=2, pad=2)  # (n3, n4)

    params = {
        # matmul operands: bf16 (halved HBM weight traffic, f32 accumulation)
        "wp_t": jnp.asarray(_pad2(wp.T, LATENT_DIM, n1p), jnp.bfloat16),
        "m1": jnp.asarray(_pad2(m1, n1p, n2p), jnp.bfloat16),
        "m2": jnp.asarray(_pad2(m2, n2p, n3p), jnp.bfloat16),
        "m3": jnp.asarray(_pad2(m3, n3p, n4p), jnp.bfloat16),
        # elementwise params: f32 (VPU work stays f32 on all chip gens)
        "gamma": jnp.asarray(_pad2(gamma[None, :], 1, n1p)),
        "beta": jnp.asarray(_pad2(beta[None, :], 1, n1p)),
        "b1": jnp.asarray(_pad_bias(b1, 7 * 7, n2p)),
        "b2": jnp.asarray(_pad_bias(b2, 14 * 14, n3p)),
        "b3": jnp.asarray(_pad_bias(b3, 28 * 28, n4p)),
    }
    return params


# ----------------------------------------------------------------------------
# Single fused kernel: projection + full-batch BatchNorm (train mode) + ReLU
# + three dense deconv matmuls (+bias, ReLU/tanh), bf16 lane-dense store.
# Whole batch + all bf16 weights (~2.8 MB) comfortably fit in VMEM.
# ----------------------------------------------------------------------------
def fused_generator_kernel(z_ref, wp_ref, gamma_ref, beta_ref,
                           m1_ref, b1_ref, m2_ref, b2_ref, m3_ref, b3_ref,
                           out_ref, *, batch):
    # Linear projection (bias dropped: cancelled by train-mode BatchNorm).
    h = jnp.dot(z_ref[...].astype(jnp.bfloat16), wp_ref[...],
                preferred_element_type=jnp.float32)               # (Bp, N1p) f32

    # Full-batch BatchNorm1d statistics, two-pass / centered variance
    # (numerically stable; zero-padded batch rows are masked out).
    row = jax.lax.broadcasted_iota(jnp.int32, h.shape, 0)
    valid = row < batch
    inv_n = 1.0 / float(batch)
    mu = jnp.sum(jnp.where(valid, h, 0.0), axis=0, keepdims=True) * inv_n
    d = jnp.where(valid, h - mu, 0.0)
    var = jnp.sum(d * d, axis=0, keepdims=True) * inv_n
    scale = jax.lax.rsqrt(var + BN_EPS) * gamma_ref[...]          # (1, N1p)
    h = jnp.maximum(d * scale + beta_ref[...], 0.0)               # BN + ReLU

    # deconv1 (-> 2C x 7 x 7) + bias + ReLU (bias fused in the epilogue expr).
    h = jnp.maximum(jnp.dot(h.astype(jnp.bfloat16), m1_ref[...],
                            preferred_element_type=jnp.float32) + b1_ref[...],
                    0.0)
    # deconv2 (-> C x 14 x 14) + bias + ReLU.
    h = jnp.maximum(jnp.dot(h.astype(jnp.bfloat16), m2_ref[...],
                            preferred_element_type=jnp.float32) + b2_ref[...],
                    0.0)
    # deconv3 (-> 1 x 28 x 28, lane-padded to 896) + bias + Tanh, bf16 store.
    h = jnp.dot(h.astype(jnp.bfloat16), m3_ref[...],
                preferred_element_type=jnp.float32) + b3_ref[...]
    out_ref[...] = jnp.tanh(h).astype(out_ref.dtype)


# ----------------------------------------------------------------------------
# Wrapper
# ----------------------------------------------------------------------------
def mnist_generator_forward(z, params):
    B = z.shape[0]
    b_pad = max(_round_up(B, 16), 16)    # bf16 sublane packing of the LHS tile
    z_p = jnp.pad(z, ((0, b_pad - B), (0, 0))) if b_pad != B else z

    n1p = params["wp_t"].shape[1]
    n2p = params["m1"].shape[1]
    n3p = params["m2"].shape[1]
    n4p = params["m3"].shape[1]

    def full(shape):
        return pl.BlockSpec(shape, lambda i: (0, 0))

    out_flat = pl.pallas_call(
        functools.partial(fused_generator_kernel, batch=B),
        out_shape=jax.ShapeDtypeStruct((b_pad, n4p), jnp.bfloat16),
        grid_spec=pltpu.PrefetchScalarGridSpec(
            num_scalar_prefetch=0,
            grid=(1,),
            in_specs=[full((b_pad, LATENT_DIM)),
                      full((LATENT_DIM, n1p)),
                      full((1, n1p)), full((1, n1p)),
                      full((n1p, n2p)), full((1, n2p)),
                      full((n2p, n3p)), full((1, n3p)),
                      full((n3p, n4p)), full((1, n4p))],
            out_specs=full((b_pad, n4p))),
        compiler_params=pltpu.CompilerParams(
            dimension_semantics=("arbitrary",)),
    )(z_p, params["wp_t"], params["gamma"], params["beta"],
      params["m1"], params["b1"], params["m2"], params["b2"],
      params["m3"], params["b3"])

    # Un-pad (896 -> 784), cast back to f32 (module interface) and NCHW
    # reshape outside the kernel (lane-dense bf16 store inside; XLA fuses
    # the slice/cast/reshape).
    return out_flat[:B, :28 * 28].astype(jnp.float32).reshape(B, 1, 28, 28)


# ----------------------------------------------------------------------------
# Pure-JAX reference (same bf16-weight / f32-accumulation math) for the
# correctness check of the Pallas lowering.
# NOTE: this validates kernel-vs-XLA with identical bf16 weights, not vs. an
# fp32 PyTorch module; bf16 weight casting introduces its own small delta.
# ----------------------------------------------------------------------------
def reference_forward(z, p):
    def bdot(a, b):
        return jnp.dot(a.astype(jnp.bfloat16), b,
                       preferred_element_type=jnp.float32)

    h = bdot(z, p["wp_t"])
    mu = jnp.mean(h, axis=0, keepdims=True)
    var = jnp.mean(jnp.square(h - mu), axis=0, keepdims=True)
    h = (h - mu) * jax.lax.rsqrt(var + BN_EPS) * p["gamma"] + p["beta"]
    h = jnp.maximum(h, 0.0)
    h = jnp.maximum(bdot(h, p["m1"]) + p["b1"], 0.0)
    h = jnp.maximum(bdot(h, p["m2"]) + p["b2"], 0.0)
    h = jnp.tanh(bdot(h, p["m3"]) + p["b3"])
    return h[:, :28 * 28].reshape(z.shape[0], 1, 28, 28)


if __name__ == "__main__":
    key = jax.random.PRNGKey(0)
    k_params, k_z = jax.random.split(key)

    params = make_params(k_params, CAPACITY)
    z = jax.random.normal(k_z, (BATCH, LATENT_DIM), dtype=jnp.float32)

    out = jax.block_until_ready(mnist_generator_forward(z, params))
    ref = jax.block_until_ready(reference_forward(z, params))

    assert out.shape == (BATCH, 1, 28, 28), out.shape
    o = np.asarray(out, dtype=np.float32)
    r = np.asarray(ref, dtype=np.float32)
    err = np.max(np.abs(o - r))
    assert np.allclose(o, r, atol=2e-2, rtol=2e-2), f"max abs err {err}"
    print("KERNEL_OK")
</pallas_src>

<mosaic_0001>
module attributes {stable_mosaic.version = 11 : i64} {
  func.func @fused_generator_kernel(%arg0: i32, %arg1: memref<256x128xf32, #tpu.memory_space<vmem>>, %arg2: memref<128x256xbf16, #tpu.memory_space<vmem>>, %arg3: memref<1x256xf32, #tpu.memory_space<vmem>>, %arg4: memref<1x256xf32, #tpu.memory_space<vmem>>, %arg5: memref<256x512xbf16, #tpu.memory_space<vmem>>, %arg6: memref<1x512xf32, #tpu.memory_space<vmem>>, %arg7: memref<512x896xbf16, #tpu.memory_space<vmem>>, %arg8: memref<1x896xf32, #tpu.memory_space<vmem>>, %arg9: memref<896x896xbf16, #tpu.memory_space<vmem>>, %arg10: memref<1x896xf32, #tpu.memory_space<vmem>>, %arg11: memref<256x896xbf16, #tpu.memory_space<vmem>>) attributes {dimension_semantics = [#tpu.dimension_semantics<arbitrary>], iteration_bounds = array<i64: 1>, scalar_prefetch = 0 : i64, scratch_operands = 0 : i64, tpu.core_type = #tpu.core_type<tc>, window_params = [{pipeline_mode = #tpu.pipeline_mode<synchronous>, transform_indices = @transform_0, window_bounds = array<i64: 256, 128>}, {pipeline_mode = #tpu.pipeline_mode<synchronous>, transform_indices = @transform_1, window_bounds = array<i64: 128, 256>}, {pipeline_mode = #tpu.pipeline_mode<synchronous>, transform_indices = @transform_2, window_bounds = array<i64: 1, 256>}, {pipeline_mode = #tpu.pipeline_mode<synchronous>, transform_indices = @transform_3, window_bounds = array<i64: 1, 256>}, {pipeline_mode = #tpu.pipeline_mode<synchronous>, transform_indices = @transform_4, window_bounds = array<i64: 256, 512>}, {pipeline_mode = #tpu.pipeline_mode<synchronous>, transform_indices = @transform_5, window_bounds = array<i64: 1, 512>}, {pipeline_mode = #tpu.pipeline_mode<synchronous>, transform_indices = @transform_6, window_bounds = array<i64: 512, 896>}, {pipeline_mode = #tpu.pipeline_mode<synchronous>, transform_indices = @transform_7, window_bounds = array<i64: 1, 896>}, {pipeline_mode = #tpu.pipeline_mode<synchronous>, transform_indices = @transform_8, window_bounds = array<i64: 896, 896>}, {pipeline_mode = #tpu.pipeline_mode<synchronous>, transform_indices = @transform_9, window_bounds = array<i64: 1, 896>}, {pipeline_mode = #tpu.pipeline_mode<synchronous>, transform_indices = @transform_10, window_bounds = array<i64: 256, 896>}]} {
    %c0 = arith.constant 0 : index
    %c0_0 = arith.constant 0 : index
    %0 = vector.load %arg1[%c0, %c0_0] : memref<256x128xf32, #tpu.memory_space<vmem>>, vector<256x128xf32>
    %1 = arith.truncf %0 : vector<256x128xf32> to vector<256x128xbf16>
    %c0_1 = arith.constant 0 : index
    %c0_2 = arith.constant 0 : index
    %2 = vector.load %arg2[%c0_1, %c0_2] : memref<128x256xbf16, #tpu.memory_space<vmem>>, vector<128x256xbf16>
    %cst = arith.constant dense<0.000000e+00> : vector<256x256xf32>
    %3 = tpu.matmul %1, %2, %cst {dimension_numbers = #tpu.dot_dimension_numbers<[1], [0], [0], [1], [0, 0, 1, 1], [], []>} : vector<256x128xbf16>, vector<128x256xbf16>, vector<256x256xf32> -> vector<256x256xf32>
    %4 = tpu.iota {dimensions = array<i32: 0>} : vector<256x256xi32>
    %c256_i32 = arith.constant 256 : i32
    %5 = vector.broadcast %c256_i32 : i32 to vector<256x256xi32>
    %6 = arith.cmpi slt, %4, %5 : vector<256x256xi32>
    %cst_3 = arith.constant 0.000000e+00 : f32
    %7 = vector.broadcast %cst_3 : f32 to vector<256x256xf32>
    %8 = arith.select %6, %3, %7 : vector<256x256xi1>, vector<256x256xf32>
    %cst_4 = arith.constant dense<0.000000e+00> : vector<256xf32>
    %9 = vector.multi_reduction <add>, %8, %cst_4 [0] : vector<256x256xf32> to vector<256xf32>
    %10 = vector.shape_cast %9 : vector<256xf32> to vector<1x256xf32>
    %cst_5 = arith.constant 3.906250e-03 : f32
    %11 = vector.broadcast %cst_5 : f32 to vector<1x256xf32>
    %12 = arith.mulf %10, %11 : vector<1x256xf32>
    %13 = vector.broadcast %12 : vector<1x256xf32> to vector<256x256xf32>
    %14 = arith.subf %3, %13 : vector<256x256xf32>
    %cst_6 = arith.constant 0.000000e+00 : f32
    %15 = vector.broadcast %cst_6 : f32 to vector<256x256xf32>
    %16 = arith.select %6, %14, %15 : vector<256x256xi1>, vector<256x256xf32>
    %17 = arith.mulf %16, %16 : vector<256x256xf32>
    %cst_7 = arith.constant dense<0.000000e+00> : vector<256xf32>
    %18 = vector.multi_reduction <add>, %17, %cst_7 [0] : vector<256x256xf32> to vector<256xf32>
    %19 = vector.shape_cast %18 : vector<256xf32> to vector<1x256xf32>
    %cst_8 = arith.constant 3.906250e-03 : f32
    %20 = vector.broadcast %cst_8 : f32 to vector<1x256xf32>
    %21 = arith.mulf %19, %20 : vector<1x256xf32>
    %cst_9 = arith.constant 9.99999974E-6 : f32
    %22 = vector.broadcast %cst_9 : f32 to vector<1x256xf32>
    %23 = arith.addf %21, %22 : vector<1x256xf32>
    %24 = math.rsqrt %23 : vector<1x256xf32>
    %c0_10 = arith.constant 0 : index
    %c0_11 = arith.constant 0 : index
    %25 = vector.load %arg3[%c0_10, %c0_11] : memref<1x256xf32, #tpu.memory_space<vmem>>, vector<1x256xf32>
    %26 = arith.mulf %24, %25 : vector<1x256xf32>
    %27 = vector.broadcast %26 : vector<1x256xf32> to vector<256x256xf32>
    %28 = arith.mulf %16, %27 : vector<256x256xf32>
    %c0_12 = arith.constant 0 : index
    %c0_13 = arith.constant 0 : index
    %29 = vector.load %arg4[%c0_12, %c0_13] : memref<1x256xf32, #tpu.memory_space<vmem>>, vector<1x256xf32>
    %30 = vector.broadcast %29 : vector<1x256xf32> to vector<256x256xf32>
    %31 = arith.addf %28, %30 : vector<256x256xf32>
    %cst_14 = arith.constant 0.000000e+00 : f32
    %32 = vector.broadcast %cst_14 : f32 to vector<256x256xf32>
    %33 = arith.maximumf %31, %32 : vector<256x256xf32>
    %34 = arith.truncf %33 : vector<256x256xf32> to vector<256x256xbf16>
    %c0_15 = arith.constant 0 : index
    %c0_16 = arith.constant 0 : index
    %35 = vector.load %arg5[%c0_15, %c0_16] : memref<256x512xbf16, #tpu.memory_space<vmem>>, vector<256x512xbf16>
    %cst_17 = arith.constant dense<0.000000e+00> : vector<256x512xf32>
    %36 = tpu.matmul %34, %35, %cst_17 {dimension_numbers = #tpu.dot_dimension_numbers<[1], [0], [0], [1], [0, 0, 1, 1], [], []>} : vector<256x256xbf16>, vector<256x512xbf16>, vector<256x512xf32> -> vector<256x512xf32>
    %c0_18 = arith.constant 0 : index
    %c0_19 = arith.constant 0 : index
    %37 = vector.load %arg6[%c0_18, %c0_19] : memref<1x512xf32, #tpu.memory_space<vmem>>, vector<1x512xf32>
    %38 = vector.broadcast %37 : vector<1x512xf32> to vector<256x512xf32>
    %39 = arith.addf %36, %38 : vector<256x512xf32>
    %cst_20 = arith.constant 0.000000e+00 : f32
    %40 = vector.broadcast %cst_20 : f32 to vector<256x512xf32>
    %41 = arith.maximumf %39, %40 : vector<256x512xf32>
    %42 = arith.truncf %41 : vector<256x512xf32> to vector<256x512xbf16>
    %c0_21 = arith.constant 0 : index
    %c0_22 = arith.constant 0 : index
    %43 = vector.load %arg7[%c0_21, %c0_22] : memref<512x896xbf16, #tpu.memory_space<vmem>>, vector<512x896xbf16>
    %cst_23 = arith.constant dense<0.000000e+00> : vector<256x896xf32>
    %44 = tpu.matmul %42, %43, %cst_23 {dimension_numbers = #tpu.dot_dimension_numbers<[1], [0], [0], [1], [0, 0, 1, 1], [], []>} : vector<256x512xbf16>, vector<512x896xbf16>, vector<256x896xf32> -> vector<256x896xf32>
    %c0_24 = arith.constant 0 : index
    %c0_25 = arith.constant 0 : index
    %45 = vector.load %arg8[%c0_24, %c0_25] : memref<1x896xf32, #tpu.memory_space<vmem>>, vector<1x896xf32>
    %46 = vector.broadcast %45 : vector<1x896xf32> to vector<256x896xf32>
    %47 = arith.addf %44, %46 : vector<256x896xf32>
    %cst_26 = arith.constant 0.000000e+00 : f32
    %48 = vector.broadcast %cst_26 : f32 to vector<256x896xf32>
    %49 = arith.maximumf %47, %48 : vector<256x896xf32>
    %50 = arith.truncf %49 : vector<256x896xf32> to vector<256x896xbf16>
    %c0_27 = arith.constant 0 : index
    %c0_28 = arith.constant 0 : index
    %51 = vector.load %arg9[%c0_27, %c0_28] : memref<896x896xbf16, #tpu.memory_space<vmem>>, vector<896x896xbf16>
    %cst_29 = arith.constant dense<0.000000e+00> : vector<256x896xf32>
    %52 = tpu.matmul %50, %51, %cst_29 {dimension_numbers = #tpu.dot_dimension_numbers<[1], [0], [0], [1], [0, 0, 1, 1], [], []>} : vector<256x896xbf16>, vector<896x896xbf16>, vector<256x896xf32> -> vector<256x896xf32>
    %c0_30 = arith.constant 0 : index
    %c0_31 = arith.constant 0 : index
    %53 = vector.load %arg10[%c0_30, %c0_31] : memref<1x896xf32, #tpu.memory_space<vmem>>, vector<1x896xf32>
    %54 = vector.broadcast %53 : vector<1x896xf32> to vector<256x896xf32>
    %55 = arith.addf %52, %54 : vector<256x896xf32>
    %56 = math.tanh %55 : vector<256x896xf32>
    %57 = arith.truncf %56 : vector<256x896xf32> to vector<256x896xbf16>
    %c0_32 = arith.constant 0 : index
    %c0_33 = arith.constant 0 : index
    %58 = vector.load %arg11[%c0_32, %c0_33] : memref<256x896xbf16, #tpu.memory_space<vmem>>, vector<256x896xbf16>
    tpu.vector_store %arg11[%c0_32, %c0_33], %57 {strides = array<i32>} : memref<256x896xbf16, #tpu.memory_space<vmem>>, vector<256x896xbf16>,
    return
  }
  func.func @transform_0(%arg0: i32) -> (i32, i32) {
    %c0_i32 = arith.constant 0 : i32
    %c0_i32_0 = arith.constant 0 : i32
    %c0_i32_1 = arith.constant 0 : i32
    return %c0_i32, %c0_i32_0 : i32, i32
  }
  func.func @transform_1(%arg0: i32) -> (i32, i32) {
    %c0_i32 = arith.constant 0 : i32
    %c0_i32_0 = arith.constant 0 : i32
    %c0_i32_1 = arith.constant 0 : i32
    return %c0_i32, %c0_i32_0 : i32, i32
  }
  func.func @transform_2(%arg0: i32) -> (i32, i32) {
    %c0_i32 = arith.constant 0 : i32
    %c0_i32_0 = arith.constant 0 : i32
    %c0_i32_1 = arith.constant 0 : i32
    return %c0_i32, %c0_i32_0 : i32, i32
  }
  func.func @transform_3(%arg0: i32) -> (i32, i32) {
    %c0_i32 = arith.constant 0 : i32
    %c0_i32_0 = arith.constant 0 : i32
    %c0_i32_1 = arith.constant 0 : i32
    return %c0_i32, %c0_i32_0 : i32, i32
  }
  func.func @transform_4(%arg0: i32) -> (i32, i32) {
    %c0_i32 = arith.constant 0 : i32
    %c0_i32_0 = arith.constant 0 : i32
    %c0_i32_1 = arith.constant 0 : i32
    return %c0_i32, %c0_i32_0 : i32, i32
  }
  func.func @transform_5(%arg0: i32) -> (i32, i32) {
    %c0_i32 = arith.constant 0 : i32
    %c0_i32_0 = arith.constant 0 : i32
    %c0_i32_1 = arith.constant 0 : i32
    return %c0_i32, %c0_i32_0 : i32, i32
  }
  func.func @transform_6(%arg0: i32) -> (i32, i32) {
    %c0_i32 = arith.constant 0 : i32
    %c0_i32_0 = arith.constant 0 : i32
    %c0_i32_1 = arith.constant 0 : i32
    return %c0_i32, %c0_i32_0 : i32, i32
  }
  func.func @transform_7(%arg0: i32) -> (i32, i32) {
    %c0_i32 = arith.constant 0 : i32
    %c0_i32_0 = arith.constant 0 : i32
    %c0_i32_1 = arith.constant 0 : i32
    return %c0_i32, %c0_i32_0 : i32, i32
  }
  func.func @transform_8(%arg0: i32) -> (i32, i32) {
    %c0_i32 = arith.constant 0 : i32
    %c0_i32_0 = arith.constant 0 : i32
    %c0_i32_1 = arith.constant 0 : i32
    return %c0_i32, %c0_i32_0 : i32, i32
  }
  func.func @transform_9(%arg0: i32) -> (i32, i32) {
    %c0_i32 = arith.constant 0 : i32
    %c0_i32_0 = arith.constant 0 : i32
    %c0_i32_1 = arith.constant 0 : i32
    return %c0_i32, %c0_i32_0 : i32, i32
  }
  func.func @transform_10(%arg0: i32) -> (i32, i32) {
    %c0_i32 = arith.constant 0 : i32
    %c0_i32_0 = arith.constant 0 : i32
    %c0_i32_1 = arith.constant 0 : i32
    return %c0_i32, %c0_i32_0 : i32, i32
  }
}

</mosaic_0001>

<llo_original>
// kernel: tpu_custom_call.1
$region0: #{tpu_custom_call.1}
  #allocation0 [shape = 'u32[]', space=smem, size = 0x4, offset = 0x4, fixed_abs, tag = 'smem constant byte address 0x4 - core index']
  #allocation1 [shape = 'u32[144,128]{1,0:T(1,128)}', space=vmem, size = 0x12000, scoped, tag = 'internal scratch']
  %s0 = inlined_call_operand.hbm [shape: f32[256,128], index: 0, kind: input, shape index: {}]
  %s1 = inlined_call_operand.hbm [shape: bf16[128,256], index: 1, kind: input, shape index: {}]
  %s2 = inlined_call_operand.hbm [shape: f32[1,256], index: 2, kind: input, shape index: {}]
  %s3 = inlined_call_operand.hbm [shape: f32[1,256], index: 3, kind: input, shape index: {}]
  %s4 = inlined_call_operand.hbm [shape: bf16[256,512], index: 4, kind: input, shape index: {}]
  %s5 = inlined_call_operand.hbm [shape: f32[1,512], index: 5, kind: input, shape index: {}]
  %s6 = inlined_call_operand.hbm [shape: bf16[512,896], index: 6, kind: input, shape index: {}]
  %s7 = inlined_call_operand.hbm [shape: f32[1,896], index: 7, kind: input, shape index: {}]
  %s8 = inlined_call_operand.hbm [shape: bf16[896,896], index: 8, kind: input, shape index: {}]
  %s9 = inlined_call_operand.hbm [shape: f32[1,896], index: 9, kind: input, shape index: {}]
  %s10 = inlined_call_operand.hbm [shape: bf16[256,896], index: 10, kind: output, shape index: {}]
  %s11 = sld [smem:[#allocation0]]
  $region90: #{tpu_custom_call.1} parent=0
    _
  %s13 = ssub.s32 1, %s11
  %s14 = scalar_select 0, %s13, %s11
  $region1: #{tpu_custom_call.1} parent=0
    #allocation2 [shape = 'u8[131072]{0}', space=vmem, size = 0x20000, scoped, tag = 'input window, operand 0, single buffered']
    #allocation3 [shape = 's32[1]{0}', space=sflag, size = 0x4, scoped, tag = 'scoped memory for tpu_custom_call.1']
    #allocation4 [shape = 's32[1]{0}', space=sflag, size = 0x4, scoped, tag = 'scoped memory for tpu_custom_call.1']
    #allocation5 [shape = 'u8[65536]{0}', space=vmem, size = 0x10000, scoped, tag = 'input window, operand 1, single buffered']
    #allocation6 [shape = 's32[1]{0}', space=sflag, size = 0x4, scoped, tag = 'scoped memory for tpu_custom_call.1']
    #allocation7 [shape = 'u8[1024]{0}', space=vmem, size = 0x400, scoped, tag = 'input window, operand 2, single buffered']
    #allocation8 [shape = 'u8[1024]{0}', space=vmem, size = 0x400, scoped, tag = 'input window, operand 3, single buffered']
    #allocation9 [shape = 's32[1]{0}', space=sflag, size = 0x4, scoped, tag = 'scoped memory for tpu_custom_call.1']
    #allocation10 [shape = 'u8[262144]{0}', space=vmem, size = 0x40000, scoped, tag = 'input window, operand 4, single buffered']
    #allocation11 [shape = 'u8[2048]{0}', space=vmem, size = 0x800, scoped, tag = 'input window, operand 5, single buffered']
    #allocation12 [shape = 's32[1]{0}', space=sflag, size = 0x4, scoped, tag = 'scoped memory for tpu_custom_call.1']
    #allocation13 [shape = 'u8[917504]{0}', space=vmem, size = 0xe0000, scoped, tag = 'input window, operand 6, single buffered']
    #allocation14 [shape = 'u8[3584]{0}', space=vmem, size = 0x1000, scoped, tag = 'input window, operand 7, single buffered']
    #allocation15 [shape = 's32[1]{0}', space=sflag, size = 0x4, scoped, tag = 'scoped memory for tpu_custom_call.1']
    #allocation16 [shape = 'u8[1605632]{0}', space=vmem, size = 0x188000, scoped, tag = 'input window, operand 8, single buffered']
    #allocation17 [shape = 'u8[3584]{0}', space=vmem, size = 0x1000, scoped, tag = 'input window, operand 9, single buffered']
    #allocation18 [shape = 's32[1]{0}', space=sflag, size = 0x4, scoped, tag = 'scoped memory for tpu_custom_call.1']
    #allocation19 [shape = 'u8[458752]{0}', space=vmem, size = 0x70000, scoped, tag = 'output window, operand 0, single buffered']
    %15 = vsyncpa [#allocation3], 0
    %16 = vsyncpa [#allocation6], 0
    %17 = vsyncpa [#allocation9], 0
    %18 = vsyncpa [#allocation12], 0
    %19 = vsyncpa [#allocation15], 0
    %20 = vsyncpa [#allocation18], 0
    %21 = vsyncpa [#allocation4], 0
    // Predicated region
    $region2: #{tpu_custom_call.1} parent=1 // pred_check
      _
    $region3: #{tpu_custom_call.1} parent=1 // pred_check_branch
      %23 = sbr.rel (0) target = $region5
    $region4: #{tpu_custom_call.1} parent=1 // pred_region
      %s25 = ssub.s32 4096, 4096
      %26 = vsyncadd [#allocation3], %s25
      %s27 = sshll.u32 [#allocation2], 4
      %s28 = int_to_ptr.vmem [resolvable:$true] %s27
      %33 = dma.hbm_to_vmem [thread:$0]  %s0, 4096, %s28, [#allocation3], 128, 128, 8
    $region5: #{tpu_custom_call.1} parent=1 // pred_fallthru
      _
    // Predicated region
    $region6: #{tpu_custom_call.1} parent=1 // pred_check
      _
    $region7: #{tpu_custom_call.1} parent=1 // pred_check_branch
      %35 = sbr.rel (0) target = $region9
    $region8: #{tpu_custom_call.1} parent=1 // pred_region
      %s37 = ssub.s32 2048, 2048
      %38 = vsyncadd [#allocation6], %s37
      %s39 = sshll.u32 [#allocation5], 4
      %s40 = int_to_ptr.vmem [resolvable:$true] %s39
      %45 = dma.hbm_to_vmem [thread:$0]  %s1, 2048, %s40, [#allocation6], 128, 128, 8
    $region9: #{tpu_custom_call.1} parent=1 // pred_fallthru
      _
    // Predicated region
    $region10: #{tpu_custom_call.1} parent=1 // pred_check
      _
    $region11: #{tpu_custom_call.1} parent=1 // pred_check_branch
      %47 = sbr.rel (0) target = $region13
    $region12: #{tpu_custom_call.1} parent=1 // pred_region
      %s49 = ssub.s32 32, 32
      %50 = vsyncadd [#allocation6], %s49
      %s52 = sshll.u32 [#allocation7], 4
      %s53 = int_to_ptr.vmem [resolvable:$true] %s52
      %55 = dma.hbm_to_vmem [thread:$0]  %s2, 32, %s53, [#allocation6]
    $region13: #{tpu_custom_call.1} parent=1 // pred_fallthru
      _
    // Predicated region
    $region14: #{tpu_custom_call.1} parent=1 // pred_check
      _
    $region15: #{tpu_custom_call.1} parent=1 // pred_check_branch
      %57 = sbr.rel (0) target = $region17
    $region16: #{tpu_custom_call.1} parent=1 // pred_region
      %s59 = ssub.s32 32, 32
      %60 = vsyncadd [#allocation9], %s59
      %s62 = sshll.u32 [#allocation8], 4
      %s63 = int_to_ptr.vmem [resolvable:$true] %s62
      %65 = dma.hbm_to_vmem [thread:$0]  %s3, 32, %s63, [#allocation9]
    $region17: #{tpu_custom_call.1} parent=1 // pred_fallthru
      _
    // Predicated region
    $region18: #{tpu_custom_call.1} parent=1 // pred_check
      _
    $region19: #{tpu_custom_call.1} parent=1 // pred_check_branch
      %67 = sbr.rel (0) target = $region21
    $region20: #{tpu_custom_call.1} parent=1 // pred_region
      %s69 = ssub.s32 8192, 8192
      %70 = vsyncadd [#allocation9], %s69
      %s71 = sshll.u32 [#allocation10], 4
      %s72 = int_to_ptr.vmem [resolvable:$true] %s71
      %77 = dma.hbm_to_vmem [thread:$0]  %s4, 8192, %s72, [#allocation9], 256, 256, 16
    $region21: #{tpu_custom_call.1} parent=1 // pred_fallthru
      _
    // Predicated region
    $region22: #{tpu_custom_call.1} parent=1 // pred_check
      _
    $region23: #{tpu_custom_call.1} parent=1 // pred_check_branch
      %79 = sbr.rel (0) target = $region25
    $region24: #{tpu_custom_call.1} parent=1 // pred_region
      %s81 = ssub.s32 64, 64
      %82 = vsyncadd [#allocation12], %s81
      %s84 = sshll.u32 [#allocation11], 4
      %s85 = int_to_ptr.vmem [resolvable:$true] %s84
      %87 = dma.hbm_to_vmem [thread:$0]  %s5, 64, %s85, [#allocation12]
    $region25: #{tpu_custom_call.1} parent=1 // pred_fallthru
      _
    // Predicated region
    $region26: #{tpu_custom_call.1} parent=1 // pred_check
      _
    $region27: #{tpu_custom_call.1} parent=1 // pred_check_branch
      %89 = sbr.rel (0) target = $region29
    $region28: #{tpu_custom_call.1} parent=1 // pred_region
      %s91 = ssub.s32 28672, 28672
      %92 = vsyncadd [#allocation12], %s91
      %s93 = sshll.u32 [#allocation13], 4
      %s94 = int_to_ptr.vmem [resolvable:$true] %s93
      %99 = dma.hbm_to_vmem [thread:$0]  %s6, 28672, %s94, [#allocation12], 448, 448, 28
    $region29: #{tpu_custom_call.1} parent=1 // pred_fallthru
      _
    // Predicated region
    $region30: #{tpu_custom_call.1} parent=1 // pred_check
      _
    $region31: #{tpu_custom_call.1} parent=1 // pred_check_branch
      %101 = sbr.rel (0) target = $region33
    $region32: #{tpu_custom_call.1} parent=1 // pred_region
      %s103 = ssub.s32 112, 112
      %104 = vsyncadd [#allocation15], %s103
      %s106 = sshll.u32 [#allocation14], 4
      %s107 = int_to_ptr.vmem [resolvable:$true] %s106
      %109 = dma.hbm_to_vmem [thread:$0]  %s7, 112, %s107, [#allocation15]
    $region33: #{tpu_custom_call.1} parent=1 // pred_fallthru
      _
    // Predicated region
    $region34: #{tpu_custom_call.1} parent=1 // pred_check
      _
    $region35: #{tpu_custom_call.1} parent=1 // pred_check_branch
      %111 = sbr.rel (0) target = $region37
    $region36: #{tpu_custom_call.1} parent=1 // pred_region
      %s113 = ssub.s32 50176, 50176
      %114 = vsyncadd [#allocation15], %s113
      %s115 = sshll.u32 [#allocation16], 4
      %s116 = int_to_ptr.vmem [resolvable:$true] %s115
      %121 = dma.hbm_to_vmem [thread:$0]  %s8, 50176, %s116, [#allocation15], 448, 448, 28
    $region37: #{tpu_custom_call.1} parent=1 // pred_fallthru
      _
    // Predicated region
    $region38: #{tpu_custom_call.1} parent=1 // pred_check
      _
    $region39: #{tpu_custom_call.1} parent=1 // pred_check_branch
      %123 = sbr.rel (0) target = $region41
    $region40: #{tpu_custom_call.1} parent=1 // pred_region
      %s125 = ssub.s32 112, 112
      %126 = vsyncadd [#allocation18], %s125
      %s128 = sshll.u32 [#allocation17], 4
      %s129 = int_to_ptr.vmem [resolvable:$true] %s128
      %131 = dma.hbm_to_vmem [thread:$0]  %s9, 112, %s129, [#allocation18]
    $region41: #{tpu_custom_call.1} parent=1 // pred_fallthru
      _
    // Predicated region
    $region42: #{tpu_custom_call.1} parent=1 // pred_check
      _
    $region43: #{tpu_custom_call.1} parent=1 // pred_check_branch
      %133 = sbr.rel (0) target = $region45
    $region44: #{tpu_custom_call.1} parent=1 // pred_region
      %134 = dma.done [#allocation3], 4096
    $region45: #{tpu_custom_call.1} parent=1 // pred_fallthru
      _
    // Predicated region
    $region46: #{tpu_custom_call.1} parent=1 // pred_check
      _
    $region47: #{tpu_custom_call.1} parent=1 // pred_check_branch
      %136 = sbr.rel (0) target = $region49
    $region48: #{tpu_custom_call.1} parent=1 // pred_region
      %137 = dma.done [#allocation6], 2048
    $region49: #{tpu_custom_call.1} parent=1 // pred_fallthru
      _
    // Predicated region
    $region50: #{tpu_custom_call.1} parent=1 // pred_check
      _
    $region51: #{tpu_custom_call.1} parent=1 // pred_check_branch
      %139 = sbr.rel (0) target = $region53
    $region52: #{tpu_custom_call.1} parent=1 // pred_region
      %140 = dma.done [#allocation6], 32
    $region53: #{tpu_custom_call.1} parent=1 // pred_fallthru
      _
    // Predicated region
    $region54: #{tpu_custom_call.1} parent=1 // pred_check
      _
    $region55: #{tpu_custom_call.1} parent=1 // pred_check_branch
      %142 = sbr.rel (0) target = $region57
    $region56: #{tpu_custom_call.1} parent=1 // pred_region
      %143 = dma.done [#allocation9], 32
    $region57: #{tpu_custom_call.1} parent=1 // pred_fallthru
      _
    // Predicated region
    $region58: #{tpu_custom_call.1} parent=1 // pred_check
      _
    $region59: #{tpu_custom_call.1} parent=1 // pred_check_branch
      %145 = sbr.rel (0) target = $region61
    $region60: #{tpu_custom_call.1} parent=1 // pred_region
      %146 = dma.done [#allocation9], 8192
    $region61: #{tpu_custom_call.1} parent=1 // pred_fallthru
      _
    // Predicated region
    $region62: #{tpu_custom_call.1} parent=1 // pred_check
      _
    $region63: #{tpu_custom_call.1} parent=1 // pred_check_branch
      %148 = sbr.rel (0) target = $region65
    $region64: #{tpu_custom_call.1} parent=1 // pred_region
      %149 = dma.done [#allocation12], 64
    $region65: #{tpu_custom_call.1} parent=1 // pred_fallthru
      _
    // Predicated region
    $region66: #{tpu_custom_call.1} parent=1 // pred_check
      _
    $region67: #{tpu_custom_call.1} parent=1 // pred_check_branch
      %151 = sbr.rel (0) target = $region69
    $region68: #{tpu_custom_call.1} parent=1 // pred_region
      %152 = dma.done [#allocation12], 28672
    $region69: #{tpu_custom_call.1} parent=1 // pred_fallthru
      _
    // Predicated region
    $region70: #{tpu_custom_call.1} parent=1 // pred_check
      _
    $region71: #{tpu_custom_call.1} parent=1 // pred_check_branch
      %154 = sbr.rel (0) target = $region73
    $region72: #{tpu_custom_call.1} parent=1 // pred_region
      %155 = dma.done [#allocation15], 112
    $region73: #{tpu_custom_call.1} parent=1 // pred_fallthru
      _
    // Predicated region
    $region74: #{tpu_custom_call.1} parent=1 // pred_check
      _
    $region75: #{tpu_custom_call.1} parent=1 // pred_check_branch
      %157 = sbr.rel (0) target = $region77
    $region76: #{tpu_custom_call.1} parent=1 // pred_region
      %158 = dma.done [#allocation15], 50176
    $region77: #{tpu_custom_call.1} parent=1 // pred_fallthru
      _
    // Predicated region
    $region78: #{tpu_custom_call.1} parent=1 // pred_check
      _
    $region79: #{tpu_custom_call.1} parent=1 // pred_check_branch
      %160 = sbr.rel (0) target = $region81
    $region80: #{tpu_custom_call.1} parent=1 // pred_region
      %161 = dma.done [#allocation18], 112
    $region81: #{tpu_custom_call.1} parent=1 // pred_fallthru
      _
    %v163 = vld [vmem:[#allocation2] sm:$0xff]
    %v164 = vld [vmem:[#allocation2 + $0x8] sm:$0xff]
    %v165 = vld [vmem:[#allocation2 + $0x10] sm:$0xff]
    %v166 = vld [vmem:[#allocation2 + $0x18] sm:$0xff]
    %v167 = vld [vmem:[#allocation2 + $0x20] sm:$0xff]
    %v168 = vld [vmem:[#allocation2 + $0x28] sm:$0xff]
    %v169 = vld [vmem:[#allocation2 + $0x30] sm:$0xff]
    %v170 = vld [vmem:[#allocation2 + $0x38] sm:$0xff]
    %v171 = vld [vmem:[#allocation2 + $0x40] sm:$0xff]
    %v172 = vld [vmem:[#allocation2 + $0x48] sm:$0xff]
    %v173 = vld [vmem:[#allocation2 + $0x50] sm:$0xff]
    %v174 = vld [vmem:[#allocation2 + $0x58] sm:$0xff]
    %v175 = vld [vmem:[#allocation2 + $0x60] sm:$0xff]
    %v176 = vld [vmem:[#allocation2 + $0x68] sm:$0xff]
    %v177 = vld [vmem:[#allocation2 + $0x70] sm:$0xff]
    %v178 = vld [vmem:[#allocation2 + $0x78] sm:$0xff]
    %v179 = vld [vmem:[#allocation2 + $0x80] sm:$0xff]
    %v180 = vld [vmem:[#allocation2 + $0x88] sm:$0xff]
    %v181 = vld [vmem:[#allocation2 + $0x90] sm:$0xff]
    %v182 = vld [vmem:[#allocation2 + $0x98] sm:$0xff]
    %v183 = vld [vmem:[#allocation2 + $0xa0] sm:$0xff]
    %v184 = vld [vmem:[#allocation2 + $0xa8] sm:$0xff]
    %v185 = vld [vmem:[#allocation2 + $0xb0] sm:$0xff]
    %v186 = vld [vmem:[#allocation2 + $0xb8] sm:$0xff]
    %v187 = vld [vmem:[#allocation2 + $0xc0] sm:$0xff]
    %v188 = vld [vmem:[#allocation2 + $0xc8] sm:$0xff]
    %v189 = vld [vmem:[#allocation2 + $0xd0] sm:$0xff]
    %v190 = vld [vmem:[#allocation2 + $0xd8] sm:$0xff]
    %v191 = vld [vmem:[#allocation2 + $0xe0] sm:$0xff]
    %v192 = vld [vmem:[#allocation2 + $0xe8] sm:$0xff]
    %v193 = vld [vmem:[#allocation2 + $0xf0] sm:$0xff]
    %v194 = vld [vmem:[#allocation2 + $0xf8] sm:$0xff]
    %v195 = vpack.c.bf16 %v164, %v163
    %v196 = vpack.c.bf16 %v166, %v165
    %v197 = vpack.c.bf16 %v168, %v167
    %v198 = vpack.c.bf16 %v170, %v169
    %v199 = vpack.c.bf16 %v172, %v171
    %v200 = vpack.c.bf16 %v174, %v173
    %v201 = vpack.c.bf16 %v176, %v175
    %v202 = vpack.c.bf16 %v178, %v177
    %v203 = vpack.c.bf16 %v180, %v179
    %v204 = vpack.c.bf16 %v182, %v181
    %v205 = vpack.c.bf16 %v184, %v183
    %v206 = vpack.c.bf16 %v186, %v185
    %v207 = vpack.c.bf16 %v188, %v187
    %v208 = vpack.c.bf16 %v190, %v189
    %v209 = vpack.c.bf16 %v192, %v191
    %v210 = vpack.c.bf16 %v194, %v193
    %v211 = vld [vmem:[#allocation5] sm:$0xff]
    %v212 = vld [vmem:[#allocation5 + $0x8] sm:$0xff]
    %v213 = vld [vmem:[#allocation5 + $0x10] sm:$0xff]
    %v214 = vld [vmem:[#allocation5 + $0x18] sm:$0xff]
    %v215 = vld [vmem:[#allocation5 + $0x20] sm:$0xff]
    %v216 = vld [vmem:[#allocation5 + $0x28] sm:$0xff]
    %v217 = vld [vmem:[#allocation5 + $0x30] sm:$0xff]
    %v218 = vld [vmem:[#allocation5 + $0x38] sm:$0xff]
    %v219 = vld [vmem:[#allocation5 + $0x40] sm:$0xff]
    %v220 = vld [vmem:[#allocation5 + $0x48] sm:$0xff]
    %v221 = vld [vmem:[#allocation5 + $0x50] sm:$0xff]
    %v222 = vld [vmem:[#allocation5 + $0x58] sm:$0xff]
    %v223 = vld [vmem:[#allocation5 + $0x60] sm:$0xff]
    %v224 = vld [vmem:[#allocation5 + $0x68] sm:$0xff]
    %v225 = vld [vmem:[#allocation5 + $0x70] sm:$0xff]
    %v226 = vld [vmem:[#allocation5 + $0x78] sm:$0xff]
    %v243 = vunpack.c.l.b16 %v211
    %v244 = vunpack.c.h.b16 %v211
    %v245 = vunpack.c.l.b16 %v212
    %v246 = vunpack.c.h.b16 %v212
    %v247 = vunpack.c.l.b16 %v213
    %v248 = vunpack.c.h.b16 %v213
    %v249 = vunpack.c.l.b16 %v214
    %v250 = vunpack.c.h.b16 %v214
    %v251 = vunpack.c.l.b16 %v215
    %v252 = vunpack.c.h.b16 %v215
    %v253 = vunpack.c.l.b16 %v216
    %v254 = vunpack.c.h.b16 %v216
    %v255 = vunpack.c.l.b16 %v217
    %v256 = vunpack.c.h.b16 %v217
    %v257 = vunpack.c.l.b16 %v218
    %v258 = vunpack.c.h.b16 %v218
    %v259 = vunpack.c.l.b16 %v219
    %v260 = vunpack.c.h.b16 %v219
    %v261 = vunpack.c.l.b16 %v220
    %v262 = vunpack.c.h.b16 %v220
    %v263 = vunpack.c.l.b16 %v221
    %v264 = vunpack.c.h.b16 %v221
    %v265 = vunpack.c.l.b16 %v222
    %v266 = vunpack.c.h.b16 %v222
    %v267 = vunpack.c.l.b16 %v223
    %v268 = vunpack.c.h.b16 %v223
    %v269 = vunpack.c.l.b16 %v224
    %v270 = vunpack.c.h.b16 %v224
    %v271 = vunpack.c.l.b16 %v225
    %v272 = vunpack.c.h.b16 %v225
    %v273 = vunpack.c.l.b16 %v226
    %v274 = vunpack.c.h.b16 %v226
    %v275 = vpack.c.b16 %v245, %v243
    %v276 = vpack.c.b16 %v246, %v244
    %v277 = vpack.c.b16 %v249, %v247
    %v278 = vpack.c.b16 %v250, %v248
    %v279 = vpack.c.b16 %v253, %v251
    %v280 = vpack.c.b16 %v254, %v252
    %v281 = vpack.c.b16 %v257, %v255
    %v282 = vpack.c.b16 %v258, %v256
    %v283 = vpack.c.b16 %v261, %v259
    %v284 = vpack.c.b16 %v262, %v260
    %v285 = vpack.c.b16 %v265, %v263
    %v286 = vpack.c.b16 %v266, %v264
    %v287 = vpack.c.b16 %v269, %v267
    %v288 = vpack.c.b16 %v270, %v268
    %v289 = vpack.c.b16 %v273, %v271
    %v290 = vpack.c.b16 %v274, %v272
    %307 = vmatprep.subr.bf16.mxu0 %v290
    %308 = vmatpush1.bf16.msra.mxu0 %v289
    %309 = vmatprep.subr.bf16.mxu0 %v288
    %310 = vmatpush1.bf16.msra.mxu0 %v287
    %311 = vmatprep.subr.bf16.mxu0 %v286
    %312 = vmatpush1.bf16.msra.mxu0 %v285
    %313 = vmatprep.subr.bf16.mxu0 %v284
    %314 = vmatpush1.bf16.msra.mxu0 %v283
    %315 = vmatprep.subr.bf16.mxu0 %v282
    %316 = vmatpush1.bf16.msra.mxu0 %v281
    %317 = vmatprep.subr.bf16.mxu0 %v280
    %318 = vmatpush1.bf16.msra.mxu0 %v279
    %319 = vmatprep.subr.bf16.mxu0 %v278
    %320 = vmatpush1.bf16.msra.mxu0 %v277
    %321 = vmatprep.subr.bf16.mxu0 %v276
    %322 = vmatpush1.bf16.msra.mxu0 %v275
    %323 = vmatprep.subr.bf16.mxu0 0
    %324 = vmatpush2.bf16.msra.mxu0 0
    %325 = vmatprep.subr.bf16.mxu0 0
    %326 = vmatpush2.bf16.msra.mxu0 0
    %327 = vmatprep.subr.bf16.mxu0 0
    %328 = vmatpush2.bf16.msra.mxu0 0
    %329 = vmatprep.subr.bf16.mxu0 0
    %330 = vmatpush2.bf16.msra.mxu0 0
    %331 = vmatprep.subr.bf16.mxu0 0
    %332 = vmatpush2.bf16.msra.mxu0 0
    %333 = vmatprep.subr.bf16.mxu0 0
    %334 = vmatpush2.bf16.msra.mxu0 0
    %335 = vmatprep.subr.bf16.mxu0 0
    %336 = vmatpush2.bf16.msra.mxu0 0
    %337 = vmatprep.subr.bf16.mxu0 0
    %338 = vmatpush2.bf16.msra.mxu0 0
    %339 = vmatprep.mubr.bf16.mxu0 0
    %340 = vmatmul.mubr.bf16.gmra.mxu0 %v195
    %v341 = vpop.f32.mrf.mxu0
    %v342 = vadd.f32 0.0, %v341
    %v343 = vpop.f32.mrf.mxu0
    %v344 = vadd.f32 0.0, %v343
    %v345 = vpop.f32.mrf.mxu0
    %v346 = vadd.f32 0.0, %v345
    %v347 = vpop.f32.mrf.mxu0
    %v348 = vadd.f32 0.0, %v347
    %349 = vmatprep.mubr.bf16.mxu0 0
    %350 = vmatmul.mubr.bf16.gmra.mxu0 %v196
    %v351 = vpop.f32.mrf.mxu0
    %v352 = vadd.f32 0.0, %v351
    %v353 = vpop.f32.mrf.mxu0
    %v354 = vadd.f32 0.0, %v353
    %v355 = vpop.f32.mrf.mxu0
    %v356 = vadd.f32 0.0, %v355
    %v357 = vpop.f32.mrf.mxu0
    %v358 = vadd.f32 0.0, %v357
    %359 = vmatprep.mubr.bf16.mxu0 0
    %360 = vmatmul.mubr.bf16.gmra.mxu0 %v197
    %v361 = vpop.f32.mrf.mxu0
    %v362 = vadd.f32 0.0, %v361
    %v363 = vpop.f32.mrf.mxu0
    %v364 = vadd.f32 0.0, %v363
    %v365 = vpop.f32.mrf.mxu0
    %v366 = vadd.f32 0.0, %v365
    %v367 = vpop.f32.mrf.mxu0
    %v368 = vadd.f32 0.0, %v367
    %369 = vmatprep.mubr.bf16.mxu0 0
    %370 = vmatmul.mubr.bf16.gmra.mxu0 %v198
    %v371 = vpop.f32.mrf.mxu0
    %v372 = vadd.f32 0.0, %v371
    %v373 = vpop.f32.mrf.mxu0
    %v374 = vadd.f32 0.0, %v373
    %v375 = vpop.f32.mrf.mxu0
    %v376 = vadd.f32 0.0, %v375
    %v377 = vpop.f32.mrf.mxu0
    %v378 = vadd.f32 0.0, %v377
    %379 = vmatprep.mubr.bf16.mxu0 0
    %380 = vmatmul.mubr.bf16.gmra.mxu0 %v199
    %v381 = vpop.f32.mrf.mxu0
    %v382 = vadd.f32 0.0, %v381
    %v383 = vpop.f32.mrf.mxu0
    %v384 = vadd.f32 0.0, %v383
    %v385 = vpop.f32.mrf.mxu0
    %v386 = vadd.f32 0.0, %v385
    %v387 = vpop.f32.mrf.mxu0
    %v388 = vadd.f32 0.0, %v387
    %389 = vmatprep.mubr.bf16.mxu0 0
    %390 = vmatmul.mubr.bf16.gmra.mxu0 %v200
    %v391 = vpop.f32.mrf.mxu0
    %v392 = vadd.f32 0.0, %v391
    %v393 = vpop.f32.mrf.mxu0
    %v394 = vadd.f32 0.0, %v393
    %v395 = vpop.f32.mrf.mxu0
    %v396 = vadd.f32 0.0, %v395
    %v397 = vpop.f32.mrf.mxu0
    %v398 = vadd.f32 0.0, %v397
    %399 = vmatprep.mubr.bf16.mxu0 0
    %400 = vmatmul.mubr.bf16.gmra.mxu0 %v201
    %v401 = vpop.f32.mrf.mxu0
    %v402 = vadd.f32 0.0, %v401
    %v403 = vpop.f32.mrf.mxu0
    %v404 = vadd.f32 0.0, %v403
    %v405 = vpop.f32.mrf.mxu0
    %v406 = vadd.f32 0.0, %v405
    %v407 = vpop.f32.mrf.mxu0
    %v408 = vadd.f32 0.0, %v407
    %409 = vmatprep.mubr.bf16.mxu0 0
    %410 = vmatmul.mubr.bf16.gmra.mxu0 %v202
    %v411 = vpop.f32.mrf.mxu0
    %v412 = vadd.f32 0.0, %v411
    %v413 = vpop.f32.mrf.mxu0
    %v414 = vadd.f32 0.0, %v413
    %v415 = vpop.f32.mrf.mxu0
    %v416 = vadd.f32 0.0, %v415
    %v417 = vpop.f32.mrf.mxu0
    %v418 = vadd.f32 0.0, %v417
    %419 = vmatprep.mubr.bf16.mxu0 0
    %420 = vmatmul.mubr.bf16.gmra.mxu0 %v203
    %v421 = vpop.f32.mrf.mxu0
    %v422 = vadd.f32 0.0, %v421
    %v423 = vpop.f32.mrf.mxu0
    %v424 = vadd.f32 0.0, %v423
    %v425 = vpop.f32.mrf.mxu0
    %v426 = vadd.f32 0.0, %v425
    %v427 = vpop.f32.mrf.mxu0
    %v428 = vadd.f32 0.0, %v427
    %429 = vmatprep.mubr.bf16.mxu0 0
    %430 = vmatmul.mubr.bf16.gmra.mxu0 %v204
    %v431 = vpop.f32.mrf.mxu0
    %v432 = vadd.f32 0.0, %v431
    %v433 = vpop.f32.mrf.mxu0
    %v434 = vadd.f32 0.0, %v433
    %v435 = vpop.f32.mrf.mxu0
    %v436 = vadd.f32 0.0, %v435
    %v437 = vpop.f32.mrf.mxu0
    %v438 = vadd.f32 0.0, %v437
    %439 = vmatprep.mubr.bf16.mxu0 0
    %440 = vmatmul.mubr.bf16.gmra.mxu0 %v205
    %v441 = vpop.f32.mrf.mxu0
    %v442 = vadd.f32 0.0, %v441
    %v443 = vpop.f32.mrf.mxu0
    %v444 = vadd.f32 0.0, %v443
    %v445 = vpop.f32.mrf.mxu0
    %v446 = vadd.f32 0.0, %v445
    %v447 = vpop.f32.mrf.mxu0
    %v448 = vadd.f32 0.0, %v447
    %449 = vmatprep.mubr.bf16.mxu0 0
    %450 = vmatmul.mubr.bf16.gmra.mxu0 %v206
    %v451 = vpop.f32.mrf.mxu0
    %v452 = vadd.f32 0.0, %v451
    %v453 = vpop.f32.mrf.mxu0
    %v454 = vadd.f32 0.0, %v453
    %v455 = vpop.f32.mrf.mxu0
    %v456 = vadd.f32 0.0, %v455
    %v457 = vpop.f32.mrf.mxu0
    %v458 = vadd.f32 0.0, %v457
    %459 = vmatprep.mubr.bf16.mxu0 0
    %460 = vmatmul.mubr.bf16.gmra.mxu0 %v207
    %v461 = vpop.f32.mrf.mxu0
    %v462 = vadd.f32 0.0, %v461
    %v463 = vpop.f32.mrf.mxu0
    %v464 = vadd.f32 0.0, %v463
    %v465 = vpop.f32.mrf.mxu0
    %v466 = vadd.f32 0.0, %v465
    %v467 = vpop.f32.mrf.mxu0
    %v468 = vadd.f32 0.0, %v467
    %469 = vmatprep.mubr.bf16.mxu0 0
    %470 = vmatmul.mubr.bf16.gmra.mxu0 %v208
    %v471 = vpop.f32.mrf.mxu0
    %v472 = vadd.f32 0.0, %v471
    %v473 = vpop.f32.mrf.mxu0
    %v474 = vadd.f32 0.0, %v473
    %v475 = vpop.f32.mrf.mxu0
    %v476 = vadd.f32 0.0, %v475
    %v477 = vpop.f32.mrf.mxu0
    %v478 = vadd.f32 0.0, %v477
    %479 = vmatprep.mubr.bf16.mxu0 0
    %480 = vmatmul.mubr.bf16.gmra.mxu0 %v209
    %v481 = vpop.f32.mrf.mxu0
    %v482 = vadd.f32 0.0, %v481
    %v483 = vpop.f32.mrf.mxu0
    %v484 = vadd.f32 0.0, %v483
    %v485 = vpop.f32.mrf.mxu0
    %v486 = vadd.f32 0.0, %v485
    %v487 = vpop.f32.mrf.mxu0
    %v488 = vadd.f32 0.0, %v487
    %489 = vmatprep.mubr.bf16.mxu0 0
    %490 = vmatmul.mubr.bf16.gmra.mxu0 %v210
    %v491 = vpop.f32.mrf.mxu0
    %v492 = vadd.f32 0.0, %v491
    %v493 = vpop.f32.mrf.mxu0
    %v494 = vadd.f32 0.0, %v493
    %v495 = vpop.f32.mrf.mxu0
    %v496 = vadd.f32 0.0, %v495
    %v497 = vpop.f32.mrf.mxu0
    %v498 = vadd.f32 0.0, %v497
    %499 = vdwg.mxu0
    %v500 = vlaneseq
    %v501 = vshrl.u32 %v500, 7
    %v502 = vadd.s32 %v501, 8
    %v503 = vadd.s32 %v501, 16
    %v504 = vadd.s32 %v501, 24
    %v505 = vadd.s32 %v501, 32
    %v506 = vadd.s32 %v501, 40
    %v507 = vadd.s32 %v501, 48
    %v508 = vadd.s32 %v501, 56
    %v509 = vadd.s32 %v501, 64
    %v510 = vadd.s32 %v501, 72
    %v511 = vadd.s32 %v501, 80
    %v512 = vadd.s32 %v501, 88
    %v513 = vadd.s32 %v501, 96
    %v514 = vadd.s32 %v501, 104
    %v515 = vadd.s32 %v501, 112
    %v516 = vadd.s32 %v501, 120
    %v517 = vadd.s32 %v501, 128
    %v518 = vadd.s32 %v501, 136
    %v519 = vadd.s32 %v501, 144
    %v520 = vadd.s32 %v501, 152
    %v521 = vadd.s32 %v501, 160
    %v522 = vadd.s32 %v501, 168
    %v523 = vadd.s32 %v501, 176
    %v524 = vadd.s32 %v501, 184
    %v525 = vadd.s32 %v501, 192
    %v526 = vadd.s32 %v501, 200
    %v527 = vadd.s32 %v501, 208
    %v528 = vadd.s32 %v501, 216
    %v529 = vadd.s32 %v501, 224
    %v530 = vadd.s32 %v501, 232
    %v531 = vadd.s32 %v501, 240
    %v532 = vadd.s32 %v501, 248
    %vm533 = vcmp.lt.s32.totalorder %v501, 256
    %vm534 = vcmp.lt.s32.totalorder %v502, 256
    %vm535 = vcmp.lt.s32.totalorder %v503, 256
    %vm536 = vcmp.lt.s32.totalorder %v504, 256
    %vm537 = vcmp.lt.s32.totalorder %v505, 256
    %vm538 = vcmp.lt.s32.totalorder %v506, 256
    %vm539 = vcmp.lt.s32.totalorder %v507, 256
    %vm540 = vcmp.lt.s32.totalorder %v508, 256
    %vm541 = vcmp.lt.s32.totalorder %v509, 256
    %vm542 = vcmp.lt.s32.totalorder %v510, 256
    %vm543 = vcmp.lt.s32.totalorder %v511, 256
    %vm544 = vcmp.lt.s32.totalorder %v512, 256
    %vm545 = vcmp.lt.s32.totalorder %v513, 256
    %vm546 = vcmp.lt.s32.totalorder %v514, 256
    %vm547 = vcmp.lt.s32.totalorder %v515, 256
    %vm548 = vcmp.lt.s32.totalorder %v516, 256
    %vm549 = vcmp.lt.s32.totalorder %v517, 256
    %vm550 = vcmp.lt.s32.totalorder %v518, 256
    %vm551 = vcmp.lt.s32.totalorder %v519, 256
    %vm552 = vcmp.lt.s32.totalorder %v520, 256
    %vm553 = vcmp.lt.s32.totalorder %v521, 256
    %vm554 = vcmp.lt.s32.totalorder %v522, 256
    %vm555 = vcmp.lt.s32.totalorder %v523, 256
    %vm556 = vcmp.lt.s32.totalorder %v524, 256
    %vm557 = vcmp.lt.s32.totalorder %v525, 256
    %vm558 = vcmp.lt.s32.totalorder %v526, 256
    %vm559 = vcmp.lt.s32.totalorder %v527, 256
    %vm560 = vcmp.lt.s32.totalorder %v528, 256
    %vm561 = vcmp.lt.s32.totalorder %v529, 256
    %vm562 = vcmp.lt.s32.totalorder %v530, 256
    %vm563 = vcmp.lt.s32.totalorder %v531, 256
    %vm564 = vcmp.lt.s32.totalorder %v532, 256
    %v565 = vsel %vm533, %v342, 0.0
    %v566 = vsel %vm533, %v344, 0.0
    %v567 = vsel %vm534, %v346, 0.0
    %v568 = vsel %vm534, %v348, 0.0
    %v569 = vsel %vm535, %v352, 0.0
    %v570 = vsel %vm535, %v354, 0.0
    %v571 = vsel %vm536, %v356, 0.0
    %v572 = vsel %vm536, %v358, 0.0
    %v573 = vsel %vm537, %v362, 0.0
    %v574 = vsel %vm537, %v364, 0.0
    %v575 = vsel %vm538, %v366, 0.0
    %v576 = vsel %vm538, %v368, 0.0
    %v577 = vsel %vm539, %v372, 0.0
    %v578 = vsel %vm539, %v374, 0.0
    %v579 = vsel %vm540, %v376, 0.0
    %v580 = vsel %vm540, %v378, 0.0
    %v581 = vsel %vm541, %v382, 0.0
    %v582 = vsel %vm541, %v384, 0.0
    %v583 = vsel %vm542, %v386, 0.0
    %v584 = vsel %vm542, %v388, 0.0
    %v585 = vsel %vm543, %v392, 0.0
    %v586 = vsel %vm543, %v394, 0.0
    %v587 = vsel %vm544, %v396, 0.0
    %v588 = vsel %vm544, %v398, 0.0
    %v589 = vsel %vm545, %v402, 0.0
    %v590 = vsel %vm545, %v404, 0.0
    %v591 = vsel %vm546, %v406, 0.0
    %v592 = vsel %vm546, %v408, 0.0
    %v593 = vsel %vm547, %v412, 0.0
    %v594 = vsel %vm547, %v414, 0.0
    %v595 = vsel %vm548, %v416, 0.0
    %v596 = vsel %vm548, %v418, 0.0
    %v597 = vsel %vm549, %v422, 0.0
    %v598 = vsel %vm549, %v424, 0.0
    %v599 = vsel %vm550, %v426, 0.0
    %v600 = vsel %vm550, %v428, 0.0
    %v601 = vsel %vm551, %v432, 0.0
    %v602 = vsel %vm551, %v434, 0.0
    %v603 = vsel %vm552, %v436, 0.0
    %v604 = vsel %vm552, %v438, 0.0
    %v605 = vsel %vm553, %v442, 0.0
    %v606 = vsel %vm553, %v444, 0.0
    %v607 = vsel %vm554, %v446, 0.0
    %v608 = vsel %vm554, %v448, 0.0
    %v609 = vsel %vm555, %v452, 0.0
    %v610 = vsel %vm555, %v454, 0.0
    %v611 = vsel %vm556, %v456, 0.0
    %v612 = vsel %vm556, %v458, 0.0
    %v613 = vsel %vm557, %v462, 0.0
    %v614 = vsel %vm557, %v464, 0.0
    %v615 = vsel %vm558, %v466, 0.0
    %v616 = vsel %vm558, %v468, 0.0
    %v617 = vsel %vm559, %v472, 0.0
    %v618 = vsel %vm559, %v474, 0.0
    %v619 = vsel %vm560, %v476, 0.0
    %v620 = vsel %vm560, %v478, 0.0
    %v621 = vsel %vm561, %v482, 0.0
    %v622 = vsel %vm561, %v484, 0.0
    %v623 = vsel %vm562, %v486, 0.0
    %v624 = vsel %vm562, %v488, 0.0
    %v625 = vsel %vm563, %v492, 0.0
    %v626 = vsel %vm563, %v494, 0.0
    %v627 = vsel %vm564, %v496, 0.0
    %v628 = vsel %vm564, %v498, 0.0
    %v629 = vadd.f32 %v565, %v567
    %v630 = vadd.f32 %v629, %v569
    %v631 = vadd.f32 %v630, %v571
    %v632 = vadd.f32 %v631, %v573
    %v633 = vadd.f32 %v632, %v575
    %v634 = vadd.f32 %v633, %v577
    %v635 = vadd.f32 %v634, %v579
    %v636 = vadd.f32 %v635, %v581
    %v637 = vadd.f32 %v636, %v583
    %v638 = vadd.f32 %v637, %v585
    %v639 = vadd.f32 %v638, %v587
    %v640 = vadd.f32 %v639, %v589
    %v641 = vadd.f32 %v640, %v591
    %v642 = vadd.f32 %v641, %v593
    %v643 = vadd.f32 %v642, %v595
    %v644 = vadd.f32 %v643, %v597
    %v645 = vadd.f32 %v644, %v599
    %v646 = vadd.f32 %v645, %v601
    %v647 = vadd.f32 %v646, %v603
    %v648 = vadd.f32 %v647, %v605
    %v649 = vadd.f32 %v648, %v607
    %v650 = vadd.f32 %v649, %v609
    %v651 = vadd.f32 %v650, %v611
    %v652 = vadd.f32 %v651, %v613
    %v653 = vadd.f32 %v652, %v615
    %v654 = vadd.f32 %v653, %v617
    %v655 = vadd.f32 %v654, %v619
    %v656 = vadd.f32 %v655, %v621
    %v657 = vadd.f32 %v656, %v623
    %v658 = vadd.f32 %v657, %v625
    %v659 = vadd.f32 %v658, %v627
    %v660 = vrot.slane %v659, 4
    %v661 = vadd.f32 %v659, %v660
    %v662 = vrot.slane %v661, 2
    %v663 = vadd.f32 %v661, %v662
    %v664 = vrot.slane %v663, 1
    %v665 = vadd.f32 %v663, %v664
    %v666 = vadd.f32 %v566, %v568
    %v667 = vadd.f32 %v666, %v570
    %v668 = vadd.f32 %v667, %v572
    %v669 = vadd.f32 %v668, %v574
    %v670 = vadd.f32 %v669, %v576
    %v671 = vadd.f32 %v670, %v578
    %v672 = vadd.f32 %v671, %v580
    %v673 = vadd.f32 %v672, %v582
    %v674 = vadd.f32 %v673, %v584
    %v675 = vadd.f32 %v674, %v586
    %v676 = vadd.f32 %v675, %v588
    %v677 = vadd.f32 %v676, %v590
    %v678 = vadd.f32 %v677, %v592
    %v679 = vadd.f32 %v678, %v594
    %v680 = vadd.f32 %v679, %v596
    %v681 = vadd.f32 %v680, %v598
    %v682 = vadd.f32 %v681, %v600
    %v683 = vadd.f32 %v682, %v602
    %v684 = vadd.f32 %v683, %v604
    %v685 = vadd.f32 %v684, %v606
    %v686 = vadd.f32 %v685, %v608
    %v687 = vadd.f32 %v686, %v610
    %v688 = vadd.f32 %v687, %v612
    %v689 = vadd.f32 %v688, %v614
    %v690 = vadd.f32 %v689, %v616
    %v691 = vadd.f32 %v690, %v618
    %v692 = vadd.f32 %v691, %v620
    %v693 = vadd.f32 %v692, %v622
    %v694 = vadd.f32 %v693, %v624
    %v695 = vadd.f32 %v694, %v626
    %v696 = vadd.f32 %v695, %v628
    %v697 = vrot.slane %v696, 4
    %v698 = vadd.f32 %v696, %v697
    %v699 = vrot.slane %v698, 2
    %v700 = vadd.f32 %v698, %v699
    %v701 = vrot.slane %v700, 1
    %v702 = vadd.f32 %v700, %v701
    %v703 = vmul.f32 %v665, 0.00390625
    %v704 = vmul.f32 %v702, 0.00390625
    %v705 = vsub.f32 %v342, %v703
    %v706 = vsub.f32 %v344, %v704
    %v707 = vsub.f32 %v346, %v703
    %v708 = vsub.f32 %v348, %v704
    %v709 = vsub.f32 %v352, %v703
    %v710 = vsub.f32 %v354, %v704
    %v711 = vsub.f32 %v356, %v703
    %v712 = vsub.f32 %v358, %v704
    %v713 = vsub.f32 %v362, %v703
    %v714 = vsub.f32 %v364, %v704
    %v715 = vsub.f32 %v366, %v703
    %v716 = vsub.f32 %v368, %v704
    %v717 = vsub.f32 %v372, %v703
    %v718 = vsub.f32 %v374, %v704
    %v719 = vsub.f32 %v376, %v703
    %v720 = vsub.f32 %v378, %v704
    %v721 = vsub.f32 %v382, %v703
    %v722 = vsub.f32 %v384, %v704
    %v723 = vsub.f32 %v386, %v703
    %v724 = vsub.f32 %v388, %v704
    %v725 = vsub.f32 %v392, %v703
    %v726 = vsub.f32 %v394, %v704
    %v727 = vsub.f32 %v396, %v703
    %v728 = vsub.f32 %v398, %v704
    %v729 = vsub.f32 %v402, %v703
    %v730 = vsub.f32 %v404, %v704
    %v731 = vsub.f32 %v406, %v703
    %v732 = vsub.f32 %v408, %v704
    %v733 = vsub.f32 %v412, %v703
    %v734 = vsub.f32 %v414, %v704
    %v735 = vsub.f32 %v416, %v703
    %v736 = vsub.f32 %v418, %v704
    %v737 = vsub.f32 %v422, %v703
    %v738 = vsub.f32 %v424, %v704
    %v739 = vsub.f32 %v426, %v703
    %v740 = vsub.f32 %v428, %v704
    %v741 = vsub.f32 %v432, %v703
    %v742 = vsub.f32 %v434, %v704
    %v743 = vsub.f32 %v436, %v703
    %v744 = vsub.f32 %v438, %v704
    %v745 = vsub.f32 %v442, %v703
    %v746 = vsub.f32 %v444, %v704
    %v747 = vsub.f32 %v446, %v703
    %v748 = vsub.f32 %v448, %v704
    %v749 = vsub.f32 %v452, %v703
    %v750 = vsub.f32 %v454, %v704
    %v751 = vsub.f32 %v456, %v703
    %v752 = vsub.f32 %v458, %v704
    %v753 = vsub.f32 %v462, %v703
    %v754 = vsub.f32 %v464, %v704
    %v755 = vsub.f32 %v466, %v703
    %v756 = vsub.f32 %v468, %v704
    %v757 = vsub.f32 %v472, %v703
    %v758 = vsub.f32 %v474, %v704
    %v759 = vsub.f32 %v476, %v703
    %v760 = vsub.f32 %v478, %v704
    %v761 = vsub.f32 %v482, %v703
    %v762 = vsub.f32 %v484, %v704
    %v763 = vsub.f32 %v486, %v703
    %v764 = vsub.f32 %v488, %v704
    %v765 = vsub.f32 %v492, %v703
    %v766 = vsub.f32 %v494, %v704
    %v767 = vsub.f32 %v496, %v703
    %v768 = vsub.f32 %v498, %v704
    %v769 = vsel %vm533, %v705, 0.0
    %v770 = vsel %vm533, %v706, 0.0
    %v771 = vsel %vm534, %v707, 0.0
    %v772 = vsel %vm534, %v708, 0.0
    %v773 = vsel %vm535, %v709, 0.0
    %v774 = vsel %vm535, %v710, 0.0
    %v775 = vsel %vm536, %v711, 0.0
    %v776 = vsel %vm536, %v712, 0.0
    %v777 = vsel %vm537, %v713, 0.0
    %v778 = vsel %vm537, %v714, 0.0
    %v779 = vsel %vm538, %v715, 0.0
    %v780 = vsel %vm538, %v716, 0.0
    %v781 = vsel %vm539, %v717, 0.0
    %v782 = vsel %vm539, %v718, 0.0
    %v783 = vsel %vm540, %v719, 0.0
    %v784 = vsel %vm540, %v720, 0.0
    %v785 = vsel %vm541, %v721, 0.0
    %v786 = vsel %vm541, %v722, 0.0
    %v787 = vsel %vm542, %v723, 0.0
    %v788 = vsel %vm542, %v724, 0.0
    %v789 = vsel %vm543, %v725, 0.0
    %v790 = vsel %vm543, %v726, 0.0
    %v791 = vsel %vm544, %v727, 0.0
    %v792 = vsel %vm544, %v728, 0.0
    %v793 = vsel %vm545, %v729, 0.0
    %v794 = vsel %vm545, %v730, 0.0
    %v795 = vsel %vm546, %v731, 0.0
    %v796 = vsel %vm546, %v732, 0.0
    %v797 = vsel %vm547, %v733, 0.0
    %v798 = vsel %vm547, %v734, 0.0
    %v799 = vsel %vm548, %v735, 0.0
    %v800 = vsel %vm548, %v736, 0.0
    %v801 = vsel %vm549, %v737, 0.0
    %v802 = vsel %vm549, %v738, 0.0
    %v803 = vsel %vm550, %v739, 0.0
    %v804 = vsel %vm550, %v740, 0.0
    %v805 = vsel %vm551, %v741, 0.0
    %v806 = vsel %vm551, %v742, 0.0
    %v807 = vsel %vm552, %v743, 0.0
    %v808 = vsel %vm552, %v744, 0.0
    %v809 = vsel %vm553, %v745, 0.0
    %v810 = vsel %vm553, %v746, 0.0
    %v811 = vsel %vm554, %v747, 0.0
    %v812 = vsel %vm554, %v748, 0.0
    %v813 = vsel %vm555, %v749, 0.0
    %v814 = vsel %vm555, %v750, 0.0
    %v815 = vsel %vm556, %v751, 0.0
    %v816 = vsel %vm556, %v752, 0.0
    %v817 = vsel %vm557, %v753, 0.0
    %v818 = vsel %vm557, %v754, 0.0
    %v819 = vsel %vm558, %v755, 0.0
    %v820 = vsel %vm558, %v756, 0.0
    %v821 = vsel %vm559, %v757, 0.0
    %v822 = vsel %vm559, %v758, 0.0
    %v823 = vsel %vm560, %v759, 0.0
    %v824 = vsel %vm560, %v760, 0.0
    %v825 = vsel %vm561, %v761, 0.0
    %v826 = vsel %vm561, %v762, 0.0
    %v827 = vsel %vm562, %v763, 0.0
    %v828 = vsel %vm562, %v764, 0.0
    %v829 = vsel %vm563, %v765, 0.0
    %v830 = vsel %vm563, %v766, 0.0
    %v831 = vsel %vm564, %v767, 0.0
    %v832 = vsel %vm564, %v768, 0.0
    %v833 = vmul.f32 %v769, %v769
    %v834 = vmul.f32 %v770, %v770
    %v835 = vmul.f32 %v771, %v771
    %v836 = vmul.f32 %v772, %v772
    %v837 = vmul.f32 %v773, %v773
    %v838 = vmul.f32 %v774, %v774
    %v839 = vmul.f32 %v775, %v775
    %v840 = vmul.f32 %v776, %v776
    %v841 = vmul.f32 %v777, %v777
    %v842 = vmul.f32 %v778, %v778
    %v843 = vmul.f32 %v779, %v779
    %v844 = vmul.f32 %v780, %v780
    %v845 = vmul.f32 %v781, %v781
    %v846 = vmul.f32 %v782, %v782
    %v847 = vmul.f32 %v783, %v783
    %v848 = vmul.f32 %v784, %v784
    %v849 = vmul.f32 %v785, %v785
    %v850 = vmul.f32 %v786, %v786
    %v851 = vmul.f32 %v787, %v787
    %v852 = vmul.f32 %v788, %v788
    %v853 = vmul.f32 %v789, %v789
    %v854 = vmul.f32 %v790, %v790
    %v855 = vmul.f32 %v791, %v791
    %v856 = vmul.f32 %v792, %v792
    %v857 = vmul.f32 %v793, %v793
    %v858 = vmul.f32 %v794, %v794
    %v859 = vmul.f32 %v795, %v795
    %v860 = vmul.f32 %v796, %v796
    %v861 = vmul.f32 %v797, %v797
    %v862 = vmul.f32 %v798, %v798
    %v863 = vmul.f32 %v799, %v799
    %v864 = vmul.f32 %v800, %v800
    %v865 = vmul.f32 %v801, %v801
    %v866 = vmul.f32 %v802, %v802
    %v867 = vmul.f32 %v803, %v803
    %v868 = vmul.f32 %v804, %v804
    %v869 = vmul.f32 %v805, %v805
    %v870 = vmul.f32 %v806, %v806
    %v871 = vmul.f32 %v807, %v807
    %v872 = vmul.f32 %v808, %v808
    %v873 = vmul.f32 %v809, %v809
    %v874 = vmul.f32 %v810, %v810
    %v875 = vmul.f32 %v811, %v811
    %v876 = vmul.f32 %v812, %v812
    %v877 = vmul.f32 %v813, %v813
    %v878 = vmul.f32 %v814, %v814
    %v879 = vmul.f32 %v815, %v815
    %v880 = vmul.f32 %v816, %v816
    %v881 = vmul.f32 %v817, %v817
    %v882 = vmul.f32 %v818, %v818
    %v883 = vmul.f32 %v819, %v819
    %v884 = vmul.f32 %v820, %v820
    %v885 = vmul.f32 %v821, %v821
    %v886 = vmul.f32 %v822, %v822
    %v887 = vmul.f32 %v823, %v823
    %v888 = vmul.f32 %v824, %v824
    %v889 = vmul.f32 %v825, %v825
    %v890 = vmul.f32 %v826, %v826
    %v891 = vmul.f32 %v827, %v827
    %v892 = vmul.f32 %v828, %v828
    %v893 = vmul.f32 %v829, %v829
    %v894 = vmul.f32 %v830, %v830
    %v895 = vmul.f32 %v831, %v831
    %v896 = vmul.f32 %v832, %v832
    %v897 = vadd.f32 %v833, %v835
    %v898 = vadd.f32 %v897, %v837
    %v899 = vadd.f32 %v898, %v839
    %v900 = vadd.f32 %v899, %v841
    %v901 = vadd.f32 %v900, %v843
    %v902 = vadd.f32 %v901, %v845
    %v903 = vadd.f32 %v902, %v847
    %v904 = vadd.f32 %v903, %v849
    %v905 = vadd.f32 %v904, %v851
    %v906 = vadd.f32 %v905, %v853
    %v907 = vadd.f32 %v906, %v855
    %v908 = vadd.f32 %v907, %v857
    %v909 = vadd.f32 %v908, %v859
    %v910 = vadd.f32 %v909, %v861
    %v911 = vadd.f32 %v910, %v863
    %v912 = vadd.f32 %v911, %v865
    %v913 = vadd.f32 %v912, %v867
    %v914 = vadd.f32 %v913, %v869
    %v915 = vadd.f32 %v914, %v871
    %v916 = vadd.f32 %v915, %v873
    %v917 = vadd.f32 %v916, %v875
    %v918 = vadd.f32 %v917, %v877
    %v919 = vadd.f32 %v918, %v879
    %v920 = vadd.f32 %v919, %v881
    %v921 = vadd.f32 %v920, %v883
    %v922 = vadd.f32 %v921, %v885
    %v923 = vadd.f32 %v922, %v887
    %v924 = vadd.f32 %v923, %v889
    %v925 = vadd.f32 %v924, %v891
    %v926 = vadd.f32 %v925, %v893
    %v927 = vadd.f32 %v926, %v895
    %v928 = vrot.slane %v927, 4
    %v929 = vadd.f32 %v927, %v928
    %v930 = vrot.slane %v929, 2
    %v931 = vadd.f32 %v929, %v930
    %v932 = vrot.slane %v931, 1
    %v933 = vadd.f32 %v931, %v932
    %v934 = vadd.f32 %v834, %v836
    %v935 = vadd.f32 %v934, %v838
    %v936 = vadd.f32 %v935, %v840
    %v937 = vadd.f32 %v936, %v842
    %v938 = vadd.f32 %v937, %v844
    %v939 = vadd.f32 %v938, %v846
    %v940 = vadd.f32 %v939, %v848
    %v941 = vadd.f32 %v940, %v850
    %v942 = vadd.f32 %v941, %v852
    %v943 = vadd.f32 %v942, %v854
    %v944 = vadd.f32 %v943, %v856
    %v945 = vadd.f32 %v944, %v858
    %v946 = vadd.f32 %v945, %v860
    %v947 = vadd.f32 %v946, %v862
    %v948 = vadd.f32 %v947, %v864
    %v949 = vadd.f32 %v948, %v866
    %v950 = vadd.f32 %v949, %v868
    %v951 = vadd.f32 %v950, %v870
    %v952 = vadd.f32 %v951, %v872
    %v953 = vadd.f32 %v952, %v874
    %v954 = vadd.f32 %v953, %v876
    %v955 = vadd.f32 %v954, %v878
    %v956 = vadd.f32 %v955, %v880
    %v957 = vadd.f32 %v956, %v882
    %v958 = vadd.f32 %v957, %v884
    %v959 = vadd.f32 %v958, %v886
    %v960 = vadd.f32 %v959, %v888
    %v961 = vadd.f32 %v960, %v890
    %v962 = vadd.f32 %v961, %v892
    %v963 = vadd.f32 %v962, %v894
    %v964 = vadd.f32 %v963, %v896
    %v965 = vrot.slane %v964, 4
    %v966 = vadd.f32 %v964, %v965
    %v967 = vrot.slane %v966, 2
    %v968 = vadd.f32 %v966, %v967
    %v969 = vrot.slane %v968, 1
    %v970 = vadd.f32 %v968, %v969
    %v971 = vmul.f32 %v933, 0.00390625
    %v972 = vmul.f32 %v970, 0.00390625
    %v973 = vadd.f32 %v971, 1e-05
    %v974 = vadd.f32 %v972, 1e-05
    %v975 = vrsqrt.pop %v973
    %v976 = vrsqrt.pop %v974
    %v977 = vld [vmem:[#allocation7] sm:$0x3]
    %v979 = vlaneseq
    %v980 = vshrl.u32 %v979, 7
    %v981 = vsub.s32 0, %v980
    %v982 = vrot.slane %v977, %v981
    %v983 = vlaneseq
    %v984 = vshrl.u32 %v983, 7
    %v985 = vsub.s32 1, %v984
    %v986 = vrot.slane %v977, %v985
    %v989 = vmul.f32 %v975, %v982
    %v990 = vmul.f32 %v976, %v986
    %v991 = vlaneseq
    %v992 = vshrl.u32 %v991, 7
    %v993 = vsub.s32 0, %v992
    %v994 = vrot.slane %v989, %v993
    %v995 = vlaneseq
    %v996 = vshrl.u32 %v995, 7
    %v997 = vsub.s32 0, %v996
    %v998 = vrot.slane %v990, %v997
    %v999 = vmul.f32 %v769, %v994
    %v1000 = vmul.f32 %v770, %v998
    %v1001 = vmul.f32 %v771, %v994
    %v1002 = vmul.f32 %v772, %v998
    %v1003 = vmul.f32 %v773, %v994
    %v1004 = vmul.f32 %v774, %v998
    %v1005 = vmul.f32 %v775, %v994
    %v1006 = vmul.f32 %v776, %v998
    %v1007 = vmul.f32 %v777, %v994
    %v1008 = vmul.f32 %v778, %v998
    %v1009 = vmul.f32 %v779, %v994
    %v1010 = vmul.f32 %v780, %v998
    %v1011 = vmul.f32 %v781, %v994
    %v1012 = vmul.f32 %v782, %v998
    %v1013 = vmul.f32 %v783, %v994
    %v1014 = vmul.f32 %v784, %v998
    %v1015 = vmul.f32 %v785, %v994
    %v1016 = vmul.f32 %v786, %v998
    %v1017 = vmul.f32 %v787, %v994
    %v1018 = vmul.f32 %v788, %v998
    %v1019 = vmul.f32 %v789, %v994
    %v1020 = vmul.f32 %v790, %v998
    %v1021 = vmul.f32 %v791, %v994
    %v1022 = vmul.f32 %v792, %v998
    %v1023 = vmul.f32 %v793, %v994
    %v1024 = vmul.f32 %v794, %v998
    %v1025 = vmul.f32 %v795, %v994
    %v1026 = vmul.f32 %v796, %v998
    %v1027 = vmul.f32 %v797, %v994
    %v1028 = vmul.f32 %v798, %v998
    %v1029 = vmul.f32 %v799, %v994
    %v1030 = vmul.f32 %v800, %v998
    %v1031 = vmul.f32 %v801, %v994
    %v1032 = vmul.f32 %v802, %v998
    %v1033 = vmul.f32 %v803, %v994
    %v1034 = vmul.f32 %v804, %v998
    %v1035 = vmul.f32 %v805, %v994
    %v1036 = vmul.f32 %v806, %v998
    %v1037 = vmul.f32 %v807, %v994
    %v1038 = vmul.f32 %v808, %v998
    %v1039 = vmul.f32 %v809, %v994
    %v1040 = vmul.f32 %v810, %v998
    %v1041 = vmul.f32 %v811, %v994
    %v1042 = vmul.f32 %v812, %v998
    %v1043 = vmul.f32 %v813, %v994
    %v1044 = vmul.f32 %v814, %v998
    %v1045 = vmul.f32 %v815, %v994
    %v1046 = vmul.f32 %v816, %v998
    %v1047 = vmul.f32 %v817, %v994
    %v1048 = vmul.f32 %v818, %v998
    %v1049 = vmul.f32 %v819, %v994
    %v1050 = vmul.f32 %v820, %v998
    %v1051 = vmul.f32 %v821, %v994
    %v1052 = vmul.f32 %v822, %v998
    %v1053 = vmul.f32 %v823, %v994
    %v1054 = vmul.f32 %v824, %v998
    %v1055 = vmul.f32 %v825, %v994
    %v1056 = vmul.f32 %v826, %v998
    %v1057 = vmul.f32 %v827, %v994
    %v1058 = vmul.f32 %v828, %v998
    %v1059 = vmul.f32 %v829, %v994
    %v1060 = vmul.f32 %v830, %v998
    %v1061 = vmul.f32 %v831, %v994
    %v1062 = vmul.f32 %v832, %v998
    %v1063 = vld [vmem:[#allocation8] sm:$0x3]
    %v1065 = vlaneseq
    %v1066 = vshrl.u32 %v1065, 7
    %v1067 = vsub.s32 0, %v1066
    %v1068 = vrot.slane %v1063, %v1067
    %v1069 = vlaneseq
    %v1070 = vshrl.u32 %v1069, 7
    %v1071 = vsub.s32 1, %v1070
    %v1072 = vrot.slane %v1063, %v1071
    %v1075 = vadd.f32 %v999, %v1068
    %v1076 = vadd.f32 %v1000, %v1072
    %v1077 = vadd.f32 %v1001, %v1068
    %v1078 = vadd.f32 %v1002, %v1072
    %v1079 = vadd.f32 %v1003, %v1068
    %v1080 = vadd.f32 %v1004, %v1072
    %v1081 = vadd.f32 %v1005, %v1068
    %v1082 = vadd.f32 %v1006, %v1072
    %v1083 = vadd.f32 %v1007, %v1068
    %v1084 = vadd.f32 %v1008, %v1072
    %v1085 = vadd.f32 %v1009, %v1068
    %v1086 = vadd.f32 %v1010, %v1072
    %v1087 = vadd.f32 %v1011, %v1068
    %v1088 = vadd.f32 %v1012, %v1072
    %v1089 = vadd.f32 %v1013, %v1068
    %v1090 = vadd.f32 %v1014, %v1072
    %v1091 = vadd.f32 %v1015, %v1068
    %v1092 = vadd.f32 %v1016, %v1072
    %v1093 = vadd.f32 %v1017, %v1068
    %v1094 = vadd.f32 %v1018, %v1072
    %v1095 = vadd.f32 %v1019, %v1068
    %v1096 = vadd.f32 %v1020, %v1072
    %v1097 = vadd.f32 %v1021, %v1068
    %v1098 = vadd.f32 %v1022, %v1072
    %v1099 = vadd.f32 %v1023, %v1068
    %v1100 = vadd.f32 %v1024, %v1072
    %v1101 = vadd.f32 %v1025, %v1068
    %v1102 = vadd.f32 %v1026, %v1072
    %v1103 = vadd.f32 %v1027, %v1068
    %v1104 = vadd.f32 %v1028, %v1072
    %v1105 = vadd.f32 %v1029, %v1068
    %v1106 = vadd.f32 %v1030, %v1072
    %v1107 = vadd.f32 %v1031, %v1068
    %v1108 = vadd.f32 %v1032, %v1072
    %v1109 = vadd.f32 %v1033, %v1068
    %v1110 = vadd.f32 %v1034, %v1072
    %v1111 = vadd.f32 %v1035, %v1068
    %v1112 = vadd.f32 %v1036, %v1072
    %v1113 = vadd.f32 %v1037, %v1068
    %v1114 = vadd.f32 %v1038, %v1072
    %v1115 = vadd.f32 %v1039, %v1068
    %v1116 = vadd.f32 %v1040, %v1072
    %v1117 = vadd.f32 %v1041, %v1068
    %v1118 = vadd.f32 %v1042, %v1072
    %v1119 = vadd.f32 %v1043, %v1068
    %v1120 = vadd.f32 %v1044, %v1072
    %v1121 = vadd.f32 %v1045, %v1068
    %v1122 = vadd.f32 %v1046, %v1072
    %v1123 = vadd.f32 %v1047, %v1068
    %v1124 = vadd.f32 %v1048, %v1072
    %v1125 = vadd.f32 %v1049, %v1068
    %v1126 = vadd.f32 %v1050, %v1072
    %v1127 = vadd.f32 %v1051, %v1068
    %v1128 = vadd.f32 %v1052, %v1072
    %v1129 = vadd.f32 %v1053, %v1068
    %v1130 = vadd.f32 %v1054, %v1072
    %v1131 = vadd.f32 %v1055, %v1068
    %v1132 = vadd.f32 %v1056, %v1072
    %v1133 = vadd.f32 %v1057, %v1068
    %v1134 = vadd.f32 %v1058, %v1072
    %v1135 = vadd.f32 %v1059, %v1068
    %v1136 = vadd.f32 %v1060, %v1072
    %v1137 = vadd.f32 %v1061, %v1068
    %v1138 = vadd.f32 %v1062, %v1072
    %v1139 = vmax.f32 %v1075, 0.0
    %v1140 = vmax.f32 %v1076, 0.0
    %v1141 = vmax.f32 %v1077, 0.0
    %v1142 = vmax.f32 %v1078, 0.0
    %v1143 = vmax.f32 %v1079, 0.0
    %v1144 = vmax.f32 %v1080, 0.0
    %v1145 = vmax.f32 %v1081, 0.0
    %v1146 = vmax.f32 %v1082, 0.0
    %v1147 = vmax.f32 %v1083, 0.0
    %v1148 = vmax.f32 %v1084, 0.0
    %v1149 = vmax.f32 %v1085, 0.0
    %v1150 = vmax.f32 %v1086, 0.0
    %v1151 = vmax.f32 %v1087, 0.0
    %v1152 = vmax.f32 %v1088, 0.0
    %v1153 = vmax.f32 %v1089, 0.0
    %v1154 = vmax.f32 %v1090, 0.0
    %v1155 = vmax.f32 %v1091, 0.0
    %v1156 = vmax.f32 %v1092, 0.0
    %v1157 = vmax.f32 %v1093, 0.0
    %v1158 = vmax.f32 %v1094, 0.0
    %v1159 = vmax.f32 %v1095, 0.0
    %v1160 = vmax.f32 %v1096, 0.0
    %v1161 = vmax.f32 %v1097, 0.0
    %v1162 = vmax.f32 %v1098, 0.0
    %v1163 = vmax.f32 %v1099, 0.0
    %v1164 = vmax.f32 %v1100, 0.0
    %v1165 = vmax.f32 %v1101, 0.0
    %v1166 = vmax.f32 %v1102, 0.0
    %v1167 = vmax.f32 %v1103, 0.0
    %v1168 = vmax.f32 %v1104, 0.0
    %v1169 = vmax.f32 %v1105, 0.0
    %v1170 = vmax.f32 %v1106, 0.0
    %v1171 = vmax.f32 %v1107, 0.0
    %v1172 = vmax.f32 %v1108, 0.0
    %v1173 = vmax.f32 %v1109, 0.0
    %v1174 = vmax.f32 %v1110, 0.0
    %v1175 = vmax.f32 %v1111, 0.0
    %v1176 = vmax.f32 %v1112, 0.0
    %v1177 = vmax.f32 %v1113, 0.0
    %v1178 = vmax.f32 %v1114, 0.0
    %v1179 = vmax.f32 %v1115, 0.0
    %v1180 = vmax.f32 %v1116, 0.0
    %v1181 = vmax.f32 %v1117, 0.0
    %v1182 = vmax.f32 %v1118, 0.0
    %v1183 = vmax.f32 %v1119, 0.0
    %v1184 = vmax.f32 %v1120, 0.0
    %v1185 = vmax.f32 %v1121, 0.0
    %v1186 = vmax.f32 %v1122, 0.0
    %v1187 = vmax.f32 %v1123, 0.0
    %v1188 = vmax.f32 %v1124, 0.0
    %v1189 = vmax.f32 %v1125, 0.0
    %v1190 = vmax.f32 %v1126, 0.0
    %v1191 = vmax.f32 %v1127, 0.0
    %v1192 = vmax.f32 %v1128, 0.0
    %v1193 = vmax.f32 %v1129, 0.0
    %v1194 = vmax.f32 %v1130, 0.0
    %v1195 = vmax.f32 %v1131, 0.0
    %v1196 = vmax.f32 %v1132, 0.0
    %v1197 = vmax.f32 %v1133, 0.0
    %v1198 = vmax.f32 %v1134, 0.0
    %v1199 = vmax.f32 %v1135, 0.0
    %v1200 = vmax.f32 %v1136, 0.0
    %v1201 = vmax.f32 %v1137, 0.0
    %v1202 = vmax.f32 %v1138, 0.0
    %v1203 = vpack.c.bf16 %v1141, %v1139
    %v1204 = vpack.c.bf16 %v1142, %v1140
    %v1205 = vpack.c.bf16 %v1145, %v1143
    %v1206 = vpack.c.bf16 %v1146, %v1144
    %v1207 = vpack.c.bf16 %v1149, %v1147
    %v1208 = vpack.c.bf16 %v1150, %v1148
    %v1209 = vpack.c.bf16 %v1153, %v1151
    %v1210 = vpack.c.bf16 %v1154, %v1152
    %v1211 = vpack.c.bf16 %v1157, %v1155
    %v1212 = vpack.c.bf16 %v1158, %v1156
    %v1213 = vpack.c.bf16 %v1161, %v1159
    %v1214 = vpack.c.bf16 %v1162, %v1160
    %v1215 = vpack.c.bf16 %v1165, %v1163
    %v1216 = vpack.c.bf16 %v1166, %v1164
    %v1217 = vpack.c.bf16 %v1169, %v1167
    %v1218 = vpack.c.bf16 %v1170, %v1168
    %v1219 = vpack.c.bf16 %v1173, %v1171
    %v1220 = vpack.c.bf16 %v1174, %v1172
    %v1221 = vpack.c.bf16 %v1177, %v1175
    %v1222 = vpack.c.bf16 %v1178, %v1176
    %v1223 = vpack.c.bf16 %v1181, %v1179
    %v1224 = vpack.c.bf16 %v1182, %v1180
    %v1225 = vpack.c.bf16 %v1185, %v1183
    %v1226 = vpack.c.bf16 %v1186, %v1184
    %v1227 = vpack.c.bf16 %v1189, %v1187
    %v1228 = vpack.c.bf16 %v1190, %v1188
    %v1229 = vpack.c.bf16 %v1193, %v1191
    %v1230 = vpack.c.bf16 %v1194, %v1192
    %v1231 = vpack.c.bf16 %v1197, %v1195
    %v1232 = vpack.c.bf16 %v1198, %v1196
    %v1233 = vpack.c.bf16 %v1201, %v1199
    %v1234 = vpack.c.bf16 %v1202, %v1200
    %v1235 = vld [vmem:[#allocation10] sm:$0xff]
    %v1236 = vld [vmem:[#allocation10 + $0x8] sm:$0xff]
    %v1237 = vld [vmem:[#allocation10 + $0x10] sm:$0xff]
    %v1238 = vld [vmem:[#allocation10 + $0x18] sm:$0xff]
    %v1239 = vld [vmem:[#allocation10 + $0x20] sm:$0xff]
    %v1240 = vld [vmem:[#allocation10 + $0x28] sm:$0xff]
    %v1241 = vld [vmem:[#allocation10 + $0x30] sm:$0xff]
    %v1242 = vld [vmem:[#allocation10 + $0x38] sm:$0xff]
    %v1243 = vld [vmem:[#allocation10 + $0x40] sm:$0xff]
    %v1244 = vld [vmem:[#allocation10 + $0x48] sm:$0xff]
    %v1245 = vld [vmem:[#allocation10 + $0x50] sm:$0xff]
    %v1246 = vld [vmem:[#allocation10 + $0x58] sm:$0xff]
    %v1247 = vld [vmem:[#allocation10 + $0x60] sm:$0xff]
    %v1248 = vld [vmem:[#allocation10 + $0x68] sm:$0xff]
    %v1249 = vld [vmem:[#allocation10 + $0x70] sm:$0xff]
    %v1250 = vld [vmem:[#allocation10 + $0x78] sm:$0xff]
    %v1251 = vld [vmem:[#allocation10 + $0x80] sm:$0xff]
    %v1252 = vld [vmem:[#allocation10 + $0x88] sm:$0xff]
    %v1253 = vld [vmem:[#allocation10 + $0x90] sm:$0xff]
    %v1254 = vld [vmem:[#allocation10 + $0x98] sm:$0xff]
    %v1255 = vld [vmem:[#allocation10 + $0xa0] sm:$0xff]
    %v1256 = vld [vmem:[#allocation10 + $0xa8] sm:$0xff]
    %v1257 = vld [vmem:[#allocation10 + $0xb0] sm:$0xff]
    %v1258 = vld [vmem:[#allocation10 + $0xb8] sm:$0xff]
    %v1259 = vld [vmem:[#allocation10 + $0xc0] sm:$0xff]
    %v1260 = vld [vmem:[#allocation10 + $0xc8] sm:$0xff]
    %v1261 = vld [vmem:[#allocation10 + $0xd0] sm:$0xff]
    %v1262 = vld [vmem:[#allocation10 + $0xd8] sm:$0xff]
    %v1263 = vld [vmem:[#allocation10 + $0xe0] sm:$0xff]
    %v1264 = vld [vmem:[#allocation10 + $0xe8] sm:$0xff]
    %v1265 = vld [vmem:[#allocation10 + $0xf0] sm:$0xff]
    %v1266 = vld [vmem:[#allocation10 + $0xf8] sm:$0xff]
    %v1267 = vld [vmem:[#allocation10 + $0x100] sm:$0xff]
    %v1268 = vld [vmem:[#allocation10 + $0x108] sm:$0xff]
    %v1269 = vld [vmem:[#allocation10 + $0x110] sm:$0xff]
    %v1270 = vld [vmem:[#allocation10 + $0x118] sm:$0xff]
    %v1271 = vld [vmem:[#allocation10 + $0x120] sm:$0xff]
    %v1272 = vld [vmem:[#allocation10 + $0x128] sm:$0xff]
    %v1273 = vld [vmem:[#allocation10 + $0x130] sm:$0xff]
    %v1274 = vld [vmem:[#allocation10 + $0x138] sm:$0xff]
    %v1275 = vld [vmem:[#allocation10 + $0x140] sm:$0xff]
    %v1276 = vld [vmem:[#allocation10 + $0x148] sm:$0xff]
    %v1277 = vld [vmem:[#allocation10 + $0x150] sm:$0xff]
    %v1278 = vld [vmem:[#allocation10 + $0x158] sm:$0xff]
    %v1279 = vld [vmem:[#allocation10 + $0x160] sm:$0xff]
    %v1280 = vld [vmem:[#allocation10 + $0x168] sm:$0xff]
    %v1281 = vld [vmem:[#allocation10 + $0x170] sm:$0xff]
    %v1282 = vld [vmem:[#allocation10 + $0x178] sm:$0xff]
    %v1283 = vld [vmem:[#allocation10 + $0x180] sm:$0xff]
    %v1284 = vld [vmem:[#allocation10 + $0x188] sm:$0xff]
    %v1285 = vld [vmem:[#allocation10 + $0x190] sm:$0xff]
    %v1286 = vld [vmem:[#allocation10 + $0x198] sm:$0xff]
    %v1287 = vld [vmem:[#allocation10 + $0x1a0] sm:$0xff]
    %v1288 = vld [vmem:[#allocation10 + $0x1a8] sm:$0xff]
    %v1289 = vld [vmem:[#allocation10 + $0x1b0] sm:$0xff]
    %v1290 = vld [vmem:[#allocation10 + $0x1b8] sm:$0xff]
    %v1291 = vld [vmem:[#allocation10 + $0x1c0] sm:$0xff]
    %v1292 = vld [vmem:[#allocation10 + $0x1c8] sm:$0xff]
    %v1293 = vld [vmem:[#allocation10 + $0x1d0] sm:$0xff]
    %v1294 = vld [vmem:[#allocation10 + $0x1d8] sm:$0xff]
    %v1295 = vld [vmem:[#allocation10 + $0x1e0] sm:$0xff]
    %v1296 = vld [vmem:[#allocation10 + $0x1e8] sm:$0xff]
    %v1297 = vld [vmem:[#allocation10 + $0x1f0] sm:$0xff]
    %v1298 = vld [vmem:[#allocation10 + $0x1f8] sm:$0xff]
    %v1299 = vld [vmem:[#allocation11] sm:$0xf]
    %v1301 = vlaneseq
    %v1302 = vshrl.u32 %v1301, 7
    %v1303 = vsub.s32 0, %v1302
    %v1304 = vrot.slane %v1299, %v1303
    %v1305 = vlaneseq
    %v1306 = vshrl.u32 %v1305, 7
    %v1307 = vsub.s32 1, %v1306
    %v1308 = vrot.slane %v1299, %v1307
    %v1309 = vlaneseq
    %v1310 = vshrl.u32 %v1309, 7
    %v1311 = vsub.s32 2, %v1310
    %v1312 = vrot.slane %v1299, %v1311
    %v1313 = vlaneseq
    %v1314 = vshrl.u32 %v1313, 7
    %v1315 = vsub.s32 3, %v1314
    %v1316 = vrot.slane %v1299, %v1315
    %v1385 = vunpack.c.l.b16 %v1235
    %v1386 = vunpack.c.h.b16 %v1235
    %v1387 = vunpack.c.l.b16 %v1236
    %v1388 = vunpack.c.h.b16 %v1236
    %v1389 = vunpack.c.l.b16 %v1237
    %v1390 = vunpack.c.h.b16 %v1237
    %v1391 = vunpack.c.l.b16 %v1238
    %v1392 = vunpack.c.h.b16 %v1238
    %v1393 = vunpack.c.l.b16 %v1239
    %v1394 = vunpack.c.h.b16 %v1239
    %v1395 = vunpack.c.l.b16 %v1240
    %v1396 = vunpack.c.h.b16 %v1240
    %v1397 = vunpack.c.l.b16 %v1241
    %v1398 = vunpack.c.h.b16 %v1241
    %v1399 = vunpack.c.l.b16 %v1242
    %v1400 = vunpack.c.h.b16 %v1242
    %v1401 = vunpack.c.l.b16 %v1243
    %v1402 = vunpack.c.h.b16 %v1243
    %v1403 = vunpack.c.l.b16 %v1244
    %v1404 = vunpack.c.h.b16 %v1244
    %v1405 = vunpack.c.l.b16 %v1245
    %v1406 = vunpack.c.h.b16 %v1245
    %v1407 = vunpack.c.l.b16 %v1246
    %v1408 = vunpack.c.h.b16 %v1246
    %v1409 = vunpack.c.l.b16 %v1247
    %v1410 = vunpack.c.h.b16 %v1247
    %v1411 = vunpack.c.l.b16 %v1248
    %v1412 = vunpack.c.h.b16 %v1248
    %v1413 = vunpack.c.l.b16 %v1249
    %v1414 = vunpack.c.h.b16 %v1249
    %v1415 = vunpack.c.l.b16 %v1250
    %v1416 = vunpack.c.h.b16 %v1250
    %v1417 = vunpack.c.l.b16 %v1251
    %v1418 = vunpack.c.h.b16 %v1251
    %v1419 = vunpack.c.l.b16 %v1252
    %v1420 = vunpack.c.h.b16 %v1252
    %v1421 = vunpack.c.l.b16 %v1253
    %v1422 = vunpack.c.h.b16 %v1253
    %v1423 = vunpack.c.l.b16 %v1254
    %v1424 = vunpack.c.h.b16 %v1254
    %v1425 = vunpack.c.l.b16 %v1255
    %v1426 = vunpack.c.h.b16 %v1255
    %v1427 = vunpack.c.l.b16 %v1256
    %v1428 = vunpack.c.h.b16 %v1256
    %v1429 = vunpack.c.l.b16 %v1257
    %v1430 = vunpack.c.h.b16 %v1257
    %v1431 = vunpack.c.l.b16 %v1258
    %v1432 = vunpack.c.h.b16 %v1258
    %v1433 = vunpack.c.l.b16 %v1259
    %v1434 = vunpack.c.h.b16 %v1259
    %v1435 = vunpack.c.l.b16 %v1260
    %v1436 = vunpack.c.h.b16 %v1260
    %v1437 = vunpack.c.l.b16 %v1261
    %v1438 = vunpack.c.h.b16 %v1261
    %v1439 = vunpack.c.l.b16 %v1262
    %v1440 = vunpack.c.h.b16 %v1262
    %v1441 = vunpack.c.l.b16 %v1263
    %v1442 = vunpack.c.h.b16 %v1263
    %v1443 = vunpack.c.l.b16 %v1264
    %v1444 = vunpack.c.h.b16 %v1264
    %v1445 = vunpack.c.l.b16 %v1265
    %v1446 = vunpack.c.h.b16 %v1265
    %v1447 = vunpack.c.l.b16 %v1266
    %v1448 = vunpack.c.h.b16 %v1266
    %v1449 = vunpack.c.l.b16 %v1267
    %v1450 = vunpack.c.h.b16 %v1267
    %v1451 = vunpack.c.l.b16 %v1268
    %v1452 = vunpack.c.h.b16 %v1268
    %v1453 = vunpack.c.l.b16 %v1269
    %v1454 = vunpack.c.h.b16 %v1269
    %v1455 = vunpack.c.l.b16 %v1270
    %v1456 = vunpack.c.h.b16 %v1270
    %v1457 = vunpack.c.l.b16 %v1271
    %v1458 = vunpack.c.h.b16 %v1271
    %v1459 = vunpack.c.l.b16 %v1272
    %v1460 = vunpack.c.h.b16 %v1272
    %v1461 = vunpack.c.l.b16 %v1273
    %v1462 = vunpack.c.h.b16 %v1273
    %v1463 = vunpack.c.l.b16 %v1274
    %v1464 = vunpack.c.h.b16 %v1274
    %v1465 = vunpack.c.l.b16 %v1275
    %v1466 = vunpack.c.h.b16 %v1275
    %v1467 = vunpack.c.l.b16 %v1276
    %v1468 = vunpack.c.h.b16 %v1276
    %v1469 = vunpack.c.l.b16 %v1277
    %v1470 = vunpack.c.h.b16 %v1277
    %v1471 = vunpack.c.l.b16 %v1278
    %v1472 = vunpack.c.h.b16 %v1278
    %v1473 = vunpack.c.l.b16 %v1279
    %v1474 = vunpack.c.h.b16 %v1279
    %v1475 = vunpack.c.l.b16 %v1280
    %v1476 = vunpack.c.h.b16 %v1280
    %v1477 = vunpack.c.l.b16 %v1281
    %v1478 = vunpack.c.h.b16 %v1281
    %v1479 = vunpack.c.l.b16 %v1282
    %v1480 = vunpack.c.h.b16 %v1282
    %v1481 = vunpack.c.l.b16 %v1283
    %v1482 = vunpack.c.h.b16 %v1283
    %v1483 = vunpack.c.l.b16 %v1284
    %v1484 = vunpack.c.h.b16 %v1284
    %v1485 = vunpack.c.l.b16 %v1285
    %v1486 = vunpack.c.h.b16 %v1285
    %v1487 = vunpack.c.l.b16 %v1286
    %v1488 = vunpack.c.h.b16 %v1286
    %v1489 = vunpack.c.l.b16 %v1287
    %v1490 = vunpack.c.h.b16 %v1287
    %v1491 = vunpack.c.l.b16 %v1288
    %v1492 = vunpack.c.h.b16 %v1288
    %v1493 = vunpack.c.l.b16 %v1289
    %v1494 = vunpack.c.h.b16 %v1289
    %v1495 = vunpack.c.l.b16 %v1290
    %v1496 = vunpack.c.h.b16 %v1290
    %v1497 = vunpack.c.l.b16 %v1291
    %v1498 = vunpack.c.h.b16 %v1291
    %v1499 = vunpack.c.l.b16 %v1292
    %v1500 = vunpack.c.h.b16 %v1292
    %v1501 = vunpack.c.l.b16 %v1293
    %v1502 = vunpack.c.h.b16 %v1293
    %v1503 = vunpack.c.l.b16 %v1294
    %v1504 = vunpack.c.h.b16 %v1294
    %v1505 = vunpack.c.l.b16 %v1295
    %v1506 = vunpack.c.h.b16 %v1295
    %v1507 = vunpack.c.l.b16 %v1296
    %v1508 = vunpack.c.h.b16 %v1296
    %v1509 = vunpack.c.l.b16 %v1297
    %v1510 = vunpack.c.h.b16 %v1297
    %v1511 = vunpack.c.l.b16 %v1298
    %v1512 = vunpack.c.h.b16 %v1298
    %v1513 = vpack.c.b16 %v1389, %v1385
    %v1514 = vpack.c.b16 %v1390, %v1386
    %v1515 = vpack.c.b16 %v1391, %v1387
    %v1516 = vpack.c.b16 %v1392, %v1388
    %v1517 = vpack.c.b16 %v1397, %v1393
    %v1518 = vpack.c.b16 %v1398, %v1394
    %v1519 = vpack.c.b16 %v1399, %v1395
    %v1520 = vpack.c.b16 %v1400, %v1396
    %v1521 = vpack.c.b16 %v1405, %v1401
    %v1522 = vpack.c.b16 %v1406, %v1402
    %v1523 = vpack.c.b16 %v1407, %v1403
    %v1524 = vpack.c.b16 %v1408, %v1404
    %v1525 = vpack.c.b16 %v1413, %v1409
    %v1526 = vpack.c.b16 %v1414, %v1410
    %v1527 = vpack.c.b16 %v1415, %v1411
    %v1528 = vpack.c.b16 %v1416, %v1412
    %v1529 = vpack.c.b16 %v1421, %v1417
    %v1530 = vpack.c.b16 %v1422, %v1418
    %v1531 = vpack.c.b16 %v1423, %v1419
    %v1532 = vpack.c.b16 %v1424, %v1420
    %v1533 = vpack.c.b16 %v1429, %v1425
    %v1534 = vpack.c.b16 %v1430, %v1426
    %v1535 = vpack.c.b16 %v1431, %v1427
    %v1536 = vpack.c.b16 %v1432, %v1428
    %v1537 = vpack.c.b16 %v1437, %v1433
    %v1538 = vpack.c.b16 %v1438, %v1434
    %v1539 = vpack.c.b16 %v1439, %v1435
    %v1540 = vpack.c.b16 %v1440, %v1436
    %v1541 = vpack.c.b16 %v1445, %v1441
    %v1542 = vpack.c.b16 %v1446, %v1442
    %v1543 = vpack.c.b16 %v1447, %v1443
    %v1544 = vpack.c.b16 %v1448, %v1444
    %v1545 = vpack.c.b16 %v1453, %v1449
    %v1546 = vpack.c.b16 %v1454, %v1450
    %v1547 = vpack.c.b16 %v1455, %v1451
    %v1548 = vpack.c.b16 %v1456, %v1452
    %v1549 = vpack.c.b16 %v1461, %v1457
    %v1550 = vpack.c.b16 %v1462, %v1458
    %v1551 = vpack.c.b16 %v1463, %v1459
    %v1552 = vpack.c.b16 %v1464, %v1460
    %v1553 = vpack.c.b16 %v1469, %v1465
    %v1554 = vpack.c.b16 %v1470, %v1466
    %v1555 = vpack.c.b16 %v1471, %v1467
    %v1556 = vpack.c.b16 %v1472, %v1468
    %v1557 = vpack.c.b16 %v1477, %v1473
    %v1558 = vpack.c.b16 %v1478, %v1474
    %v1559 = vpack.c.b16 %v1479, %v1475
    %v1560 = vpack.c.b16 %v1480, %v1476
    %v1561 = vpack.c.b16 %v1485, %v1481
    %v1562 = vpack.c.b16 %v1486, %v1482
    %v1563 = vpack.c.b16 %v1487, %v1483
    %v1564 = vpack.c.b16 %v1488, %v1484
    %v1565 = vpack.c.b16 %v1493, %v1489
    %v1566 = vpack.c.b16 %v1494, %v1490
    %v1567 = vpack.c.b16 %v1495, %v1491
    %v1568 = vpack.c.b16 %v1496, %v1492
    %v1569 = vpack.c.b16 %v1501, %v1497
    %v1570 = vpack.c.b16 %v1502, %v1498
    %v1571 = vpack.c.b16 %v1503, %v1499
    %v1572 = vpack.c.b16 %v1504, %v1500
    %v1573 = vpack.c.b16 %v1509, %v1505
    %v1574 = vpack.c.b16 %v1510, %v1506
    %v1575 = vpack.c.b16 %v1511, %v1507
    %v1576 = vpack.c.b16 %v1512, %v1508
    %1641 = vmatprep.subr.bf16.mxu0 %v1542
    %1642 = vmatpush1.bf16.msra.mxu0 %v1541
    %1643 = vmatprep.subr.bf16.mxu0 %v1538
    %1644 = vmatpush1.bf16.msra.mxu0 %v1537
    %1645 = vmatprep.subr.bf16.mxu0 %v1534
    %1646 = vmatpush1.bf16.msra.mxu0 %v1533
    %1647 = vmatprep.subr.bf16.mxu0 %v1530
    %1648 = vmatpush1.bf16.msra.mxu0 %v1529
    %1649 = vmatprep.subr.bf16.mxu0 %v1526
    %1650 = vmatpush1.bf16.msra.mxu0 %v1525
    %1651 = vmatprep.subr.bf16.mxu0 %v1522
    %1652 = vmatpush1.bf16.msra.mxu0 %v1521
    %1653 = vmatprep.subr.bf16.mxu0 %v1518
    %1654 = vmatpush1.bf16.msra.mxu0 %v1517
    %1655 = vmatprep.subr.bf16.mxu0 %v1514
    %1656 = vmatpush1.bf16.msra.mxu0 %v1513
    %1657 = vmatprep.subr.bf16.mxu0 %v1574
    %1658 = vmatpush2.bf16.msra.mxu0 %v1573
    %1659 = vmatprep.subr.bf16.mxu0 %v1570
    %1660 = vmatpush2.bf16.msra.mxu0 %v1569
    %1661 = vmatprep.subr.bf16.mxu0 %v1566
    %1662 = vmatpush2.bf16.msra.mxu0 %v1565
    %1663 = vmatprep.subr.bf16.mxu0 %v1562
    %1664 = vmatpush2.bf16.msra.mxu0 %v1561
    %1665 = vmatprep.subr.bf16.mxu0 %v1558
    %1666 = vmatpush2.bf16.msra.mxu0 %v1557
    %1667 = vmatprep.subr.bf16.mxu0 %v1554
    %1668 = vmatpush2.bf16.msra.mxu0 %v1553
    %1669 = vmatprep.subr.bf16.mxu0 %v1550
    %1670 = vmatpush2.bf16.msra.mxu0 %v1549
    %1671 = vmatprep.subr.bf16.mxu0 %v1546
    %1672 = vmatpush2.bf16.msra.mxu0 %v1545
    %1673 = vmatprep.mubr.bf16.mxu0 %v1204
    %1674 = vmatmul.mubr.bf16.gmra.mxu0 %v1203
    %v1675 = vpop.f32.mrf.mxu0
    %v1676 = vadd.f32 %v1304, %v1675
    %v1677 = vpop.f32.mrf.mxu0
    %v1678 = vadd.f32 %v1308, %v1677
    %v1679 = vpop.f32.mrf.mxu0
    %v1680 = vadd.f32 %v1304, %v1679
    %v1681 = vpop.f32.mrf.mxu0
    %v1682 = vadd.f32 %v1308, %v1681
    %1683 = vmatprep.mubr.bf16.mxu0 %v1206
    %1684 = vmatmul.mubr.bf16.gmra.mxu0 %v1205
    %v1685 = vpop.f32.mrf.mxu0
    %v1686 = vadd.f32 %v1304, %v1685
    %v1687 = vpop.f32.mrf.mxu0
    %v1688 = vadd.f32 %v1308, %v1687
    %v1689 = vpop.f32.mrf.mxu0
    %v1690 = vadd.f32 %v1304, %v1689
    %v1691 = vpop.f32.mrf.mxu0
    %v1692 = vadd.f32 %v1308, %v1691
    %1693 = vmatprep.mubr.bf16.mxu0 %v1208
    %1694 = vmatmul.mubr.bf16.gmra.mxu0 %v1207
    %v1695 = vpop.f32.mrf.mxu0
    %v1696 = vadd.f32 %v1304, %v1695
    %v1697 = vpop.f32.mrf.mxu0
    %v1698 = vadd.f32 %v1308, %v1697
    %v1699 = vpop.f32.mrf.mxu0
    %v1700 = vadd.f32 %v1304, %v1699
    %v1701 = vpop.f32.mrf.mxu0
    %v1702 = vadd.f32 %v1308, %v1701
    %1703 = vmatprep.mubr.bf16.mxu0 %v1210
    %1704 = vmatmul.mubr.bf16.gmra.mxu0 %v1209
    %v1705 = vpop.f32.mrf.mxu0
    %v1706 = vadd.f32 %v1304, %v1705
    %v1707 = vpop.f32.mrf.mxu0
    %v1708 = vadd.f32 %v1308, %v1707
    %v1709 = vpop.f32.mrf.mxu0
    %v1710 = vadd.f32 %v1304, %v1709
    %v1711 = vpop.f32.mrf.mxu0
    %v1712 = vadd.f32 %v1308, %v1711
    %1713 = vmatprep.mubr.bf16.mxu0 %v1212
    %1714 = vmatmul.mubr.bf16.gmra.mxu0 %v1211
    %v1715 = vpop.f32.mrf.mxu0
    %v1716 = vadd.f32 %v1304, %v1715
    %v1717 = vpop.f32.mrf.mxu0
    %v1718 = vadd.f32 %v1308, %v1717
    %v1719 = vpop.f32.mrf.mxu0
    %v1720 = vadd.f32 %v1304, %v1719
    %v1721 = vpop.f32.mrf.mxu0
    %v1722 = vadd.f32 %v1308, %v1721
    %1723 = vmatprep.mubr.bf16.mxu0 %v1214
    %1724 = vmatmul.mubr.bf16.gmra.mxu0 %v1213
    %v1725 = vpop.f32.mrf.mxu0
    %v1726 = vadd.f32 %v1304, %v1725
    %v1727 = vpop.f32.mrf.mxu0
    %v1728 = vadd.f32 %v1308, %v1727
    %v1729 = vpop.f32.mrf.mxu0
    %v1730 = vadd.f32 %v1304, %v1729
    %v1731 = vpop.f32.mrf.mxu0
    %v1732 = vadd.f32 %v1308, %v1731
    %1733 = vmatprep.mubr.bf16.mxu0 %v1216
    %1734 = vmatmul.mubr.bf16.gmra.mxu0 %v1215
    %v1735 = vpop.f32.mrf.mxu0
    %v1736 = vadd.f32 %v1304, %v1735
    %v1737 = vpop.f32.mrf.mxu0
    %v1738 = vadd.f32 %v1308, %v1737
    %v1739 = vpop.f32.mrf.mxu0
    %v1740 = vadd.f32 %v1304, %v1739
    %v1741 = vpop.f32.mrf.mxu0
    %v1742 = vadd.f32 %v1308, %v1741
    %1743 = vmatprep.mubr.bf16.mxu0 %v1218
    %1744 = vmatmul.mubr.bf16.gmra.mxu0 %v1217
    %v1745 = vpop.f32.mrf.mxu0
    %v1746 = vadd.f32 %v1304, %v1745
    %v1747 = vpop.f32.mrf.mxu0
    %v1748 = vadd.f32 %v1308, %v1747
    %v1749 = vpop.f32.mrf.mxu0
    %v1750 = vadd.f32 %v1304, %v1749
    %v1751 = vpop.f32.mrf.mxu0
    %v1752 = vadd.f32 %v1308, %v1751
    %1753 = vmatprep.mubr.bf16.mxu0 %v1220
    %1754 = vmatmul.mubr.bf16.gmra.mxu0 %v1219
    %v1755 = vpop.f32.mrf.mxu0
    %v1756 = vadd.f32 %v1304, %v1755
    %v1757 = vpop.f32.mrf.mxu0
    %v1758 = vadd.f32 %v1308, %v1757
    %v1759 = vpop.f32.mrf.mxu0
    %v1760 = vadd.f32 %v1304, %v1759
    %v1761 = vpop.f32.mrf.mxu0
    %v1762 = vadd.f32 %v1308, %v1761
    %1763 = vmatprep.mubr.bf16.mxu0 %v1222
    %1764 = vmatmul.mubr.bf16.gmra.mxu0 %v1221
    %v1765 = vpop.f32.mrf.mxu0
    %v1766 = vadd.f32 %v1304, %v1765
    %v1767 = vpop.f32.mrf.mxu0
    %v1768 = vadd.f32 %v1308, %v1767
    %v1769 = vpop.f32.mrf.mxu0
    %v1770 = vadd.f32 %v1304, %v1769
    %v1771 = vpop.f32.mrf.mxu0
    %v1772 = vadd.f32 %v1308, %v1771
    %1773 = vmatprep.mubr.bf16.mxu0 %v1224
    %1774 = vmatmul.mubr.bf16.gmra.mxu0 %v1223
    %v1775 = vpop.f32.mrf.mxu0
    %v1776 = vadd.f32 %v1304, %v1775
    %v1777 = vpop.f32.mrf.mxu0
    %v1778 = vadd.f32 %v1308, %v1777
    %v1779 = vpop.f32.mrf.mxu0
    %v1780 = vadd.f32 %v1304, %v1779
    %v1781 = vpop.f32.mrf.mxu0
    %v1782 = vadd.f32 %v1308, %v1781
    %1783 = vmatprep.mubr.bf16.mxu0 %v1226
    %1784 = vmatmul.mubr.bf16.gmra.mxu0 %v1225
    %v1785 = vpop.f32.mrf.mxu0
    %v1786 = vadd.f32 %v1304, %v1785
    %v1787 = vpop.f32.mrf.mxu0
    %v1788 = vadd.f32 %v1308, %v1787
    %v1789 = vpop.f32.mrf.mxu0
    %v1790 = vadd.f32 %v1304, %v1789
    %v1791 = vpop.f32.mrf.mxu0
    %v1792 = vadd.f32 %v1308, %v1791
    %1793 = vmatprep.mubr.bf16.mxu0 %v1228
    %1794 = vmatmul.mubr.bf16.gmra.mxu0 %v1227
    %v1795 = vpop.f32.mrf.mxu0
    %v1796 = vadd.f32 %v1304, %v1795
    %v1797 = vpop.f32.mrf.mxu0
    %v1798 = vadd.f32 %v1308, %v1797
    %v1799 = vpop.f32.mrf.mxu0
    %v1800 = vadd.f32 %v1304, %v1799
    %v1801 = vpop.f32.mrf.mxu0
    %v1802 = vadd.f32 %v1308, %v1801
    %1803 = vmatprep.mubr.bf16.mxu0 %v1230
    %1804 = vmatmul.mubr.bf16.gmra.mxu0 %v1229
    %v1805 = vpop.f32.mrf.mxu0
    %v1806 = vadd.f32 %v1304, %v1805
    %v1807 = vpop.f32.mrf.mxu0
    %v1808 = vadd.f32 %v1308, %v1807
    %v1809 = vpop.f32.mrf.mxu0
    %v1810 = vadd.f32 %v1304, %v1809
    %v1811 = vpop.f32.mrf.mxu0
    %v1812 = vadd.f32 %v1308, %v1811
    %1813 = vmatprep.mubr.bf16.mxu0 %v1232
    %1814 = vmatmul.mubr.bf16.gmra.mxu0 %v1231
    %v1815 = vpop.f32.mrf.mxu0
    %v1816 = vadd.f32 %v1304, %v1815
    %v1817 = vpop.f32.mrf.mxu0
    %v1818 = vadd.f32 %v1308, %v1817
    %v1819 = vpop.f32.mrf.mxu0
    %v1820 = vadd.f32 %v1304, %v1819
    %v1821 = vpop.f32.mrf.mxu0
    %v1822 = vadd.f32 %v1308, %v1821
    %1823 = vmatprep.mubr.bf16.mxu0 %v1234
    %1824 = vmatmul.mubr.bf16.gmra.mxu0 %v1233
    %v1825 = vpop.f32.mrf.mxu0
    %v1826 = vadd.f32 %v1304, %v1825
    %v1827 = vpop.f32.mrf.mxu0
    %v1828 = vadd.f32 %v1308, %v1827
    %v1829 = vpop.f32.mrf.mxu0
    %v1830 = vadd.f32 %v1304, %v1829
    %v1831 = vpop.f32.mrf.mxu0
    %v1832 = vadd.f32 %v1308, %v1831
    %1833 = vdwg.mxu0
    %1834 = vmatprep.subr.bf16.mxu0 %v1544
    %1835 = vmatpush1.bf16.msra.mxu0 %v1543
    %1836 = vmatprep.subr.bf16.mxu0 %v1540
    %1837 = vmatpush1.bf16.msra.mxu0 %v1539
    %1838 = vmatprep.subr.bf16.mxu0 %v1536
    %1839 = vmatpush1.bf16.msra.mxu0 %v1535
    %1840 = vmatprep.subr.bf16.mxu0 %v1532
    %1841 = vmatpush1.bf16.msra.mxu0 %v1531
    %1842 = vmatprep.subr.bf16.mxu0 %v1528
    %1843 = vmatpush1.bf16.msra.mxu0 %v1527
    %1844 = vmatprep.subr.bf16.mxu0 %v1524
    %1845 = vmatpush1.bf16.msra.mxu0 %v1523
    %1846 = vmatprep.subr.bf16.mxu0 %v1520
    %1847 = vmatpush1.bf16.msra.mxu0 %v1519
    %1848 = vmatprep.subr.bf16.mxu0 %v1516
    %1849 = vmatpush1.bf16.msra.mxu0 %v1515
    %1850 = vmatprep.subr.bf16.mxu0 %v1576
    %1851 = vmatpush2.bf16.msra.mxu0 %v1575
    %1852 = vmatprep.subr.bf16.mxu0 %v1572
    %1853 = vmatpush2.bf16.msra.mxu0 %v1571
    %1854 = vmatprep.subr.bf16.mxu0 %v1568
    %1855 = vmatpush2.bf16.msra.mxu0 %v1567
    %1856 = vmatprep.subr.bf16.mxu0 %v1564
    %1857 = vmatpush2.bf16.msra.mxu0 %v1563
    %1858 = vmatprep.subr.bf16.mxu0 %v1560
    %1859 = vmatpush2.bf16.msra.mxu0 %v1559
    %1860 = vmatprep.subr.bf16.mxu0 %v1556
    %1861 = vmatpush2.bf16.msra.mxu0 %v1555
    %1862 = vmatprep.subr.bf16.mxu0 %v1552
    %1863 = vmatpush2.bf16.msra.mxu0 %v1551
    %1864 = vmatprep.subr.bf16.mxu0 %v1548
    %1865 = vmatpush2.bf16.msra.mxu0 %v1547
    %1866 = vmatprep.mubr.bf16.mxu0 %v1204
    %1867 = vmatmul.mubr.bf16.gmra.mxu0 %v1203
    %v1868 = vpop.f32.mrf.mxu0
    %v1869 = vadd.f32 %v1312, %v1868
    %v1870 = vpop.f32.mrf.mxu0
    %v1871 = vadd.f32 %v1316, %v1870
    %v1872 = vpop.f32.mrf.mxu0
    %v1873 = vadd.f32 %v1312, %v1872
    %v1874 = vpop.f32.mrf.mxu0
    %v1875 = vadd.f32 %v1316, %v1874
    %1876 = vmatprep.mubr.bf16.mxu0 %v1206
    %1877 = vmatmul.mubr.bf16.gmra.mxu0 %v1205
    %v1878 = vpop.f32.mrf.mxu0
    %v1879 = vadd.f32 %v1312, %v1878
    %v1880 = vpop.f32.mrf.mxu0
    %v1881 = vadd.f32 %v1316, %v1880
    %v1882 = vpop.f32.mrf.mxu0
    %v1883 = vadd.f32 %v1312, %v1882
    %v1884 = vpop.f32.mrf.mxu0
    %v1885 = vadd.f32 %v1316, %v1884
    %1886 = vmatprep.mubr.bf16.mxu0 %v1208
    %1887 = vmatmul.mubr.bf16.gmra.mxu0 %v1207
    %v1888 = vpop.f32.mrf.mxu0
    %v1889 = vadd.f32 %v1312, %v1888
    %v1890 = vpop.f32.mrf.mxu0
    %v1891 = vadd.f32 %v1316, %v1890
    %v1892 = vpop.f32.mrf.mxu0
    %v1893 = vadd.f32 %v1312, %v1892
    %v1894 = vpop.f32.mrf.mxu0
    %v1895 = vadd.f32 %v1316, %v1894
    %1896 = vmatprep.mubr.bf16.mxu0 %v1210
    %1897 = vmatmul.mubr.bf16.gmra.mxu0 %v1209
    %v1898 = vpop.f32.mrf.mxu0
    %v1899 = vadd.f32 %v1312, %v1898
    %v1900 = vpop.f32.mrf.mxu0
    %v1901 = vadd.f32 %v1316, %v1900
    %v1902 = vpop.f32.mrf.mxu0
    %v1903 = vadd.f32 %v1312, %v1902
    %v1904 = vpop.f32.mrf.mxu0
    %v1905 = vadd.f32 %v1316, %v1904
    %1906 = vmatprep.mubr.bf16.mxu0 %v1212
    %1907 = vmatmul.mubr.bf16.gmra.mxu0 %v1211
    %v1908 = vpop.f32.mrf.mxu0
    %v1909 = vadd.f32 %v1312, %v1908
    %v1910 = vpop.f32.mrf.mxu0
    %v1911 = vadd.f32 %v1316, %v1910
    %v1912 = vpop.f32.mrf.mxu0
    %v1913 = vadd.f32 %v1312, %v1912
    %v1914 = vpop.f32.mrf.mxu0
    %v1915 = vadd.f32 %v1316, %v1914
    %1916 = vmatprep.mubr.bf16.mxu0 %v1214
    %1917 = vmatmul.mubr.bf16.gmra.mxu0 %v1213
    %v1918 = vpop.f32.mrf.mxu0
    %v1919 = vadd.f32 %v1312, %v1918
    %v1920 = vpop.f32.mrf.mxu0
    %v1921 = vadd.f32 %v1316, %v1920
    %v1922 = vpop.f32.mrf.mxu0
    %v1923 = vadd.f32 %v1312, %v1922
    %v1924 = vpop.f32.mrf.mxu0
    %v1925 = vadd.f32 %v1316, %v1924
    %1926 = vmatprep.mubr.bf16.mxu0 %v1216
    %1927 = vmatmul.mubr.bf16.gmra.mxu0 %v1215
    %v1928 = vpop.f32.mrf.mxu0
    %v1929 = vadd.f32 %v1312, %v1928
    %v1930 = vpop.f32.mrf.mxu0
    %v1931 = vadd.f32 %v1316, %v1930
    %v1932 = vpop.f32.mrf.mxu0
    %v1933 = vadd.f32 %v1312, %v1932
    %v1934 = vpop.f32.mrf.mxu0
    %v1935 = vadd.f32 %v1316, %v1934
    %1936 = vmatprep.mubr.bf16.mxu0 %v1218
    %1937 = vmatmul.mubr.bf16.gmra.mxu0 %v1217
    %v1938 = vpop.f32.mrf.mxu0
    %v1939 = vadd.f32 %v1312, %v1938
    %v1940 = vpop.f32.mrf.mxu0
    %v1941 = vadd.f32 %v1316, %v1940
    %v1942 = vpop.f32.mrf.mxu0
    %v1943 = vadd.f32 %v1312, %v1942
    %v1944 = vpop.f32.mrf.mxu0
    %v1945 = vadd.f32 %v1316, %v1944
    %1946 = vmatprep.mubr.bf16.mxu0 %v1220
    %1947 = vmatmul.mubr.bf16.gmra.mxu0 %v1219
    %v1948 = vpop.f32.mrf.mxu0
    %v1949 = vadd.f32 %v1312, %v1948
    %v1950 = vpop.f32.mrf.mxu0
    %v1951 = vadd.f32 %v1316, %v1950
    %v1952 = vpop.f32.mrf.mxu0
    %v1953 = vadd.f32 %v1312, %v1952
    %v1954 = vpop.f32.mrf.mxu0
    %v1955 = vadd.f32 %v1316, %v1954
    %1956 = vmatprep.mubr.bf16.mxu0 %v1222
    %1957 = vmatmul.mubr.bf16.gmra.mxu0 %v1221
    %v1958 = vpop.f32.mrf.mxu0
    %v1959 = vadd.f32 %v1312, %v1958
    %v1960 = vpop.f32.mrf.mxu0
    %v1961 = vadd.f32 %v1316, %v1960
    %v1962 = vpop.f32.mrf.mxu0
    %v1963 = vadd.f32 %v1312, %v1962
    %v1964 = vpop.f32.mrf.mxu0
    %v1965 = vadd.f32 %v1316, %v1964
    %1966 = vmatprep.mubr.bf16.mxu0 %v1224
    %1967 = vmatmul.mubr.bf16.gmra.mxu0 %v1223
    %v1968 = vpop.f32.mrf.mxu0
    %v1969 = vadd.f32 %v1312, %v1968
    %v1970 = vpop.f32.mrf.mxu0
    %v1971 = vadd.f32 %v1316, %v1970
    %v1972 = vpop.f32.mrf.mxu0
    %v1973 = vadd.f32 %v1312, %v1972
    %v1974 = vpop.f32.mrf.mxu0
    %v1975 = vadd.f32 %v1316, %v1974
    %1976 = vmatprep.mubr.bf16.mxu0 %v1226
    %1977 = vmatmul.mubr.bf16.gmra.mxu0 %v1225
    %v1978 = vpop.f32.mrf.mxu0
    %v1979 = vadd.f32 %v1312, %v1978
    %v1980 = vpop.f32.mrf.mxu0
    %v1981 = vadd.f32 %v1316, %v1980
    %v1982 = vpop.f32.mrf.mxu0
    %v1983 = vadd.f32 %v1312, %v1982
    %v1984 = vpop.f32.mrf.mxu0
    %v1985 = vadd.f32 %v1316, %v1984
    %1986 = vmatprep.mubr.bf16.mxu0 %v1228
    %1987 = vmatmul.mubr.bf16.gmra.mxu0 %v1227
    %v1988 = vpop.f32.mrf.mxu0
    %v1989 = vadd.f32 %v1312, %v1988
    %v1990 = vpop.f32.mrf.mxu0
    %v1991 = vadd.f32 %v1316, %v1990
    %v1992 = vpop.f32.mrf.mxu0
    %v1993 = vadd.f32 %v1312, %v1992
    %v1994 = vpop.f32.mrf.mxu0
    %v1995 = vadd.f32 %v1316, %v1994
    %1996 = vmatprep.mubr.bf16.mxu0 %v1230
    %1997 = vmatmul.mubr.bf16.gmra.mxu0 %v1229
    %v1998 = vpop.f32.mrf.mxu0
    %v1999 = vadd.f32 %v1312, %v1998
    %v2000 = vpop.f32.mrf.mxu0
    %v2001 = vadd.f32 %v1316, %v2000
    %v2002 = vpop.f32.mrf.mxu0
    %v2003 = vadd.f32 %v1312, %v2002
    %v2004 = vpop.f32.mrf.mxu0
    %v2005 = vadd.f32 %v1316, %v2004
    %2006 = vmatprep.mubr.bf16.mxu0 %v1232
    %2007 = vmatmul.mubr.bf16.gmra.mxu0 %v1231
    %v2008 = vpop.f32.mrf.mxu0
    %v2009 = vadd.f32 %v1312, %v2008
    %v2010 = vpop.f32.mrf.mxu0
    %v2011 = vadd.f32 %v1316, %v2010
    %v2012 = vpop.f32.mrf.mxu0
    %v2013 = vadd.f32 %v1312, %v2012
    %v2014 = vpop.f32.mrf.mxu0
    %v2015 = vadd.f32 %v1316, %v2014
    %2016 = vmatprep.mubr.bf16.mxu0 %v1234
    %2017 = vmatmul.mubr.bf16.gmra.mxu0 %v1233
    %v2018 = vpop.f32.mrf.mxu0
    %v2019 = vadd.f32 %v1312, %v2018
    %v2020 = vpop.f32.mrf.mxu0
    %v2021 = vadd.f32 %v1316, %v2020
    %v2022 = vpop.f32.mrf.mxu0
    %v2023 = vadd.f32 %v1312, %v2022
    %v2024 = vpop.f32.mrf.mxu0
    %v2025 = vadd.f32 %v1316, %v2024
    %2026 = vdwg.mxu0
    %v2027 = vmax.f32 %v1676, 0.0
    %v2028 = vmax.f32 %v1678, 0.0
    %v2029 = vmax.f32 %v1869, 0.0
    %v2030 = vmax.f32 %v1871, 0.0
    %v2031 = vmax.f32 %v1680, 0.0
    %v2032 = vmax.f32 %v1682, 0.0
    %v2033 = vmax.f32 %v1873, 0.0
    %v2034 = vmax.f32 %v1875, 0.0
    %v2035 = vmax.f32 %v1686, 0.0
    %v2036 = vmax.f32 %v1688, 0.0
    %v2037 = vmax.f32 %v1879, 0.0
    %v2038 = vmax.f32 %v1881, 0.0
    %v2039 = vmax.f32 %v1690, 0.0
    %v2040 = vmax.f32 %v1692, 0.0
    %v2041 = vmax.f32 %v1883, 0.0
    %v2042 = vmax.f32 %v1885, 0.0
    %v2043 = vmax.f32 %v1696, 0.0
    %v2044 = vmax.f32 %v1698, 0.0
    %v2045 = vmax.f32 %v1889, 0.0
    %v2046 = vmax.f32 %v1891, 0.0
    %v2047 = vmax.f32 %v1700, 0.0
    %v2048 = vmax.f32 %v1702, 0.0
    %v2049 = vmax.f32 %v1893, 0.0
    %v2050 = vmax.f32 %v1895, 0.0
    %v2051 = vmax.f32 %v1706, 0.0
    %v2052 = vmax.f32 %v1708, 0.0
    %v2053 = vmax.f32 %v1899, 0.0
    %v2054 = vmax.f32 %v1901, 0.0
    %v2055 = vmax.f32 %v1710, 0.0
    %v2056 = vmax.f32 %v1712, 0.0
    %v2057 = vmax.f32 %v1903, 0.0
    %v2058 = vmax.f32 %v1905, 0.0
    %v2059 = vmax.f32 %v1716, 0.0
    %v2060 = vmax.f32 %v1718, 0.0
    %v2061 = vmax.f32 %v1909, 0.0
    %v2062 = vmax.f32 %v1911, 0.0
    %v2063 = vmax.f32 %v1720, 0.0
    %v2064 = vmax.f32 %v1722, 0.0
    %v2065 = vmax.f32 %v1913, 0.0
    %v2066 = vmax.f32 %v1915, 0.0
    %v2067 = vmax.f32 %v1726, 0.0
    %v2068 = vmax.f32 %v1728, 0.0
    %v2069 = vmax.f32 %v1919, 0.0
    %v2070 = vmax.f32 %v1921, 0.0
    %v2071 = vmax.f32 %v1730, 0.0
    %v2072 = vmax.f32 %v1732, 0.0
    %v2073 = vmax.f32 %v1923, 0.0
    %v2074 = vmax.f32 %v1925, 0.0
    %v2075 = vmax.f32 %v1736, 0.0
    %v2076 = vmax.f32 %v1738, 0.0
    %v2077 = vmax.f32 %v1929, 0.0
    %v2078 = vmax.f32 %v1931, 0.0
    %v2079 = vmax.f32 %v1740, 0.0
    %v2080 = vmax.f32 %v1742, 0.0
    %v2081 = vmax.f32 %v1933, 0.0
    %v2082 = vmax.f32 %v1935, 0.0
    %v2083 = vmax.f32 %v1746, 0.0
    %v2084 = vmax.f32 %v1748, 0.0
    %v2085 = vmax.f32 %v1939, 0.0
    %v2086 = vmax.f32 %v1941, 0.0
    %v2087 = vmax.f32 %v1750, 0.0
    %v2088 = vmax.f32 %v1752, 0.0
    %v2089 = vmax.f32 %v1943, 0.0
    %v2090 = vmax.f32 %v1945, 0.0
    %v2091 = vmax.f32 %v1756, 0.0
    %v2092 = vmax.f32 %v1758, 0.0
    %v2093 = vmax.f32 %v1949, 0.0
    %v2094 = vmax.f32 %v1951, 0.0
    %v2095 = vmax.f32 %v1760, 0.0
    %v2096 = vmax.f32 %v1762, 0.0
    %v2097 = vmax.f32 %v1953, 0.0
    %v2098 = vmax.f32 %v1955, 0.0
    %v2099 = vmax.f32 %v1766, 0.0
    %v2100 = vmax.f32 %v1768, 0.0
    %v2101 = vmax.f32 %v1959, 0.0
    %v2102 = vmax.f32 %v1961, 0.0
    %v2103 = vmax.f32 %v1770, 0.0
    %v2104 = vmax.f32 %v1772, 0.0
    %v2105 = vmax.f32 %v1963, 0.0
    %v2106 = vmax.f32 %v1965, 0.0
    %v2107 = vmax.f32 %v1776, 0.0
    %v2108 = vmax.f32 %v1778, 0.0
    %v2109 = vmax.f32 %v1969, 0.0
    %v2110 = vmax.f32 %v1971, 0.0
    %v2111 = vmax.f32 %v1780, 0.0
    %v2112 = vmax.f32 %v1782, 0.0
    %v2113 = vmax.f32 %v1973, 0.0
    %v2114 = vmax.f32 %v1975, 0.0
    %v2115 = vmax.f32 %v1786, 0.0
    %v2116 = vmax.f32 %v1788, 0.0
    %v2117 = vmax.f32 %v1979, 0.0
    %v2118 = vmax.f32 %v1981, 0.0
    %v2119 = vmax.f32 %v1790, 0.0
    %v2120 = vmax.f32 %v1792, 0.0
    %v2121 = vmax.f32 %v1983, 0.0
    %v2122 = vmax.f32 %v1985, 0.0
    %v2123 = vmax.f32 %v1796, 0.0
    %v2124 = vmax.f32 %v1798, 0.0
    %v2125 = vmax.f32 %v1989, 0.0
    %v2126 = vmax.f32 %v1991, 0.0
    %v2127 = vmax.f32 %v1800, 0.0
    %v2128 = vmax.f32 %v1802, 0.0
    %v2129 = vmax.f32 %v1993, 0.0
    %v2130 = vmax.f32 %v1995, 0.0
    %v2131 = vmax.f32 %v1806, 0.0
    %v2132 = vmax.f32 %v1808, 0.0
    %v2133 = vmax.f32 %v1999, 0.0
    %v2134 = vmax.f32 %v2001, 0.0
    %v2135 = vmax.f32 %v1810, 0.0
    %v2136 = vmax.f32 %v1812, 0.0
    %v2137 = vmax.f32 %v2003, 0.0
    %v2138 = vmax.f32 %v2005, 0.0
    %v2139 = vmax.f32 %v1816, 0.0
    %v2140 = vmax.f32 %v1818, 0.0
    %v2141 = vmax.f32 %v2009, 0.0
    %v2142 = vmax.f32 %v2011, 0.0
    %v2143 = vmax.f32 %v1820, 0.0
    %v2144 = vmax.f32 %v1822, 0.0
    %v2145 = vmax.f32 %v2013, 0.0
    %v2146 = vmax.f32 %v2015, 0.0
    %v2147 = vmax.f32 %v1826, 0.0
    %v2148 = vmax.f32 %v1828, 0.0
    %v2149 = vmax.f32 %v2019, 0.0
    %v2150 = vmax.f32 %v2021, 0.0
    %v2151 = vmax.f32 %v1830, 0.0
    %v2152 = vmax.f32 %v1832, 0.0
    %v2153 = vmax.f32 %v2023, 0.0
    %v2154 = vmax.f32 %v2025, 0.0
    %v2155 = vpack.c.bf16 %v2031, %v2027
    %v2156 = vpack.c.bf16 %v2032, %v2028
    %v2157 = vpack.c.bf16 %v2033, %v2029
    %v2158 = vpack.c.bf16 %v2034, %v2030
    %v2159 = vpack.c.bf16 %v2039, %v2035
    %v2160 = vpack.c.bf16 %v2040, %v2036
    %v2161 = vpack.c.bf16 %v2041, %v2037
    %v2162 = vpack.c.bf16 %v2042, %v2038
    %v2163 = vpack.c.bf16 %v2047, %v2043
    %v2164 = vpack.c.bf16 %v2048, %v2044
    %v2165 = vpack.c.bf16 %v2049, %v2045
    %v2166 = vpack.c.bf16 %v2050, %v2046
    %v2167 = vpack.c.bf16 %v2055, %v2051
    %v2168 = vpack.c.bf16 %v2056, %v2052
    %v2169 = vpack.c.bf16 %v2057, %v2053
    %v2170 = vpack.c.bf16 %v2058, %v2054
    %v2171 = vpack.c.bf16 %v2063, %v2059
    %v2172 = vpack.c.bf16 %v2064, %v2060
    %v2173 = vpack.c.bf16 %v2065, %v2061
    %v2174 = vpack.c.bf16 %v2066, %v2062
    %v2175 = vpack.c.bf16 %v2071, %v2067
    %v2176 = vpack.c.bf16 %v2072, %v2068
    %v2177 = vpack.c.bf16 %v2073, %v2069
    %v2178 = vpack.c.bf16 %v2074, %v2070
    %v2179 = vpack.c.bf16 %v2079, %v2075
    %v2180 = vpack.c.bf16 %v2080, %v2076
    %v2181 = vpack.c.bf16 %v2081, %v2077
    %v2182 = vpack.c.bf16 %v2082, %v2078
    %v2183 = vpack.c.bf16 %v2087, %v2083
    %v2184 = vpack.c.bf16 %v2088, %v2084
    %v2185 = vpack.c.bf16 %v2089, %v2085
    %v2186 = vpack.c.bf16 %v2090, %v2086
    %v2187 = vpack.c.bf16 %v2095, %v2091
    %v2188 = vpack.c.bf16 %v2096, %v2092
    %v2189 = vpack.c.bf16 %v2097, %v2093
    %v2190 = vpack.c.bf16 %v2098, %v2094
    %v2191 = vpack.c.bf16 %v2103, %v2099
    %v2192 = vpack.c.bf16 %v2104, %v2100
    %v2193 = vpack.c.bf16 %v2105, %v2101
    %v2194 = vpack.c.bf16 %v2106, %v2102
    %v2195 = vpack.c.bf16 %v2111, %v2107
    %v2196 = vpack.c.bf16 %v2112, %v2108
    %v2197 = vpack.c.bf16 %v2113, %v2109
    %v2198 = vpack.c.bf16 %v2114, %v2110
    %v2199 = vpack.c.bf16 %v2119, %v2115
    %v2200 = vpack.c.bf16 %v2120, %v2116
    %v2201 = vpack.c.bf16 %v2121, %v2117
    %v2202 = vpack.c.bf16 %v2122, %v2118
    %v2203 = vpack.c.bf16 %v2127, %v2123
    %v2204 = vpack.c.bf16 %v2128, %v2124
    %v2205 = vpack.c.bf16 %v2129, %v2125
    %v2206 = vpack.c.bf16 %v2130, %v2126
    %v2207 = vpack.c.bf16 %v2135, %v2131
    %v2208 = vpack.c.bf16 %v2136, %v2132
    %v2209 = vpack.c.bf16 %v2137, %v2133
    %v2210 = vpack.c.bf16 %v2138, %v2134
    %v2211 = vpack.c.bf16 %v2143, %v2139
    %v2212 = vpack.c.bf16 %v2144, %v2140
    %v2213 = vpack.c.bf16 %v2145, %v2141
    %v2214 = vpack.c.bf16 %v2146, %v2142
    %v2215 = vpack.c.bf16 %v2151, %v2147
    %v2216 = vpack.c.bf16 %v2152, %v2148
    %v2217 = vpack.c.bf16 %v2153, %v2149
    %v2218 = vpack.c.bf16 %v2154, %v2150
    %v2219 = vld [vmem:[#allocation13] sm:$0xff]
    %v2220 = vld [vmem:[#allocation13 + $0x8] sm:$0xff]
    %v2221 = vld [vmem:[#allocation13 + $0x10] sm:$0xff]
    %v2222 = vld [vmem:[#allocation13 + $0x18] sm:$0xf]
    %v2223 = vld [vmem:[#allocation13 + $0x1c] sm:$0xff]
    %v2224 = vld [vmem:[#allocation13 + $0x24] sm:$0xff]
    %v2225 = vld [vmem:[#allocation13 + $0x2c] sm:$0xff]
    %v2226 = vld [vmem:[#allocation13 + $0x34] sm:$0xf]
    %v2227 = vld [vmem:[#allocation13 + $0x38] sm:$0xff]
    %v2228 = vld [vmem:[#allocation13 + $0x40] sm:$0xff]
    %v2229 = vld [vmem:[#allocation13 + $0x48] sm:$0xff]
    %v2230 = vld [vmem:[#allocation13 + $0x50] sm:$0xf]
    %v2231 = vld [vmem:[#allocation13 + $0x54] sm:$0xff]
    %v2232 = vld [vmem:[#allocation13 + $0x5c] sm:$0xff]
    %v2233 = vld [vmem:[#allocation13 + $0x64] sm:$0xff]
    %v2234 = vld [vmem:[#allocation13 + $0x6c] sm:$0xf]
    %v2235 = vld [vmem:[#allocation13 + $0x70] sm:$0xff]
    %v2236 = vld [vmem:[#allocation13 + $0x78] sm:$0xff]
    %v2237 = vld [vmem:[#allocation13 + $0x80] sm:$0xff]
    %v2238 = vld [vmem:[#allocation13 + $0x88] sm:$0xf]
    %v2239 = vld [vmem:[#allocation13 + $0x8c] sm:$0xff]
    %v2240 = vld [vmem:[#allocation13 + $0x94] sm:$0xff]
    %v2241 = vld [vmem:[#allocation13 + $0x9c] sm:$0xff]
    %v2242 = vld [vmem:[#allocation13 + $0xa4] sm:$0xf]
    %v2243 = vld [vmem:[#allocation13 + $0xa8] sm:$0xff]
    %v2244 = vld [vmem:[#allocation13 + $0xb0] sm:$0xff]
    %v2245 = vld [vmem:[#allocation13 + $0xb8] sm:$0xff]
    %v2246 = vld [vmem:[#allocation13 + $0xc0] sm:$0xf]
    %v2247 = vld [vmem:[#allocation13 + $0xc4] sm:$0xff]
    %v2248 = vld [vmem:[#allocation13 + $0xcc] sm:$0xff]
    %v2249 = vld [vmem:[#allocation13 + $0xd4] sm:$0xff]
    %v2250 = vld [vmem:[#allocation13 + $0xdc] sm:$0xf]
    %v2251 = vld [vmem:[#allocation13 + $0xe0] sm:$0xff]
    %v2252 = vld [vmem:[#allocation13 + $0xe8] sm:$0xff]
    %v2253 = vld [vmem:[#allocation13 + $0xf0] sm:$0xff]
    %v2254 = vld [vmem:[#allocation13 + $0xf8] sm:$0xf]
    %v2255 = vld [vmem:[#allocation13 + $0xfc] sm:$0xff]
    %v2256 = vld [vmem:[#allocation13 + $0x104] sm:$0xff]
    %v2257 = vld [vmem:[#allocation13 + $0x10c] sm:$0xff]
    %v2258 = vld [vmem:[#allocation13 + $0x114] sm:$0xf]
    %v2259 = vld [vmem:[#allocation13 + $0x118] sm:$0xff]
    %v2260 = vld [vmem:[#allocation13 + $0x120] sm:$0xff]
    %v2261 = vld [vmem:[#allocation13 + $0x128] sm:$0xff]
    %v2262 = vld [vmem:[#allocation13 + $0x130] sm:$0xf]
    %v2263 = vld [vmem:[#allocation13 + $0x134] sm:$0xff]
    %v2264 = vld [vmem:[#allocation13 + $0x13c] sm:$0xff]
    %v2265 = vld [vmem:[#allocation13 + $0x144] sm:$0xff]
    %v2266 = vld [vmem:[#allocation13 + $0x14c] sm:$0xf]
    %v2267 = vld [vmem:[#allocation13 + $0x150] sm:$0xff]
    %v2268 = vld [vmem:[#allocation13 + $0x158] sm:$0xff]
    %v2269 = vld [vmem:[#allocation13 + $0x160] sm:$0xff]
    %v2270 = vld [vmem:[#allocation13 + $0x168] sm:$0xf]
    %v2271 = vld [vmem:[#allocation13 + $0x16c] sm:$0xff]
    %v2272 = vld [vmem:[#allocation13 + $0x174] sm:$0xff]
    %v2273 = vld [vmem:[#allocation13 + $0x17c] sm:$0xff]
    %v2274 = vld [vmem:[#allocation13 + $0x184] sm:$0xf]
    %v2275 = vld [vmem:[#allocation13 + $0x188] sm:$0xff]
    %v2276 = vld [vmem:[#allocation13 + $0x190] sm:$0xff]
    %v2277 = vld [vmem:[#allocation13 + $0x198] sm:$0xff]
    %v2278 = vld [vmem:[#allocation13 + $0x1a0] sm:$0xf]
    %v2279 = vld [vmem:[#allocation13 + $0x1a4] sm:$0xff]
    %v2280 = vld [vmem:[#allocation13 + $0x1ac] sm:$0xff]
    %v2281 = vld [vmem:[#allocation13 + $0x1b4] sm:$0xff]
    %v2282 = vld [vmem:[#allocation13 + $0x1bc] sm:$0xf]
    %v2283 = vld [vmem:[#allocation13 + $0x1c0] sm:$0xff]
    %v2284 = vld [vmem:[#allocation13 + $0x1c8] sm:$0xff]
    %v2285 = vld [vmem:[#allocation13 + $0x1d0] sm:$0xff]
    %v2286 = vld [vmem:[#allocation13 + $0x1d8] sm:$0xf]
    %v2287 = vld [vmem:[#allocation13 + $0x1dc] sm:$0xff]
    %v2288 = vld [vmem:[#allocation13 + $0x1e4] sm:$0xff]
    %v2289 = vld [vmem:[#allocation13 + $0x1ec] sm:$0xff]
    %v2290 = vld [vmem:[#allocation13 + $0x1f4] sm:$0xf]
    %v2291 = vld [vmem:[#allocation13 + $0x1f8] sm:$0xff]
    %v2292 = vld [vmem:[#allocation13 + $0x200] sm:$0xff]
    %v2293 = vld [vmem:[#allocation13 + $0x208] sm:$0xff]
    %v2294 = vld [vmem:[#allocation13 + $0x210] sm:$0xf]
    %v2295 = vld [vmem:[#allocation13 + $0x214] sm:$0xff]
    %v2296 = vld [vmem:[#allocation13 + $0x21c] sm:$0xff]
    %v2297 = vld [vmem:[#allocation13 + $0x224] sm:$0xff]
    %v2298 = vld [vmem:[#allocation13 + $0x22c] sm:$0xf]
    %v2299 = vld [vmem:[#allocation13 + $0x230] sm:$0xff]
    %v2300 = vld [vmem:[#allocation13 + $0x238] sm:$0xff]
    %v2301 = vld [vmem:[#allocation13 + $0x240] sm:$0xff]
    %v2302 = vld [vmem:[#allocation13 + $0x248] sm:$0xf]
    %v2303 = vld [vmem:[#allocation13 + $0x24c] sm:$0xff]
    %v2304 = vld [vmem:[#allocation13 + $0x254] sm:$0xff]
    %v2305 = vld [vmem:[#allocation13 + $0x25c] sm:$0xff]
    %v2306 = vld [vmem:[#allocation13 + $0x264] sm:$0xf]
    %v2307 = vld [vmem:[#allocation13 + $0x268] sm:$0xff]
    %v2308 = vld [vmem:[#allocation13 + $0x270] sm:$0xff]
    %v2309 = vld [vmem:[#allocation13 + $0x278] sm:$0xff]
    %v2310 = vld [vmem:[#allocation13 + $0x280] sm:$0xf]
    %v2311 = vld [vmem:[#allocation13 + $0x284] sm:$0xff]
    %v2312 = vld [vmem:[#allocation13 + $0x28c] sm:$0xff]
    %v2313 = vld [vmem:[#allocation13 + $0x294] sm:$0xff]
    %v2314 = vld [vmem:[#allocation13 + $0x29c] sm:$0xf]
    %v2315 = vld [vmem:[#allocation13 + $0x2a0] sm:$0xff]
    %v2316 = vld [vmem:[#allocation13 + $0x2a8] sm:$0xff]
    %v2317 = vld [vmem:[#allocation13 + $0x2b0] sm:$0xff]
    %v2318 = vld [vmem:[#allocation13 + $0x2b8] sm:$0xf]
    %v2319 = vld [vmem:[#allocation13 + $0x2bc] sm:$0xff]
    %v2320 = vld [vmem:[#allocation13 + $0x2c4] sm:$0xff]
    %v2321 = vld [vmem:[#allocation13 + $0x2cc] sm:$0xff]
    %v2322 = vld [vmem:[#allocation13 + $0x2d4] sm:$0xf]
    %v2323 = vld [vmem:[#allocation13 + $0x2d8] sm:$0xff]
    %v2324 = vld [vmem:[#allocation13 + $0x2e0] sm:$0xff]
    %v2325 = vld [vmem:[#allocation13 + $0x2e8] sm:$0xff]
    %v2326 = vld [vmem:[#allocation13 + $0x2f0] sm:$0xf]
    %v2327 = vld [vmem:[#allocation13 + $0x2f4] sm:$0xff]
    %v2328 = vld [vmem:[#allocation13 + $0x2fc] sm:$0xff]
    %v2329 = vld [vmem:[#allocation13 + $0x304] sm:$0xff]
    %v2330 = vld [vmem:[#allocation13 + $0x30c] sm:$0xf]
    %v2331 = vld [vmem:[#allocation13 + $0x310] sm:$0xff]
    %v2332 = vld [vmem:[#allocation13 + $0x318] sm:$0xff]
    %v2333 = vld [vmem:[#allocation13 + $0x320] sm:$0xff]
    %v2334 = vld [vmem:[#allocation13 + $0x328] sm:$0xf]
    %v2335 = vld [vmem:[#allocation13 + $0x32c] sm:$0xff]
    %v2336 = vld [vmem:[#allocation13 + $0x334] sm:$0xff]
    %v2337 = vld [vmem:[#allocation13 + $0x33c] sm:$0xff]
    %v2338 = vld [vmem:[#allocation13 + $0x344] sm:$0xf]
    %v2339 = vld [vmem:[#allocation13 + $0x348] sm:$0xff]
    %v2340 = vld [vmem:[#allocation13 + $0x350] sm:$0xff]
    %v2341 = vld [vmem:[#allocation13 + $0x358] sm:$0xff]
    %v2342 = vld [vmem:[#allocation13 + $0x360] sm:$0xf]
    %v2343 = vld [vmem:[#allocation13 + $0x364] sm:$0xff]
    %v2344 = vld [vmem:[#allocation13 + $0x36c] sm:$0xff]
    %v2345 = vld [vmem:[#allocation13 + $0x374] sm:$0xff]
    %v2346 = vld [vmem:[#allocation13 + $0x37c] sm:$0xf]
    %v2347 = vld [vmem:[#allocation13 + $0x380] sm:$0xff]
    %v2348 = vld [vmem:[#allocation13 + $0x388] sm:$0xff]
    %v2349 = vld [vmem:[#allocation13 + $0x390] sm:$0xff]
    %v2350 = vld [vmem:[#allocation13 + $0x398] sm:$0xf]
    %v2351 = vld [vmem:[#allocation13 + $0x39c] sm:$0xff]
    %v2352 = vld [vmem:[#allocation13 + $0x3a4] sm:$0xff]
    %v2353 = vld [vmem:[#allocation13 + $0x3ac] sm:$0xff]
    %v2354 = vld [vmem:[#allocation13 + $0x3b4] sm:$0xf]
    %v2355 = vld [vmem:[#allocation13 + $0x3b8] sm:$0xff]
    %v2356 = vld [vmem:[#allocation13 + $0x3c0] sm:$0xff]
    %v2357 = vld [vmem:[#allocation13 + $0x3c8] sm:$0xff]
    %v2358 = vld [vmem:[#allocation13 + $0x3d0] sm:$0xf]
    %v2359 = vld [vmem:[#allocation13 + $0x3d4] sm:$0xff]
    %v2360 = vld [vmem:[#allocation13 + $0x3dc] sm:$0xff]
    %v2361 = vld [vmem:[#allocation13 + $0x3e4] sm:$0xff]
    %v2362 = vld [vmem:[#allocation13 + $0x3ec] sm:$0xf]
    %v2363 = vld [vmem:[#allocation13 + $0x3f0] sm:$0xff]
    %v2364 = vld [vmem:[#allocation13 + $0x3f8] sm:$0xff]
    %v2365 = vld [vmem:[#allocation13 + $0x400] sm:$0xff]
    %v2366 = vld [vmem:[#allocation13 + $0x408] sm:$0xf]
    %v2367 = vld [vmem:[#allocation13 + $0x40c] sm:$0xff]
    %v2368 = vld [vmem:[#allocation13 + $0x414] sm:$0xff]
    %v2369 = vld [vmem:[#allocation13 + $0x41c] sm:$0xff]
    %v2370 = vld [vmem:[#allocation13 + $0x424] sm:$0xf]
    %v2371 = vld [vmem:[#allocation13 + $0x428] sm:$0xff]
    %v2372 = vld [vmem:[#allocation13 + $0x430] sm:$0xff]
    %v2373 = vld [vmem:[#allocation13 + $0x438] sm:$0xff]
    %v2374 = vld [vmem:[#allocation13 + $0x440] sm:$0xf]
    %v2375 = vld [vmem:[#allocation13 + $0x444] sm:$0xff]
    %v2376 = vld [vmem:[#allocation13 + $0x44c] sm:$0xff]
    %v2377 = vld [vmem:[#allocation13 + $0x454] sm:$0xff]
    %v2378 = vld [vmem:[#allocation13 + $0x45c] sm:$0xf]
    %v2379 = vld [vmem:[#allocation13 + $0x460] sm:$0xff]
    %v2380 = vld [vmem:[#allocation13 + $0x468] sm:$0xff]
    %v2381 = vld [vmem:[#allocation13 + $0x470] sm:$0xff]
    %v2382 = vld [vmem:[#allocation13 + $0x478] sm:$0xf]
    %v2383 = vld [vmem:[#allocation13 + $0x47c] sm:$0xff]
    %v2384 = vld [vmem:[#allocation13 + $0x484] sm:$0xff]
    %v2385 = vld [vmem:[#allocation13 + $0x48c] sm:$0xff]
    %v2386 = vld [vmem:[#allocation13 + $0x494] sm:$0xf]
    %v2387 = vld [vmem:[#allocation13 + $0x498] sm:$0xff]
    %v2388 = vld [vmem:[#allocation13 + $0x4a0] sm:$0xff]
    %v2389 = vld [vmem:[#allocation13 + $0x4a8] sm:$0xff]
    %v2390 = vld [vmem:[#allocation13 + $0x4b0] sm:$0xf]
    %v2391 = vld [vmem:[#allocation13 + $0x4b4] sm:$0xff]
    %v2392 = vld [vmem:[#allocation13 + $0x4bc] sm:$0xff]
    %v2393 = vld [vmem:[#allocation13 + $0x4c4] sm:$0xff]
    %v2394 = vld [vmem:[#allocation13 + $0x4cc] sm:$0xf]
    %v2395 = vld [vmem:[#allocation13 + $0x4d0] sm:$0xff]
    %v2396 = vld [vmem:[#allocation13 + $0x4d8] sm:$0xff]
    %v2397 = vld [vmem:[#allocation13 + $0x4e0] sm:$0xff]
    %v2398 = vld [vmem:[#allocation13 + $0x4e8] sm:$0xf]
    %v2399 = vld [vmem:[#allocation13 + $0x4ec] sm:$0xff]
    %v2400 = vld [vmem:[#allocation13 + $0x4f4] sm:$0xff]
    %v2401 = vld [vmem:[#allocation13 + $0x4fc] sm:$0xff]
    %v2402 = vld [vmem:[#allocation13 + $0x504] sm:$0xf]
    %v2403 = vld [vmem:[#allocation13 + $0x508] sm:$0xff]
    %v2404 = vld [vmem:[#allocation13 + $0x510] sm:$0xff]
    %v2405 = vld [vmem:[#allocation13 + $0x518] sm:$0xff]
    %v2406 = vld [vmem:[#allocation13 + $0x520] sm:$0xf]
    %v2407 = vld [vmem:[#allocation13 + $0x524] sm:$0xff]
    %v2408 = vld [vmem:[#allocation13 + $0x52c] sm:$0xff]
    %v2409 = vld [vmem:[#allocation13 + $0x534] sm:$0xff]
    %v2410 = vld [vmem:[#allocation13 + $0x53c] sm:$0xf]
    %v2411 = vld [vmem:[#allocation13 + $0x540] sm:$0xff]
    %v2412 = vld [vmem:[#allocation13 + $0x548] sm:$0xff]
    %v2413 = vld [vmem:[#allocation13 + $0x550] sm:$0xff]
    %v2414 = vld [vmem:[#allocation13 + $0x558] sm:$0xf]
    %v2415 = vld [vmem:[#allocation13 + $0x55c] sm:$0xff]
    %v2416 = vld [vmem:[#allocation13 + $0x564] sm:$0xff]
    %v2417 = vld [vmem:[#allocation13 + $0x56c] sm:$0xff]
    %v2418 = vld [vmem:[#allocation13 + $0x574] sm:$0xf]
    %v2419 = vld [vmem:[#allocation13 + $0x578] sm:$0xff]
    %v2420 = vld [vmem:[#allocation13 + $0x580] sm:$0xff]
    %v2421 = vld [vmem:[#allocation13 + $0x588] sm:$0xff]
    %v2422 = vld [vmem:[#allocation13 + $0x590] sm:$0xf]
    %v2423 = vld [vmem:[#allocation13 + $0x594] sm:$0xff]
    %v2424 = vld [vmem:[#allocation13 + $0x59c] sm:$0xff]
    %v2425 = vld [vmem:[#allocation13 + $0x5a4] sm:$0xff]
    %v2426 = vld [vmem:[#allocation13 + $0x5ac] sm:$0xf]
    %v2427 = vld [vmem:[#allocation13 + $0x5b0] sm:$0xff]
    %v2428 = vld [vmem:[#allocation13 + $0x5b8] sm:$0xff]
    %v2429 = vld [vmem:[#allocation13 + $0x5c0] sm:$0xff]
    %v2430 = vld [vmem:[#allocation13 + $0x5c8] sm:$0xf]
    %v2431 = vld [vmem:[#allocation13 + $0x5cc] sm:$0xff]
    %v2432 = vld [vmem:[#allocation13 + $0x5d4] sm:$0xff]
    %v2433 = vld [vmem:[#allocation13 + $0x5dc] sm:$0xff]
    %v2434 = vld [vmem:[#allocation13 + $0x5e4] sm:$0xf]
    %v2435 = vld [vmem:[#allocation13 + $0x5e8] sm:$0xff]
    %v2436 = vld [vmem:[#allocation13 + $0x5f0] sm:$0xff]
    %v2437 = vld [vmem:[#allocation13 + $0x5f8] sm:$0xff]
    %v2438 = vld [vmem:[#allocation13 + $0x600] sm:$0xf]
    %v2439 = vld [vmem:[#allocation13 + $0x604] sm:$0xff]
    %v2440 = vld [vmem:[#allocation13 + $0x60c] sm:$0xff]
    %v2441 = vld [vmem:[#allocation13 + $0x614] sm:$0xff]
    %v2442 = vld [vmem:[#allocation13 + $0x61c] sm:$0xf]
    %v2443 = vld [vmem:[#allocation13 + $0x620] sm:$0xff]
    %v2444 = vld [vmem:[#allocation13 + $0x628] sm:$0xff]
    %v2445 = vld [vmem:[#allocation13 + $0x630] sm:$0xff]
    %v2446 = vld [vmem:[#allocation13 + $0x638] sm:$0xf]
    %v2447 = vld [vmem:[#allocation13 + $0x63c] sm:$0xff]
    %v2448 = vld [vmem:[#allocation13 + $0x644] sm:$0xff]
    %v2449 = vld [vmem:[#allocation13 + $0x64c] sm:$0xff]
    %v2450 = vld [vmem:[#allocation13 + $0x654] sm:$0xf]
    %v2451 = vld [vmem:[#allocation13 + $0x658] sm:$0xff]
    %v2452 = vld [vmem:[#allocation13 + $0x660] sm:$0xff]
    %v2453 = vld [vmem:[#allocation13 + $0x668] sm:$0xff]
    %v2454 = vld [vmem:[#allocation13 + $0x670] sm:$0xf]
    %v2455 = vld [vmem:[#allocation13 + $0x674] sm:$0xff]
    %v2456 = vld [vmem:[#allocation13 + $0x67c] sm:$0xff]
    %v2457 = vld [vmem:[#allocation13 + $0x684] sm:$0xff]
    %v2458 = vld [vmem:[#allocation13 + $0x68c] sm:$0xf]
    %v2459 = vld [vmem:[#allocation13 + $0x690] sm:$0xff]
    %v2460 = vld [vmem:[#allocation13 + $0x698] sm:$0xff]
    %v2461 = vld [vmem:[#allocation13 + $0x6a0] sm:$0xff]
    %v2462 = vld [vmem:[#allocation13 + $0x6a8] sm:$0xf]
    %v2463 = vld [vmem:[#allocation13 + $0x6ac] sm:$0xff]
    %v2464 = vld [vmem:[#allocation13 + $0x6b4] sm:$0xff]
    %v2465 = vld [vmem:[#allocation13 + $0x6bc] sm:$0xff]
    %v2466 = vld [vmem:[#allocation13 + $0x6c4] sm:$0xf]
    %v2467 = vld [vmem:[#allocation13 + $0x6c8] sm:$0xff]
    %v2468 = vld [vmem:[#allocation13 + $0x6d0] sm:$0xff]
    %v2469 = vld [vmem:[#allocation13 + $0x6d8] sm:$0xff]
    %v2470 = vld [vmem:[#allocation13 + $0x6e0] sm:$0xf]
    %v2471 = vld [vmem:[#allocation13 + $0x6e4] sm:$0xff]
    %v2472 = vld [vmem:[#allocation13 + $0x6ec] sm:$0xff]
    %v2473 = vld [vmem:[#allocation13 + $0x6f4] sm:$0xff]
    %v2474 = vld [vmem:[#allocation13 + $0x6fc] sm:$0xf]
    %v2475 = vld [vmem:[#allocation14] sm:$0xff]
    %v2477 = vlaneseq
    %v2478 = vshrl.u32 %v2477, 7
    %v2479 = vsub.s32 0, %v2478
    %v2480 = vrot.slane %v2475, %v2479
    %v2481 = vlaneseq
    %v2482 = vshrl.u32 %v2481, 7
    %v2483 = vsub.s32 1, %v2482
    %v2484 = vrot.slane %v2475, %v2483
    %v2485 = vlaneseq
    %v2486 = vshrl.u32 %v2485, 7
    %v2487 = vsub.s32 2, %v2486
    %v2488 = vrot.slane %v2475, %v2487
    %v2489 = vlaneseq
    %v2490 = vshrl.u32 %v2489, 7
    %v2491 = vsub.s32 3, %v2490
    %v2492 = vrot.slane %v2475, %v2491
    %v2493 = vlaneseq
    %v2494 = vshrl.u32 %v2493, 7
    %v2495 = vsub.s32 4, %v2494
    %v2496 = vrot.slane %v2475, %v2495
    %v2497 = vlaneseq
    %v2498 = vshrl.u32 %v2497, 7
    %v2499 = vsub.s32 5, %v2498
    %v2500 = vrot.slane %v2475, %v2499
    %v2501 = vlaneseq
    %v2502 = vshrl.u32 %v2501, 7
    %v2503 = vsub.s32 6, %v2502
    %v2504 = vrot.slane %v2475, %v2503
    %v2768 = vunpack.c.l.b16 %v2219
    %v2769 = vunpack.c.h.b16 %v2219
    %v2770 = vunpack.c.l.b16 %v2220
    %v2771 = vunpack.c.h.b16 %v2220
    %v2772 = vunpack.c.l.b16 %v2221
    %v2773 = vunpack.c.h.b16 %v2221
    %v2774 = vunpack.c.l.b16 %v2222
    %v2775 = vunpack.c.l.b16 %v2223
    %v2776 = vunpack.c.h.b16 %v2223
    %v2777 = vunpack.c.l.b16 %v2224
    %v2778 = vunpack.c.h.b16 %v2224
    %v2779 = vunpack.c.l.b16 %v2225
    %v2780 = vunpack.c.h.b16 %v2225
    %v2781 = vunpack.c.l.b16 %v2226
    %v2782 = vunpack.c.l.b16 %v2227
    %v2783 = vunpack.c.h.b16 %v2227
    %v2784 = vunpack.c.l.b16 %v2228
    %v2785 = vunpack.c.h.b16 %v2228
    %v2786 = vunpack.c.l.b16 %v2229
    %v2787 = vunpack.c.h.b16 %v2229
    %v2788 = vunpack.c.l.b16 %v2230
    %v2789 = vunpack.c.l.b16 %v2231
    %v2790 = vunpack.c.h.b16 %v2231
    %v2791 = vunpack.c.l.b16 %v2232
    %v2792 = vunpack.c.h.b16 %v2232
    %v2793 = vunpack.c.l.b16 %v2233
    %v2794 = vunpack.c.h.b16 %v2233
    %v2795 = vunpack.c.l.b16 %v2234
    %v2796 = vunpack.c.l.b16 %v2235
    %v2797 = vunpack.c.h.b16 %v2235
    %v2798 = vunpack.c.l.b16 %v2236
    %v2799 = vunpack.c.h.b16 %v2236
    %v2800 = vunpack.c.l.b16 %v2237
    %v2801 = vunpack.c.h.b16 %v2237
    %v2802 = vunpack.c.l.b16 %v2238
    %v2803 = vunpack.c.l.b16 %v2239
    %v2804 = vunpack.c.h.b16 %v2239
    %v2805 = vunpack.c.l.b16 %v2240
    %v2806 = vunpack.c.h.b16 %v2240
    %v2807 = vunpack.c.l.b16 %v2241
    %v2808 = vunpack.c.h.b16 %v2241
    %v2809 = vunpack.c.l.b16 %v2242
    %v2810 = vunpack.c.l.b16 %v2243
    %v2811 = vunpack.c.h.b16 %v2243
    %v2812 = vunpack.c.l.b16 %v2244
    %v2813 = vunpack.c.h.b16 %v2244
    %v2814 = vunpack.c.l.b16 %v2245
    %v2815 = vunpack.c.h.b16 %v2245
    %v2816 = vunpack.c.l.b16 %v2246
    %v2817 = vunpack.c.l.b16 %v2247
    %v2818 = vunpack.c.h.b16 %v2247
    %v2819 = vunpack.c.l.b16 %v2248
    %v2820 = vunpack.c.h.b16 %v2248
    %v2821 = vunpack.c.l.b16 %v2249
    %v2822 = vunpack.c.h.b16 %v2249
    %v2823 = vunpack.c.l.b16 %v2250
    %v2824 = vunpack.c.l.b16 %v2251
    %v2825 = vunpack.c.h.b16 %v2251
    %v2826 = vunpack.c.l.b16 %v2252
    %v2827 = vunpack.c.h.b16 %v2252
    %v2828 = vunpack.c.l.b16 %v2253
    %v2829 = vunpack.c.h.b16 %v2253
    %v2830 = vunpack.c.l.b16 %v2254
    %v2831 = vunpack.c.l.b16 %v2255
    %v2832 = vunpack.c.h.b16 %v2255
    %v2833 = vunpack.c.l.b16 %v2256
    %v2834 = vunpack.c.h.b16 %v2256
    %v2835 = vunpack.c.l.b16 %v2257
    %v2836 = vunpack.c.h.b16 %v2257
    %v2837 = vunpack.c.l.b16 %v2258
    %v2838 = vunpack.c.l.b16 %v2259
    %v2839 = vunpack.c.h.b16 %v2259
    %v2840 = vunpack.c.l.b16 %v2260
    %v2841 = vunpack.c.h.b16 %v2260
    %v2842 = vunpack.c.l.b16 %v2261
    %v2843 = vunpack.c.h.b16 %v2261
    %v2844 = vunpack.c.l.b16 %v2262
    %v2845 = vunpack.c.l.b16 %v2263
    %v2846 = vunpack.c.h.b16 %v2263
    %v2847 = vunpack.c.l.b16 %v2264
    %v2848 = vunpack.c.h.b16 %v2264
    %v2849 = vunpack.c.l.b16 %v2265
    %v2850 = vunpack.c.h.b16 %v2265
    %v2851 = vunpack.c.l.b16 %v2266
    %v2852 = vunpack.c.l.b16 %v2267
    %v2853 = vunpack.c.h.b16 %v2267
    %v2854 = vunpack.c.l.b16 %v2268
    %v2855 = vunpack.c.h.b16 %v2268
    %v2856 = vunpack.c.l.b16 %v2269
    %v2857 = vunpack.c.h.b16 %v2269
    %v2858 = vunpack.c.l.b16 %v2270
    %v2859 = vunpack.c.l.b16 %v2271
    %v2860 = vunpack.c.h.b16 %v2271
    %v2861 = vunpack.c.l.b16 %v2272
    %v2862 = vunpack.c.h.b16 %v2272
    %v2863 = vunpack.c.l.b16 %v2273
    %v2864 = vunpack.c.h.b16 %v2273
    %v2865 = vunpack.c.l.b16 %v2274
    %v2866 = vunpack.c.l.b16 %v2275
    %v2867 = vunpack.c.h.b16 %v2275
    %v2868 = vunpack.c.l.b16 %v2276
    %v2869 = vunpack.c.h.b16 %v2276
    %v2870 = vunpack.c.l.b16 %v2277
    %v2871 = vunpack.c.h.b16 %v2277
    %v2872 = vunpack.c.l.b16 %v2278
    %v2873 = vunpack.c.l.b16 %v2279
    %v2874 = vunpack.c.h.b16 %v2279
    %v2875 = vunpack.c.l.b16 %v2280
    %v2876 = vunpack.c.h.b16 %v2280
    %v2877 = vunpack.c.l.b16 %v2281
    %v2878 = vunpack.c.h.b16 %v2281
    %v2879 = vunpack.c.l.b16 %v2282
    %v2880 = vunpack.c.l.b16 %v2283
    %v2881 = vunpack.c.h.b16 %v2283
    %v2882 = vunpack.c.l.b16 %v2284
    %v2883 = vunpack.c.h.b16 %v2284
    %v2884 = vunpack.c.l.b16 %v2285
    %v2885 = vunpack.c.h.b16 %v2285
    %v2886 = vunpack.c.l.b16 %v2286
    %v2887 = vunpack.c.l.b16 %v2287
    %v2888 = vunpack.c.h.b16 %v2287
    %v2889 = vunpack.c.l.b16 %v2288
    %v2890 = vunpack.c.h.b16 %v2288
    %v2891 = vunpack.c.l.b16 %v2289
    %v2892 = vunpack.c.h.b16 %v2289
    %v2893 = vunpack.c.l.b16 %v2290
    %v2894 = vunpack.c.l.b16 %v2291
    %v2895 = vunpack.c.h.b16 %v2291
    %v2896 = vunpack.c.l.b16 %v2292
    %v2897 = vunpack.c.h.b16 %v2292
    %v2898 = vunpack.c.l.b16 %v2293
    %v2899 = vunpack.c.h.b16 %v2293
    %v2900 = vunpack.c.l.b16 %v2294
    %v2901 = vunpack.c.l.b16 %v2295
    %v2902 = vunpack.c.h.b16 %v2295
    %v2903 = vunpack.c.l.b16 %v2296
    %v2904 = vunpack.c.h.b16 %v2296
    %v2905 = vunpack.c.l.b16 %v2297
    %v2906 = vunpack.c.h.b16 %v2297
    %v2907 = vunpack.c.l.b16 %v2298
    %v2908 = vunpack.c.l.b16 %v2299
    %v2909 = vunpack.c.h.b16 %v2299
    %v2910 = vunpack.c.l.b16 %v2300
    %v2911 = vunpack.c.h.b16 %v2300
    %v2912 = vunpack.c.l.b16 %v2301
    %v2913 = vunpack.c.h.b16 %v2301
    %v2914 = vunpack.c.l.b16 %v2302
    %v2915 = vunpack.c.l.b16 %v2303
    %v2916 = vunpack.c.h.b16 %v2303
    %v2917 = vunpack.c.l.b16 %v2304
    %v2918 = vunpack.c.h.b16 %v2304
    %v2919 = vunpack.c.l.b16 %v2305
    %v2920 = vunpack.c.h.b16 %v2305
    %v2921 = vunpack.c.l.b16 %v2306
    %v2922 = vunpack.c.l.b16 %v2307
    %v2923 = vunpack.c.h.b16 %v2307
    %v2924 = vunpack.c.l.b16 %v2308
    %v2925 = vunpack.c.h.b16 %v2308
    %v2926 = vunpack.c.l.b16 %v2309
    %v2927 = vunpack.c.h.b16 %v2309
    %v2928 = vunpack.c.l.b16 %v2310
    %v2929 = vunpack.c.l.b16 %v2311
    %v2930 = vunpack.c.h.b16 %v2311
    %v2931 = vunpack.c.l.b16 %v2312
    %v2932 = vunpack.c.h.b16 %v2312
    %v2933 = vunpack.c.l.b16 %v2313
    %v2934 = vunpack.c.h.b16 %v2313
    %v2935 = vunpack.c.l.b16 %v2314
    %v2936 = vunpack.c.l.b16 %v2315
    %v2937 = vunpack.c.h.b16 %v2315
    %v2938 = vunpack.c.l.b16 %v2316
    %v2939 = vunpack.c.h.b16 %v2316
    %v2940 = vunpack.c.l.b16 %v2317
    %v2941 = vunpack.c.h.b16 %v2317
    %v2942 = vunpack.c.l.b16 %v2318
    %v2943 = vunpack.c.l.b16 %v2319
    %v2944 = vunpack.c.h.b16 %v2319
    %v2945 = vunpack.c.l.b16 %v2320
    %v2946 = vunpack.c.h.b16 %v2320
    %v2947 = vunpack.c.l.b16 %v2321
    %v2948 = vunpack.c.h.b16 %v2321
    %v2949 = vunpack.c.l.b16 %v2322
    %v2950 = vunpack.c.l.b16 %v2323
    %v2951 = vunpack.c.h.b16 %v2323
    %v2952 = vunpack.c.l.b16 %v2324
    %v2953 = vunpack.c.h.b16 %v2324
    %v2954 = vunpack.c.l.b16 %v2325
    %v2955 = vunpack.c.h.b16 %v2325
    %v2956 = vunpack.c.l.b16 %v2326
    %v2957 = vunpack.c.l.b16 %v2327
    %v2958 = vunpack.c.h.b16 %v2327
    %v2959 = vunpack.c.l.b16 %v2328
    %v2960 = vunpack.c.h.b16 %v2328
    %v2961 = vunpack.c.l.b16 %v2329
    %v2962 = vunpack.c.h.b16 %v2329
    %v2963 = vunpack.c.l.b16 %v2330
    %v2964 = vunpack.c.l.b16 %v2331
    %v2965 = vunpack.c.h.b16 %v2331
    %v2966 = vunpack.c.l.b16 %v2332
    %v2967 = vunpack.c.h.b16 %v2332
    %v2968 = vunpack.c.l.b16 %v2333
    %v2969 = vunpack.c.h.b16 %v2333
    %v2970 = vunpack.c.l.b16 %v2334
    %v2971 = vunpack.c.l.b16 %v2335
    %v2972 = vunpack.c.h.b16 %v2335
    %v2973 = vunpack.c.l.b16 %v2336
    %v2974 = vunpack.c.h.b16 %v2336
    %v2975 = vunpack.c.l.b16 %v2337
    %v2976 = vunpack.c.h.b16 %v2337
    %v2977 = vunpack.c.l.b16 %v2338
    %v2978 = vunpack.c.l.b16 %v2339
    %v2979 = vunpack.c.h.b16 %v2339
    %v2980 = vunpack.c.l.b16 %v2340
    %v2981 = vunpack.c.h.b16 %v2340
    %v2982 = vunpack.c.l.b16 %v2341
    %v2983 = vunpack.c.h.b16 %v2341
    %v2984 = vunpack.c.l.b16 %v2342
    %v2985 = vunpack.c.l.b16 %v2343
    %v2986 = vunpack.c.h.b16 %v2343
    %v2987 = vunpack.c.l.b16 %v2344
    %v2988 = vunpack.c.h.b16 %v2344
    %v2989 = vunpack.c.l.b16 %v2345
    %v2990 = vunpack.c.h.b16 %v2345
    %v2991 = vunpack.c.l.b16 %v2346
    %v2992 = vunpack.c.l.b16 %v2347
    %v2993 = vunpack.c.h.b16 %v2347
    %v2994 = vunpack.c.l.b16 %v2348
    %v2995 = vunpack.c.h.b16 %v2348
    %v2996 = vunpack.c.l.b16 %v2349
    %v2997 = vunpack.c.h.b16 %v2349
    %v2998 = vunpack.c.l.b16 %v2350
    %v2999 = vunpack.c.l.b16 %v2351
    %v3000 = vunpack.c.h.b16 %v2351
    %v3001 = vunpack.c.l.b16 %v2352
    %v3002 = vunpack.c.h.b16 %v2352
    %v3003 = vunpack.c.l.b16 %v2353
    %v3004 = vunpack.c.h.b16 %v2353
    %v3005 = vunpack.c.l.b16 %v2354
    %v3006 = vunpack.c.l.b16 %v2355
    %v3007 = vunpack.c.h.b16 %v2355
    %v3008 = vunpack.c.l.b16 %v2356
    %v3009 = vunpack.c.h.b16 %v2356
    %v3010 = vunpack.c.l.b16 %v2357
    %v3011 = vunpack.c.h.b16 %v2357
    %v3012 = vunpack.c.l.b16 %v2358
    %v3013 = vunpack.c.l.b16 %v2359
    %v3014 = vunpack.c.h.b16 %v2359
    %v3015 = vunpack.c.l.b16 %v2360
    %v3016 = vunpack.c.h.b16 %v2360
    %v3017 = vunpack.c.l.b16 %v2361
    %v3018 = vunpack.c.h.b16 %v2361
    %v3019 = vunpack.c.l.b16 %v2362
    %v3020 = vunpack.c.l.b16 %v2363
    %v3021 = vunpack.c.h.b16 %v2363
    %v3022 = vunpack.c.l.b16 %v2364
    %v3023 = vunpack.c.h.b16 %v2364
    %v3024 = vunpack.c.l.b16 %v2365
    %v3025 = vunpack.c.h.b16 %v2365
    %v3026 = vunpack.c.l.b16 %v2366
    %v3027 = vunpack.c.l.b16 %v2367
    %v3028 = vunpack.c.h.b16 %v2367
    %v3029 = vunpack.c.l.b16 %v2368
    %v3030 = vunpack.c.h.b16 %v2368
    %v3031 = vunpack.c.l.b16 %v2369
    %v3032 = vunpack.c.h.b16 %v2369
    %v3033 = vunpack.c.l.b16 %v2370
    %v3034 = vunpack.c.l.b16 %v2371
    %v3035 = vunpack.c.h.b16 %v2371
    %v3036 = vunpack.c.l.b16 %v2372
    %v3037 = vunpack.c.h.b16 %v2372
    %v3038 = vunpack.c.l.b16 %v2373
    %v3039 = vunpack.c.h.b16 %v2373
    %v3040 = vunpack.c.l.b16 %v2374
    %v3041 = vunpack.c.l.b16 %v2375
    %v3042 = vunpack.c.h.b16 %v2375
    %v3043 = vunpack.c.l.b16 %v2376
    %v3044 = vunpack.c.h.b16 %v2376
    %v3045 = vunpack.c.l.b16 %v2377
    %v3046 = vunpack.c.h.b16 %v2377
    %v3047 = vunpack.c.l.b16 %v2378
    %v3048 = vunpack.c.l.b16 %v2379
    %v3049 = vunpack.c.h.b16 %v2379
    %v3050 = vunpack.c.l.b16 %v2380
    %v3051 = vunpack.c.h.b16 %v2380
    %v3052 = vunpack.c.l.b16 %v2381
    %v3053 = vunpack.c.h.b16 %v2381
    %v3054 = vunpack.c.l.b16 %v2382
    %v3055 = vunpack.c.l.b16 %v2383
    %v3056 = vunpack.c.h.b16 %v2383
    %v3057 = vunpack.c.l.b16 %v2384
    %v3058 = vunpack.c.h.b16 %v2384
    %v3059 = vunpack.c.l.b16 %v2385
    %v3060 = vunpack.c.h.b16 %v2385
    %v3061 = vunpack.c.l.b16 %v2386
    %v3062 = vunpack.c.l.b16 %v2387
    %v3063 = vunpack.c.h.b16 %v2387
    %v3064 = vunpack.c.l.b16 %v2388
    %v3065 = vunpack.c.h.b16 %v2388
    %v3066 = vunpack.c.l.b16 %v2389
    %v3067 = vunpack.c.h.b16 %v2389
    %v3068 = vunpack.c.l.b16 %v2390
    %v3069 = vunpack.c.l.b16 %v2391
    %v3070 = vunpack.c.h.b16 %v2391
    %v3071 = vunpack.c.l.b16 %v2392
    %v3072 = vunpack.c.h.b16 %v2392
    %v3073 = vunpack.c.l.b16 %v2393
    %v3074 = vunpack.c.h.b16 %v2393
    %v3075 = vunpack.c.l.b16 %v2394
    %v3076 = vunpack.c.l.b16 %v2395
    %v3077 = vunpack.c.h.b16 %v2395
    %v3078 = vunpack.c.l.b16 %v2396
    %v3079 = vunpack.c.h.b16 %v2396
    %v3080 = vunpack.c.l.b16 %v2397
    %v3081 = vunpack.c.h.b16 %v2397
    %v3082 = vunpack.c.l.b16 %v2398
    %v3083 = vunpack.c.l.b16 %v2399
    %v3084 = vunpack.c.h.b16 %v2399
    %v3085 = vunpack.c.l.b16 %v2400
    %v3086 = vunpack.c.h.b16 %v2400
    %v3087 = vunpack.c.l.b16 %v2401
    %v3088 = vunpack.c.h.b16 %v2401
    %v3089 = vunpack.c.l.b16 %v2402
    %v3090 = vunpack.c.l.b16 %v2403
    %v3091 = vunpack.c.h.b16 %v2403
    %v3092 = vunpack.c.l.b16 %v2404
    %v3093 = vunpack.c.h.b16 %v2404
    %v3094 = vunpack.c.l.b16 %v2405
    %v3095 = vunpack.c.h.b16 %v2405
    %v3096 = vunpack.c.l.b16 %v2406
    %v3097 = vunpack.c.l.b16 %v2407
    %v3098 = vunpack.c.h.b16 %v2407
    %v3099 = vunpack.c.l.b16 %v2408
    %v3100 = vunpack.c.h.b16 %v2408
    %v3101 = vunpack.c.l.b16 %v2409
    %v3102 = vunpack.c.h.b16 %v2409
    %v3103 = vunpack.c.l.b16 %v2410
    %v3104 = vunpack.c.l.b16 %v2411
    %v3105 = vunpack.c.h.b16 %v2411
    %v3106 = vunpack.c.l.b16 %v2412
    %v3107 = vunpack.c.h.b16 %v2412
    %v3108 = vunpack.c.l.b16 %v2413
    %v3109 = vunpack.c.h.b16 %v2413
    %v3110 = vunpack.c.l.b16 %v2414
    %v3111 = vunpack.c.l.b16 %v2415
    %v3112 = vunpack.c.h.b16 %v2415
    %v3113 = vunpack.c.l.b16 %v2416
    %v3114 = vunpack.c.h.b16 %v2416
    %v3115 = vunpack.c.l.b16 %v2417
    %v3116 = vunpack.c.h.b16 %v2417
    %v3117 = vunpack.c.l.b16 %v2418
    %v3118 = vunpack.c.l.b16 %v2419
    %v3119 = vunpack.c.h.b16 %v2419
    %v3120 = vunpack.c.l.b16 %v2420
    %v3121 = vunpack.c.h.b16 %v2420
    %v3122 = vunpack.c.l.b16 %v2421
    %v3123 = vunpack.c.h.b16 %v2421
    %v3124 = vunpack.c.l.b16 %v2422
    %v3125 = vunpack.c.l.b16 %v2423
    %v3126 = vunpack.c.h.b16 %v2423
    %v3127 = vunpack.c.l.b16 %v2424
    %v3128 = vunpack.c.h.b16 %v2424
    %v3129 = vunpack.c.l.b16 %v2425
    %v3130 = vunpack.c.h.b16 %v2425
    %v3131 = vunpack.c.l.b16 %v2426
    %v3132 = vunpack.c.l.b16 %v2427
    %v3133 = vunpack.c.h.b16 %v2427
    %v3134 = vunpack.c.l.b16 %v2428
    %v3135 = vunpack.c.h.b16 %v2428
    %v3136 = vunpack.c.l.b16 %v2429
    %v3137 = vunpack.c.h.b16 %v2429
    %v3138 = vunpack.c.l.b16 %v2430
    %v3139 = vunpack.c.l.b16 %v2431
    %v3140 = vunpack.c.h.b16 %v2431
    %v3141 = vunpack.c.l.b16 %v2432
    %v3142 = vunpack.c.h.b16 %v2432
    %v3143 = vunpack.c.l.b16 %v2433
    %v3144 = vunpack.c.h.b16 %v2433
    %v3145 = vunpack.c.l.b16 %v2434
    %v3146 = vunpack.c.l.b16 %v2435
    %v3147 = vunpack.c.h.b16 %v2435
    %v3148 = vunpack.c.l.b16 %v2436
    %v3149 = vunpack.c.h.b16 %v2436
    %v3150 = vunpack.c.l.b16 %v2437
    %v3151 = vunpack.c.h.b16 %v2437
    %v3152 = vunpack.c.l.b16 %v2438
    %v3153 = vunpack.c.l.b16 %v2439
    %v3154 = vunpack.c.h.b16 %v2439
    %v3155 = vunpack.c.l.b16 %v2440
    %v3156 = vunpack.c.h.b16 %v2440
    %v3157 = vunpack.c.l.b16 %v2441
    %v3158 = vunpack.c.h.b16 %v2441
    %v3159 = vunpack.c.l.b16 %v2442
    %v3160 = vunpack.c.l.b16 %v2443
    %v3161 = vunpack.c.h.b16 %v2443
    %v3162 = vunpack.c.l.b16 %v2444
    %v3163 = vunpack.c.h.b16 %v2444
    %v3164 = vunpack.c.l.b16 %v2445
    %v3165 = vunpack.c.h.b16 %v2445
    %v3166 = vunpack.c.l.b16 %v2446
    %v3167 = vunpack.c.l.b16 %v2447
    %v3168 = vunpack.c.h.b16 %v2447
    %v3169 = vunpack.c.l.b16 %v2448
    %v3170 = vunpack.c.h.b16 %v2448
    %v3171 = vunpack.c.l.b16 %v2449
    %v3172 = vunpack.c.h.b16 %v2449
    %v3173 = vunpack.c.l.b16 %v2450
    %v3174 = vunpack.c.l.b16 %v2451
    %v3175 = vunpack.c.h.b16 %v2451
    %v3176 = vunpack.c.l.b16 %v2452
    %v3177 = vunpack.c.h.b16 %v2452
    %v3178 = vunpack.c.l.b16 %v2453
    %v3179 = vunpack.c.h.b16 %v2453
    %v3180 = vunpack.c.l.b16 %v2454
    %v3181 = vunpack.c.l.b16 %v2455
    %v3182 = vunpack.c.h.b16 %v2455
    %v3183 = vunpack.c.l.b16 %v2456
    %v3184 = vunpack.c.h.b16 %v2456
    %v3185 = vunpack.c.l.b16 %v2457
    %v3186 = vunpack.c.h.b16 %v2457
    %v3187 = vunpack.c.l.b16 %v2458
    %v3188 = vunpack.c.l.b16 %v2459
    %v3189 = vunpack.c.h.b16 %v2459
    %v3190 = vunpack.c.l.b16 %v2460
    %v3191 = vunpack.c.h.b16 %v2460
    %v3192 = vunpack.c.l.b16 %v2461
    %v3193 = vunpack.c.h.b16 %v2461
    %v3194 = vunpack.c.l.b16 %v2462
    %v3195 = vunpack.c.l.b16 %v2463
    %v3196 = vunpack.c.h.b16 %v2463
    %v3197 = vunpack.c.l.b16 %v2464
    %v3198 = vunpack.c.h.b16 %v2464
    %v3199 = vunpack.c.l.b16 %v2465
    %v3200 = vunpack.c.h.b16 %v2465
    %v3201 = vunpack.c.l.b16 %v2466
    %v3202 = vunpack.c.l.b16 %v2467
    %v3203 = vunpack.c.h.b16 %v2467
    %v3204 = vunpack.c.l.b16 %v2468
    %v3205 = vunpack.c.h.b16 %v2468
    %v3206 = vunpack.c.l.b16 %v2469
    %v3207 = vunpack.c.h.b16 %v2469
    %v3208 = vunpack.c.l.b16 %v2470
    %v3209 = vunpack.c.l.b16 %v2471
    %v3210 = vunpack.c.h.b16 %v2471
    %v3211 = vunpack.c.l.b16 %v2472
    %v3212 = vunpack.c.h.b16 %v2472
    %v3213 = vunpack.c.l.b16 %v2473
    %v3214 = vunpack.c.h.b16 %v2473
    %v3215 = vunpack.c.l.b16 %v2474
    %v3216 = vpack.c.b16 %v2775, %v2768
    %v3217 = vpack.c.b16 %v2776, %v2769
    %v3218 = vpack.c.b16 %v2777, %v2770
    %v3219 = vpack.c.b16 %v2778, %v2771
    %v3220 = vpack.c.b16 %v2779, %v2772
    %v3221 = vpack.c.b16 %v2780, %v2773
    %v3222 = vpack.c.b16 %v2781, %v2774
    %v3223 = vpack.c.b16 %v2789, %v2782
    %v3224 = vpack.c.b16 %v2790, %v2783
    %v3225 = vpack.c.b16 %v2791, %v2784
    %v3226 = vpack.c.b16 %v2792, %v2785
    %v3227 = vpack.c.b16 %v2793, %v2786
    %v3228 = vpack.c.b16 %v2794, %v2787
    %v3229 = vpack.c.b16 %v2795, %v2788
    %v3230 = vpack.c.b16 %v2803, %v2796
    %v3231 = vpack.c.b16 %v2804, %v2797
    %v3232 = vpack.c.b16 %v2805, %v2798
    %v3233 = vpack.c.b16 %v2806, %v2799
    %v3234 = vpack.c.b16 %v2807, %v2800
    %v3235 = vpack.c.b16 %v2808, %v2801
    %v3236 = vpack.c.b16 %v2809, %v2802
    %v3237 = vpack.c.b16 %v2817, %v2810
    %v3238 = vpack.c.b16 %v2818, %v2811
    %v3239 = vpack.c.b16 %v2819, %v2812
    %v3240 = vpack.c.b16 %v2820, %v2813
    %v3241 = vpack.c.b16 %v2821, %v2814
    %v3242 = vpack.c.b16 %v2822, %v2815
    %v3243 = vpack.c.b16 %v2823, %v2816
    %v3244 = vpack.c.b16 %v2831, %v2824
    %v3245 = vpack.c.b16 %v2832, %v2825
    %v3246 = vpack.c.b16 %v2833, %v2826
    %v3247 = vpack.c.b16 %v2834, %v2827
    %v3248 = vpack.c.b16 %v2835, %v2828
    %v3249 = vpack.c.b16 %v2836, %v2829
    %v3250 = vpack.c.b16 %v2837, %v2830
    %v3251 = vpack.c.b16 %v2845, %v2838
    %v3252 = vpack.c.b16 %v2846, %v2839
    %v3253 = vpack.c.b16 %v2847, %v2840
    %v3254 = vpack.c.b16 %v2848, %v2841
    %v3255 = vpack.c.b16 %v2849, %v2842
    %v3256 = vpack.c.b16 %v2850, %v2843
    %v3257 = vpack.c.b16 %v2851, %v2844
    %v3258 = vpack.c.b16 %v2859, %v2852
    %v3259 = vpack.c.b16 %v2860, %v2853
    %v3260 = vpack.c.b16 %v2861, %v2854
    %v3261 = vpack.c.b16 %v2862, %v2855
    %v3262 = vpack.c.b16 %v2863, %v2856
    %v3263 = vpack.c.b16 %v2864, %v2857
    %v3264 = vpack.c.b16 %v2865, %v2858
    %v3265 = vpack.c.b16 %v2873, %v2866
    %v3266 = vpack.c.b16 %v2874, %v2867
    %v3267 = vpack.c.b16 %v2875, %v2868
    %v3268 = vpack.c.b16 %v2876, %v2869
    %v3269 = vpack.c.b16 %v2877, %v2870
    %v3270 = vpack.c.b16 %v2878, %v2871
    %v3271 = vpack.c.b16 %v2879, %v2872
    %v3272 = vpack.c.b16 %v2887, %v2880
    %v3273 = vpack.c.b16 %v2888, %v2881
    %v3274 = vpack.c.b16 %v2889, %v2882
    %v3275 = vpack.c.b16 %v2890, %v2883
    %v3276 = vpack.c.b16 %v2891, %v2884
    %v3277 = vpack.c.b16 %v2892, %v2885
    %v3278 = vpack.c.b16 %v2893, %v2886
    %v3279 = vpack.c.b16 %v2901, %v2894
    %v3280 = vpack.c.b16 %v2902, %v2895
    %v3281 = vpack.c.b16 %v2903, %v2896
    %v3282 = vpack.c.b16 %v2904, %v2897
    %v3283 = vpack.c.b16 %v2905, %v2898
    %v3284 = vpack.c.b16 %v2906, %v2899
    %v3285 = vpack.c.b16 %v2907, %v2900
    %v3286 = vpack.c.b16 %v2915, %v2908
    %v3287 = vpack.c.b16 %v2916, %v2909
    %v3288 = vpack.c.b16 %v2917, %v2910
    %v3289 = vpack.c.b16 %v2918, %v2911
    %v3290 = vpack.c.b16 %v2919, %v2912
    %v3291 = vpack.c.b16 %v2920, %v2913
    %v3292 = vpack.c.b16 %v2921, %v2914
    %v3293 = vpack.c.b16 %v2929, %v2922
    %v3294 = vpack.c.b16 %v2930, %v2923
    %v3295 = vpack.c.b16 %v2931, %v2924
    %v3296 = vpack.c.b16 %v2932, %v2925
    %v3297 = vpack.c.b16 %v2933, %v2926
    %v3298 = vpack.c.b16 %v2934, %v2927
    %v3299 = vpack.c.b16 %v2935, %v2928
    %v3300 = vpack.c.b16 %v2943, %v2936
    %v3301 = vpack.c.b16 %v2944, %v2937
    %v3302 = vpack.c.b16 %v2945, %v2938
    %v3303 = vpack.c.b16 %v2946, %v2939
    %v3304 = vpack.c.b16 %v2947, %v2940
    %v3305 = vpack.c.b16 %v2948, %v2941
    %v3306 = vpack.c.b16 %v2949, %v2942
    %v3307 = vpack.c.b16 %v2957, %v2950
    %v3308 = vpack.c.b16 %v2958, %v2951
    %v3309 = vpack.c.b16 %v2959, %v2952
    %v3310 = vpack.c.b16 %v2960, %v2953
    %v3311 = vpack.c.b16 %v2961, %v2954
    %v3312 = vpack.c.b16 %v2962, %v2955
    %v3313 = vpack.c.b16 %v2963, %v2956
    %v3314 = vpack.c.b16 %v2971, %v2964
    %v3315 = vpack.c.b16 %v2972, %v2965
    %v3316 = vpack.c.b16 %v2973, %v2966
    %v3317 = vpack.c.b16 %v2974, %v2967
    %v3318 = vpack.c.b16 %v2975, %v2968
    %v3319 = vpack.c.b16 %v2976, %v2969
    %v3320 = vpack.c.b16 %v2977, %v2970
    %v3321 = vpack.c.b16 %v2985, %v2978
    %v3322 = vpack.c.b16 %v2986, %v2979
    %v3323 = vpack.c.b16 %v2987, %v2980
    %v3324 = vpack.c.b16 %v2988, %v2981
    %v3325 = vpack.c.b16 %v2989, %v2982
    %v3326 = vpack.c.b16 %v2990, %v2983
    %v3327 = vpack.c.b16 %v2991, %v2984
    %v3328 = vpack.c.b16 %v2999, %v2992
    %v3329 = vpack.c.b16 %v3000, %v2993
    %v3330 = vpack.c.b16 %v3001, %v2994
    %v3331 = vpack.c.b16 %v3002, %v2995
    %v3332 = vpack.c.b16 %v3003, %v2996
    %v3333 = vpack.c.b16 %v3004, %v2997
    %v3334 = vpack.c.b16 %v3005, %v2998
    %v3335 = vpack.c.b16 %v3013, %v3006
    %v3336 = vpack.c.b16 %v3014, %v3007
    %v3337 = vpack.c.b16 %v3015, %v3008
    %v3338 = vpack.c.b16 %v3016, %v3009
    %v3339 = vpack.c.b16 %v3017, %v3010
    %v3340 = vpack.c.b16 %v3018, %v3011
    %v3341 = vpack.c.b16 %v3019, %v3012
    %v3342 = vpack.c.b16 %v3027, %v3020
    %v3343 = vpack.c.b16 %v3028, %v3021
    %v3344 = vpack.c.b16 %v3029, %v3022
    %v3345 = vpack.c.b16 %v3030, %v3023
    %v3346 = vpack.c.b16 %v3031, %v3024
    %v3347 = vpack.c.b16 %v3032, %v3025
    %v3348 = vpack.c.b16 %v3033, %v3026
    %v3349 = vpack.c.b16 %v3041, %v3034
    %v3350 = vpack.c.b16 %v3042, %v3035
    %v3351 = vpack.c.b16 %v3043, %v3036
    %v3352 = vpack.c.b16 %v3044, %v3037
    %v3353 = vpack.c.b16 %v3045, %v3038
    %v3354 = vpack.c.b16 %v3046, %v3039
    %v3355 = vpack.c.b16 %v3047, %v3040
    %v3356 = vpack.c.b16 %v3055, %v3048
    %v3357 = vpack.c.b16 %v3056, %v3049
    %v3358 = vpack.c.b16 %v3057, %v3050
    %v3359 = vpack.c.b16 %v3058, %v3051
    %v3360 = vpack.c.b16 %v3059, %v3052
    %v3361 = vpack.c.b16 %v3060, %v3053
    %v3362 = vpack.c.b16 %v3061, %v3054
    %v3363 = vpack.c.b16 %v3069, %v3062
    %v3364 = vpack.c.b16 %v3070, %v3063
    %v3365 = vpack.c.b16 %v3071, %v3064
    %v3366 = vpack.c.b16 %v3072, %v3065
    %v3367 = vpack.c.b16 %v3073, %v3066
    %v3368 = vpack.c.b16 %v3074, %v3067
    %v3369 = vpack.c.b16 %v3075, %v3068
    %v3370 = vpack.c.b16 %v3083, %v3076
    %v3371 = vpack.c.b16 %v3084, %v3077
    %v3372 = vpack.c.b16 %v3085, %v3078
    %v3373 = vpack.c.b16 %v3086, %v3079
    %v3374 = vpack.c.b16 %v3087, %v3080
    %v3375 = vpack.c.b16 %v3088, %v3081
    %v3376 = vpack.c.b16 %v3089, %v3082
    %v3377 = vpack.c.b16 %v3097, %v3090
    %v3378 = vpack.c.b16 %v3098, %v3091
    %v3379 = vpack.c.b16 %v3099, %v3092
    %v3380 = vpack.c.b16 %v3100, %v3093
    %v3381 = vpack.c.b16 %v3101, %v3094
    %v3382 = vpack.c.b16 %v3102, %v3095
    %v3383 = vpack.c.b16 %v3103, %v3096
    %v3384 = vpack.c.b16 %v3111, %v3104
    %v3385 = vpack.c.b16 %v3112, %v3105
    %v3386 = vpack.c.b16 %v3113, %v3106
    %v3387 = vpack.c.b16 %v3114, %v3107
    %v3388 = vpack.c.b16 %v3115, %v3108
    %v3389 = vpack.c.b16 %v3116, %v3109
    %v3390 = vpack.c.b16 %v3117, %v3110
    %v3391 = vpack.c.b16 %v3125, %v3118
    %v3392 = vpack.c.b16 %v3126, %v3119
    %v3393 = vpack.c.b16 %v3127, %v3120
    %v3394 = vpack.c.b16 %v3128, %v3121
    %v3395 = vpack.c.b16 %v3129, %v3122
    %v3396 = vpack.c.b16 %v3130, %v3123
    %v3397 = vpack.c.b16 %v3131, %v3124
    %v3398 = vpack.c.b16 %v3139, %v3132
    %v3399 = vpack.c.b16 %v3140, %v3133
    %v3400 = vpack.c.b16 %v3141, %v3134
    %v3401 = vpack.c.b16 %v3142, %v3135
    %v3402 = vpack.c.b16 %v3143, %v3136
    %v3403 = vpack.c.b16 %v3144, %v3137
    %v3404 = vpack.c.b16 %v3145, %v3138
    %v3405 = vpack.c.b16 %v3153, %v3146
    %v3406 = vpack.c.b16 %v3154, %v3147
    %v3407 = vpack.c.b16 %v3155, %v3148
    %v3408 = vpack.c.b16 %v3156, %v3149
    %v3409 = vpack.c.b16 %v3157, %v3150
    %v3410 = vpack.c.b16 %v3158, %v3151
    %v3411 = vpack.c.b16 %v3159, %v3152
    %v3412 = vpack.c.b16 %v3167, %v3160
    %v3413 = vpack.c.b16 %v3168, %v3161
    %v3414 = vpack.c.b16 %v3169, %v3162
    %v3415 = vpack.c.b16 %v3170, %v3163
    %v3416 = vpack.c.b16 %v3171, %v3164
    %v3417 = vpack.c.b16 %v3172, %v3165
    %v3418 = vpack.c.b16 %v3173, %v3166
    %v3419 = vpack.c.b16 %v3181, %v3174
    %v3420 = vpack.c.b16 %v3182, %v3175
    %v3421 = vpack.c.b16 %v3183, %v3176
    %v3422 = vpack.c.b16 %v3184, %v3177
    %v3423 = vpack.c.b16 %v3185, %v3178
    %v3424 = vpack.c.b16 %v3186, %v3179
    %v3425 = vpack.c.b16 %v3187, %v3180
    %v3426 = vpack.c.b16 %v3195, %v3188
    %v3427 = vpack.c.b16 %v3196, %v3189
    %v3428 = vpack.c.b16 %v3197, %v3190
    %v3429 = vpack.c.b16 %v3198, %v3191
    %v3430 = vpack.c.b16 %v3199, %v3192
    %v3431 = vpack.c.b16 %v3200, %v3193
    %v3432 = vpack.c.b16 %v3201, %v3194
    %v3433 = vpack.c.b16 %v3209, %v3202
    %v3434 = vpack.c.b16 %v3210, %v3203
    %v3435 = vpack.c.b16 %v3211, %v3204
    %v3436 = vpack.c.b16 %v3212, %v3205
    %v3437 = vpack.c.b16 %v3213, %v3206
    %v3438 = vpack.c.b16 %v3214, %v3207
    %v3439 = vpack.c.b16 %v3215, %v3208
    %3664 = vmatprep.subr.bf16.mxu0 %v3266
    %3665 = vmatpush1.bf16.msra.mxu0 %v3265
    %3666 = vmatprep.subr.bf16.mxu0 %v3259
    %3667 = vmatpush1.bf16.msra.mxu0 %v3258
    %3668 = vmatprep.subr.bf16.mxu0 %v3252
    %3669 = vmatpush1.bf16.msra.mxu0 %v3251
    %3670 = vmatprep.subr.bf16.mxu0 %v3245
    %3671 = vmatpush1.bf16.msra.mxu0 %v3244
    %3672 = vmatprep.subr.bf16.mxu0 %v3238
    %3673 = vmatpush1.bf16.msra.mxu0 %v3237
    %3674 = vmatprep.subr.bf16.mxu0 %v3231
    %3675 = vmatpush1.bf16.msra.mxu0 %v3230
    %3676 = vmatprep.subr.bf16.mxu0 %v3224
    %3677 = vmatpush1.bf16.msra.mxu0 %v3223
    %3678 = vmatprep.subr.bf16.mxu0 %v3217
    %3679 = vmatpush1.bf16.msra.mxu0 %v3216
    %3680 = vmatprep.subr.bf16.mxu0 %v3322
    %3681 = vmatpush2.bf16.msra.mxu0 %v3321
    %3682 = vmatprep.subr.bf16.mxu0 %v3315
    %3683 = vmatpush2.bf16.msra.mxu0 %v3314
    %3684 = vmatprep.subr.bf16.mxu0 %v3308
    %3685 = vmatpush2.bf16.msra.mxu0 %v3307
    %3686 = vmatprep.subr.bf16.mxu0 %v3301
    %3687 = vmatpush2.bf16.msra.mxu0 %v3300
    %3688 = vmatprep.subr.bf16.mxu0 %v3294
    %3689 = vmatpush2.bf16.msra.mxu0 %v3293
    %3690 = vmatprep.subr.bf16.mxu0 %v3287
    %3691 = vmatpush2.bf16.msra.mxu0 %v3286
    %3692 = vmatprep.subr.bf16.mxu0 %v3280
    %3693 = vmatpush2.bf16.msra.mxu0 %v3279
    %3694 = vmatprep.subr.bf16.mxu0 %v3273
    %3695 = vmatpush2.bf16.msra.mxu0 %v3272
    %3696 = vmatprep.mubr.bf16.mxu0 %v2156
    %3697 = vmatmul.mubr.bf16.gmra.mxu0 %v2155
    %v3698 = vpop.f32.mrf.mxu0
    %v3699 = vadd.f32 %v2480, %v3698
    %v3700 = vpop.f32.mrf.mxu0
    %v3701 = vadd.f32 %v2484, %v3700
    %v3702 = vpop.f32.mrf.mxu0
    %v3703 = vadd.f32 %v2480, %v3702
    %v3704 = vpop.f32.mrf.mxu0
    %v3705 = vadd.f32 %v2484, %v3704
    %3706 = vmatprep.mubr.bf16.mxu0 %v2160
    %3707 = vmatmul.mubr.bf16.gmra.mxu0 %v2159
    %v3708 = vpop.f32.mrf.mxu0
    %v3709 = vadd.f32 %v2480, %v3708
    %v3710 = vpop.f32.mrf.mxu0
    %v3711 = vadd.f32 %v2484, %v3710
    %v3712 = vpop.f32.mrf.mxu0
    %v3713 = vadd.f32 %v2480, %v3712
    %v3714 = vpop.f32.mrf.mxu0
    %v3715 = vadd.f32 %v2484, %v3714
    %3716 = vmatprep.mubr.bf16.mxu0 %v2164
    %3717 = vmatmul.mubr.bf16.gmra.mxu0 %v2163
    %v3718 = vpop.f32.mrf.mxu0
    %v3719 = vadd.f32 %v2480, %v3718
    %v3720 = vpop.f32.mrf.mxu0
    %v3721 = vadd.f32 %v2484, %v3720
    %v3722 = vpop.f32.mrf.mxu0
    %v3723 = vadd.f32 %v2480, %v3722
    %v3724 = vpop.f32.mrf.mxu0
    %v3725 = vadd.f32 %v2484, %v3724
    %3726 = vmatprep.mubr.bf16.mxu0 %v2168
    %3727 = vmatmul.mubr.bf16.gmra.mxu0 %v2167
    %v3728 = vpop.f32.mrf.mxu0
    %v3729 = vadd.f32 %v2480, %v3728
    %v3730 = vpop.f32.mrf.mxu0
    %v3731 = vadd.f32 %v2484, %v3730
    %v3732 = vpop.f32.mrf.mxu0
    %v3733 = vadd.f32 %v2480, %v3732
    %v3734 = vpop.f32.mrf.mxu0
    %v3735 = vadd.f32 %v2484, %v3734
    %3736 = vmatprep.mubr.bf16.mxu0 %v2172
    %3737 = vmatmul.mubr.bf16.gmra.mxu0 %v2171
    %v3738 = vpop.f32.mrf.mxu0
    %v3739 = vadd.f32 %v2480, %v3738
    %v3740 = vpop.f32.mrf.mxu0
    %v3741 = vadd.f32 %v2484, %v3740
    %v3742 = vpop.f32.mrf.mxu0
    %v3743 = vadd.f32 %v2480, %v3742
    %v3744 = vpop.f32.mrf.mxu0
    %v3745 = vadd.f32 %v2484, %v3744
    %3746 = vmatprep.mubr.bf16.mxu0 %v2176
    %3747 = vmatmul.mubr.bf16.gmra.mxu0 %v2175
    %v3748 = vpop.f32.mrf.mxu0
    %v3749 = vadd.f32 %v2480, %v3748
    %v3750 = vpop.f32.mrf.mxu0
    %v3751 = vadd.f32 %v2484, %v3750
    %v3752 = vpop.f32.mrf.mxu0
    %v3753 = vadd.f32 %v2480, %v3752
    %v3754 = vpop.f32.mrf.mxu0
    %v3755 = vadd.f32 %v2484, %v3754
    %3756 = vmatprep.mubr.bf16.mxu0 %v2180
    %3757 = vmatmul.mubr.bf16.gmra.mxu0 %v2179
    %v3758 = vpop.f32.mrf.mxu0
    %v3759 = vadd.f32 %v2480, %v3758
    %v3760 = vpop.f32.mrf.mxu0
    %v3761 = vadd.f32 %v2484, %v3760
    %v3762 = vpop.f32.mrf.mxu0
    %v3763 = vadd.f32 %v2480, %v3762
    %v3764 = vpop.f32.mrf.mxu0
    %v3765 = vadd.f32 %v2484, %v3764
    %3766 = vmatprep.mubr.bf16.mxu0 %v2184
    %3767 = vmatmul.mubr.bf16.gmra.mxu0 %v2183
    %v3768 = vpop.f32.mrf.mxu0
    %v3769 = vadd.f32 %v2480, %v3768
    %v3770 = vpop.f32.mrf.mxu0
    %v3771 = vadd.f32 %v2484, %v3770
    %v3772 = vpop.f32.mrf.mxu0
    %v3773 = vadd.f32 %v2480, %v3772
    %v3774 = vpop.f32.mrf.mxu0
    %v3775 = vadd.f32 %v2484, %v3774
    %3776 = vmatprep.mubr.bf16.mxu0 %v2188
    %3777 = vmatmul.mubr.bf16.gmra.mxu0 %v2187
    %v3778 = vpop.f32.mrf.mxu0
    %v3779 = vadd.f32 %v2480, %v3778
    %v3780 = vpop.f32.mrf.mxu0
    %v3781 = vadd.f32 %v2484, %v3780
    %v3782 = vpop.f32.mrf.mxu0
    %v3783 = vadd.f32 %v2480, %v3782
    %v3784 = vpop.f32.mrf.mxu0
    %v3785 = vadd.f32 %v2484, %v3784
    %3786 = vmatprep.mubr.bf16.mxu0 %v2192
    %3787 = vmatmul.mubr.bf16.gmra.mxu0 %v2191
    %v3788 = vpop.f32.mrf.mxu0
    %v3789 = vadd.f32 %v2480, %v3788
    %v3790 = vpop.f32.mrf.mxu0
    %v3791 = vadd.f32 %v2484, %v3790
    %v3792 = vpop.f32.mrf.mxu0
    %v3793 = vadd.f32 %v2480, %v3792
    %v3794 = vpop.f32.mrf.mxu0
    %v3795 = vadd.f32 %v2484, %v3794
    %3796 = vmatprep.mubr.bf16.mxu0 %v2196
    %3797 = vmatmul.mubr.bf16.gmra.mxu0 %v2195
    %v3798 = vpop.f32.mrf.mxu0
    %v3799 = vadd.f32 %v2480, %v3798
    %v3800 = vpop.f32.mrf.mxu0
    %v3801 = vadd.f32 %v2484, %v3800
    %v3802 = vpop.f32.mrf.mxu0
    %v3803 = vadd.f32 %v2480, %v3802
    %v3804 = vpop.f32.mrf.mxu0
    %v3805 = vadd.f32 %v2484, %v3804
    %3806 = vmatprep.mubr.bf16.mxu0 %v2200
    %3807 = vmatmul.mubr.bf16.gmra.mxu0 %v2199
    %v3808 = vpop.f32.mrf.mxu0
    %v3809 = vadd.f32 %v2480, %v3808
    %v3810 = vpop.f32.mrf.mxu0
    %v3811 = vadd.f32 %v2484, %v3810
    %v3812 = vpop.f32.mrf.mxu0
    %v3813 = vadd.f32 %v2480, %v3812
    %v3814 = vpop.f32.mrf.mxu0
    %v3815 = vadd.f32 %v2484, %v3814
    %3816 = vmatprep.mubr.bf16.mxu0 %v2204
    %3817 = vmatmul.mubr.bf16.gmra.mxu0 %v2203
    %v3818 = vpop.f32.mrf.mxu0
    %v3819 = vadd.f32 %v2480, %v3818
    %v3820 = vpop.f32.mrf.mxu0
    %v3821 = vadd.f32 %v2484, %v3820
    %v3822 = vpop.f32.mrf.mxu0
    %v3823 = vadd.f32 %v2480, %v3822
    %v3824 = vpop.f32.mrf.mxu0
    %v3825 = vadd.f32 %v2484, %v3824
    %3826 = vmatprep.mubr.bf16.mxu0 %v2208
    %3827 = vmatmul.mubr.bf16.gmra.mxu0 %v2207
    %v3828 = vpop.f32.mrf.mxu0
    %v3829 = vadd.f32 %v2480, %v3828
    %v3830 = vpop.f32.mrf.mxu0
    %v3831 = vadd.f32 %v2484, %v3830
    %v3832 = vpop.f32.mrf.mxu0
    %v3833 = vadd.f32 %v2480, %v3832
    %v3834 = vpop.f32.mrf.mxu0
    %v3835 = vadd.f32 %v2484, %v3834
    %3836 = vmatprep.mubr.bf16.mxu0 %v2212
    %3837 = vmatmul.mubr.bf16.gmra.mxu0 %v2211
    %v3838 = vpop.f32.mrf.mxu0
    %v3839 = vadd.f32 %v2480, %v3838
    %v3840 = vpop.f32.mrf.mxu0
    %v3841 = vadd.f32 %v2484, %v3840
    %v3842 = vpop.f32.mrf.mxu0
    %v3843 = vadd.f32 %v2480, %v3842
    %v3844 = vpop.f32.mrf.mxu0
    %v3845 = vadd.f32 %v2484, %v3844
    %3846 = vmatprep.mubr.bf16.mxu0 %v2216
    %3847 = vmatmul.mubr.bf16.gmra.mxu0 %v2215
    %v3848 = vpop.f32.mrf.mxu0
    %v3849 = vadd.f32 %v2480, %v3848
    %v3850 = vpop.f32.mrf.mxu0
    %v3851 = vadd.f32 %v2484, %v3850
    %v3852 = vpop.f32.mrf.mxu0
    %v3853 = vadd.f32 %v2480, %v3852
    %v3854 = vpop.f32.mrf.mxu0
    %v3855 = vadd.f32 %v2484, %v3854
    %3856 = vdwg.mxu0
    %3857 = vmatprep.subr.bf16.mxu0 %v3378
    %3858 = vmatpush1.bf16.msra.mxu0 %v3377
    %3859 = vmatprep.subr.bf16.mxu0 %v3371
    %3860 = vmatpush1.bf16.msra.mxu0 %v3370
    %3861 = vmatprep.subr.bf16.mxu0 %v3364
    %3862 = vmatpush1.bf16.msra.mxu0 %v3363
    %3863 = vmatprep.subr.bf16.mxu0 %v3357
    %3864 = vmatpush1.bf16.msra.mxu0 %v3356
    %3865 = vmatprep.subr.bf16.mxu0 %v3350
    %3866 = vmatpush1.bf16.msra.mxu0 %v3349
    %3867 = vmatprep.subr.bf16.mxu0 %v3343
    %3868 = vmatpush1.bf16.msra.mxu0 %v3342
    %3869 = vmatprep.subr.bf16.mxu0 %v3336
    %3870 = vmatpush1.bf16.msra.mxu0 %v3335
    %3871 = vmatprep.subr.bf16.mxu0 %v3329
    %3872 = vmatpush1.bf16.msra.mxu0 %v3328
    %3873 = vmatprep.subr.bf16.mxu0 %v3434
    %3874 = vmatpush2.bf16.msra.mxu0 %v3433
    %3875 = vmatprep.subr.bf16.mxu0 %v3427
    %3876 = vmatpush2.bf16.msra.mxu0 %v3426
    %3877 = vmatprep.subr.bf16.mxu0 %v3420
    %3878 = vmatpush2.bf16.msra.mxu0 %v3419
    %3879 = vmatprep.subr.bf16.mxu0 %v3413
    %3880 = vmatpush2.bf16.msra.mxu0 %v3412
    %3881 = vmatprep.subr.bf16.mxu0 %v3406
    %3882 = vmatpush2.bf16.msra.mxu0 %v3405
    %3883 = vmatprep.subr.bf16.mxu0 %v3399
    %3884 = vmatpush2.bf16.msra.mxu0 %v3398
    %3885 = vmatprep.subr.bf16.mxu0 %v3392
    %3886 = vmatpush2.bf16.msra.mxu0 %v3391
    %3887 = vmatprep.subr.bf16.mxu0 %v3385
    %3888 = vmatpush2.bf16.msra.mxu0 %v3384
    %3889 = vmatprep.mubr.bf16.mxu0 %v2158
    %3890 = vmatmul.mubr.bf16.gmra.mxu0 %v2157
    %v3891 = vpop.f32.mrf.mxu0
    %v3892 = vadd.f32 %v3699, %v3891
    %v3893 = vpop.f32.mrf.mxu0
    %v3894 = vadd.f32 %v3701, %v3893
    %v3895 = vpop.f32.mrf.mxu0
    %v3896 = vadd.f32 %v3703, %v3895
    %v3897 = vpop.f32.mrf.mxu0
    %v3898 = vadd.f32 %v3705, %v3897
    %3899 = vmatprep.mubr.bf16.mxu0 %v2162
    %3900 = vmatmul.mubr.bf16.gmra.mxu0 %v2161
    %v3901 = vpop.f32.mrf.mxu0
    %v3902 = vadd.f32 %v3709, %v3901
    %v3903 = vpop.f32.mrf.mxu0
    %v3904 = vadd.f32 %v3711, %v3903
    %v3905 = vpop.f32.mrf.mxu0
    %v3906 = vadd.f32 %v3713, %v3905
    %v3907 = vpop.f32.mrf.mxu0
    %v3908 = vadd.f32 %v3715, %v3907
    %3909 = vmatprep.mubr.bf16.mxu0 %v2166
    %3910 = vmatmul.mubr.bf16.gmra.mxu0 %v2165
    %v3911 = vpop.f32.mrf.mxu0
    %v3912 = vadd.f32 %v3719, %v3911
    %v3913 = vpop.f32.mrf.mxu0
    %v3914 = vadd.f32 %v3721, %v3913
    %v3915 = vpop.f32.mrf.mxu0
    %v3916 = vadd.f32 %v3723, %v3915
    %v3917 = vpop.f32.mrf.mxu0
    %v3918 = vadd.f32 %v3725, %v3917
    %3919 = vmatprep.mubr.bf16.mxu0 %v2170
    %3920 = vmatmul.mubr.bf16.gmra.mxu0 %v2169
    %v3921 = vpop.f32.mrf.mxu0
    %v3922 = vadd.f32 %v3729, %v3921
    %v3923 = vpop.f32.mrf.mxu0
    %v3924 = vadd.f32 %v3731, %v3923
    %v3925 = vpop.f32.mrf.mxu0
    %v3926 = vadd.f32 %v3733, %v3925
    %v3927 = vpop.f32.mrf.mxu0
    %v3928 = vadd.f32 %v3735, %v3927
    %3929 = vmatprep.mubr.bf16.mxu0 %v2174
    %3930 = vmatmul.mubr.bf16.gmra.mxu0 %v2173
    %v3931 = vpop.f32.mrf.mxu0
    %v3932 = vadd.f32 %v3739, %v3931
    %v3933 = vpop.f32.mrf.mxu0
    %v3934 = vadd.f32 %v3741, %v3933
    %v3935 = vpop.f32.mrf.mxu0
    %v3936 = vadd.f32 %v3743, %v3935
    %v3937 = vpop.f32.mrf.mxu0
    %v3938 = vadd.f32 %v3745, %v3937
    %3939 = vmatprep.mubr.bf16.mxu0 %v2178
    %3940 = vmatmul.mubr.bf16.gmra.mxu0 %v2177
    %v3941 = vpop.f32.mrf.mxu0
    %v3942 = vadd.f32 %v3749, %v3941
    %v3943 = vpop.f32.mrf.mxu0
    %v3944 = vadd.f32 %v3751, %v3943
    %v3945 = vpop.f32.mrf.mxu0
    %v3946 = vadd.f32 %v3753, %v3945
    %v3947 = vpop.f32.mrf.mxu0
    %v3948 = vadd.f32 %v3755, %v3947
    %3949 = vmatprep.mubr.bf16.mxu0 %v2182
    %3950 = vmatmul.mubr.bf16.gmra.mxu0 %v2181
    %v3951 = vpop.f32.mrf.mxu0
    %v3952 = vadd.f32 %v3759, %v3951
    %v3953 = vpop.f32.mrf.mxu0
    %v3954 = vadd.f32 %v3761, %v3953
    %v3955 = vpop.f32.mrf.mxu0
    %v3956 = vadd.f32 %v3763, %v3955
    %v3957 = vpop.f32.mrf.mxu0
    %v3958 = vadd.f32 %v3765, %v3957
    %3959 = vmatprep.mubr.bf16.mxu0 %v2186
    %3960 = vmatmul.mubr.bf16.gmra.mxu0 %v2185
    %v3961 = vpop.f32.mrf.mxu0
    %v3962 = vadd.f32 %v3769, %v3961
    %v3963 = vpop.f32.mrf.mxu0
    %v3964 = vadd.f32 %v3771, %v3963
    %v3965 = vpop.f32.mrf.mxu0
    %v3966 = vadd.f32 %v3773, %v3965
    %v3967 = vpop.f32.mrf.mxu0
    %v3968 = vadd.f32 %v3775, %v3967
    %3969 = vmatprep.mubr.bf16.mxu0 %v2190
    %3970 = vmatmul.mubr.bf16.gmra.mxu0 %v2189
    %v3971 = vpop.f32.mrf.mxu0
    %v3972 = vadd.f32 %v3779, %v3971
    %v3973 = vpop.f32.mrf.mxu0
    %v3974 = vadd.f32 %v3781, %v3973
    %v3975 = vpop.f32.mrf.mxu0
    %v3976 = vadd.f32 %v3783, %v3975
    %v3977 = vpop.f32.mrf.mxu0
    %v3978 = vadd.f32 %v3785, %v3977
    %3979 = vmatprep.mubr.bf16.mxu0 %v2194
    %3980 = vmatmul.mubr.bf16.gmra.mxu0 %v2193
    %v3981 = vpop.f32.mrf.mxu0
    %v3982 = vadd.f32 %v3789, %v3981
    %v3983 = vpop.f32.mrf.mxu0
    %v3984 = vadd.f32 %v3791, %v3983
    %v3985 = vpop.f32.mrf.mxu0
    %v3986 = vadd.f32 %v3793, %v3985
    %v3987 = vpop.f32.mrf.mxu0
    %v3988 = vadd.f32 %v3795, %v3987
    %3989 = vmatprep.mubr.bf16.mxu0 %v2198
    %3990 = vmatmul.mubr.bf16.gmra.mxu0 %v2197
    %v3991 = vpop.f32.mrf.mxu0
    %v3992 = vadd.f32 %v3799, %v3991
    %v3993 = vpop.f32.mrf.mxu0
    %v3994 = vadd.f32 %v3801, %v3993
    %v3995 = vpop.f32.mrf.mxu0
    %v3996 = vadd.f32 %v3803, %v3995
    %v3997 = vpop.f32.mrf.mxu0
    %v3998 = vadd.f32 %v3805, %v3997
    %3999 = vmatprep.mubr.bf16.mxu0 %v2202
    %4000 = vmatmul.mubr.bf16.gmra.mxu0 %v2201
    %v4001 = vpop.f32.mrf.mxu0
    %v4002 = vadd.f32 %v3809, %v4001
    %v4003 = vpop.f32.mrf.mxu0
    %v4004 = vadd.f32 %v3811, %v4003
    %v4005 = vpop.f32.mrf.mxu0
    %v4006 = vadd.f32 %v3813, %v4005
    %v4007 = vpop.f32.mrf.mxu0
    %v4008 = vadd.f32 %v3815, %v4007
    %4009 = vmatprep.mubr.bf16.mxu0 %v2206
    %4010 = vmatmul.mubr.bf16.gmra.mxu0 %v2205
    %v4011 = vpop.f32.mrf.mxu0
    %v4012 = vadd.f32 %v3819, %v4011
    %v4013 = vpop.f32.mrf.mxu0
    %v4014 = vadd.f32 %v3821, %v4013
    %v4015 = vpop.f32.mrf.mxu0
    %v4016 = vadd.f32 %v3823, %v4015
    %v4017 = vpop.f32.mrf.mxu0
    %v4018 = vadd.f32 %v3825, %v4017
    %4019 = vmatprep.mubr.bf16.mxu0 %v2210
    %4020 = vmatmul.mubr.bf16.gmra.mxu0 %v2209
    %v4021 = vpop.f32.mrf.mxu0
    %v4022 = vadd.f32 %v3829, %v4021
    %v4023 = vpop.f32.mrf.mxu0
    %v4024 = vadd.f32 %v3831, %v4023
    %v4025 = vpop.f32.mrf.mxu0
    %v4026 = vadd.f32 %v3833, %v4025
    %v4027 = vpop.f32.mrf.mxu0
    %v4028 = vadd.f32 %v3835, %v4027
    %4029 = vmatprep.mubr.bf16.mxu0 %v2214
    %4030 = vmatmul.mubr.bf16.gmra.mxu0 %v2213
    %v4031 = vpop.f32.mrf.mxu0
    %v4032 = vadd.f32 %v3839, %v4031
    %v4033 = vpop.f32.mrf.mxu0
    %v4034 = vadd.f32 %v3841, %v4033
    %v4035 = vpop.f32.mrf.mxu0
    %v4036 = vadd.f32 %v3843, %v4035
    %v4037 = vpop.f32.mrf.mxu0
    %v4038 = vadd.f32 %v3845, %v4037
    %4039 = vmatprep.mubr.bf16.mxu0 %v2218
    %4040 = vmatmul.mubr.bf16.gmra.mxu0 %v2217
    %v4041 = vpop.f32.mrf.mxu0
    %v4042 = vadd.f32 %v3849, %v4041
    %v4043 = vpop.f32.mrf.mxu0
    %v4044 = vadd.f32 %v3851, %v4043
    %v4045 = vpop.f32.mrf.mxu0
    %v4046 = vadd.f32 %v3853, %v4045
    %v4047 = vpop.f32.mrf.mxu0
    %v4048 = vadd.f32 %v3855, %v4047
    %4049 = vdwg.mxu0
    %4050 = vmatprep.subr.bf16.mxu0 %v3268
    %4051 = vmatpush1.bf16.msra.mxu0 %v3267
    %4052 = vmatprep.subr.bf16.mxu0 %v3261
    %4053 = vmatpush1.bf16.msra.mxu0 %v3260
    %4054 = vmatprep.subr.bf16.mxu0 %v3254
    %4055 = vmatpush1.bf16.msra.mxu0 %v3253
    %4056 = vmatprep.subr.bf16.mxu0 %v3247
    %4057 = vmatpush1.bf16.msra.mxu0 %v3246
    %4058 = vmatprep.subr.bf16.mxu0 %v3240
    %4059 = vmatpush1.bf16.msra.mxu0 %v3239
    %4060 = vmatprep.subr.bf16.mxu0 %v3233
    %4061 = vmatpush1.bf16.msra.mxu0 %v3232
    %4062 = vmatprep.subr.bf16.mxu0 %v3226
    %4063 = vmatpush1.bf16.msra.mxu0 %v3225
    %4064 = vmatprep.subr.bf16.mxu0 %v3219
    %4065 = vmatpush1.bf16.msra.mxu0 %v3218
    %4066 = vmatprep.subr.bf16.mxu0 %v3324
    %4067 = vmatpush2.bf16.msra.mxu0 %v3323
    %4068 = vmatprep.subr.bf16.mxu0 %v3317
    %4069 = vmatpush2.bf16.msra.mxu0 %v3316
    %4070 = vmatprep.subr.bf16.mxu0 %v3310
    %4071 = vmatpush2.bf16.msra.mxu0 %v3309
    %4072 = vmatprep.subr.bf16.mxu0 %v3303
    %4073 = vmatpush2.bf16.msra.mxu0 %v3302
    %4074 = vmatprep.subr.bf16.mxu0 %v3296
    %4075 = vmatpush2.bf16.msra.mxu0 %v3295
    %4076 = vmatprep.subr.bf16.mxu0 %v3289
    %4077 = vmatpush2.bf16.msra.mxu0 %v3288
    %4078 = vmatprep.subr.bf16.mxu0 %v3282
    %4079 = vmatpush2.bf16.msra.mxu0 %v3281
    %4080 = vmatprep.subr.bf16.mxu0 %v3275
    %4081 = vmatpush2.bf16.msra.mxu0 %v3274
    %4082 = vmatprep.mubr.bf16.mxu0 %v2156
    %4083 = vmatmul.mubr.bf16.gmra.mxu0 %v2155
    %v4084 = vpop.f32.mrf.mxu0
    %v4085 = vadd.f32 %v2488, %v4084
    %v4086 = vpop.f32.mrf.mxu0
    %v4087 = vadd.f32 %v2492, %v4086
    %v4088 = vpop.f32.mrf.mxu0
    %v4089 = vadd.f32 %v2488, %v4088
    %v4090 = vpop.f32.mrf.mxu0
    %v4091 = vadd.f32 %v2492, %v4090
    %4092 = vmatprep.mubr.bf16.mxu0 %v2160
    %4093 = vmatmul.mubr.bf16.gmra.mxu0 %v2159
    %v4094 = vpop.f32.mrf.mxu0
    %v4095 = vadd.f32 %v2488, %v4094
    %v4096 = vpop.f32.mrf.mxu0
    %v4097 = vadd.f32 %v2492, %v4096
    %v4098 = vpop.f32.mrf.mxu0
    %v4099 = vadd.f32 %v2488, %v4098
    %v4100 = vpop.f32.mrf.mxu0
    %v4101 = vadd.f32 %v2492, %v4100
    %4102 = vmatprep.mubr.bf16.mxu0 %v2164
    %4103 = vmatmul.mubr.bf16.gmra.mxu0 %v2163
    %v4104 = vpop.f32.mrf.mxu0
    %v4105 = vadd.f32 %v2488, %v4104
    %v4106 = vpop.f32.mrf.mxu0
    %v4107 = vadd.f32 %v2492, %v4106
    %v4108 = vpop.f32.mrf.mxu0
    %v4109 = vadd.f32 %v2488, %v4108
    %v4110 = vpop.f32.mrf.mxu0
    %v4111 = vadd.f32 %v2492, %v4110
    %4112 = vmatprep.mubr.bf16.mxu0 %v2168
    %4113 = vmatmul.mubr.bf16.gmra.mxu0 %v2167
    %v4114 = vpop.f32.mrf.mxu0
    %v4115 = vadd.f32 %v2488, %v4114
    %v4116 = vpop.f32.mrf.mxu0
    %v4117 = vadd.f32 %v2492, %v4116
    %v4118 = vpop.f32.mrf.mxu0
    %v4119 = vadd.f32 %v2488, %v4118
    %v4120 = vpop.f32.mrf.mxu0
    %v4121 = vadd.f32 %v2492, %v4120
    %4122 = vmatprep.mubr.bf16.mxu0 %v2172
    %4123 = vmatmul.mubr.bf16.gmra.mxu0 %v2171
    %v4124 = vpop.f32.mrf.mxu0
    %v4125 = vadd.f32 %v2488, %v4124
    %v4126 = vpop.f32.mrf.mxu0
    %v4127 = vadd.f32 %v2492, %v4126
    %v4128 = vpop.f32.mrf.mxu0
    %v4129 = vadd.f32 %v2488, %v4128
    %v4130 = vpop.f32.mrf.mxu0
    %v4131 = vadd.f32 %v2492, %v4130
    %4132 = vmatprep.mubr.bf16.mxu0 %v2176
    %4133 = vmatmul.mubr.bf16.gmra.mxu0 %v2175
    %v4134 = vpop.f32.mrf.mxu0
    %v4135 = vadd.f32 %v2488, %v4134
    %v4136 = vpop.f32.mrf.mxu0
    %v4137 = vadd.f32 %v2492, %v4136
    %v4138 = vpop.f32.mrf.mxu0
    %v4139 = vadd.f32 %v2488, %v4138
    %v4140 = vpop.f32.mrf.mxu0
    %v4141 = vadd.f32 %v2492, %v4140
    %4142 = vmatprep.mubr.bf16.mxu0 %v2180
    %4143 = vmatmul.mubr.bf16.gmra.mxu0 %v2179
    %v4144 = vpop.f32.mrf.mxu0
    %v4145 = vadd.f32 %v2488, %v4144
    %v4146 = vpop.f32.mrf.mxu0
    %v4147 = vadd.f32 %v2492, %v4146
    %v4148 = vpop.f32.mrf.mxu0
    %v4149 = vadd.f32 %v2488, %v4148
    %v4150 = vpop.f32.mrf.mxu0
    %v4151 = vadd.f32 %v2492, %v4150
    %4152 = vmatprep.mubr.bf16.mxu0 %v2184
    %4153 = vmatmul.mubr.bf16.gmra.mxu0 %v2183
    %v4154 = vpop.f32.mrf.mxu0
    %v4155 = vadd.f32 %v2488, %v4154
    %v4156 = vpop.f32.mrf.mxu0
    %v4157 = vadd.f32 %v2492, %v4156
    %v4158 = vpop.f32.mrf.mxu0
    %v4159 = vadd.f32 %v2488, %v4158
    %v4160 = vpop.f32.mrf.mxu0
    %v4161 = vadd.f32 %v2492, %v4160
    %4162 = vmatprep.mubr.bf16.mxu0 %v2188
    %4163 = vmatmul.mubr.bf16.gmra.mxu0 %v2187
    %v4164 = vpop.f32.mrf.mxu0
    %v4165 = vadd.f32 %v2488, %v4164
    %v4166 = vpop.f32.mrf.mxu0
    %v4167 = vadd.f32 %v2492, %v4166
    %v4168 = vpop.f32.mrf.mxu0
    %v4169 = vadd.f32 %v2488, %v4168
    %v4170 = vpop.f32.mrf.mxu0
    %v4171 = vadd.f32 %v2492, %v4170
    %4172 = vmatprep.mubr.bf16.mxu0 %v2192
    %4173 = vmatmul.mubr.bf16.gmra.mxu0 %v2191
    %v4174 = vpop.f32.mrf.mxu0
    %v4175 = vadd.f32 %v2488, %v4174
    %v4176 = vpop.f32.mrf.mxu0
    %v4177 = vadd.f32 %v2492, %v4176
    %v4178 = vpop.f32.mrf.mxu0
    %v4179 = vadd.f32 %v2488, %v4178
    %v4180 = vpop.f32.mrf.mxu0
    %v4181 = vadd.f32 %v2492, %v4180
    %4182 = vmatprep.mubr.bf16.mxu0 %v2196
    %4183 = vmatmul.mubr.bf16.gmra.mxu0 %v2195
    %v4184 = vpop.f32.mrf.mxu0
    %v4185 = vadd.f32 %v2488, %v4184
    %v4186 = vpop.f32.mrf.mxu0
    %v4187 = vadd.f32 %v2492, %v4186
    %v4188 = vpop.f32.mrf.mxu0
    %v4189 = vadd.f32 %v2488, %v4188
    %v4190 = vpop.f32.mrf.mxu0
    %v4191 = vadd.f32 %v2492, %v4190
    %4192 = vmatprep.mubr.bf16.mxu0 %v2200
    %4193 = vmatmul.mubr.bf16.gmra.mxu0 %v2199
    %v4194 = vpop.f32.mrf.mxu0
    %v4195 = vadd.f32 %v2488, %v4194
    %v4196 = vpop.f32.mrf.mxu0
    %v4197 = vadd.f32 %v2492, %v4196
    %v4198 = vpop.f32.mrf.mxu0
    %v4199 = vadd.f32 %v2488, %v4198
    %v4200 = vpop.f32.mrf.mxu0
    %v4201 = vadd.f32 %v2492, %v4200
    %4202 = vmatprep.mubr.bf16.mxu0 %v2204
    %4203 = vmatmul.mubr.bf16.gmra.mxu0 %v2203
    %v4204 = vpop.f32.mrf.mxu0
    %v4205 = vadd.f32 %v2488, %v4204
    %v4206 = vpop.f32.mrf.mxu0
    %v4207 = vadd.f32 %v2492, %v4206
    %v4208 = vpop.f32.mrf.mxu0
    %v4209 = vadd.f32 %v2488, %v4208
    %v4210 = vpop.f32.mrf.mxu0
    %v4211 = vadd.f32 %v2492, %v4210
    %4212 = vmatprep.mubr.bf16.mxu0 %v2208
    %4213 = vmatmul.mubr.bf16.gmra.mxu0 %v2207
    %v4214 = vpop.f32.mrf.mxu0
    %v4215 = vadd.f32 %v2488, %v4214
    %v4216 = vpop.f32.mrf.mxu0
    %v4217 = vadd.f32 %v2492, %v4216
    %v4218 = vpop.f32.mrf.mxu0
    %v4219 = vadd.f32 %v2488, %v4218
    %v4220 = vpop.f32.mrf.mxu0
    %v4221 = vadd.f32 %v2492, %v4220
    %4222 = vmatprep.mubr.bf16.mxu0 %v2212
    %4223 = vmatmul.mubr.bf16.gmra.mxu0 %v2211
    %v4224 = vpop.f32.mrf.mxu0
    %v4225 = vadd.f32 %v2488, %v4224
    %v4226 = vpop.f32.mrf.mxu0
    %v4227 = vadd.f32 %v2492, %v4226
    %v4228 = vpop.f32.mrf.mxu0
    %v4229 = vadd.f32 %v2488, %v4228
    %v4230 = vpop.f32.mrf.mxu0
    %v4231 = vadd.f32 %v2492, %v4230
    %4232 = vmatprep.mubr.bf16.mxu0 %v2216
    %4233 = vmatmul.mubr.bf16.gmra.mxu0 %v2215
    %v4234 = vpop.f32.mrf.mxu0
    %v4235 = vadd.f32 %v2488, %v4234
    %v4236 = vpop.f32.mrf.mxu0
    %v4237 = vadd.f32 %v2492, %v4236
    %v4238 = vpop.f32.mrf.mxu0
    %v4239 = vadd.f32 %v2488, %v4238
    %v4240 = vpop.f32.mrf.mxu0
    %v4241 = vadd.f32 %v2492, %v4240
    %4242 = vdwg.mxu0
    %4243 = vmatprep.subr.bf16.mxu0 %v3380
    %4244 = vmatpush1.bf16.msra.mxu0 %v3379
    %4245 = vmatprep.subr.bf16.mxu0 %v3373
    %4246 = vmatpush1.bf16.msra.mxu0 %v3372
    %4247 = vmatprep.subr.bf16.mxu0 %v3366
    %4248 = vmatpush1.bf16.msra.mxu0 %v3365
    %4249 = vmatprep.subr.bf16.mxu0 %v3359
    %4250 = vmatpush1.bf16.msra.mxu0 %v3358
    %4251 = vmatprep.subr.bf16.mxu0 %v3352
    %4252 = vmatpush1.bf16.msra.mxu0 %v3351
    %4253 = vmatprep.subr.bf16.mxu0 %v3345
    %4254 = vmatpush1.bf16.msra.mxu0 %v3344
    %4255 = vmatprep.subr.bf16.mxu0 %v3338
    %4256 = vmatpush1.bf16.msra.mxu0 %v3337
    %4257 = vmatprep.subr.bf16.mxu0 %v3331
    %4258 = vmatpush1.bf16.msra.mxu0 %v3330
    %4259 = vmatprep.subr.bf16.mxu0 %v3436
    %4260 = vmatpush2.bf16.msra.mxu0 %v3435
    %4261 = vmatprep.subr.bf16.mxu0 %v3429
    %4262 = vmatpush2.bf16.msra.mxu0 %v3428
    %4263 = vmatprep.subr.bf16.mxu0 %v3422
    %4264 = vmatpush2.bf16.msra.mxu0 %v3421
    %4265 = vmatprep.subr.bf16.mxu0 %v3415
    %4266 = vmatpush2.bf16.msra.mxu0 %v3414
    %4267 = vmatprep.subr.bf16.mxu0 %v3408
    %4268 = vmatpush2.bf16.msra.mxu0 %v3407
    %4269 = vmatprep.subr.bf16.mxu0 %v3401
    %4270 = vmatpush2.bf16.msra.mxu0 %v3400
    %4271 = vmatprep.subr.bf16.mxu0 %v3394
    %4272 = vmatpush2.bf16.msra.mxu0 %v3393
    %4273 = vmatprep.subr.bf16.mxu0 %v3387
    %4274 = vmatpush2.bf16.msra.mxu0 %v3386
    %4275 = vmatprep.mubr.bf16.mxu0 %v2158
    %4276 = vmatmul.mubr.bf16.gmra.mxu0 %v2157
    %v4277 = vpop.f32.mrf.mxu0
    %v4278 = vadd.f32 %v4085, %v4277
    %v4279 = vpop.f32.mrf.mxu0
    %v4280 = vadd.f32 %v4087, %v4279
    %v4281 = vpop.f32.mrf.mxu0
    %v4282 = vadd.f32 %v4089, %v4281
    %v4283 = vpop.f32.mrf.mxu0
    %v4284 = vadd.f32 %v4091, %v4283
    %4285 = vmatprep.mubr.bf16.mxu0 %v2162
    %4286 = vmatmul.mubr.bf16.gmra.mxu0 %v2161
    %v4287 = vpop.f32.mrf.mxu0
    %v4288 = vadd.f32 %v4095, %v4287
    %v4289 = vpop.f32.mrf.mxu0
    %v4290 = vadd.f32 %v4097, %v4289
    %v4291 = vpop.f32.mrf.mxu0
    %v4292 = vadd.f32 %v4099, %v4291
    %v4293 = vpop.f32.mrf.mxu0
    %v4294 = vadd.f32 %v4101, %v4293
    %4295 = vmatprep.mubr.bf16.mxu0 %v2166
    %4296 = vmatmul.mubr.bf16.gmra.mxu0 %v2165
    %v4297 = vpop.f32.mrf.mxu0
    %v4298 = vadd.f32 %v4105, %v4297
    %v4299 = vpop.f32.mrf.mxu0
    %v4300 = vadd.f32 %v4107, %v4299
    %v4301 = vpop.f32.mrf.mxu0
    %v4302 = vadd.f32 %v4109, %v4301
    %v4303 = vpop.f32.mrf.mxu0
    %v4304 = vadd.f32 %v4111, %v4303
    %4305 = vmatprep.mubr.bf16.mxu0 %v2170
    %4306 = vmatmul.mubr.bf16.gmra.mxu0 %v2169
    %v4307 = vpop.f32.mrf.mxu0
    %v4308 = vadd.f32 %v4115, %v4307
    %v4309 = vpop.f32.mrf.mxu0
    %v4310 = vadd.f32 %v4117, %v4309
    %v4311 = vpop.f32.mrf.mxu0
    %v4312 = vadd.f32 %v4119, %v4311
    %v4313 = vpop.f32.mrf.mxu0
    %v4314 = vadd.f32 %v4121, %v4313
    %4315 = vmatprep.mubr.bf16.mxu0 %v2174
    %4316 = vmatmul.mubr.bf16.gmra.mxu0 %v2173
    %v4317 = vpop.f32.mrf.mxu0
    %v4318 = vadd.f32 %v4125, %v4317
    %v4319 = vpop.f32.mrf.mxu0
    %v4320 = vadd.f32 %v4127, %v4319
    %v4321 = vpop.f32.mrf.mxu0
    %v4322 = vadd.f32 %v4129, %v4321
    %v4323 = vpop.f32.mrf.mxu0
    %v4324 = vadd.f32 %v4131, %v4323
    %4325 = vmatprep.mubr.bf16.mxu0 %v2178
    %4326 = vmatmul.mubr.bf16.gmra.mxu0 %v2177
    %v4327 = vpop.f32.mrf.mxu0
    %v4328 = vadd.f32 %v4135, %v4327
    %v4329 = vpop.f32.mrf.mxu0
    %v4330 = vadd.f32 %v4137, %v4329
    %v4331 = vpop.f32.mrf.mxu0
    %v4332 = vadd.f32 %v4139, %v4331
    %v4333 = vpop.f32.mrf.mxu0
    %v4334 = vadd.f32 %v4141, %v4333
    %4335 = vmatprep.mubr.bf16.mxu0 %v2182
    %4336 = vmatmul.mubr.bf16.gmra.mxu0 %v2181
    %v4337 = vpop.f32.mrf.mxu0
    %v4338 = vadd.f32 %v4145, %v4337
    %v4339 = vpop.f32.mrf.mxu0
    %v4340 = vadd.f32 %v4147, %v4339
    %v4341 = vpop.f32.mrf.mxu0
    %v4342 = vadd.f32 %v4149, %v4341
    %v4343 = vpop.f32.mrf.mxu0
    %v4344 = vadd.f32 %v4151, %v4343
    %4345 = vmatprep.mubr.bf16.mxu0 %v2186
    %4346 = vmatmul.mubr.bf16.gmra.mxu0 %v2185
    %v4347 = vpop.f32.mrf.mxu0
    %v4348 = vadd.f32 %v4155, %v4347
    %v4349 = vpop.f32.mrf.mxu0
    %v4350 = vadd.f32 %v4157, %v4349
    %v4351 = vpop.f32.mrf.mxu0
    %v4352 = vadd.f32 %v4159, %v4351
    %v4353 = vpop.f32.mrf.mxu0
    %v4354 = vadd.f32 %v4161, %v4353
    %4355 = vmatprep.mubr.bf16.mxu0 %v2190
    %4356 = vmatmul.mubr.bf16.gmra.mxu0 %v2189
    %v4357 = vpop.f32.mrf.mxu0
    %v4358 = vadd.f32 %v4165, %v4357
    %v4359 = vpop.f32.mrf.mxu0
    %v4360 = vadd.f32 %v4167, %v4359
    %v4361 = vpop.f32.mrf.mxu0
    %v4362 = vadd.f32 %v4169, %v4361
    %v4363 = vpop.f32.mrf.mxu0
    %v4364 = vadd.f32 %v4171, %v4363
    %4365 = vmatprep.mubr.bf16.mxu0 %v2194
    %4366 = vmatmul.mubr.bf16.gmra.mxu0 %v2193
    %v4367 = vpop.f32.mrf.mxu0
    %v4368 = vadd.f32 %v4175, %v4367
    %v4369 = vpop.f32.mrf.mxu0
    %v4370 = vadd.f32 %v4177, %v4369
    %v4371 = vpop.f32.mrf.mxu0
    %v4372 = vadd.f32 %v4179, %v4371
    %v4373 = vpop.f32.mrf.mxu0
    %v4374 = vadd.f32 %v4181, %v4373
    %4375 = vmatprep.mubr.bf16.mxu0 %v2198
    %4376 = vmatmul.mubr.bf16.gmra.mxu0 %v2197
    %v4377 = vpop.f32.mrf.mxu0
    %v4378 = vadd.f32 %v4185, %v4377
    %v4379 = vpop.f32.mrf.mxu0
    %v4380 = vadd.f32 %v4187, %v4379
    %v4381 = vpop.f32.mrf.mxu0
    %v4382 = vadd.f32 %v4189, %v4381
    %v4383 = vpop.f32.mrf.mxu0
    %v4384 = vadd.f32 %v4191, %v4383
    %4385 = vmatprep.mubr.bf16.mxu0 %v2202
    %4386 = vmatmul.mubr.bf16.gmra.mxu0 %v2201
    %v4387 = vpop.f32.mrf.mxu0
    %v4388 = vadd.f32 %v4195, %v4387
    %v4389 = vpop.f32.mrf.mxu0
    %v4390 = vadd.f32 %v4197, %v4389
    %v4391 = vpop.f32.mrf.mxu0
    %v4392 = vadd.f32 %v4199, %v4391
    %v4393 = vpop.f32.mrf.mxu0
    %v4394 = vadd.f32 %v4201, %v4393
    %4395 = vmatprep.mubr.bf16.mxu0 %v2206
    %4396 = vmatmul.mubr.bf16.gmra.mxu0 %v2205
    %v4397 = vpop.f32.mrf.mxu0
    %v4398 = vadd.f32 %v4205, %v4397
    %v4399 = vpop.f32.mrf.mxu0
    %v4400 = vadd.f32 %v4207, %v4399
    %v4401 = vpop.f32.mrf.mxu0
    %v4402 = vadd.f32 %v4209, %v4401
    %v4403 = vpop.f32.mrf.mxu0
    %v4404 = vadd.f32 %v4211, %v4403
    %4405 = vmatprep.mubr.bf16.mxu0 %v2210
    %4406 = vmatmul.mubr.bf16.gmra.mxu0 %v2209
    %v4407 = vpop.f32.mrf.mxu0
    %v4408 = vadd.f32 %v4215, %v4407
    %v4409 = vpop.f32.mrf.mxu0
    %v4410 = vadd.f32 %v4217, %v4409
    %v4411 = vpop.f32.mrf.mxu0
    %v4412 = vadd.f32 %v4219, %v4411
    %v4413 = vpop.f32.mrf.mxu0
    %v4414 = vadd.f32 %v4221, %v4413
    %4415 = vmatprep.mubr.bf16.mxu0 %v2214
    %4416 = vmatmul.mubr.bf16.gmra.mxu0 %v2213
    %v4417 = vpop.f32.mrf.mxu0
    %v4418 = vadd.f32 %v4225, %v4417
    %v4419 = vpop.f32.mrf.mxu0
    %v4420 = vadd.f32 %v4227, %v4419
    %v4421 = vpop.f32.mrf.mxu0
    %v4422 = vadd.f32 %v4229, %v4421
    %v4423 = vpop.f32.mrf.mxu0
    %v4424 = vadd.f32 %v4231, %v4423
    %4425 = vmatprep.mubr.bf16.mxu0 %v2218
    %4426 = vmatmul.mubr.bf16.gmra.mxu0 %v2217
    %v4427 = vpop.f32.mrf.mxu0
    %v4428 = vadd.f32 %v4235, %v4427
    %v4429 = vpop.f32.mrf.mxu0
    %v4430 = vadd.f32 %v4237, %v4429
    %v4431 = vpop.f32.mrf.mxu0
    %v4432 = vadd.f32 %v4239, %v4431
    %v4433 = vpop.f32.mrf.mxu0
    %v4434 = vadd.f32 %v4241, %v4433
    %4435 = vdwg.mxu0
    %4436 = vmatprep.subr.bf16.mxu0 %v3270
    %4437 = vmatpush1.bf16.msra.mxu0 %v3269
    %4438 = vmatprep.subr.bf16.mxu0 %v3263
    %4439 = vmatpush1.bf16.msra.mxu0 %v3262
    %4440 = vmatprep.subr.bf16.mxu0 %v3256
    %4441 = vmatpush1.bf16.msra.mxu0 %v3255
    %4442 = vmatprep.subr.bf16.mxu0 %v3249
    %4443 = vmatpush1.bf16.msra.mxu0 %v3248
    %4444 = vmatprep.subr.bf16.mxu0 %v3242
    %4445 = vmatpush1.bf16.msra.mxu0 %v3241
    %4446 = vmatprep.subr.bf16.mxu0 %v3235
    %4447 = vmatpush1.bf16.msra.mxu0 %v3234
    %4448 = vmatprep.subr.bf16.mxu0 %v3228
    %4449 = vmatpush1.bf16.msra.mxu0 %v3227
    %4450 = vmatprep.subr.bf16.mxu0 %v3221
    %4451 = vmatpush1.bf16.msra.mxu0 %v3220
    %4452 = vmatprep.subr.bf16.mxu0 %v3326
    %4453 = vmatpush2.bf16.msra.mxu0 %v3325
    %4454 = vmatprep.subr.bf16.mxu0 %v3319
    %4455 = vmatpush2.bf16.msra.mxu0 %v3318
    %4456 = vmatprep.subr.bf16.mxu0 %v3312
    %4457 = vmatpush2.bf16.msra.mxu0 %v3311
    %4458 = vmatprep.subr.bf16.mxu0 %v3305
    %4459 = vmatpush2.bf16.msra.mxu0 %v3304
    %4460 = vmatprep.subr.bf16.mxu0 %v3298
    %4461 = vmatpush2.bf16.msra.mxu0 %v3297
    %4462 = vmatprep.subr.bf16.mxu0 %v3291
    %4463 = vmatpush2.bf16.msra.mxu0 %v3290
    %4464 = vmatprep.subr.bf16.mxu0 %v3284
    %4465 = vmatpush2.bf16.msra.mxu0 %v3283
    %4466 = vmatprep.subr.bf16.mxu0 %v3277
    %4467 = vmatpush2.bf16.msra.mxu0 %v3276
    %4468 = vmatprep.mubr.bf16.mxu0 %v2156
    %4469 = vmatmul.mubr.bf16.gmra.mxu0 %v2155
    %v4470 = vpop.f32.mrf.mxu0
    %v4471 = vadd.f32 %v2496, %v4470
    %v4472 = vpop.f32.mrf.mxu0
    %v4473 = vadd.f32 %v2500, %v4472
    %v4474 = vpop.f32.mrf.mxu0
    %v4475 = vadd.f32 %v2496, %v4474
    %v4476 = vpop.f32.mrf.mxu0
    %v4477 = vadd.f32 %v2500, %v4476
    %4478 = vmatprep.mubr.bf16.mxu0 %v2160
    %4479 = vmatmul.mubr.bf16.gmra.mxu0 %v2159
    %v4480 = vpop.f32.mrf.mxu0
    %v4481 = vadd.f32 %v2496, %v4480
    %v4482 = vpop.f32.mrf.mxu0
    %v4483 = vadd.f32 %v2500, %v4482
    %v4484 = vpop.f32.mrf.mxu0
    %v4485 = vadd.f32 %v2496, %v4484
    %v4486 = vpop.f32.mrf.mxu0
    %v4487 = vadd.f32 %v2500, %v4486
    %4488 = vmatprep.mubr.bf16.mxu0 %v2164
    %4489 = vmatmul.mubr.bf16.gmra.mxu0 %v2163
    %v4490 = vpop.f32.mrf.mxu0
    %v4491 = vadd.f32 %v2496, %v4490
    %v4492 = vpop.f32.mrf.mxu0
    %v4493 = vadd.f32 %v2500, %v4492
    %v4494 = vpop.f32.mrf.mxu0
    %v4495 = vadd.f32 %v2496, %v4494
    %v4496 = vpop.f32.mrf.mxu0
    %v4497 = vadd.f32 %v2500, %v4496
    %4498 = vmatprep.mubr.bf16.mxu0 %v2168
    %4499 = vmatmul.mubr.bf16.gmra.mxu0 %v2167
    %v4500 = vpop.f32.mrf.mxu0
    %v4501 = vadd.f32 %v2496, %v4500
    %v4502 = vpop.f32.mrf.mxu0
    %v4503 = vadd.f32 %v2500, %v4502
    %v4504 = vpop.f32.mrf.mxu0
    %v4505 = vadd.f32 %v2496, %v4504
    %v4506 = vpop.f32.mrf.mxu0
    %v4507 = vadd.f32 %v2500, %v4506
    %4508 = vmatprep.mubr.bf16.mxu0 %v2172
    %4509 = vmatmul.mubr.bf16.gmra.mxu0 %v2171
    %v4510 = vpop.f32.mrf.mxu0
    %v4511 = vadd.f32 %v2496, %v4510
    %v4512 = vpop.f32.mrf.mxu0
    %v4513 = vadd.f32 %v2500, %v4512
    %v4514 = vpop.f32.mrf.mxu0
    %v4515 = vadd.f32 %v2496, %v4514
    %v4516 = vpop.f32.mrf.mxu0
    %v4517 = vadd.f32 %v2500, %v4516
    %4518 = vmatprep.mubr.bf16.mxu0 %v2176
    %4519 = vmatmul.mubr.bf16.gmra.mxu0 %v2175
    %v4520 = vpop.f32.mrf.mxu0
    %v4521 = vadd.f32 %v2496, %v4520
    %v4522 = vpop.f32.mrf.mxu0
    %v4523 = vadd.f32 %v2500, %v4522
    %v4524 = vpop.f32.mrf.mxu0
    %v4525 = vadd.f32 %v2496, %v4524
    %v4526 = vpop.f32.mrf.mxu0
    %v4527 = vadd.f32 %v2500, %v4526
    %4528 = vmatprep.mubr.bf16.mxu0 %v2180
    %4529 = vmatmul.mubr.bf16.gmra.mxu0 %v2179
    %v4530 = vpop.f32.mrf.mxu0
    %v4531 = vadd.f32 %v2496, %v4530
    %v4532 = vpop.f32.mrf.mxu0
    %v4533 = vadd.f32 %v2500, %v4532
    %v4534 = vpop.f32.mrf.mxu0
    %v4535 = vadd.f32 %v2496, %v4534
    %v4536 = vpop.f32.mrf.mxu0
    %v4537 = vadd.f32 %v2500, %v4536
    %4538 = vmatprep.mubr.bf16.mxu0 %v2184
    %4539 = vmatmul.mubr.bf16.gmra.mxu0 %v2183
    %v4540 = vpop.f32.mrf.mxu0
    %v4541 = vadd.f32 %v2496, %v4540
    %v4542 = vpop.f32.mrf.mxu0
    %v4543 = vadd.f32 %v2500, %v4542
    %v4544 = vpop.f32.mrf.mxu0
    %v4545 = vadd.f32 %v2496, %v4544
    %v4546 = vpop.f32.mrf.mxu0
    %v4547 = vadd.f32 %v2500, %v4546
    %4548 = vmatprep.mubr.bf16.mxu0 %v2188
    %4549 = vmatmul.mubr.bf16.gmra.mxu0 %v2187
    %v4550 = vpop.f32.mrf.mxu0
    %v4551 = vadd.f32 %v2496, %v4550
    %v4552 = vpop.f32.mrf.mxu0
    %v4553 = vadd.f32 %v2500, %v4552
    %v4554 = vpop.f32.mrf.mxu0
    %v4555 = vadd.f32 %v2496, %v4554
    %v4556 = vpop.f32.mrf.mxu0
    %v4557 = vadd.f32 %v2500, %v4556
    %4558 = vmatprep.mubr.bf16.mxu0 %v2192
    %4559 = vmatmul.mubr.bf16.gmra.mxu0 %v2191
    %v4560 = vpop.f32.mrf.mxu0
    %v4561 = vadd.f32 %v2496, %v4560
    %v4562 = vpop.f32.mrf.mxu0
    %v4563 = vadd.f32 %v2500, %v4562
    %v4564 = vpop.f32.mrf.mxu0
    %v4565 = vadd.f32 %v2496, %v4564
    %v4566 = vpop.f32.mrf.mxu0
    %v4567 = vadd.f32 %v2500, %v4566
    %4568 = vmatprep.mubr.bf16.mxu0 %v2196
    %4569 = vmatmul.mubr.bf16.gmra.mxu0 %v2195
    %v4570 = vpop.f32.mrf.mxu0
    %v4571 = vadd.f32 %v2496, %v4570
    %v4572 = vpop.f32.mrf.mxu0
    %v4573 = vadd.f32 %v2500, %v4572
    %v4574 = vpop.f32.mrf.mxu0
    %v4575 = vadd.f32 %v2496, %v4574
    %v4576 = vpop.f32.mrf.mxu0
    %v4577 = vadd.f32 %v2500, %v4576
    %4578 = vmatprep.mubr.bf16.mxu0 %v2200
    %4579 = vmatmul.mubr.bf16.gmra.mxu0 %v2199
    %v4580 = vpop.f32.mrf.mxu0
    %v4581 = vadd.f32 %v2496, %v4580
    %v4582 = vpop.f32.mrf.mxu0
    %v4583 = vadd.f32 %v2500, %v4582
    %v4584 = vpop.f32.mrf.mxu0
    %v4585 = vadd.f32 %v2496, %v4584
    %v4586 = vpop.f32.mrf.mxu0
    %v4587 = vadd.f32 %v2500, %v4586
    %4588 = vmatprep.mubr.bf16.mxu0 %v2204
    %4589 = vmatmul.mubr.bf16.gmra.mxu0 %v2203
    %v4590 = vpop.f32.mrf.mxu0
    %v4591 = vadd.f32 %v2496, %v4590
    %v4592 = vpop.f32.mrf.mxu0
    %v4593 = vadd.f32 %v2500, %v4592
    %v4594 = vpop.f32.mrf.mxu0
    %v4595 = vadd.f32 %v2496, %v4594
    %v4596 = vpop.f32.mrf.mxu0
    %v4597 = vadd.f32 %v2500, %v4596
    %4598 = vmatprep.mubr.bf16.mxu0 %v2208
    %4599 = vmatmul.mubr.bf16.gmra.mxu0 %v2207
    %v4600 = vpop.f32.mrf.mxu0
    %v4601 = vadd.f32 %v2496, %v4600
    %v4602 = vpop.f32.mrf.mxu0
    %v4603 = vadd.f32 %v2500, %v4602
    %v4604 = vpop.f32.mrf.mxu0
    %v4605 = vadd.f32 %v2496, %v4604
    %v4606 = vpop.f32.mrf.mxu0
    %v4607 = vadd.f32 %v2500, %v4606
    %4608 = vmatprep.mubr.bf16.mxu0 %v2212
    %4609 = vmatmul.mubr.bf16.gmra.mxu0 %v2211
    %v4610 = vpop.f32.mrf.mxu0
    %v4611 = vadd.f32 %v2496, %v4610
    %v4612 = vpop.f32.mrf.mxu0
    %v4613 = vadd.f32 %v2500, %v4612
    %v4614 = vpop.f32.mrf.mxu0
    %v4615 = vadd.f32 %v2496, %v4614
    %v4616 = vpop.f32.mrf.mxu0
    %v4617 = vadd.f32 %v2500, %v4616
    %4618 = vmatprep.mubr.bf16.mxu0 %v2216
    %4619 = vmatmul.mubr.bf16.gmra.mxu0 %v2215
    %v4620 = vpop.f32.mrf.mxu0
    %v4621 = vadd.f32 %v2496, %v4620
    %v4622 = vpop.f32.mrf.mxu0
    %v4623 = vadd.f32 %v2500, %v4622
    %v4624 = vpop.f32.mrf.mxu0
    %v4625 = vadd.f32 %v2496, %v4624
    %v4626 = vpop.f32.mrf.mxu0
    %v4627 = vadd.f32 %v2500, %v4626
    %4628 = vdwg.mxu0
    %4629 = vmatprep.subr.bf16.mxu0 %v3382
    %4630 = vmatpush1.bf16.msra.mxu0 %v3381
    %4631 = vmatprep.subr.bf16.mxu0 %v3375
    %4632 = vmatpush1.bf16.msra.mxu0 %v3374
    %4633 = vmatprep.subr.bf16.mxu0 %v3368
    %4634 = vmatpush1.bf16.msra.mxu0 %v3367
    %4635 = vmatprep.subr.bf16.mxu0 %v3361
    %4636 = vmatpush1.bf16.msra.mxu0 %v3360
    %4637 = vmatprep.subr.bf16.mxu0 %v3354
    %4638 = vmatpush1.bf16.msra.mxu0 %v3353
    %4639 = vmatprep.subr.bf16.mxu0 %v3347
    %4640 = vmatpush1.bf16.msra.mxu0 %v3346
    %4641 = vmatprep.subr.bf16.mxu0 %v3340
    %4642 = vmatpush1.bf16.msra.mxu0 %v3339
    %4643 = vmatprep.subr.bf16.mxu0 %v3333
    %4644 = vmatpush1.bf16.msra.mxu0 %v3332
    %4645 = vmatprep.subr.bf16.mxu0 %v3438
    %4646 = vmatpush2.bf16.msra.mxu0 %v3437
    %4647 = vmatprep.subr.bf16.mxu0 %v3431
    %4648 = vmatpush2.bf16.msra.mxu0 %v3430
    %4649 = vmatprep.subr.bf16.mxu0 %v3424
    %4650 = vmatpush2.bf16.msra.mxu0 %v3423
    %4651 = vmatprep.subr.bf16.mxu0 %v3417
    %4652 = vmatpush2.bf16.msra.mxu0 %v3416
    %4653 = vmatprep.subr.bf16.mxu0 %v3410
    %4654 = vmatpush2.bf16.msra.mxu0 %v3409
    %4655 = vmatprep.subr.bf16.mxu0 %v3403
    %4656 = vmatpush2.bf16.msra.mxu0 %v3402
    %4657 = vmatprep.subr.bf16.mxu0 %v3396
    %4658 = vmatpush2.bf16.msra.mxu0 %v3395
    %4659 = vmatprep.subr.bf16.mxu0 %v3389
    %4660 = vmatpush2.bf16.msra.mxu0 %v3388
    %4661 = vmatprep.mubr.bf16.mxu0 %v2158
    %4662 = vmatmul.mubr.bf16.gmra.mxu0 %v2157
    %v4663 = vpop.f32.mrf.mxu0
    %v4664 = vadd.f32 %v4471, %v4663
    %v4665 = vpop.f32.mrf.mxu0
    %v4666 = vadd.f32 %v4473, %v4665
    %v4667 = vpop.f32.mrf.mxu0
    %v4668 = vadd.f32 %v4475, %v4667
    %v4669 = vpop.f32.mrf.mxu0
    %v4670 = vadd.f32 %v4477, %v4669
    %4671 = vmatprep.mubr.bf16.mxu0 %v2162
    %4672 = vmatmul.mubr.bf16.gmra.mxu0 %v2161
    %v4673 = vpop.f32.mrf.mxu0
    %v4674 = vadd.f32 %v4481, %v4673
    %v4675 = vpop.f32.mrf.mxu0
    %v4676 = vadd.f32 %v4483, %v4675
    %v4677 = vpop.f32.mrf.mxu0
    %v4678 = vadd.f32 %v4485, %v4677
    %v4679 = vpop.f32.mrf.mxu0
    %v4680 = vadd.f32 %v4487, %v4679
    %4681 = vmatprep.mubr.bf16.mxu0 %v2166
    %4682 = vmatmul.mubr.bf16.gmra.mxu0 %v2165
    %v4683 = vpop.f32.mrf.mxu0
    %v4684 = vadd.f32 %v4491, %v4683
    %v4685 = vpop.f32.mrf.mxu0
    %v4686 = vadd.f32 %v4493, %v4685
    %v4687 = vpop.f32.mrf.mxu0
    %v4688 = vadd.f32 %v4495, %v4687
    %v4689 = vpop.f32.mrf.mxu0
    %v4690 = vadd.f32 %v4497, %v4689
    %4691 = vmatprep.mubr.bf16.mxu0 %v2170
    %4692 = vmatmul.mubr.bf16.gmra.mxu0 %v2169
    %v4693 = vpop.f32.mrf.mxu0
    %v4694 = vadd.f32 %v4501, %v4693
    %v4695 = vpop.f32.mrf.mxu0
    %v4696 = vadd.f32 %v4503, %v4695
    %v4697 = vpop.f32.mrf.mxu0
    %v4698 = vadd.f32 %v4505, %v4697
    %v4699 = vpop.f32.mrf.mxu0
    %v4700 = vadd.f32 %v4507, %v4699
    %4701 = vmatprep.mubr.bf16.mxu0 %v2174
    %4702 = vmatmul.mubr.bf16.gmra.mxu0 %v2173
    %v4703 = vpop.f32.mrf.mxu0
    %v4704 = vadd.f32 %v4511, %v4703
    %v4705 = vpop.f32.mrf.mxu0
    %v4706 = vadd.f32 %v4513, %v4705
    %v4707 = vpop.f32.mrf.mxu0
    %v4708 = vadd.f32 %v4515, %v4707
    %v4709 = vpop.f32.mrf.mxu0
    %v4710 = vadd.f32 %v4517, %v4709
    %4711 = vmatprep.mubr.bf16.mxu0 %v2178
    %4712 = vmatmul.mubr.bf16.gmra.mxu0 %v2177
    %v4713 = vpop.f32.mrf.mxu0
    %v4714 = vadd.f32 %v4521, %v4713
    %v4715 = vpop.f32.mrf.mxu0
    %v4716 = vadd.f32 %v4523, %v4715
    %v4717 = vpop.f32.mrf.mxu0
    %v4718 = vadd.f32 %v4525, %v4717
    %v4719 = vpop.f32.mrf.mxu0
    %v4720 = vadd.f32 %v4527, %v4719
    %4721 = vmatprep.mubr.bf16.mxu0 %v2182
    %4722 = vmatmul.mubr.bf16.gmra.mxu0 %v2181
    %v4723 = vpop.f32.mrf.mxu0
    %v4724 = vadd.f32 %v4531, %v4723
    %v4725 = vpop.f32.mrf.mxu0
    %v4726 = vadd.f32 %v4533, %v4725
    %v4727 = vpop.f32.mrf.mxu0
    %v4728 = vadd.f32 %v4535, %v4727
    %v4729 = vpop.f32.mrf.mxu0
    %v4730 = vadd.f32 %v4537, %v4729
    %4731 = vmatprep.mubr.bf16.mxu0 %v2186
    %4732 = vmatmul.mubr.bf16.gmra.mxu0 %v2185
    %v4733 = vpop.f32.mrf.mxu0
    %v4734 = vadd.f32 %v4541, %v4733
    %v4735 = vpop.f32.mrf.mxu0
    %v4736 = vadd.f32 %v4543, %v4735
    %v4737 = vpop.f32.mrf.mxu0
    %v4738 = vadd.f32 %v4545, %v4737
    %v4739 = vpop.f32.mrf.mxu0
    %v4740 = vadd.f32 %v4547, %v4739
    %4741 = vmatprep.mubr.bf16.mxu0 %v2190
    %4742 = vmatmul.mubr.bf16.gmra.mxu0 %v2189
    %v4743 = vpop.f32.mrf.mxu0
    %v4744 = vadd.f32 %v4551, %v4743
    %v4745 = vpop.f32.mrf.mxu0
    %v4746 = vadd.f32 %v4553, %v4745
    %v4747 = vpop.f32.mrf.mxu0
    %v4748 = vadd.f32 %v4555, %v4747
    %v4749 = vpop.f32.mrf.mxu0
    %v4750 = vadd.f32 %v4557, %v4749
    %4751 = vmatprep.mubr.bf16.mxu0 %v2194
    %4752 = vmatmul.mubr.bf16.gmra.mxu0 %v2193
    %v4753 = vpop.f32.mrf.mxu0
    %v4754 = vadd.f32 %v4561, %v4753
    %v4755 = vpop.f32.mrf.mxu0
    %v4756 = vadd.f32 %v4563, %v4755
    %v4757 = vpop.f32.mrf.mxu0
    %v4758 = vadd.f32 %v4565, %v4757
    %v4759 = vpop.f32.mrf.mxu0
    %v4760 = vadd.f32 %v4567, %v4759
    %4761 = vmatprep.mubr.bf16.mxu0 %v2198
    %4762 = vmatmul.mubr.bf16.gmra.mxu0 %v2197
    %v4763 = vpop.f32.mrf.mxu0
    %v4764 = vadd.f32 %v4571, %v4763
    %v4765 = vpop.f32.mrf.mxu0
    %v4766 = vadd.f32 %v4573, %v4765
    %v4767 = vpop.f32.mrf.mxu0
    %v4768 = vadd.f32 %v4575, %v4767
    %v4769 = vpop.f32.mrf.mxu0
    %v4770 = vadd.f32 %v4577, %v4769
    %4771 = vmatprep.mubr.bf16.mxu0 %v2202
    %4772 = vmatmul.mubr.bf16.gmra.mxu0 %v2201
    %v4773 = vpop.f32.mrf.mxu0
    %v4774 = vadd.f32 %v4581, %v4773
    %v4775 = vpop.f32.mrf.mxu0
    %v4776 = vadd.f32 %v4583, %v4775
    %v4777 = vpop.f32.mrf.mxu0
    %v4778 = vadd.f32 %v4585, %v4777
    %v4779 = vpop.f32.mrf.mxu0
    %v4780 = vadd.f32 %v4587, %v4779
    %4781 = vmatprep.mubr.bf16.mxu0 %v2206
    %4782 = vmatmul.mubr.bf16.gmra.mxu0 %v2205
    %v4783 = vpop.f32.mrf.mxu0
    %v4784 = vadd.f32 %v4591, %v4783
    %v4785 = vpop.f32.mrf.mxu0
    %v4786 = vadd.f32 %v4593, %v4785
    %v4787 = vpop.f32.mrf.mxu0
    %v4788 = vadd.f32 %v4595, %v4787
    %v4789 = vpop.f32.mrf.mxu0
    %v4790 = vadd.f32 %v4597, %v4789
    %4791 = vmatprep.mubr.bf16.mxu0 %v2210
    %4792 = vmatmul.mubr.bf16.gmra.mxu0 %v2209
    %v4793 = vpop.f32.mrf.mxu0
    %v4794 = vadd.f32 %v4601, %v4793
    %v4795 = vpop.f32.mrf.mxu0
    %v4796 = vadd.f32 %v4603, %v4795
    %v4797 = vpop.f32.mrf.mxu0
    %v4798 = vadd.f32 %v4605, %v4797
    %v4799 = vpop.f32.mrf.mxu0
    %v4800 = vadd.f32 %v4607, %v4799
    %4801 = vmatprep.mubr.bf16.mxu0 %v2214
    %4802 = vmatmul.mubr.bf16.gmra.mxu0 %v2213
    %v4803 = vpop.f32.mrf.mxu0
    %v4804 = vadd.f32 %v4611, %v4803
    %v4805 = vpop.f32.mrf.mxu0
    %v4806 = vadd.f32 %v4613, %v4805
    %v4807 = vpop.f32.mrf.mxu0
    %v4808 = vadd.f32 %v4615, %v4807
    %v4809 = vpop.f32.mrf.mxu0
    %v4810 = vadd.f32 %v4617, %v4809
    %4811 = vmatprep.mubr.bf16.mxu0 %v2218
    %4812 = vmatmul.mubr.bf16.gmra.mxu0 %v2217
    %v4813 = vpop.f32.mrf.mxu0
    %v4814 = vadd.f32 %v4621, %v4813
    %v4815 = vpop.f32.mrf.mxu0
    %v4816 = vadd.f32 %v4623, %v4815
    %v4817 = vpop.f32.mrf.mxu0
    %v4818 = vadd.f32 %v4625, %v4817
    %v4819 = vpop.f32.mrf.mxu0
    %v4820 = vadd.f32 %v4627, %v4819
    %4821 = vdwg.mxu0
    %4822 = vmatprep.subr.bf16.mxu0 0
    %4823 = vmatpush1.bf16.msra.mxu0 %v3271
    %4824 = vmatprep.subr.bf16.mxu0 0
    %4825 = vmatpush1.bf16.msra.mxu0 %v3264
    %4826 = vmatprep.subr.bf16.mxu0 0
    %4827 = vmatpush1.bf16.msra.mxu0 %v3257
    %4828 = vmatprep.subr.bf16.mxu0 0
    %4829 = vmatpush1.bf16.msra.mxu0 %v3250
    %4830 = vmatprep.subr.bf16.mxu0 0
    %4831 = vmatpush1.bf16.msra.mxu0 %v3243
    %4832 = vmatprep.subr.bf16.mxu0 0
    %4833 = vmatpush1.bf16.msra.mxu0 %v3236
    %4834 = vmatprep.subr.bf16.mxu0 0
    %4835 = vmatpush1.bf16.msra.mxu0 %v3229
    %4836 = vmatprep.subr.bf16.mxu0 0
    %4837 = vmatpush1.bf16.msra.mxu0 %v3222
    %4838 = vmatprep.subr.bf16.mxu0 0
    %4839 = vmatpush2.bf16.msra.mxu0 %v3327
    %4840 = vmatprep.subr.bf16.mxu0 0
    %4841 = vmatpush2.bf16.msra.mxu0 %v3320
    %4842 = vmatprep.subr.bf16.mxu0 0
    %4843 = vmatpush2.bf16.msra.mxu0 %v3313
    %4844 = vmatprep.subr.bf16.mxu0 0
    %4845 = vmatpush2.bf16.msra.mxu0 %v3306
    %4846 = vmatprep.subr.bf16.mxu0 0
    %4847 = vmatpush2.bf16.msra.mxu0 %v3299
    %4848 = vmatprep.subr.bf16.mxu0 0
    %4849 = vmatpush2.bf16.msra.mxu0 %v3292
    %4850 = vmatprep.subr.bf16.mxu0 0
    %4851 = vmatpush2.bf16.msra.mxu0 %v3285
    %4852 = vmatprep.subr.bf16.mxu0 0
    %4853 = vmatpush2.bf16.msra.mxu0 %v3278
    %4854 = vmatprep.mubr.bf16.mxu0 %v2156
    %4855 = vmatmul.mubr.bf16.gmra.mxu0 %v2155
    %v4856 = vpop.f32.mrf.mxu0
    %v4857 = vadd.f32 %v2504, %v4856
    %v4858 = vpop.f32.mrf.mxu0
    %v4859 = vpop.f32.mrf.mxu0
    %v4860 = vadd.f32 %v2504, %v4859
    %v4861 = vpop.f32.mrf.mxu0
    %4862 = vmatprep.mubr.bf16.mxu0 %v2160
    %4863 = vmatmul.mubr.bf16.gmra.mxu0 %v2159
    %v4864 = vpop.f32.mrf.mxu0
    %v4865 = vadd.f32 %v2504, %v4864
    %v4866 = vpop.f32.mrf.mxu0
    %v4867 = vpop.f32.mrf.mxu0
    %v4868 = vadd.f32 %v2504, %v4867
    %v4869 = vpop.f32.mrf.mxu0
    %4870 = vmatprep.mubr.bf16.mxu0 %v2164
    %4871 = vmatmul.mubr.bf16.gmra.mxu0 %v2163
    %v4872 = vpop.f32.mrf.mxu0
    %v4873 = vadd.f32 %v2504, %v4872
    %v4874 = vpop.f32.mrf.mxu0
    %v4875 = vpop.f32.mrf.mxu0
    %v4876 = vadd.f32 %v2504, %v4875
    %v4877 = vpop.f32.mrf.mxu0
    %4878 = vmatprep.mubr.bf16.mxu0 %v2168
    %4879 = vmatmul.mubr.bf16.gmra.mxu0 %v2167
    %v4880 = vpop.f32.mrf.mxu0
    %v4881 = vadd.f32 %v2504, %v4880
    %v4882 = vpop.f32.mrf.mxu0
    %v4883 = vpop.f32.mrf.mxu0
    %v4884 = vadd.f32 %v2504, %v4883
    %v4885 = vpop.f32.mrf.mxu0
    %4886 = vmatprep.mubr.bf16.mxu0 %v2172
    %4887 = vmatmul.mubr.bf16.gmra.mxu0 %v2171
    %v4888 = vpop.f32.mrf.mxu0
    %v4889 = vadd.f32 %v2504, %v4888
    %v4890 = vpop.f32.mrf.mxu0
    %v4891 = vpop.f32.mrf.mxu0
    %v4892 = vadd.f32 %v2504, %v4891
    %v4893 = vpop.f32.mrf.mxu0
    %4894 = vmatprep.mubr.bf16.mxu0 %v2176
    %4895 = vmatmul.mubr.bf16.gmra.mxu0 %v2175
    %v4896 = vpop.f32.mrf.mxu0
    %v4897 = vadd.f32 %v2504, %v4896
    %v4898 = vpop.f32.mrf.mxu0
    %v4899 = vpop.f32.mrf.mxu0
    %v4900 = vadd.f32 %v2504, %v4899
    %v4901 = vpop.f32.mrf.mxu0
    %4902 = vmatprep.mubr.bf16.mxu0 %v2180
    %4903 = vmatmul.mubr.bf16.gmra.mxu0 %v2179
    %v4904 = vpop.f32.mrf.mxu0
    %v4905 = vadd.f32 %v2504, %v4904
    %v4906 = vpop.f32.mrf.mxu0
    %v4907 = vpop.f32.mrf.mxu0
    %v4908 = vadd.f32 %v2504, %v4907
    %v4909 = vpop.f32.mrf.mxu0
    %4910 = vmatprep.mubr.bf16.mxu0 %v2184
    %4911 = vmatmul.mubr.bf16.gmra.mxu0 %v2183
    %v4912 = vpop.f32.mrf.mxu0
    %v4913 = vadd.f32 %v2504, %v4912
    %v4914 = vpop.f32.mrf.mxu0
    %v4915 = vpop.f32.mrf.mxu0
    %v4916 = vadd.f32 %v2504, %v4915
    %v4917 = vpop.f32.mrf.mxu0
    %4918 = vmatprep.mubr.bf16.mxu0 %v2188
    %4919 = vmatmul.mubr.bf16.gmra.mxu0 %v2187
    %v4920 = vpop.f32.mrf.mxu0
    %v4921 = vadd.f32 %v2504, %v4920
    %v4922 = vpop.f32.mrf.mxu0
    %v4923 = vpop.f32.mrf.mxu0
    %v4924 = vadd.f32 %v2504, %v4923
    %v4925 = vpop.f32.mrf.mxu0
    %4926 = vmatprep.mubr.bf16.mxu0 %v2192
    %4927 = vmatmul.mubr.bf16.gmra.mxu0 %v2191
    %v4928 = vpop.f32.mrf.mxu0
    %v4929 = vadd.f32 %v2504, %v4928
    %v4930 = vpop.f32.mrf.mxu0
    %v4931 = vpop.f32.mrf.mxu0
    %v4932 = vadd.f32 %v2504, %v4931
    %v4933 = vpop.f32.mrf.mxu0
    %4934 = vmatprep.mubr.bf16.mxu0 %v2196
    %4935 = vmatmul.mubr.bf16.gmra.mxu0 %v2195
    %v4936 = vpop.f32.mrf.mxu0
    %v4937 = vadd.f32 %v2504, %v4936
    %v4938 = vpop.f32.mrf.mxu0
    %v4939 = vpop.f32.mrf.mxu0
    %v4940 = vadd.f32 %v2504, %v4939
    %v4941 = vpop.f32.mrf.mxu0
    %4942 = vmatprep.mubr.bf16.mxu0 %v2200
    %4943 = vmatmul.mubr.bf16.gmra.mxu0 %v2199
    %v4944 = vpop.f32.mrf.mxu0
    %v4945 = vadd.f32 %v2504, %v4944
    %v4946 = vpop.f32.mrf.mxu0
    %v4947 = vpop.f32.mrf.mxu0
    %v4948 = vadd.f32 %v2504, %v4947
    %v4949 = vpop.f32.mrf.mxu0
    %4950 = vmatprep.mubr.bf16.mxu0 %v2204
    %4951 = vmatmul.mubr.bf16.gmra.mxu0 %v2203
    %v4952 = vpop.f32.mrf.mxu0
    %v4953 = vadd.f32 %v2504, %v4952
    %v4954 = vpop.f32.mrf.mxu0
    %v4955 = vpop.f32.mrf.mxu0
    %v4956 = vadd.f32 %v2504, %v4955
    %v4957 = vpop.f32.mrf.mxu0
    %4958 = vmatprep.mubr.bf16.mxu0 %v2208
    %4959 = vmatmul.mubr.bf16.gmra.mxu0 %v2207
    %v4960 = vpop.f32.mrf.mxu0
    %v4961 = vadd.f32 %v2504, %v4960
    %v4962 = vpop.f32.mrf.mxu0
    %v4963 = vpop.f32.mrf.mxu0
    %v4964 = vadd.f32 %v2504, %v4963
    %v4965 = vpop.f32.mrf.mxu0
    %4966 = vmatprep.mubr.bf16.mxu0 %v2212
    %4967 = vmatmul.mubr.bf16.gmra.mxu0 %v2211
    %v4968 = vpop.f32.mrf.mxu0
    %v4969 = vadd.f32 %v2504, %v4968
    %v4970 = vpop.f32.mrf.mxu0
    %v4971 = vpop.f32.mrf.mxu0
    %v4972 = vadd.f32 %v2504, %v4971
    %v4973 = vpop.f32.mrf.mxu0
    %4974 = vmatprep.mubr.bf16.mxu0 %v2216
    %4975 = vmatmul.mubr.bf16.gmra.mxu0 %v2215
    %v4976 = vpop.f32.mrf.mxu0
    %v4977 = vadd.f32 %v2504, %v4976
    %v4978 = vpop.f32.mrf.mxu0
    %v4979 = vpop.f32.mrf.mxu0
    %v4980 = vadd.f32 %v2504, %v4979
    %v4981 = vpop.f32.mrf.mxu0
    %4982 = vdwg.mxu0
    %4983 = vmatprep.subr.bf16.mxu0 0
    %4984 = vmatpush1.bf16.msra.mxu0 %v3383
    %4985 = vmatprep.subr.bf16.mxu0 0
    %4986 = vmatpush1.bf16.msra.mxu0 %v3376
    %4987 = vmatprep.subr.bf16.mxu0 0
    %4988 = vmatpush1.bf16.msra.mxu0 %v3369
    %4989 = vmatprep.subr.bf16.mxu0 0
    %4990 = vmatpush1.bf16.msra.mxu0 %v3362
    %4991 = vmatprep.subr.bf16.mxu0 0
    %4992 = vmatpush1.bf16.msra.mxu0 %v3355
    %4993 = vmatprep.subr.bf16.mxu0 0
    %4994 = vmatpush1.bf16.msra.mxu0 %v3348
    %4995 = vmatprep.subr.bf16.mxu0 0
    %4996 = vmatpush1.bf16.msra.mxu0 %v3341
    %4997 = vmatprep.subr.bf16.mxu0 0
    %4998 = vmatpush1.bf16.msra.mxu0 %v3334
    %4999 = vmatprep.subr.bf16.mxu0 0
    %5000 = vmatpush2.bf16.msra.mxu0 %v3439
    %5001 = vmatprep.subr.bf16.mxu0 0
    %5002 = vmatpush2.bf16.msra.mxu0 %v3432
    %5003 = vmatprep.subr.bf16.mxu0 0
    %5004 = vmatpush2.bf16.msra.mxu0 %v3425
    %5005 = vmatprep.subr.bf16.mxu0 0
    %5006 = vmatpush2.bf16.msra.mxu0 %v3418
    %5007 = vmatprep.subr.bf16.mxu0 0
    %5008 = vmatpush2.bf16.msra.mxu0 %v3411
    %5009 = vmatprep.subr.bf16.mxu0 0
    %5010 = vmatpush2.bf16.msra.mxu0 %v3404
    %5011 = vmatprep.subr.bf16.mxu0 0
    %5012 = vmatpush2.bf16.msra.mxu0 %v3397
    %5013 = vmatprep.subr.bf16.mxu0 0
    %5014 = vmatpush2.bf16.msra.mxu0 %v3390
    %5015 = vmatprep.mubr.bf16.mxu0 %v2158
    %5016 = vmatmul.mubr.bf16.gmra.mxu0 %v2157
    %v5017 = vpop.f32.mrf.mxu0
    %v5018 = vadd.f32 %v4857, %v5017
    %v5019 = vpop.f32.mrf.mxu0
    %v5020 = vpop.f32.mrf.mxu0
    %v5021 = vadd.f32 %v4860, %v5020
    %v5022 = vpop.f32.mrf.mxu0
    %5023 = vmatprep.mubr.bf16.mxu0 %v2162
    %5024 = vmatmul.mubr.bf16.gmra.mxu0 %v2161
    %v5025 = vpop.f32.mrf.mxu0
    %v5026 = vadd.f32 %v4865, %v5025
    %v5027 = vpop.f32.mrf.mxu0
    %v5028 = vpop.f32.mrf.mxu0
    %v5029 = vadd.f32 %v4868, %v5028
    %v5030 = vpop.f32.mrf.mxu0
    %5031 = vmatprep.mubr.bf16.mxu0 %v2166
    %5032 = vmatmul.mubr.bf16.gmra.mxu0 %v2165
    %v5033 = vpop.f32.mrf.mxu0
    %v5034 = vadd.f32 %v4873, %v5033
    %v5035 = vpop.f32.mrf.mxu0
    %v5036 = vpop.f32.mrf.mxu0
    %v5037 = vadd.f32 %v4876, %v5036
    %v5038 = vpop.f32.mrf.mxu0
    %5039 = vmatprep.mubr.bf16.mxu0 %v2170
    %5040 = vmatmul.mubr.bf16.gmra.mxu0 %v2169
    %v5041 = vpop.f32.mrf.mxu0
    %v5042 = vadd.f32 %v4881, %v5041
    %v5043 = vpop.f32.mrf.mxu0
    %v5044 = vpop.f32.mrf.mxu0
    %v5045 = vadd.f32 %v4884, %v5044
    %v5046 = vpop.f32.mrf.mxu0
    %5047 = vmatprep.mubr.bf16.mxu0 %v2174
    %5048 = vmatmul.mubr.bf16.gmra.mxu0 %v2173
    %v5049 = vpop.f32.mrf.mxu0
    %v5050 = vadd.f32 %v4889, %v5049
    %v5051 = vpop.f32.mrf.mxu0
    %v5052 = vpop.f32.mrf.mxu0
    %v5053 = vadd.f32 %v4892, %v5052
    %v5054 = vpop.f32.mrf.mxu0
    %5055 = vmatprep.mubr.bf16.mxu0 %v2178
    %5056 = vmatmul.mubr.bf16.gmra.mxu0 %v2177
    %v5057 = vpop.f32.mrf.mxu0
    %v5058 = vadd.f32 %v4897, %v5057
    %v5059 = vpop.f32.mrf.mxu0
    %v5060 = vpop.f32.mrf.mxu0
    %v5061 = vadd.f32 %v4900, %v5060
    %v5062 = vpop.f32.mrf.mxu0
    %5063 = vmatprep.mubr.bf16.mxu0 %v2182
    %5064 = vmatmul.mubr.bf16.gmra.mxu0 %v2181
    %v5065 = vpop.f32.mrf.mxu0
    %v5066 = vadd.f32 %v4905, %v5065
    %v5067 = vpop.f32.mrf.mxu0
    %v5068 = vpop.f32.mrf.mxu0
    %v5069 = vadd.f32 %v4908, %v5068
    %v5070 = vpop.f32.mrf.mxu0
    %5071 = vmatprep.mubr.bf16.mxu0 %v2186
    %5072 = vmatmul.mubr.bf16.gmra.mxu0 %v2185
    %v5073 = vpop.f32.mrf.mxu0
    %v5074 = vadd.f32 %v4913, %v5073
    %v5075 = vpop.f32.mrf.mxu0
    %v5076 = vpop.f32.mrf.mxu0
    %v5077 = vadd.f32 %v4916, %v5076
    %v5078 = vpop.f32.mrf.mxu0
    %5079 = vmatprep.mubr.bf16.mxu0 %v2190
    %5080 = vmatmul.mubr.bf16.gmra.mxu0 %v2189
    %v5081 = vpop.f32.mrf.mxu0
    %v5082 = vadd.f32 %v4921, %v5081
    %v5083 = vpop.f32.mrf.mxu0
    %v5084 = vpop.f32.mrf.mxu0
    %v5085 = vadd.f32 %v4924, %v5084
    %v5086 = vpop.f32.mrf.mxu0
    %5087 = vmatprep.mubr.bf16.mxu0 %v2194
    %5088 = vmatmul.mubr.bf16.gmra.mxu0 %v2193
    %v5089 = vpop.f32.mrf.mxu0
    %v5090 = vadd.f32 %v4929, %v5089
    %v5091 = vpop.f32.mrf.mxu0
    %v5092 = vpop.f32.mrf.mxu0
    %v5093 = vadd.f32 %v4932, %v5092
    %v5094 = vpop.f32.mrf.mxu0
    %5095 = vmatprep.mubr.bf16.mxu0 %v2198
    %5096 = vmatmul.mubr.bf16.gmra.mxu0 %v2197
    %v5097 = vpop.f32.mrf.mxu0
    %v5098 = vadd.f32 %v4937, %v5097
    %v5099 = vpop.f32.mrf.mxu0
    %v5100 = vpop.f32.mrf.mxu0
    %v5101 = vadd.f32 %v4940, %v5100
    %v5102 = vpop.f32.mrf.mxu0
    %5103 = vmatprep.mubr.bf16.mxu0 %v2202
    %5104 = vmatmul.mubr.bf16.gmra.mxu0 %v2201
    %v5105 = vpop.f32.mrf.mxu0
    %v5106 = vadd.f32 %v4945, %v5105
    %v5107 = vpop.f32.mrf.mxu0
    %v5108 = vpop.f32.mrf.mxu0
    %v5109 = vadd.f32 %v4948, %v5108
    %v5110 = vpop.f32.mrf.mxu0
    %5111 = vmatprep.mubr.bf16.mxu0 %v2206
    %5112 = vmatmul.mubr.bf16.gmra.mxu0 %v2205
    %v5113 = vpop.f32.mrf.mxu0
    %v5114 = vadd.f32 %v4953, %v5113
    %v5115 = vpop.f32.mrf.mxu0
    %v5116 = vpop.f32.mrf.mxu0
    %v5117 = vadd.f32 %v4956, %v5116
    %v5118 = vpop.f32.mrf.mxu0
    %5119 = vmatprep.mubr.bf16.mxu0 %v2210
    %5120 = vmatmul.mubr.bf16.gmra.mxu0 %v2209
    %v5121 = vpop.f32.mrf.mxu0
    %v5122 = vadd.f32 %v4961, %v5121
    %v5123 = vpop.f32.mrf.mxu0
    %v5124 = vpop.f32.mrf.mxu0
    %v5125 = vadd.f32 %v4964, %v5124
    %v5126 = vpop.f32.mrf.mxu0
    %5127 = vmatprep.mubr.bf16.mxu0 %v2214
    %5128 = vmatmul.mubr.bf16.gmra.mxu0 %v2213
    %v5129 = vpop.f32.mrf.mxu0
    %v5130 = vadd.f32 %v4969, %v5129
    %v5131 = vpop.f32.mrf.mxu0
    %v5132 = vpop.f32.mrf.mxu0
    %v5133 = vadd.f32 %v4972, %v5132
    %v5134 = vpop.f32.mrf.mxu0
    %5135 = vmatprep.mubr.bf16.mxu0 %v2218
    %5136 = vmatmul.mubr.bf16.gmra.mxu0 %v2217
    %v5137 = vpop.f32.mrf.mxu0
    %v5138 = vadd.f32 %v4977, %v5137
    %v5139 = vpop.f32.mrf.mxu0
    %v5140 = vpop.f32.mrf.mxu0
    %v5141 = vadd.f32 %v4980, %v5140
    %v5142 = vpop.f32.mrf.mxu0
    %5143 = vdwg.mxu0
    %v5144 = vmax.f32 %v3892, 0.0
    %v5145 = vmax.f32 %v3894, 0.0
    %v5146 = vmax.f32 %v4278, 0.0
    %v5147 = vmax.f32 %v4280, 0.0
    %v5148 = vmax.f32 %v4664, 0.0
    %v5149 = vmax.f32 %v4666, 0.0
    %v5150 = vmax.f32 %v5018, 0.0
    %v5151 = vmax.f32 %v3896, 0.0
    %v5152 = vmax.f32 %v3898, 0.0
    %v5153 = vmax.f32 %v4282, 0.0
    %v5154 = vmax.f32 %v4284, 0.0
    %v5155 = vmax.f32 %v4668, 0.0
    %v5156 = vmax.f32 %v4670, 0.0
    %v5157 = vmax.f32 %v5021, 0.0
    %v5158 = vmax.f32 %v3902, 0.0
    %v5159 = vmax.f32 %v3904, 0.0
    %v5160 = vmax.f32 %v4288, 0.0
    %v5161 = vmax.f32 %v4290, 0.0
    %v5162 = vmax.f32 %v4674, 0.0
    %v5163 = vmax.f32 %v4676, 0.0
    %v5164 = vmax.f32 %v5026, 0.0
    %v5165 = vmax.f32 %v3906, 0.0
    %v5166 = vmax.f32 %v3908, 0.0
    %v5167 = vmax.f32 %v4292, 0.0
    %v5168 = vmax.f32 %v4294, 0.0
    %v5169 = vmax.f32 %v4678, 0.0
    %v5170 = vmax.f32 %v4680, 0.0
    %v5171 = vmax.f32 %v5029, 0.0
    %v5172 = vmax.f32 %v3912, 0.0
    %v5173 = vmax.f32 %v3914, 0.0
    %v5174 = vmax.f32 %v4298, 0.0
    %v5175 = vmax.f32 %v4300, 0.0
    %v5176 = vmax.f32 %v4684, 0.0
    %v5177 = vmax.f32 %v4686, 0.0
    %v5178 = vmax.f32 %v5034, 0.0
    %v5179 = vmax.f32 %v3916, 0.0
    %v5180 = vmax.f32 %v3918, 0.0
    %v5181 = vmax.f32 %v4302, 0.0
    %v5182 = vmax.f32 %v4304, 0.0
    %v5183 = vmax.f32 %v4688, 0.0
    %v5184 = vmax.f32 %v4690, 0.0
    %v5185 = vmax.f32 %v5037, 0.0
    %v5186 = vmax.f32 %v3922, 0.0
    %v5187 = vmax.f32 %v3924, 0.0
    %v5188 = vmax.f32 %v4308, 0.0
    %v5189 = vmax.f32 %v4310, 0.0
    %v5190 = vmax.f32 %v4694, 0.0
    %v5191 = vmax.f32 %v4696, 0.0
    %v5192 = vmax.f32 %v5042, 0.0
    %v5193 = vmax.f32 %v3926, 0.0
    %v5194 = vmax.f32 %v3928, 0.0
    %v5195 = vmax.f32 %v4312, 0.0
    %v5196 = vmax.f32 %v4314, 0.0
    %v5197 = vmax.f32 %v4698, 0.0
    %v5198 = vmax.f32 %v4700, 0.0
    %v5199 = vmax.f32 %v5045, 0.0
    %v5200 = vmax.f32 %v3932, 0.0
    %v5201 = vmax.f32 %v3934, 0.0
    %v5202 = vmax.f32 %v4318, 0.0
    %v5203 = vmax.f32 %v4320, 0.0
    %v5204 = vmax.f32 %v4704, 0.0
    %v5205 = vmax.f32 %v4706, 0.0
    %v5206 = vmax.f32 %v5050, 0.0
    %v5207 = vmax.f32 %v3936, 0.0
    %v5208 = vmax.f32 %v3938, 0.0
    %v5209 = vmax.f32 %v4322, 0.0
    %v5210 = vmax.f32 %v4324, 0.0
    %v5211 = vmax.f32 %v4708, 0.0
    %v5212 = vmax.f32 %v4710, 0.0
    %v5213 = vmax.f32 %v5053, 0.0
    %v5214 = vmax.f32 %v3942, 0.0
    %v5215 = vmax.f32 %v3944, 0.0
    %v5216 = vmax.f32 %v4328, 0.0
    %v5217 = vmax.f32 %v4330, 0.0
    %v5218 = vmax.f32 %v4714, 0.0
    %v5219 = vmax.f32 %v4716, 0.0
    %v5220 = vmax.f32 %v5058, 0.0
    %v5221 = vmax.f32 %v3946, 0.0
    %v5222 = vmax.f32 %v3948, 0.0
    %v5223 = vmax.f32 %v4332, 0.0
    %v5224 = vmax.f32 %v4334, 0.0
    %v5225 = vmax.f32 %v4718, 0.0
    %v5226 = vmax.f32 %v4720, 0.0
    %v5227 = vmax.f32 %v5061, 0.0
    %v5228 = vmax.f32 %v3952, 0.0
    %v5229 = vmax.f32 %v3954, 0.0
    %v5230 = vmax.f32 %v4338, 0.0
    %v5231 = vmax.f32 %v4340, 0.0
    %v5232 = vmax.f32 %v4724, 0.0
    %v5233 = vmax.f32 %v4726, 0.0
    %v5234 = vmax.f32 %v5066, 0.0
    %v5235 = vmax.f32 %v3956, 0.0
    %v5236 = vmax.f32 %v3958, 0.0
    %v5237 = vmax.f32 %v4342, 0.0
    %v5238 = vmax.f32 %v4344, 0.0
    %v5239 = vmax.f32 %v4728, 0.0
    %v5240 = vmax.f32 %v4730, 0.0
    %v5241 = vmax.f32 %v5069, 0.0
    %v5242 = vmax.f32 %v3962, 0.0
    %v5243 = vmax.f32 %v3964, 0.0
    %v5244 = vmax.f32 %v4348, 0.0
    %v5245 = vmax.f32 %v4350, 0.0
    %v5246 = vmax.f32 %v4734, 0.0
    %v5247 = vmax.f32 %v4736, 0.0
    %v5248 = vmax.f32 %v5074, 0.0
    %v5249 = vmax.f32 %v3966, 0.0
    %v5250 = vmax.f32 %v3968, 0.0
    %v5251 = vmax.f32 %v4352, 0.0
    %v5252 = vmax.f32 %v4354, 0.0
    %v5253 = vmax.f32 %v4738, 0.0
    %v5254 = vmax.f32 %v4740, 0.0
    %v5255 = vmax.f32 %v5077, 0.0
    %v5256 = vmax.f32 %v3972, 0.0
    %v5257 = vmax.f32 %v3974, 0.0
    %v5258 = vmax.f32 %v4358, 0.0
    %v5259 = vmax.f32 %v4360, 0.0
    %v5260 = vmax.f32 %v4744, 0.0
    %v5261 = vmax.f32 %v4746, 0.0
    %v5262 = vmax.f32 %v5082, 0.0
    %v5263 = vmax.f32 %v3976, 0.0
    %v5264 = vmax.f32 %v3978, 0.0
    %v5265 = vmax.f32 %v4362, 0.0
    %v5266 = vmax.f32 %v4364, 0.0
    %v5267 = vmax.f32 %v4748, 0.0
    %v5268 = vmax.f32 %v4750, 0.0
    %v5269 = vmax.f32 %v5085, 0.0
    %v5270 = vmax.f32 %v3982, 0.0
    %v5271 = vmax.f32 %v3984, 0.0
    %v5272 = vmax.f32 %v4368, 0.0
    %v5273 = vmax.f32 %v4370, 0.0
    %v5274 = vmax.f32 %v4754, 0.0
    %v5275 = vmax.f32 %v4756, 0.0
    %v5276 = vmax.f32 %v5090, 0.0
    %v5277 = vmax.f32 %v3986, 0.0
    %v5278 = vmax.f32 %v3988, 0.0
    %v5279 = vmax.f32 %v4372, 0.0
    %v5280 = vmax.f32 %v4374, 0.0
    %v5281 = vmax.f32 %v4758, 0.0
    %v5282 = vmax.f32 %v4760, 0.0
    %v5283 = vmax.f32 %v5093, 0.0
    %v5284 = vmax.f32 %v3992, 0.0
    %v5285 = vmax.f32 %v3994, 0.0
    %v5286 = vmax.f32 %v4378, 0.0
    %v5287 = vmax.f32 %v4380, 0.0
    %v5288 = vmax.f32 %v4764, 0.0
    %v5289 = vmax.f32 %v4766, 0.0
    %v5290 = vmax.f32 %v5098, 0.0
    %v5291 = vmax.f32 %v3996, 0.0
    %v5292 = vmax.f32 %v3998, 0.0
    %v5293 = vmax.f32 %v4382, 0.0
    %v5294 = vmax.f32 %v4384, 0.0
    %v5295 = vmax.f32 %v4768, 0.0
    %v5296 = vmax.f32 %v4770, 0.0
    %v5297 = vmax.f32 %v5101, 0.0
    %v5298 = vmax.f32 %v4002, 0.0
    %v5299 = vmax.f32 %v4004, 0.0
    %v5300 = vmax.f32 %v4388, 0.0
    %v5301 = vmax.f32 %v4390, 0.0
    %v5302 = vmax.f32 %v4774, 0.0
    %v5303 = vmax.f32 %v4776, 0.0
    %v5304 = vmax.f32 %v5106, 0.0
    %v5305 = vmax.f32 %v4006, 0.0
    %v5306 = vmax.f32 %v4008, 0.0
    %v5307 = vmax.f32 %v4392, 0.0
    %v5308 = vmax.f32 %v4394, 0.0
    %v5309 = vmax.f32 %v4778, 0.0
    %v5310 = vmax.f32 %v4780, 0.0
    %v5311 = vmax.f32 %v5109, 0.0
    %v5312 = vmax.f32 %v4012, 0.0
    %v5313 = vmax.f32 %v4014, 0.0
    %v5314 = vmax.f32 %v4398, 0.0
    %v5315 = vmax.f32 %v4400, 0.0
    %v5316 = vmax.f32 %v4784, 0.0
    %v5317 = vmax.f32 %v4786, 0.0
    %v5318 = vmax.f32 %v5114, 0.0
    %v5319 = vmax.f32 %v4016, 0.0
    %v5320 = vmax.f32 %v4018, 0.0
    %v5321 = vmax.f32 %v4402, 0.0
    %v5322 = vmax.f32 %v4404, 0.0
    %v5323 = vmax.f32 %v4788, 0.0
    %v5324 = vmax.f32 %v4790, 0.0
    %v5325 = vmax.f32 %v5117, 0.0
    %v5326 = vmax.f32 %v4022, 0.0
    %v5327 = vmax.f32 %v4024, 0.0
    %v5328 = vmax.f32 %v4408, 0.0
    %v5329 = vmax.f32 %v4410, 0.0
    %v5330 = vmax.f32 %v4794, 0.0
    %v5331 = vmax.f32 %v4796, 0.0
    %v5332 = vmax.f32 %v5122, 0.0
    %v5333 = vmax.f32 %v4026, 0.0
    %v5334 = vmax.f32 %v4028, 0.0
    %v5335 = vmax.f32 %v4412, 0.0
    %v5336 = vmax.f32 %v4414, 0.0
    %v5337 = vmax.f32 %v4798, 0.0
    %v5338 = vmax.f32 %v4800, 0.0
    %v5339 = vmax.f32 %v5125, 0.0
    %v5340 = vmax.f32 %v4032, 0.0
    %v5341 = vmax.f32 %v4034, 0.0
    %v5342 = vmax.f32 %v4418, 0.0
    %v5343 = vmax.f32 %v4420, 0.0
    %v5344 = vmax.f32 %v4804, 0.0
    %v5345 = vmax.f32 %v4806, 0.0
    %v5346 = vmax.f32 %v5130, 0.0
    %v5347 = vmax.f32 %v4036, 0.0
    %v5348 = vmax.f32 %v4038, 0.0
    %v5349 = vmax.f32 %v4422, 0.0
    %v5350 = vmax.f32 %v4424, 0.0
    %v5351 = vmax.f32 %v4808, 0.0
    %v5352 = vmax.f32 %v4810, 0.0
    %v5353 = vmax.f32 %v5133, 0.0
    %v5354 = vmax.f32 %v4042, 0.0
    %v5355 = vmax.f32 %v4044, 0.0
    %v5356 = vmax.f32 %v4428, 0.0
    %v5357 = vmax.f32 %v4430, 0.0
    %v5358 = vmax.f32 %v4814, 0.0
    %v5359 = vmax.f32 %v4816, 0.0
    %v5360 = vmax.f32 %v5138, 0.0
    %v5361 = vmax.f32 %v4046, 0.0
    %v5362 = vmax.f32 %v4048, 0.0
    %v5363 = vmax.f32 %v4432, 0.0
    %v5364 = vmax.f32 %v4434, 0.0
    %v5365 = vmax.f32 %v4818, 0.0
    %v5366 = vmax.f32 %v4820, 0.0
    %v5367 = vmax.f32 %v5141, 0.0
    %v5368 = vpack.c.bf16 %v5151, %v5144
    %v5369 = vpack.c.bf16 %v5152, %v5145
    %v5370 = vpack.c.bf16 %v5153, %v5146
    %v5371 = vpack.c.bf16 %v5154, %v5147
    %v5372 = vpack.c.bf16 %v5155, %v5148
    %v5373 = vpack.c.bf16 %v5156, %v5149
    %v5374 = vpack.c.bf16 %v5157, %v5150
    %v5375 = vpack.c.bf16 %v5165, %v5158
    %v5376 = vpack.c.bf16 %v5166, %v5159
    %v5377 = vpack.c.bf16 %v5167, %v5160
    %v5378 = vpack.c.bf16 %v5168, %v5161
    %v5379 = vpack.c.bf16 %v5169, %v5162
    %v5380 = vpack.c.bf16 %v5170, %v5163
    %v5381 = vpack.c.bf16 %v5171, %v5164
    %v5382 = vpack.c.bf16 %v5179, %v5172
    %v5383 = vpack.c.bf16 %v5180, %v5173
    %v5384 = vpack.c.bf16 %v5181, %v5174
    %v5385 = vpack.c.bf16 %v5182, %v5175
    %v5386 = vpack.c.bf16 %v5183, %v5176
    %v5387 = vpack.c.bf16 %v5184, %v5177
    %v5388 = vpack.c.bf16 %v5185, %v5178
    %v5389 = vpack.c.bf16 %v5193, %v5186
    %v5390 = vpack.c.bf16 %v5194, %v5187
    %v5391 = vpack.c.bf16 %v5195, %v5188
    %v5392 = vpack.c.bf16 %v5196, %v5189
    %v5393 = vpack.c.bf16 %v5197, %v5190
    %v5394 = vpack.c.bf16 %v5198, %v5191
    %v5395 = vpack.c.bf16 %v5199, %v5192
    %v5396 = vpack.c.bf16 %v5207, %v5200
    %v5397 = vpack.c.bf16 %v5208, %v5201
    %v5398 = vpack.c.bf16 %v5209, %v5202
    %v5399 = vpack.c.bf16 %v5210, %v5203
    %v5400 = vpack.c.bf16 %v5211, %v5204
    %v5401 = vpack.c.bf16 %v5212, %v5205
    %v5402 = vpack.c.bf16 %v5213, %v5206
    %v5403 = vpack.c.bf16 %v5221, %v5214
    %v5404 = vpack.c.bf16 %v5222, %v5215
    %v5405 = vpack.c.bf16 %v5223, %v5216
    %v5406 = vpack.c.bf16 %v5224, %v5217
    %v5407 = vpack.c.bf16 %v5225, %v5218
    %v5408 = vpack.c.bf16 %v5226, %v5219
    %v5409 = vpack.c.bf16 %v5227, %v5220
    %v5410 = vpack.c.bf16 %v5235, %v5228
    %v5411 = vpack.c.bf16 %v5236, %v5229
    %v5412 = vpack.c.bf16 %v5237, %v5230
    %v5413 = vpack.c.bf16 %v5238, %v5231
    %v5414 = vpack.c.bf16 %v5239, %v5232
    %v5415 = vpack.c.bf16 %v5240, %v5233
    %v5416 = vpack.c.bf16 %v5241, %v5234
    %v5417 = vpack.c.bf16 %v5249, %v5242
    %v5418 = vpack.c.bf16 %v5250, %v5243
    %v5419 = vpack.c.bf16 %v5251, %v5244
    %v5420 = vpack.c.bf16 %v5252, %v5245
    %v5421 = vpack.c.bf16 %v5253, %v5246
    %v5422 = vpack.c.bf16 %v5254, %v5247
    %v5423 = vpack.c.bf16 %v5255, %v5248
    %v5424 = vpack.c.bf16 %v5263, %v5256
    %v5425 = vpack.c.bf16 %v5264, %v5257
    %v5426 = vpack.c.bf16 %v5265, %v5258
    %v5427 = vpack.c.bf16 %v5266, %v5259
    %v5428 = vpack.c.bf16 %v5267, %v5260
    %v5429 = vpack.c.bf16 %v5268, %v5261
    %v5430 = vpack.c.bf16 %v5269, %v5262
    %v5431 = vpack.c.bf16 %v5277, %v5270
    %v5432 = vpack.c.bf16 %v5278, %v5271
    %v5433 = vpack.c.bf16 %v5279, %v5272
    %v5434 = vpack.c.bf16 %v5280, %v5273
    %v5435 = vpack.c.bf16 %v5281, %v5274
    %v5436 = vpack.c.bf16 %v5282, %v5275
    %v5437 = vpack.c.bf16 %v5283, %v5276
    %v5438 = vpack.c.bf16 %v5291, %v5284
    %v5439 = vpack.c.bf16 %v5292, %v5285
    %v5440 = vpack.c.bf16 %v5293, %v5286
    %v5441 = vpack.c.bf16 %v5294, %v5287
    %v5442 = vpack.c.bf16 %v5295, %v5288
    %v5443 = vpack.c.bf16 %v5296, %v5289
    %v5444 = vpack.c.bf16 %v5297, %v5290
    %v5445 = vpack.c.bf16 %v5305, %v5298
    %v5446 = vpack.c.bf16 %v5306, %v5299
    %v5447 = vpack.c.bf16 %v5307, %v5300
    %v5448 = vpack.c.bf16 %v5308, %v5301
    %v5449 = vpack.c.bf16 %v5309, %v5302
    %v5450 = vpack.c.bf16 %v5310, %v5303
    %v5451 = vpack.c.bf16 %v5311, %v5304
    %v5452 = vpack.c.bf16 %v5319, %v5312
    %v5453 = vpack.c.bf16 %v5320, %v5313
    %v5454 = vpack.c.bf16 %v5321, %v5314
    %v5455 = vpack.c.bf16 %v5322, %v5315
    %v5456 = vpack.c.bf16 %v5323, %v5316
    %v5457 = vpack.c.bf16 %v5324, %v5317
    %v5458 = vpack.c.bf16 %v5325, %v5318
    %v5459 = vpack.c.bf16 %v5333, %v5326
    %v5460 = vpack.c.bf16 %v5334, %v5327
    %v5461 = vpack.c.bf16 %v5335, %v5328
    %v5462 = vpack.c.bf16 %v5336, %v5329
    %v5463 = vpack.c.bf16 %v5337, %v5330
    %v5464 = vpack.c.bf16 %v5338, %v5331
    %v5465 = vpack.c.bf16 %v5339, %v5332
    %v5466 = vpack.c.bf16 %v5347, %v5340
    %v5467 = vpack.c.bf16 %v5348, %v5341
    %v5468 = vpack.c.bf16 %v5349, %v5342
    %v5469 = vpack.c.bf16 %v5350, %v5343
    %v5470 = vpack.c.bf16 %v5351, %v5344
    %v5471 = vpack.c.bf16 %v5352, %v5345
    %v5472 = vpack.c.bf16 %v5353, %v5346
    %v5473 = vpack.c.bf16 %v5361, %v5354
    %v5474 = vpack.c.bf16 %v5362, %v5355
    %v5475 = vpack.c.bf16 %v5363, %v5356
    %v5476 = vpack.c.bf16 %v5364, %v5357
    %v5477 = vpack.c.bf16 %v5365, %v5358
    %v5478 = vpack.c.bf16 %v5366, %v5359
    %v5479 = vpack.c.bf16 %v5367, %v5360
    %v5480 = vld [vmem:[#allocation16] sm:$0xff]
    %v5481 = vld [vmem:[#allocation16 + $0x8] sm:$0xff]
    %v5482 = vld [vmem:[#allocation16 + $0x10] sm:$0xff]
    %v5483 = vld [vmem:[#allocation16 + $0x18] sm:$0xf]
    %v5484 = vld [vmem:[#allocation16 + $0x1c] sm:$0xff]
    %v5485 = vld [vmem:[#allocation16 + $0x24] sm:$0xff]
    %v5486 = vld [vmem:[#allocation16 + $0x2c] sm:$0xff]
    %v5487 = vld [vmem:[#allocation16 + $0x34] sm:$0xf]
    %v5488 = vld [vmem:[#allocation16 + $0x38] sm:$0xff]
    %v5489 = vld [vmem:[#allocation16 + $0x40] sm:$0xff]
    %v5490 = vld [vmem:[#allocation16 + $0x48] sm:$0xff]
    %v5491 = vld [vmem:[#allocation16 + $0x50] sm:$0xf]
    %v5492 = vld [vmem:[#allocation16 + $0x54] sm:$0xff]
    %v5493 = vld [vmem:[#allocation16 + $0x5c] sm:$0xff]
    %v5494 = vld [vmem:[#allocation16 + $0x64] sm:$0xff]
    %v5495 = vld [vmem:[#allocation16 + $0x6c] sm:$0xf]
    %v5496 = vld [vmem:[#allocation16 + $0x70] sm:$0xff]
    %v5497 = vld [vmem:[#allocation16 + $0x78] sm:$0xff]
    %v5498 = vld [vmem:[#allocation16 + $0x80] sm:$0xff]
    %v5499 = vld [vmem:[#allocation16 + $0x88] sm:$0xf]
    %v5500 = vld [vmem:[#allocation16 + $0x8c] sm:$0xff]
    %v5501 = vld [vmem:[#allocation16 + $0x94] sm:$0xff]
    %v5502 = vld [vmem:[#allocation16 + $0x9c] sm:$0xff]
    %v5503 = vld [vmem:[#allocation16 + $0xa4] sm:$0xf]
    %v5504 = vld [vmem:[#allocation16 + $0xa8] sm:$0xff]
    %v5505 = vld [vmem:[#allocation16 + $0xb0] sm:$0xff]
    %v5506 = vld [vmem:[#allocation16 + $0xb8] sm:$0xff]
    %v5507 = vld [vmem:[#allocation16 + $0xc0] sm:$0xf]
    %v5508 = vld [vmem:[#allocation16 + $0xc4] sm:$0xff]
    %v5509 = vld [vmem:[#allocation16 + $0xcc] sm:$0xff]
    %v5510 = vld [vmem:[#allocation16 + $0xd4] sm:$0xff]
    %v5511 = vld [vmem:[#allocation16 + $0xdc] sm:$0xf]
    %v5512 = vld [vmem:[#allocation16 + $0xe0] sm:$0xff]
    %v5513 = vld [vmem:[#allocation16 + $0xe8] sm:$0xff]
    %v5514 = vld [vmem:[#allocation16 + $0xf0] sm:$0xff]
    %v5515 = vld [vmem:[#allocation16 + $0xf8] sm:$0xf]
    %v5516 = vld [vmem:[#allocation16 + $0xfc] sm:$0xff]
    %v5517 = vld [vmem:[#allocation16 + $0x104] sm:$0xff]
    %v5518 = vld [vmem:[#allocation16 + $0x10c] sm:$0xff]
    %v5519 = vld [vmem:[#allocation16 + $0x114] sm:$0xf]
    %v5520 = vld [vmem:[#allocation16 + $0x118] sm:$0xff]
    %v5521 = vld [vmem:[#allocation16 + $0x120] sm:$0xff]
    %v5522 = vld [vmem:[#allocation16 + $0x128] sm:$0xff]
    %v5523 = vld [vmem:[#allocation16 + $0x130] sm:$0xf]
    %v5524 = vld [vmem:[#allocation16 + $0x134] sm:$0xff]
    %v5525 = vld [vmem:[#allocation16 + $0x13c] sm:$0xff]
    %v5526 = vld [vmem:[#allocation16 + $0x144] sm:$0xff]
    %v5527 = vld [vmem:[#allocation16 + $0x14c] sm:$0xf]
    %v5528 = vld [vmem:[#allocation16 + $0x150] sm:$0xff]
    %v5529 = vld [vmem:[#allocation16 + $0x158] sm:$0xff]
    %v5530 = vld [vmem:[#allocation16 + $0x160] sm:$0xff]
    %v5531 = vld [vmem:[#allocation16 + $0x168] sm:$0xf]
    %v5532 = vld [vmem:[#allocation16 + $0x16c] sm:$0xff]
    %v5533 = vld [vmem:[#allocation16 + $0x174] sm:$0xff]
    %v5534 = vld [vmem:[#allocation16 + $0x17c] sm:$0xff]
    %v5535 = vld [vmem:[#allocation16 + $0x184] sm:$0xf]
    %v5536 = vld [vmem:[#allocation16 + $0x188] sm:$0xff]
    %v5537 = vld [vmem:[#allocation16 + $0x190] sm:$0xff]
    %v5538 = vld [vmem:[#allocation16 + $0x198] sm:$0xff]
    %v5539 = vld [vmem:[#allocation16 + $0x1a0] sm:$0xf]
    %v5540 = vld [vmem:[#allocation16 + $0x1a4] sm:$0xff]
    %v5541 = vld [vmem:[#allocation16 + $0x1ac] sm:$0xff]
    %v5542 = vld [vmem:[#allocation16 + $0x1b4] sm:$0xff]
    %v5543 = vld [vmem:[#allocation16 + $0x1bc] sm:$0xf]
    %v5544 = vld [vmem:[#allocation16 + $0x1c0] sm:$0xff]
    %v5545 = vld [vmem:[#allocation16 + $0x1c8] sm:$0xff]
    %v5546 = vld [vmem:[#allocation16 + $0x1d0] sm:$0xff]
    %v5547 = vld [vmem:[#allocation16 + $0x1d8] sm:$0xf]
    %v5548 = vld [vmem:[#allocation16 + $0x1dc] sm:$0xff]
    %v5549 = vld [vmem:[#allocation16 + $0x1e4] sm:$0xff]
    %v5550 = vld [vmem:[#allocation16 + $0x1ec] sm:$0xff]
    %v5551 = vld [vmem:[#allocation16 + $0x1f4] sm:$0xf]
    %v5552 = vld [vmem:[#allocation16 + $0x1f8] sm:$0xff]
    %v5553 = vld [vmem:[#allocation16 + $0x200] sm:$0xff]
    %v5554 = vld [vmem:[#allocation16 + $0x208] sm:$0xff]
    %v5555 = vld [vmem:[#allocation16 + $0x210] sm:$0xf]
    %v5556 = vld [vmem:[#allocation16 + $0x214] sm:$0xff]
    %v5557 = vld [vmem:[#allocation16 + $0x21c] sm:$0xff]
    %v5558 = vld [vmem:[#allocation16 + $0x224] sm:$0xff]
    %v5559 = vld [vmem:[#allocation16 + $0x22c] sm:$0xf]
    %v5560 = vld [vmem:[#allocation16 + $0x230] sm:$0xff]
    %v5561 = vld [vmem:[#allocation16 + $0x238] sm:$0xff]
    %v5562 = vld [vmem:[#allocation16 + $0x240] sm:$0xff]
    %v5563 = vld [vmem:[#allocation16 + $0x248] sm:$0xf]
    %v5564 = vld [vmem:[#allocation16 + $0x24c] sm:$0xff]
    %v5565 = vld [vmem:[#allocation16 + $0x254] sm:$0xff]
    %v5566 = vld [vmem:[#allocation16 + $0x25c] sm:$0xff]
    %v5567 = vld [vmem:[#allocation16 + $0x264] sm:$0xf]
    %v5568 = vld [vmem:[#allocation16 + $0x268] sm:$0xff]
    %v5569 = vld [vmem:[#allocation16 + $0x270] sm:$0xff]
    %v5570 = vld [vmem:[#allocation16 + $0x278] sm:$0xff]
    %v5571 = vld [vmem:[#allocation16 + $0x280] sm:$0xf]
    %v5572 = vld [vmem:[#allocation16 + $0x284] sm:$0xff]
    %v5573 = vld [vmem:[#allocation16 + $0x28c] sm:$0xff]
    %v5574 = vld [vmem:[#allocation16 + $0x294] sm:$0xff]
    %v5575 = vld [vmem:[#allocation16 + $0x29c] sm:$0xf]
    %v5576 = vld [vmem:[#allocation16 + $0x2a0] sm:$0xff]
    %v5577 = vld [vmem:[#allocation16 + $0x2a8] sm:$0xff]
    %v5578 = vld [vmem:[#allocation16 + $0x2b0] sm:$0xff]
    %v5579 = vld [vmem:[#allocation16 + $0x2b8] sm:$0xf]
    %v5580 = vld [vmem:[#allocation16 + $0x2bc] sm:$0xff]
    %v5581 = vld [vmem:[#allocation16 + $0x2c4] sm:$0xff]
    %v5582 = vld [vmem:[#allocation16 + $0x2cc] sm:$0xff]
    %v5583 = vld [vmem:[#allocation16 + $0x2d4] sm:$0xf]
    %v5584 = vld [vmem:[#allocation16 + $0x2d8] sm:$0xff]
    %v5585 = vld [vmem:[#allocation16 + $0x2e0] sm:$0xff]
    %v5586 = vld [vmem:[#allocation16 + $0x2e8] sm:$0xff]
    %v5587 = vld [vmem:[#allocation16 + $0x2f0] sm:$0xf]
    %v5588 = vld [vmem:[#allocation16 + $0x2f4] sm:$0xff]
    %v5589 = vld [vmem:[#allocation16 + $0x2fc] sm:$0xff]
    %v5590 = vld [vmem:[#allocation16 + $0x304] sm:$0xff]
    %v5591 = vld [vmem:[#allocation16 + $0x30c] sm:$0xf]
    %v5592 = vld [vmem:[#allocation16 + $0x310] sm:$0xff]
    %v5593 = vld [vmem:[#allocation16 + $0x318] sm:$0xff]
    %v5594 = vld [vmem:[#allocation16 + $0x320] sm:$0xff]
    %v5595 = vld [vmem:[#allocation16 + $0x328] sm:$0xf]
    %v5596 = vld [vmem:[#allocation16 + $0x32c] sm:$0xff]
    %v5597 = vld [vmem:[#allocation16 + $0x334] sm:$0xff]
    %v5598 = vld [vmem:[#allocation16 + $0x33c] sm:$0xff]
    %v5599 = vld [vmem:[#allocation16 + $0x344] sm:$0xf]
    %v5600 = vld [vmem:[#allocation16 + $0x348] sm:$0xff]
    %v5601 = vld [vmem:[#allocation16 + $0x350] sm:$0xff]
    %v5602 = vld [vmem:[#allocation16 + $0x358] sm:$0xff]
    %v5603 = vld [vmem:[#allocation16 + $0x360] sm:$0xf]
    %v5604 = vld [vmem:[#allocation16 + $0x364] sm:$0xff]
    %v5605 = vld [vmem:[#allocation16 + $0x36c] sm:$0xff]
    %v5606 = vld [vmem:[#allocation16 + $0x374] sm:$0xff]
    %v5607 = vld [vmem:[#allocation16 + $0x37c] sm:$0xf]
    %v5608 = vld [vmem:[#allocation16 + $0x380] sm:$0xff]
    %v5609 = vld [vmem:[#allocation16 + $0x388] sm:$0xff]
    %v5610 = vld [vmem:[#allocation16 + $0x390] sm:$0xff]
    %v5611 = vld [vmem:[#allocation16 + $0x398] sm:$0xf]
    %v5612 = vld [vmem:[#allocation16 + $0x39c] sm:$0xff]
    %v5613 = vld [vmem:[#allocation16 + $0x3a4] sm:$0xff]
    %v5614 = vld [vmem:[#allocation16 + $0x3ac] sm:$0xff]
    %v5615 = vld [vmem:[#allocation16 + $0x3b4] sm:$0xf]
    %v5616 = vld [vmem:[#allocation16 + $0x3b8] sm:$0xff]
    %v5617 = vld [vmem:[#allocation16 + $0x3c0] sm:$0xff]
    %v5618 = vld [vmem:[#allocation16 + $0x3c8] sm:$0xff]
    %v5619 = vld [vmem:[#allocation16 + $0x3d0] sm:$0xf]
    %v5620 = vld [vmem:[#allocation16 + $0x3d4] sm:$0xff]
    %v5621 = vld [vmem:[#allocation16 + $0x3dc] sm:$0xff]
    %v5622 = vld [vmem:[#allocation16 + $0x3e4] sm:$0xff]
    %v5623 = vld [vmem:[#allocation16 + $0x3ec] sm:$0xf]
    %v5624 = vld [vmem:[#allocation16 + $0x3f0] sm:$0xff]
    %v5625 = vld [vmem:[#allocation16 + $0x3f8] sm:$0xff]
    %v5626 = vld [vmem:[#allocation16 + $0x400] sm:$0xff]
    %v5627 = vld [vmem:[#allocation16 + $0x408] sm:$0xf]
    %v5628 = vld [vmem:[#allocation16 + $0x40c] sm:$0xff]
    %v5629 = vld [vmem:[#allocation16 + $0x414] sm:$0xff]
    %v5630 = vld [vmem:[#allocation16 + $0x41c] sm:$0xff]
    %v5631 = vld [vmem:[#allocation16 + $0x424] sm:$0xf]
    %v5632 = vld [vmem:[#allocation16 + $0x428] sm:$0xff]
    %v5633 = vld [vmem:[#allocation16 + $0x430] sm:$0xff]
    %v5634 = vld [vmem:[#allocation16 + $0x438] sm:$0xff]
    %v5635 = vld [vmem:[#allocation16 + $0x440] sm:$0xf]
    %v5636 = vld [vmem:[#allocation16 + $0x444] sm:$0xff]
    %v5637 = vld [vmem:[#allocation16 + $0x44c] sm:$0xff]
    %v5638 = vld [vmem:[#allocation16 + $0x454] sm:$0xff]
    %v5639 = vld [vmem:[#allocation16 + $0x45c] sm:$0xf]
    %v5640 = vld [vmem:[#allocation16 + $0x460] sm:$0xff]
    %v5641 = vld [vmem:[#allocation16 + $0x468] sm:$0xff]
    %v5642 = vld [vmem:[#allocation16 + $0x470] sm:$0xff]
    %v5643 = vld [vmem:[#allocation16 + $0x478] sm:$0xf]
    %v5644 = vld [vmem:[#allocation16 + $0x47c] sm:$0xff]
    %v5645 = vld [vmem:[#allocation16 + $0x484] sm:$0xff]
    %v5646 = vld [vmem:[#allocation16 + $0x48c] sm:$0xff]
    %v5647 = vld [vmem:[#allocation16 + $0x494] sm:$0xf]
    %v5648 = vld [vmem:[#allocation16 + $0x498] sm:$0xff]
    %v5649 = vld [vmem:[#allocation16 + $0x4a0] sm:$0xff]
    %v5650 = vld [vmem:[#allocation16 + $0x4a8] sm:$0xff]
    %v5651 = vld [vmem:[#allocation16 + $0x4b0] sm:$0xf]
    %v5652 = vld [vmem:[#allocation16 + $0x4b4] sm:$0xff]
    %v5653 = vld [vmem:[#allocation16 + $0x4bc] sm:$0xff]
    %v5654 = vld [vmem:[#allocation16 + $0x4c4] sm:$0xff]
    %v5655 = vld [vmem:[#allocation16 + $0x4cc] sm:$0xf]
    %v5656 = vld [vmem:[#allocation16 + $0x4d0] sm:$0xff]
    %v5657 = vld [vmem:[#allocation16 + $0x4d8] sm:$0xff]
    %v5658 = vld [vmem:[#allocation16 + $0x4e0] sm:$0xff]
    %v5659 = vld [vmem:[#allocation16 + $0x4e8] sm:$0xf]
    %v5660 = vld [vmem:[#allocation16 + $0x4ec] sm:$0xff]
    %v5661 = vld [vmem:[#allocation16 + $0x4f4] sm:$0xff]
    %v5662 = vld [vmem:[#allocation16 + $0x4fc] sm:$0xff]
    %v5663 = vld [vmem:[#allocation16 + $0x504] sm:$0xf]
    %v5664 = vld [vmem:[#allocation16 + $0x508] sm:$0xff]
    %v5665 = vld [vmem:[#allocation16 + $0x510] sm:$0xff]
    %v5666 = vld [vmem:[#allocation16 + $0x518] sm:$0xff]
    %v5667 = vld [vmem:[#allocation16 + $0x520] sm:$0xf]
    %v5668 = vld [vmem:[#allocation16 + $0x524] sm:$0xff]
    %v5669 = vld [vmem:[#allocation16 + $0x52c] sm:$0xff]
    %v5670 = vld [vmem:[#allocation16 + $0x534] sm:$0xff]
    %v5671 = vld [vmem:[#allocation16 + $0x53c] sm:$0xf]
    %v5672 = vld [vmem:[#allocation16 + $0x540] sm:$0xff]
    %v5673 = vld [vmem:[#allocation16 + $0x548] sm:$0xff]
    %v5674 = vld [vmem:[#allocation16 + $0x550] sm:$0xff]
    %v5675 = vld [vmem:[#allocation16 + $0x558] sm:$0xf]
    %v5676 = vld [vmem:[#allocation16 + $0x55c] sm:$0xff]
    %v5677 = vld [vmem:[#allocation16 + $0x564] sm:$0xff]
    %v5678 = vld [vmem:[#allocation16 + $0x56c] sm:$0xff]
    %v5679 = vld [vmem:[#allocation16 + $0x574] sm:$0xf]
    %v5680 = vld [vmem:[#allocation16 + $0x578] sm:$0xff]
    %v5681 = vld [vmem:[#allocation16 + $0x580] sm:$0xff]
    %v5682 = vld [vmem:[#allocation16 + $0x588] sm:$0xff]
    %v5683 = vld [vmem:[#allocation16 + $0x590] sm:$0xf]
    %v5684 = vld [vmem:[#allocation16 + $0x594] sm:$0xff]
    %v5685 = vld [vmem:[#allocation16 + $0x59c] sm:$0xff]
    %v5686 = vld [vmem:[#allocation16 + $0x5a4] sm:$0xff]
    %v5687 = vld [vmem:[#allocation16 + $0x5ac] sm:$0xf]
    %v5688 = vld [vmem:[#allocation16 + $0x5b0] sm:$0xff]
    %v5689 = vld [vmem:[#allocation16 + $0x5b8] sm:$0xff]
    %v5690 = vld [vmem:[#allocation16 + $0x5c0] sm:$0xff]
    %v5691 = vld [vmem:[#allocation16 + $0x5c8] sm:$0xf]
    %v5692 = vld [vmem:[#allocation16 + $0x5cc] sm:$0xff]
    %v5693 = vld [vmem:[#allocation16 + $0x5d4] sm:$0xff]
    %v5694 = vld [vmem:[#allocation16 + $0x5dc] sm:$0xff]
    %v5695 = vld [vmem:[#allocation16 + $0x5e4] sm:$0xf]
    %v5696 = vld [vmem:[#allocation16 + $0x5e8] sm:$0xff]
    %v5697 = vld [vmem:[#allocation16 + $0x5f0] sm:$0xff]
    %v5698 = vld [vmem:[#allocation16 + $0x5f8] sm:$0xff]
    %v5699 = vld [vmem:[#allocation16 + $0x600] sm:$0xf]
    %v5700 = vld [vmem:[#allocation16 + $0x604] sm:$0xff]
    %v5701 = vld [vmem:[#allocation16 + $0x60c] sm:$0xff]
    %v5702 = vld [vmem:[#allocation16 + $0x614] sm:$0xff]
    %v5703 = vld [vmem:[#allocation16 + $0x61c] sm:$0xf]
    %v5704 = vld [vmem:[#allocation16 + $0x620] sm:$0xff]
    %v5705 = vld [vmem:[#allocation16 + $0x628] sm:$0xff]
    %v5706 = vld [vmem:[#allocation16 + $0x630] sm:$0xff]
    %v5707 = vld [vmem:[#allocation16 + $0x638] sm:$0xf]
    %v5708 = vld [vmem:[#allocation16 + $0x63c] sm:$0xff]
    %v5709 = vld [vmem:[#allocation16 + $0x644] sm:$0xff]
    %v5710 = vld [vmem:[#allocation16 + $0x64c] sm:$0xff]
    %v5711 = vld [vmem:[#allocation16 + $0x654] sm:$0xf]
    %v5712 = vld [vmem:[#allocation16 + $0x658] sm:$0xff]
    %v5713 = vld [vmem:[#allocation16 + $0x660] sm:$0xff]
    %v5714 = vld [vmem:[#allocation16 + $0x668] sm:$0xff]
    %v5715 = vld [vmem:[#allocation16 + $0x670] sm:$0xf]
    %v5716 = vld [vmem:[#allocation16 + $0x674] sm:$0xff]
    %v5717 = vld [vmem:[#allocation16 + $0x67c] sm:$0xff]
    %v5718 = vld [vmem:[#allocation16 + $0x684] sm:$0xff]
    %v5719 = vld [vmem:[#allocation16 + $0x68c] sm:$0xf]
    %v5720 = vld [vmem:[#allocation16 + $0x690] sm:$0xff]
    %v5721 = vld [vmem:[#allocation16 + $0x698] sm:$0xff]
    %v5722 = vld [vmem:[#allocation16 + $0x6a0] sm:$0xff]
    %v5723 = vld [vmem:[#allocation16 + $0x6a8] sm:$0xf]
    %v5724 = vld [vmem:[#allocation16 + $0x6ac] sm:$0xff]
    %v5725 = vld [vmem:[#allocation16 + $0x6b4] sm:$0xff]
    %v5726 = vld [vmem:[#allocation16 + $0x6bc] sm:$0xff]
    %v5727 = vld [vmem:[#allocation16 + $0x6c4] sm:$0xf]
    %v5728 = vld [vmem:[#allocation16 + $0x6c8] sm:$0xff]
    %v5729 = vld [vmem:[#allocation16 + $0x6d0] sm:$0xff]
    %v5730 = vld [vmem:[#allocation16 + $0x6d8] sm:$0xff]
    %v5731 = vld [vmem:[#allocation16 + $0x6e0] sm:$0xf]
    %v5732 = vld [vmem:[#allocation16 + $0x6e4] sm:$0xff]
    %v5733 = vld [vmem:[#allocation16 + $0x6ec] sm:$0xff]
    %v5734 = vld [vmem:[#allocation16 + $0x6f4] sm:$0xff]
    %v5735 = vld [vmem:[#allocation16 + $0x6fc] sm:$0xf]
    %v5736 = vld [vmem:[#allocation16 + $0x700] sm:$0xff]
    %v5737 = vld [vmem:[#allocation16 + $0x708] sm:$0xff]
    %v5738 = vld [vmem:[#allocation16 + $0x710] sm:$0xff]
    %v5739 = vld [vmem:[#allocation16 + $0x718] sm:$0xf]
    %v5740 = vld [vmem:[#allocation16 + $0x71c] sm:$0xff]
    %v5741 = vld [vmem:[#allocation16 + $0x724] sm:$0xff]
    %v5742 = vld [vmem:[#allocation16 + $0x72c] sm:$0xff]
    %v5743 = vld [vmem:[#allocation16 + $0x734] sm:$0xf]
    %v5744 = vld [vmem:[#allocation16 + $0x738] sm:$0xff]
    %v5745 = vld [vmem:[#allocation16 + $0x740] sm:$0xff]
    %v5746 = vld [vmem:[#allocation16 + $0x748] sm:$0xff]
    %v5747 = vld [vmem:[#allocation16 + $0x750] sm:$0xf]
    %v5748 = vld [vmem:[#allocation16 + $0x754] sm:$0xff]
    %v5749 = vld [vmem:[#allocation16 + $0x75c] sm:$0xff]
    %v5750 = vld [vmem:[#allocation16 + $0x764] sm:$0xff]
    %v5751 = vld [vmem:[#allocation16 + $0x76c] sm:$0xf]
    %v5752 = vld [vmem:[#allocation16 + $0x770] sm:$0xff]
    %v5753 = vld [vmem:[#allocation16 + $0x778] sm:$0xff]
    %v5754 = vld [vmem:[#allocation16 + $0x780] sm:$0xff]
    %v5755 = vld [vmem:[#allocation16 + $0x788] sm:$0xf]
    %v5756 = vld [vmem:[#allocation16 + $0x78c] sm:$0xff]
    %v5757 = vld [vmem:[#allocation16 + $0x794] sm:$0xff]
    %v5758 = vld [vmem:[#allocation16 + $0x79c] sm:$0xff]
    %v5759 = vld [vmem:[#allocation16 + $0x7a4] sm:$0xf]
    %v5760 = vld [vmem:[#allocation16 + $0x7a8] sm:$0xff]
    %v5761 = vld [vmem:[#allocation16 + $0x7b0] sm:$0xff]
    %v5762 = vld [vmem:[#allocation16 + $0x7b8] sm:$0xff]
    %v5763 = vld [vmem:[#allocation16 + $0x7c0] sm:$0xf]
    %v5764 = vld [vmem:[#allocation16 + $0x7c4] sm:$0xff]
    %v5765 = vld [vmem:[#allocation16 + $0x7cc] sm:$0xff]
    %v5766 = vld [vmem:[#allocation16 + $0x7d4] sm:$0xff]
    %v5767 = vld [vmem:[#allocation16 + $0x7dc] sm:$0xf]
    %v5768 = vld [vmem:[#allocation16 + $0x7e0] sm:$0xff]
    %v5769 = vld [vmem:[#allocation16 + $0x7e8] sm:$0xff]
    %v5770 = vld [vmem:[#allocation16 + $0x7f0] sm:$0xff]
    %v5771 = vld [vmem:[#allocation16 + $0x7f8] sm:$0xf]
    %v5772 = vld [vmem:[#allocation16 + $0x7fc] sm:$0xff]
    %v5773 = vld [vmem:[#allocation16 + $0x804] sm:$0xff]
    %v5774 = vld [vmem:[#allocation16 + $0x80c] sm:$0xff]
    %v5775 = vld [vmem:[#allocation16 + $0x814] sm:$0xf]
    %v5776 = vld [vmem:[#allocation16 + $0x818] sm:$0xff]
    %v5777 = vld [vmem:[#allocation16 + $0x820] sm:$0xff]
    %v5778 = vld [vmem:[#allocation16 + $0x828] sm:$0xff]
    %v5779 = vld [vmem:[#allocation16 + $0x830] sm:$0xf]
    %v5780 = vld [vmem:[#allocation16 + $0x834] sm:$0xff]
    %v5781 = vld [vmem:[#allocation16 + $0x83c] sm:$0xff]
    %v5782 = vld [vmem:[#allocation16 + $0x844] sm:$0xff]
    %v5783 = vld [vmem:[#allocation16 + $0x84c] sm:$0xf]
    %v5784 = vld [vmem:[#allocation16 + $0x850] sm:$0xff]
    %v5785 = vld [vmem:[#allocation16 + $0x858] sm:$0xff]
    %v5786 = vld [vmem:[#allocation16 + $0x860] sm:$0xff]
    %v5787 = vld [vmem:[#allocation16 + $0x868] sm:$0xf]
    %v5788 = vld [vmem:[#allocation16 + $0x86c] sm:$0xff]
    %v5789 = vld [vmem:[#allocation16 + $0x874] sm:$0xff]
    %v5790 = vld [vmem:[#allocation16 + $0x87c] sm:$0xff]
    %v5791 = vld [vmem:[#allocation16 + $0x884] sm:$0xf]
    %v5792 = vld [vmem:[#allocation16 + $0x888] sm:$0xff]
    %v5793 = vld [vmem:[#allocation16 + $0x890] sm:$0xff]
    %v5794 = vld [vmem:[#allocation16 + $0x898] sm:$0xff]
    %v5795 = vld [vmem:[#allocation16 + $0x8a0] sm:$0xf]
    %v5796 = vld [vmem:[#allocation16 + $0x8a4] sm:$0xff]
    %v5797 = vld [vmem:[#allocation16 + $0x8ac] sm:$0xff]
    %v5798 = vld [vmem:[#allocation16 + $0x8b4] sm:$0xff]
    %v5799 = vld [vmem:[#allocation16 + $0x8bc] sm:$0xf]
    %v5800 = vld [vmem:[#allocation16 + $0x8c0] sm:$0xff]
    %v5801 = vld [vmem:[#allocation16 + $0x8c8] sm:$0xff]
    %v5802 = vld [vmem:[#allocation16 + $0x8d0] sm:$0xff]
    %v5803 = vld [vmem:[#allocation16 + $0x8d8] sm:$0xf]
    %v5804 = vld [vmem:[#allocation16 + $0x8dc] sm:$0xff]
    %v5805 = vld [vmem:[#allocation16 + $0x8e4] sm:$0xff]
    %v5806 = vld [vmem:[#allocation16 + $0x8ec] sm:$0xff]
    %v5807 = vld [vmem:[#allocation16 + $0x8f4] sm:$0xf]
    %v5808 = vld [vmem:[#allocation16 + $0x8f8] sm:$0xff]
    %v5809 = vld [vmem:[#allocation16 + $0x900] sm:$0xff]
    %v5810 = vld [vmem:[#allocation16 + $0x908] sm:$0xff]
    %v5811 = vld [vmem:[#allocation16 + $0x910] sm:$0xf]
    %v5812 = vld [vmem:[#allocation16 + $0x914] sm:$0xff]
    %v5813 = vld [vmem:[#allocation16 + $0x91c] sm:$0xff]
    %v5814 = vld [vmem:[#allocation16 + $0x924] sm:$0xff]
    %v5815 = vld [vmem:[#allocation16 + $0x92c] sm:$0xf]
    %v5816 = vld [vmem:[#allocation16 + $0x930] sm:$0xff]
    %v5817 = vld [vmem:[#allocation16 + $0x938] sm:$0xff]
    %v5818 = vld [vmem:[#allocation16 + $0x940] sm:$0xff]
    %v5819 = vld [vmem:[#allocation16 + $0x948] sm:$0xf]
    %v5820 = vld [vmem:[#allocation16 + $0x94c] sm:$0xff]
    %v5821 = vld [vmem:[#allocation16 + $0x954] sm:$0xff]
    %v5822 = vld [vmem:[#allocation16 + $0x95c] sm:$0xff]
    %v5823 = vld [vmem:[#allocation16 + $0x964] sm:$0xf]
    %v5824 = vld [vmem:[#allocation16 + $0x968] sm:$0xff]
    %v5825 = vld [vmem:[#allocation16 + $0x970] sm:$0xff]
    %v5826 = vld [vmem:[#allocation16 + $0x978] sm:$0xff]
    %v5827 = vld [vmem:[#allocation16 + $0x980] sm:$0xf]
    %v5828 = vld [vmem:[#allocation16 + $0x984] sm:$0xff]
    %v5829 = vld [vmem:[#allocation16 + $0x98c] sm:$0xff]
    %v5830 = vld [vmem:[#allocation16 + $0x994] sm:$0xff]
    %v5831 = vld [vmem:[#allocation16 + $0x99c] sm:$0xf]
    %v5832 = vld [vmem:[#allocation16 + $0x9a0] sm:$0xff]
    %v5833 = vld [vmem:[#allocation16 + $0x9a8] sm:$0xff]
    %v5834 = vld [vmem:[#allocation16 + $0x9b0] sm:$0xff]
    %v5835 = vld [vmem:[#allocation16 + $0x9b8] sm:$0xf]
    %v5836 = vld [vmem:[#allocation16 + $0x9bc] sm:$0xff]
    %v5837 = vld [vmem:[#allocation16 + $0x9c4] sm:$0xff]
    %v5838 = vld [vmem:[#allocation16 + $0x9cc] sm:$0xff]
    %v5839 = vld [vmem:[#allocation16 + $0x9d4] sm:$0xf]
    %v5840 = vld [vmem:[#allocation16 + $0x9d8] sm:$0xff]
    %v5841 = vld [vmem:[#allocation16 + $0x9e0] sm:$0xff]
    %v5842 = vld [vmem:[#allocation16 + $0x9e8] sm:$0xff]
    %v5843 = vld [vmem:[#allocation16 + $0x9f0] sm:$0xf]
    %v5844 = vld [vmem:[#allocation16 + $0x9f4] sm:$0xff]
    %v5845 = vld [vmem:[#allocation16 + $0x9fc] sm:$0xff]
    %v5846 = vld [vmem:[#allocation16 + $0xa04] sm:$0xff]
    %v5847 = vld [vmem:[#allocation16 + $0xa0c] sm:$0xf]
    %v5848 = vld [vmem:[#allocation16 + $0xa10] sm:$0xff]
    %v5849 = vld [vmem:[#allocation16 + $0xa18] sm:$0xff]
    %v5850 = vld [vmem:[#allocation16 + $0xa20] sm:$0xff]
    %v5851 = vld [vmem:[#allocation16 + $0xa28] sm:$0xf]
    %v5852 = vld [vmem:[#allocation16 + $0xa2c] sm:$0xff]
    %v5853 = vld [vmem:[#allocation16 + $0xa34] sm:$0xff]
    %v5854 = vld [vmem:[#allocation16 + $0xa3c] sm:$0xff]
    %v5855 = vld [vmem:[#allocation16 + $0xa44] sm:$0xf]
    %v5856 = vld [vmem:[#allocation16 + $0xa48] sm:$0xff]
    %v5857 = vld [vmem:[#allocation16 + $0xa50] sm:$0xff]
    %v5858 = vld [vmem:[#allocation16 + $0xa58] sm:$0xff]
    %v5859 = vld [vmem:[#allocation16 + $0xa60] sm:$0xf]
    %v5860 = vld [vmem:[#allocation16 + $0xa64] sm:$0xff]
    %v5861 = vld [vmem:[#allocation16 + $0xa6c] sm:$0xff]
    %v5862 = vld [vmem:[#allocation16 + $0xa74] sm:$0xff]
    %v5863 = vld [vmem:[#allocation16 + $0xa7c] sm:$0xf]
    %v5864 = vld [vmem:[#allocation16 + $0xa80] sm:$0xff]
    %v5865 = vld [vmem:[#allocation16 + $0xa88] sm:$0xff]
    %v5866 = vld [vmem:[#allocation16 + $0xa90] sm:$0xff]
    %v5867 = vld [vmem:[#allocation16 + $0xa98] sm:$0xf]
    %v5868 = vld [vmem:[#allocation16 + $0xa9c] sm:$0xff]
    %v5869 = vld [vmem:[#allocation16 + $0xaa4] sm:$0xff]
    %v5870 = vld [vmem:[#allocation16 + $0xaac] sm:$0xff]
    %v5871 = vld [vmem:[#allocation16 + $0xab4] sm:$0xf]
    %v5872 = vld [vmem:[#allocation16 + $0xab8] sm:$0xff]
    %v5873 = vld [vmem:[#allocation16 + $0xac0] sm:$0xff]
    %v5874 = vld [vmem:[#allocation16 + $0xac8] sm:$0xff]
    %v5875 = vld [vmem:[#allocation16 + $0xad0] sm:$0xf]
    %v5876 = vld [vmem:[#allocation16 + $0xad4] sm:$0xff]
    %v5877 = vld [vmem:[#allocation16 + $0xadc] sm:$0xff]
    %v5878 = vld [vmem:[#allocation16 + $0xae4] sm:$0xff]
    %v5879 = vld [vmem:[#allocation16 + $0xaec] sm:$0xf]
    %v5880 = vld [vmem:[#allocation16 + $0xaf0] sm:$0xff]
    %v5881 = vld [vmem:[#allocation16 + $0xaf8] sm:$0xff]
    %v5882 = vld [vmem:[#allocation16 + $0xb00] sm:$0xff]
    %v5883 = vld [vmem:[#allocation16 + $0xb08] sm:$0xf]
    %v5884 = vld [vmem:[#allocation16 + $0xb0c] sm:$0xff]
    %v5885 = vld [vmem:[#allocation16 + $0xb14] sm:$0xff]
    %v5886 = vld [vmem:[#allocation16 + $0xb1c] sm:$0xff]
    %v5887 = vld [vmem:[#allocation16 + $0xb24] sm:$0xf]
    %v5888 = vld [vmem:[#allocation16 + $0xb28] sm:$0xff]
    %v5889 = vld [vmem:[#allocation16 + $0xb30] sm:$0xff]
    %v5890 = vld [vmem:[#allocation16 + $0xb38] sm:$0xff]
    %v5891 = vld [vmem:[#allocation16 + $0xb40] sm:$0xf]
    %v5892 = vld [vmem:[#allocation16 + $0xb44] sm:$0xff]
    %v5893 = vld [vmem:[#allocation16 + $0xb4c] sm:$0xff]
    %v5894 = vld [vmem:[#allocation16 + $0xb54] sm:$0xff]
    %v5895 = vld [vmem:[#allocation16 + $0xb5c] sm:$0xf]
    %v5896 = vld [vmem:[#allocation16 + $0xb60] sm:$0xff]
    %v5897 = vld [vmem:[#allocation16 + $0xb68] sm:$0xff]
    %v5898 = vld [vmem:[#allocation16 + $0xb70] sm:$0xff]
    %v5899 = vld [vmem:[#allocation16 + $0xb78] sm:$0xf]
    %v5900 = vld [vmem:[#allocation16 + $0xb7c] sm:$0xff]
    %v5901 = vld [vmem:[#allocation16 + $0xb84] sm:$0xff]
    %v5902 = vld [vmem:[#allocation16 + $0xb8c] sm:$0xff]
    %v5903 = vld [vmem:[#allocation16 + $0xb94] sm:$0xf]
    %v5904 = vld [vmem:[#allocation16 + $0xb98] sm:$0xff]
    %v5905 = vld [vmem:[#allocation16 + $0xba0] sm:$0xff]
    %v5906 = vld [vmem:[#allocation16 + $0xba8] sm:$0xff]
    %v5907 = vld [vmem:[#allocation16 + $0xbb0] sm:$0xf]
    %v5908 = vld [vmem:[#allocation16 + $0xbb4] sm:$0xff]
    %v5909 = vld [vmem:[#allocation16 + $0xbbc] sm:$0xff]
    %v5910 = vld [vmem:[#allocation16 + $0xbc4] sm:$0xff]
    %v5911 = vld [vmem:[#allocation16 + $0xbcc] sm:$0xf]
    %v5912 = vld [vmem:[#allocation16 + $0xbd0] sm:$0xff]
    %v5913 = vld [vmem:[#allocation16 + $0xbd8] sm:$0xff]
    %v5914 = vld [vmem:[#allocation16 + $0xbe0] sm:$0xff]
    %v5915 = vld [vmem:[#allocation16 + $0xbe8] sm:$0xf]
    %v5916 = vld [vmem:[#allocation16 + $0xbec] sm:$0xff]
    %v5917 = vld [vmem:[#allocation16 + $0xbf4] sm:$0xff]
    %v5918 = vld [vmem:[#allocation16 + $0xbfc] sm:$0xff]
    %v5919 = vld [vmem:[#allocation16 + $0xc04] sm:$0xf]
    %v5920 = vld [vmem:[#allocation16 + $0xc08] sm:$0xff]
    %v5921 = vld [vmem:[#allocation16 + $0xc10] sm:$0xff]
    %v5922 = vld [vmem:[#allocation16 + $0xc18] sm:$0xff]
    %v5923 = vld [vmem:[#allocation16 + $0xc20] sm:$0xf]
    %v5924 = vld [vmem:[#allocation16 + $0xc24] sm:$0xff]
    %v5925 = vld [vmem:[#allocation16 + $0xc2c] sm:$0xff]
    %v5926 = vld [vmem:[#allocation16 + $0xc34] sm:$0xff]
    %v5927 = vld [vmem:[#allocation16 + $0xc3c] sm:$0xf]
    %v5928 = vld [vmem:[#allocation17] sm:$0xff]
    %v5930 = vlaneseq
    %v5931 = vshrl.u32 %v5930, 7
    %v5932 = vsub.s32 0, %v5931
    %v5933 = vrot.slane %v5928, %v5932
    %v5934 = vlaneseq
    %v5935 = vshrl.u32 %v5934, 7
    %v5936 = vsub.s32 1, %v5935
    %v5937 = vrot.slane %v5928, %v5936
    %v5938 = vlaneseq
    %v5939 = vshrl.u32 %v5938, 7
    %v5940 = vsub.s32 2, %v5939
    %v5941 = vrot.slane %v5928, %v5940
    %v5942 = vlaneseq
    %v5943 = vshrl.u32 %v5942, 7
    %v5944 = vsub.s32 3, %v5943
    %v5945 = vrot.slane %v5928, %v5944
    %v5946 = vlaneseq
    %v5947 = vshrl.u32 %v5946, 7
    %v5948 = vsub.s32 4, %v5947
    %v5949 = vrot.slane %v5928, %v5948
    %v5950 = vlaneseq
    %v5951 = vshrl.u32 %v5950, 7
    %v5952 = vsub.s32 5, %v5951
    %v5953 = vrot.slane %v5928, %v5952
    %v5954 = vlaneseq
    %v5955 = vshrl.u32 %v5954, 7
    %v5956 = vsub.s32 6, %v5955
    %v5957 = vrot.slane %v5928, %v5956
    %v6413 = vunpack.c.l.b16 %v5480
    %v6414 = vunpack.c.h.b16 %v5480
    %v6415 = vunpack.c.l.b16 %v5481
    %v6416 = vunpack.c.h.b16 %v5481
    %v6417 = vunpack.c.l.b16 %v5482
    %v6418 = vunpack.c.h.b16 %v5482
    %v6419 = vunpack.c.l.b16 %v5483
    %v6420 = vunpack.c.l.b16 %v5484
    %v6421 = vunpack.c.h.b16 %v5484
    %v6422 = vunpack.c.l.b16 %v5485
    %v6423 = vunpack.c.h.b16 %v5485
    %v6424 = vunpack.c.l.b16 %v5486
    %v6425 = vunpack.c.h.b16 %v5486
    %v6426 = vunpack.c.l.b16 %v5487
    %v6427 = vunpack.c.l.b16 %v5488
    %v6428 = vunpack.c.h.b16 %v5488
    %v6429 = vunpack.c.l.b16 %v5489
    %v6430 = vunpack.c.h.b16 %v5489
    %v6431 = vunpack.c.l.b16 %v5490
    %v6432 = vunpack.c.h.b16 %v5490
    %v6433 = vunpack.c.l.b16 %v5491
    %v6434 = vunpack.c.l.b16 %v5492
    %v6435 = vunpack.c.h.b16 %v5492
    %v6436 = vunpack.c.l.b16 %v5493
    %v6437 = vunpack.c.h.b16 %v5493
    %v6438 = vunpack.c.l.b16 %v5494
    %v6439 = vunpack.c.h.b16 %v5494
    %v6440 = vunpack.c.l.b16 %v5495
    %v6441 = vunpack.c.l.b16 %v5496
    %v6442 = vunpack.c.h.b16 %v5496
    %v6443 = vunpack.c.l.b16 %v5497
    %v6444 = vunpack.c.h.b16 %v5497
    %v6445 = vunpack.c.l.b16 %v5498
    %v6446 = vunpack.c.h.b16 %v5498
    %v6447 = vunpack.c.l.b16 %v5499
    %v6448 = vunpack.c.l.b16 %v5500
    %v6449 = vunpack.c.h.b16 %v5500
    %v6450 = vunpack.c.l.b16 %v5501
    %v6451 = vunpack.c.h.b16 %v5501
    %v6452 = vunpack.c.l.b16 %v5502
    %v6453 = vunpack.c.h.b16 %v5502
    %v6454 = vunpack.c.l.b16 %v5503
    %v6455 = vunpack.c.l.b16 %v5504
    %v6456 = vunpack.c.h.b16 %v5504
    %v6457 = vunpack.c.l.b16 %v5505
    %v6458 = vunpack.c.h.b16 %v5505
    %v6459 = vunpack.c.l.b16 %v5506
    %v6460 = vunpack.c.h.b16 %v5506
    %v6461 = vunpack.c.l.b16 %v5507
    %v6462 = vunpack.c.l.b16 %v5508
    %v6463 = vunpack.c.h.b16 %v5508
    %v6464 = vunpack.c.l.b16 %v5509
    %v6465 = vunpack.c.h.b16 %v5509
    %v6466 = vunpack.c.l.b16 %v5510
    %v6467 = vunpack.c.h.b16 %v5510
    %v6468 = vunpack.c.l.b16 %v5511
    %v6469 = vunpack.c.l.b16 %v5512
    %v6470 = vunpack.c.h.b16 %v5512
    %v6471 = vunpack.c.l.b16 %v5513
    %v6472 = vunpack.c.h.b16 %v5513
    %v6473 = vunpack.c.l.b16 %v5514
    %v6474 = vunpack.c.h.b16 %v5514
    %v6475 = vunpack.c.l.b16 %v5515
    %v6476 = vunpack.c.l.b16 %v5516
    %v6477 = vunpack.c.h.b16 %v5516
    %v6478 = vunpack.c.l.b16 %v5517
    %v6479 = vunpack.c.h.b16 %v5517
    %v6480 = vunpack.c.l.b16 %v5518
    %v6481 = vunpack.c.h.b16 %v5518
    %v6482 = vunpack.c.l.b16 %v5519
    %v6483 = vunpack.c.l.b16 %v5520
    %v6484 = vunpack.c.h.b16 %v5520
    %v6485 = vunpack.c.l.b16 %v5521
    %v6486 = vunpack.c.h.b16 %v5521
    %v6487 = vunpack.c.l.b16 %v5522
    %v6488 = vunpack.c.h.b16 %v5522
    %v6489 = vunpack.c.l.b16 %v5523
    %v6490 = vunpack.c.l.b16 %v5524
    %v6491 = vunpack.c.h.b16 %v5524
    %v6492 = vunpack.c.l.b16 %v5525
    %v6493 = vunpack.c.h.b16 %v5525
    %v6494 = vunpack.c.l.b16 %v5526
    %v6495 = vunpack.c.h.b16 %v5526
    %v6496 = vunpack.c.l.b16 %v5527
    %v6497 = vunpack.c.l.b16 %v5528
    %v6498 = vunpack.c.h.b16 %v5528
    %v6499 = vunpack.c.l.b16 %v5529
    %v6500 = vunpack.c.h.b16 %v5529
    %v6501 = vunpack.c.l.b16 %v5530
    %v6502 = vunpack.c.h.b16 %v5530
    %v6503 = vunpack.c.l.b16 %v5531
    %v6504 = vunpack.c.l.b16 %v5532
    %v6505 = vunpack.c.h.b16 %v5532
    %v6506 = vunpack.c.l.b16 %v5533
    %v6507 = vunpack.c.h.b16 %v5533
    %v6508 = vunpack.c.l.b16 %v5534
    %v6509 = vunpack.c.h.b16 %v5534
    %v6510 = vunpack.c.l.b16 %v5535
    %v6511 = vunpack.c.l.b16 %v5536
    %v6512 = vunpack.c.h.b16 %v5536
    %v6513 = vunpack.c.l.b16 %v5537
    %v6514 = vunpack.c.h.b16 %v5537
    %v6515 = vunpack.c.l.b16 %v5538
    %v6516 = vunpack.c.h.b16 %v5538
    %v6517 = vunpack.c.l.b16 %v5539
    %v6518 = vunpack.c.l.b16 %v5540
    %v6519 = vunpack.c.h.b16 %v5540
    %v6520 = vunpack.c.l.b16 %v5541
    %v6521 = vunpack.c.h.b16 %v5541
    %v6522 = vunpack.c.l.b16 %v5542
    %v6523 = vunpack.c.h.b16 %v5542
    %v6524 = vunpack.c.l.b16 %v5543
    %v6525 = vunpack.c.l.b16 %v5544
    %v6526 = vunpack.c.h.b16 %v5544
    %v6527 = vunpack.c.l.b16 %v5545
    %v6528 = vunpack.c.h.b16 %v5545
    %v6529 = vunpack.c.l.b16 %v5546
    %v6530 = vunpack.c.h.b16 %v5546
    %v6531 = vunpack.c.l.b16 %v5547
    %v6532 = vunpack.c.l.b16 %v5548
    %v6533 = vunpack.c.h.b16 %v5548
    %v6534 = vunpack.c.l.b16 %v5549
    %v6535 = vunpack.c.h.b16 %v5549
    %v6536 = vunpack.c.l.b16 %v5550
    %v6537 = vunpack.c.h.b16 %v5550
    %v6538 = vunpack.c.l.b16 %v5551
    %v6539 = vunpack.c.l.b16 %v5552
    %v6540 = vunpack.c.h.b16 %v5552
    %v6541 = vunpack.c.l.b16 %v5553
    %v6542 = vunpack.c.h.b16 %v5553
    %v6543 = vunpack.c.l.b16 %v5554
    %v6544 = vunpack.c.h.b16 %v5554
    %v6545 = vunpack.c.l.b16 %v5555
    %v6546 = vunpack.c.l.b16 %v5556
    %v6547 = vunpack.c.h.b16 %v5556
    %v6548 = vunpack.c.l.b16 %v5557
    %v6549 = vunpack.c.h.b16 %v5557
    %v6550 = vunpack.c.l.b16 %v5558
    %v6551 = vunpack.c.h.b16 %v5558
    %v6552 = vunpack.c.l.b16 %v5559
    %v6553 = vunpack.c.l.b16 %v5560
    %v6554 = vunpack.c.h.b16 %v5560
    %v6555 = vunpack.c.l.b16 %v5561
    %v6556 = vunpack.c.h.b16 %v5561
    %v6557 = vunpack.c.l.b16 %v5562
    %v6558 = vunpack.c.h.b16 %v5562
    %v6559 = vunpack.c.l.b16 %v5563
    %v6560 = vunpack.c.l.b16 %v5564
    %v6561 = vunpack.c.h.b16 %v5564
    %v6562 = vunpack.c.l.b16 %v5565
    %v6563 = vunpack.c.h.b16 %v5565
    %v6564 = vunpack.c.l.b16 %v5566
    %v6565 = vunpack.c.h.b16 %v5566
    %v6566 = vunpack.c.l.b16 %v5567
    %v6567 = vunpack.c.l.b16 %v5568
    %v6568 = vunpack.c.h.b16 %v5568
    %v6569 = vunpack.c.l.b16 %v5569
    %v6570 = vunpack.c.h.b16 %v5569
    %v6571 = vunpack.c.l.b16 %v5570
    %v6572 = vunpack.c.h.b16 %v5570
    %v6573 = vunpack.c.l.b16 %v5571
    %v6574 = vunpack.c.l.b16 %v5572
    %v6575 = vunpack.c.h.b16 %v5572
    %v6576 = vunpack.c.l.b16 %v5573
    %v6577 = vunpack.c.h.b16 %v5573
    %v6578 = vunpack.c.l.b16 %v5574
    %v6579 = vunpack.c.h.b16 %v5574
    %v6580 = vunpack.c.l.b16 %v5575
    %v6581 = vunpack.c.l.b16 %v5576
    %v6582 = vunpack.c.h.b16 %v5576
    %v6583 = vunpack.c.l.b16 %v5577
    %v6584 = vunpack.c.h.b16 %v5577
    %v6585 = vunpack.c.l.b16 %v5578
    %v6586 = vunpack.c.h.b16 %v5578
    %v6587 = vunpack.c.l.b16 %v5579
    %v6588 = vunpack.c.l.b16 %v5580
    %v6589 = vunpack.c.h.b16 %v5580
    %v6590 = vunpack.c.l.b16 %v5581
    %v6591 = vunpack.c.h.b16 %v5581
    %v6592 = vunpack.c.l.b16 %v5582
    %v6593 = vunpack.c.h.b16 %v5582
    %v6594 = vunpack.c.l.b16 %v5583
    %v6595 = vunpack.c.l.b16 %v5584
    %v6596 = vunpack.c.h.b16 %v5584
    %v6597 = vunpack.c.l.b16 %v5585
    %v6598 = vunpack.c.h.b16 %v5585
    %v6599 = vunpack.c.l.b16 %v5586
    %v6600 = vunpack.c.h.b16 %v5586
    %v6601 = vunpack.c.l.b16 %v5587
    %v6602 = vunpack.c.l.b16 %v5588
    %v6603 = vunpack.c.h.b16 %v5588
    %v6604 = vunpack.c.l.b16 %v5589
    %v6605 = vunpack.c.h.b16 %v5589
    %v6606 = vunpack.c.l.b16 %v5590
    %v6607 = vunpack.c.h.b16 %v5590
    %v6608 = vunpack.c.l.b16 %v5591
    %v6609 = vunpack.c.l.b16 %v5592
    %v6610 = vunpack.c.h.b16 %v5592
    %v6611 = vunpack.c.l.b16 %v5593
    %v6612 = vunpack.c.h.b16 %v5593
    %v6613 = vunpack.c.l.b16 %v5594
    %v6614 = vunpack.c.h.b16 %v5594
    %v6615 = vunpack.c.l.b16 %v5595
    %v6616 = vunpack.c.l.b16 %v5596
    %v6617 = vunpack.c.h.b16 %v5596
    %v6618 = vunpack.c.l.b16 %v5597
    %v6619 = vunpack.c.h.b16 %v5597
    %v6620 = vunpack.c.l.b16 %v5598
    %v6621 = vunpack.c.h.b16 %v5598
    %v6622 = vunpack.c.l.b16 %v5599
    %v6623 = vunpack.c.l.b16 %v5600
    %v6624 = vunpack.c.h.b16 %v5600
    %v6625 = vunpack.c.l.b16 %v5601
    %v6626 = vunpack.c.h.b16 %v5601
    %v6627 = vunpack.c.l.b16 %v5602
    %v6628 = vunpack.c.h.b16 %v5602
    %v6629 = vunpack.c.l.b16 %v5603
    %v6630 = vunpack.c.l.b16 %v5604
    %v6631 = vunpack.c.h.b16 %v5604
    %v6632 = vunpack.c.l.b16 %v5605
    %v6633 = vunpack.c.h.b16 %v5605
    %v6634 = vunpack.c.l.b16 %v5606
    %v6635 = vunpack.c.h.b16 %v5606
    %v6636 = vunpack.c.l.b16 %v5607
    %v6637 = vunpack.c.l.b16 %v5608
    %v6638 = vunpack.c.h.b16 %v5608
    %v6639 = vunpack.c.l.b16 %v5609
    %v6640 = vunpack.c.h.b16 %v5609
    %v6641 = vunpack.c.l.b16 %v5610
    %v6642 = vunpack.c.h.b16 %v5610
    %v6643 = vunpack.c.l.b16 %v5611
    %v6644 = vunpack.c.l.b16 %v5612
    %v6645 = vunpack.c.h.b16 %v5612
    %v6646 = vunpack.c.l.b16 %v5613
    %v6647 = vunpack.c.h.b16 %v5613
    %v6648 = vunpack.c.l.b16 %v5614
    %v6649 = vunpack.c.h.b16 %v5614
    %v6650 = vunpack.c.l.b16 %v5615
    %v6651 = vunpack.c.l.b16 %v5616
    %v6652 = vunpack.c.h.b16 %v5616
    %v6653 = vunpack.c.l.b16 %v5617
    %v6654 = vunpack.c.h.b16 %v5617
    %v6655 = vunpack.c.l.b16 %v5618
    %v6656 = vunpack.c.h.b16 %v5618
    %v6657 = vunpack.c.l.b16 %v5619
    %v6658 = vunpack.c.l.b16 %v5620
    %v6659 = vunpack.c.h.b16 %v5620
    %v6660 = vunpack.c.l.b16 %v5621
    %v6661 = vunpack.c.h.b16 %v5621
    %v6662 = vunpack.c.l.b16 %v5622
    %v6663 = vunpack.c.h.b16 %v5622
    %v6664 = vunpack.c.l.b16 %v5623
    %v6665 = vunpack.c.l.b16 %v5624
    %v6666 = vunpack.c.h.b16 %v5624
    %v6667 = vunpack.c.l.b16 %v5625
    %v6668 = vunpack.c.h.b16 %v5625
    %v6669 = vunpack.c.l.b16 %v5626
    %v6670 = vunpack.c.h.b16 %v5626
    %v6671 = vunpack.c.l.b16 %v5627
    %v6672 = vunpack.c.l.b16 %v5628
    %v6673 = vunpack.c.h.b16 %v5628
    %v6674 = vunpack.c.l.b16 %v5629
    %v6675 = vunpack.c.h.b16 %v5629
    %v6676 = vunpack.c.l.b16 %v5630
    %v6677 = vunpack.c.h.b16 %v5630
    %v6678 = vunpack.c.l.b16 %v5631
    %v6679 = vunpack.c.l.b16 %v5632
    %v6680 = vunpack.c.h.b16 %v5632
    %v6681 = vunpack.c.l.b16 %v5633
    %v6682 = vunpack.c.h.b16 %v5633
    %v6683 = vunpack.c.l.b16 %v5634
    %v6684 = vunpack.c.h.b16 %v5634
    %v6685 = vunpack.c.l.b16 %v5635
    %v6686 = vunpack.c.l.b16 %v5636
    %v6687 = vunpack.c.h.b16 %v5636
    %v6688 = vunpack.c.l.b16 %v5637
    %v6689 = vunpack.c.h.b16 %v5637
    %v6690 = vunpack.c.l.b16 %v5638
    %v6691 = vunpack.c.h.b16 %v5638
    %v6692 = vunpack.c.l.b16 %v5639
    %v6693 = vunpack.c.l.b16 %v5640
    %v6694 = vunpack.c.h.b16 %v5640
    %v6695 = vunpack.c.l.b16 %v5641
    %v6696 = vunpack.c.h.b16 %v5641
    %v6697 = vunpack.c.l.b16 %v5642
    %v6698 = vunpack.c.h.b16 %v5642
    %v6699 = vunpack.c.l.b16 %v5643
    %v6700 = vunpack.c.l.b16 %v5644
    %v6701 = vunpack.c.h.b16 %v5644
    %v6702 = vunpack.c.l.b16 %v5645
    %v6703 = vunpack.c.h.b16 %v5645
    %v6704 = vunpack.c.l.b16 %v5646
    %v6705 = vunpack.c.h.b16 %v5646
    %v6706 = vunpack.c.l.b16 %v5647
    %v6707 = vunpack.c.l.b16 %v5648
    %v6708 = vunpack.c.h.b16 %v5648
    %v6709 = vunpack.c.l.b16 %v5649
    %v6710 = vunpack.c.h.b16 %v5649
    %v6711 = vunpack.c.l.b16 %v5650
    %v6712 = vunpack.c.h.b16 %v5650
    %v6713 = vunpack.c.l.b16 %v5651
    %v6714 = vunpack.c.l.b16 %v5652
    %v6715 = vunpack.c.h.b16 %v5652
    %v6716 = vunpack.c.l.b16 %v5653
    %v6717 = vunpack.c.h.b16 %v5653
    %v6718 = vunpack.c.l.b16 %v5654
    %v6719 = vunpack.c.h.b16 %v5654
    %v6720 = vunpack.c.l.b16 %v5655
    %v6721 = vunpack.c.l.b16 %v5656
    %v6722 = vunpack.c.h.b16 %v5656
    %v6723 = vunpack.c.l.b16 %v5657
    %v6724 = vunpack.c.h.b16 %v5657
    %v6725 = vunpack.c.l.b16 %v5658
    %v6726 = vunpack.c.h.b16 %v5658
    %v6727 = vunpack.c.l.b16 %v5659
    %v6728 = vunpack.c.l.b16 %v5660
    %v6729 = vunpack.c.h.b16 %v5660
    %v6730 = vunpack.c.l.b16 %v5661
    %v6731 = vunpack.c.h.b16 %v5661
    %v6732 = vunpack.c.l.b16 %v5662
    %v6733 = vunpack.c.h.b16 %v5662
    %v6734 = vunpack.c.l.b16 %v5663
    %v6735 = vunpack.c.l.b16 %v5664
    %v6736 = vunpack.c.h.b16 %v5664
    %v6737 = vunpack.c.l.b16 %v5665
    %v6738 = vunpack.c.h.b16 %v5665
    %v6739 = vunpack.c.l.b16 %v5666
    %v6740 = vunpack.c.h.b16 %v5666
    %v6741 = vunpack.c.l.b16 %v5667
    %v6742 = vunpack.c.l.b16 %v5668
    %v6743 = vunpack.c.h.b16 %v5668
    %v6744 = vunpack.c.l.b16 %v5669
    %v6745 = vunpack.c.h.b16 %v5669
    %v6746 = vunpack.c.l.b16 %v5670
    %v6747 = vunpack.c.h.b16 %v5670
    %v6748 = vunpack.c.l.b16 %v5671
    %v6749 = vunpack.c.l.b16 %v5672
    %v6750 = vunpack.c.h.b16 %v5672
    %v6751 = vunpack.c.l.b16 %v5673
    %v6752 = vunpack.c.h.b16 %v5673
    %v6753 = vunpack.c.l.b16 %v5674
    %v6754 = vunpack.c.h.b16 %v5674
    %v6755 = vunpack.c.l.b16 %v5675
    %v6756 = vunpack.c.l.b16 %v5676
    %v6757 = vunpack.c.h.b16 %v5676
    %v6758 = vunpack.c.l.b16 %v5677
    %v6759 = vunpack.c.h.b16 %v5677
    %v6760 = vunpack.c.l.b16 %v5678
    %v6761 = vunpack.c.h.b16 %v5678
    %v6762 = vunpack.c.l.b16 %v5679
    %v6763 = vunpack.c.l.b16 %v5680
    %v6764 = vunpack.c.h.b16 %v5680
    %v6765 = vunpack.c.l.b16 %v5681
    %v6766 = vunpack.c.h.b16 %v5681
    %v6767 = vunpack.c.l.b16 %v5682
    %v6768 = vunpack.c.h.b16 %v5682
    %v6769 = vunpack.c.l.b16 %v5683
    %v6770 = vunpack.c.l.b16 %v5684
    %v6771 = vunpack.c.h.b16 %v5684
    %v6772 = vunpack.c.l.b16 %v5685
    %v6773 = vunpack.c.h.b16 %v5685
    %v6774 = vunpack.c.l.b16 %v5686
    %v6775 = vunpack.c.h.b16 %v5686
    %v6776 = vunpack.c.l.b16 %v5687
    %v6777 = vunpack.c.l.b16 %v5688
    %v6778 = vunpack.c.h.b16 %v5688
    %v6779 = vunpack.c.l.b16 %v5689
    %v6780 = vunpack.c.h.b16 %v5689
    %v6781 = vunpack.c.l.b16 %v5690
    %v6782 = vunpack.c.h.b16 %v5690
    %v6783 = vunpack.c.l.b16 %v5691
    %v6784 = vunpack.c.l.b16 %v5692
    %v6785 = vunpack.c.h.b16 %v5692
    %v6786 = vunpack.c.l.b16 %v5693
    %v6787 = vunpack.c.h.b16 %v5693
    %v6788 = vunpack.c.l.b16 %v5694
    %v6789 = vunpack.c.h.b16 %v5694
    %v6790 = vunpack.c.l.b16 %v5695
    %v6791 = vunpack.c.l.b16 %v5696
    %v6792 = vunpack.c.h.b16 %v5696
    %v6793 = vunpack.c.l.b16 %v5697
    %v6794 = vunpack.c.h.b16 %v5697
    %v6795 = vunpack.c.l.b16 %v5698
    %v6796 = vunpack.c.h.b16 %v5698
    %v6797 = vunpack.c.l.b16 %v5699
    %v6798 = vunpack.c.l.b16 %v5700
    %v6799 = vunpack.c.h.b16 %v5700
    %v6800 = vunpack.c.l.b16 %v5701
    %v6801 = vunpack.c.h.b16 %v5701
    %v6802 = vunpack.c.l.b16 %v5702
    %v6803 = vunpack.c.h.b16 %v5702
    %v6804 = vunpack.c.l.b16 %v5703
    %v6805 = vunpack.c.l.b16 %v5704
    %v6806 = vunpack.c.h.b16 %v5704
    %v6807 = vunpack.c.l.b16 %v5705
    %v6808 = vunpack.c.h.b16 %v5705
    %v6809 = vunpack.c.l.b16 %v5706
    %v6810 = vunpack.c.h.b16 %v5706
    %v6811 = vunpack.c.l.b16 %v5707
    %v6812 = vunpack.c.l.b16 %v5708
    %v6813 = vunpack.c.h.b16 %v5708
    %v6814 = vunpack.c.l.b16 %v5709
    %v6815 = vunpack.c.h.b16 %v5709
    %v6816 = vunpack.c.l.b16 %v5710
    %v6817 = vunpack.c.h.b16 %v5710
    %v6818 = vunpack.c.l.b16 %v5711
    %v6819 = vunpack.c.l.b16 %v5712
    %v6820 = vunpack.c.h.b16 %v5712
    %v6821 = vunpack.c.l.b16 %v5713
    %v6822 = vunpack.c.h.b16 %v5713
    %v6823 = vunpack.c.l.b16 %v5714
    %v6824 = vunpack.c.h.b16 %v5714
    %v6825 = vunpack.c.l.b16 %v5715
    %v6826 = vunpack.c.l.b16 %v5716
    %v6827 = vunpack.c.h.b16 %v5716
    %v6828 = vunpack.c.l.b16 %v5717
    %v6829 = vunpack.c.h.b16 %v5717
    %v6830 = vunpack.c.l.b16 %v5718
    %v6831 = vunpack.c.h.b16 %v5718
    %v6832 = vunpack.c.l.b16 %v5719
    %v6833 = vunpack.c.l.b16 %v5720
    %v6834 = vunpack.c.h.b16 %v5720
    %v6835 = vunpack.c.l.b16 %v5721
    %v6836 = vunpack.c.h.b16 %v5721
    %v6837 = vunpack.c.l.b16 %v5722
    %v6838 = vunpack.c.h.b16 %v5722
    %v6839 = vunpack.c.l.b16 %v5723
    %v6840 = vunpack.c.l.b16 %v5724
    %v6841 = vunpack.c.h.b16 %v5724
    %v6842 = vunpack.c.l.b16 %v5725
    %v6843 = vunpack.c.h.b16 %v5725
    %v6844 = vunpack.c.l.b16 %v5726
    %v6845 = vunpack.c.h.b16 %v5726
    %v6846 = vunpack.c.l.b16 %v5727
    %v6847 = vunpack.c.l.b16 %v5728
    %v6848 = vunpack.c.h.b16 %v5728
    %v6849 = vunpack.c.l.b16 %v5729
    %v6850 = vunpack.c.h.b16 %v5729
    %v6851 = vunpack.c.l.b16 %v5730
    %v6852 = vunpack.c.h.b16 %v5730
    %v6853 = vunpack.c.l.b16 %v5731
    %v6854 = vunpack.c.l.b16 %v5732
    %v6855 = vunpack.c.h.b16 %v5732
    %v6856 = vunpack.c.l.b16 %v5733
    %v6857 = vunpack.c.h.b16 %v5733
    %v6858 = vunpack.c.l.b16 %v5734
    %v6859 = vunpack.c.h.b16 %v5734
    %v6860 = vunpack.c.l.b16 %v5735
    %v6861 = vunpack.c.l.b16 %v5736
    %v6862 = vunpack.c.h.b16 %v5736
    %v6863 = vunpack.c.l.b16 %v5737
    %v6864 = vunpack.c.h.b16 %v5737
    %v6865 = vunpack.c.l.b16 %v5738
    %v6866 = vunpack.c.h.b16 %v5738
    %v6867 = vunpack.c.l.b16 %v5739
    %v6868 = vunpack.c.l.b16 %v5740
    %v6869 = vunpack.c.h.b16 %v5740
    %v6870 = vunpack.c.l.b16 %v5741
    %v6871 = vunpack.c.h.b16 %v5741
    %v6872 = vunpack.c.l.b16 %v5742
    %v6873 = vunpack.c.h.b16 %v5742
    %v6874 = vunpack.c.l.b16 %v5743
    %v6875 = vunpack.c.l.b16 %v5744
    %v6876 = vunpack.c.h.b16 %v5744
    %v6877 = vunpack.c.l.b16 %v5745
    %v6878 = vunpack.c.h.b16 %v5745
    %v6879 = vunpack.c.l.b16 %v5746
    %v6880 = vunpack.c.h.b16 %v5746
    %v6881 = vunpack.c.l.b16 %v5747
    %v6882 = vunpack.c.l.b16 %v5748
    %v6883 = vunpack.c.h.b16 %v5748
    %v6884 = vunpack.c.l.b16 %v5749
    %v6885 = vunpack.c.h.b16 %v5749
    %v6886 = vunpack.c.l.b16 %v5750
    %v6887 = vunpack.c.h.b16 %v5750
    %v6888 = vunpack.c.l.b16 %v5751
    %v6889 = vunpack.c.l.b16 %v5752
    %v6890 = vunpack.c.h.b16 %v5752
    %v6891 = vunpack.c.l.b16 %v5753
    %v6892 = vunpack.c.h.b16 %v5753
    %v6893 = vunpack.c.l.b16 %v5754
    %v6894 = vunpack.c.h.b16 %v5754
    %v6895 = vunpack.c.l.b16 %v5755
    %v6896 = vunpack.c.l.b16 %v5756
    %v6897 = vunpack.c.h.b16 %v5756
    %v6898 = vunpack.c.l.b16 %v5757
    %v6899 = vunpack.c.h.b16 %v5757
    %v6900 = vunpack.c.l.b16 %v5758
    %v6901 = vunpack.c.h.b16 %v5758
    %v6902 = vunpack.c.l.b16 %v5759
    %v6903 = vunpack.c.l.b16 %v5760
    %v6904 = vunpack.c.h.b16 %v5760
    %v6905 = vunpack.c.l.b16 %v5761
    %v6906 = vunpack.c.h.b16 %v5761
    %v6907 = vunpack.c.l.b16 %v5762
    %v6908 = vunpack.c.h.b16 %v5762
    %v6909 = vunpack.c.l.b16 %v5763
    %v6910 = vunpack.c.l.b16 %v5764
    %v6911 = vunpack.c.h.b16 %v5764
    %v6912 = vunpack.c.l.b16 %v5765
    %v6913 = vunpack.c.h.b16 %v5765
    %v6914 = vunpack.c.l.b16 %v5766
    %v6915 = vunpack.c.h.b16 %v5766
    %v6916 = vunpack.c.l.b16 %v5767
    %v6917 = vunpack.c.l.b16 %v5768
    %v6918 = vunpack.c.h.b16 %v5768
    %v6919 = vunpack.c.l.b16 %v5769
    %v6920 = vunpack.c.h.b16 %v5769
    %v6921 = vunpack.c.l.b16 %v5770
    %v6922 = vunpack.c.h.b16 %v5770
    %v6923 = vunpack.c.l.b16 %v5771
    %v6924 = vunpack.c.l.b16 %v5772
    %v6925 = vunpack.c.h.b16 %v5772
    %v6926 = vunpack.c.l.b16 %v5773
    %v6927 = vunpack.c.h.b16 %v5773
    %v6928 = vunpack.c.l.b16 %v5774
    %v6929 = vunpack.c.h.b16 %v5774
    %v6930 = vunpack.c.l.b16 %v5775
    %v6931 = vunpack.c.l.b16 %v5776
    %v6932 = vunpack.c.h.b16 %v5776
    %v6933 = vunpack.c.l.b16 %v5777
    %v6934 = vunpack.c.h.b16 %v5777
    %v6935 = vunpack.c.l.b16 %v5778
    %v6936 = vunpack.c.h.b16 %v5778
    %v6937 = vunpack.c.l.b16 %v5779
    %v6938 = vunpack.c.l.b16 %v5780
    %v6939 = vunpack.c.h.b16 %v5780
    %v6940 = vunpack.c.l.b16 %v5781
    %v6941 = vunpack.c.h.b16 %v5781
    %v6942 = vunpack.c.l.b16 %v5782
    %v6943 = vunpack.c.h.b16 %v5782
    %v6944 = vunpack.c.l.b16 %v5783
    %v6945 = vunpack.c.l.b16 %v5784
    %v6946 = vunpack.c.h.b16 %v5784
    %v6947 = vunpack.c.l.b16 %v5785
    %v6948 = vunpack.c.h.b16 %v5785
    %v6949 = vunpack.c.l.b16 %v5786
    %v6950 = vunpack.c.h.b16 %v5786
    %v6951 = vunpack.c.l.b16 %v5787
    %v6952 = vunpack.c.l.b16 %v5788
    %v6953 = vunpack.c.h.b16 %v5788
    %v6954 = vunpack.c.l.b16 %v5789
    %v6955 = vunpack.c.h.b16 %v5789
    %v6956 = vunpack.c.l.b16 %v5790
    %v6957 = vunpack.c.h.b16 %v5790
    %v6958 = vunpack.c.l.b16 %v5791
    %v6959 = vunpack.c.l.b16 %v5792
    %v6960 = vunpack.c.h.b16 %v5792
    %v6961 = vunpack.c.l.b16 %v5793
    %v6962 = vunpack.c.h.b16 %v5793
    %v6963 = vunpack.c.l.b16 %v5794
    %v6964 = vunpack.c.h.b16 %v5794
    %v6965 = vunpack.c.l.b16 %v5795
    %v6966 = vunpack.c.l.b16 %v5796
    %v6967 = vunpack.c.h.b16 %v5796
    %v6968 = vunpack.c.l.b16 %v5797
    %v6969 = vunpack.c.h.b16 %v5797
    %v6970 = vunpack.c.l.b16 %v5798
    %v6971 = vunpack.c.h.b16 %v5798
    %v6972 = vunpack.c.l.b16 %v5799
    %v6973 = vunpack.c.l.b16 %v5800
    %v6974 = vunpack.c.h.b16 %v5800
    %v6975 = vunpack.c.l.b16 %v5801
    %v6976 = vunpack.c.h.b16 %v5801
    %v6977 = vunpack.c.l.b16 %v5802
    %v6978 = vunpack.c.h.b16 %v5802
    %v6979 = vunpack.c.l.b16 %v5803
    %v6980 = vunpack.c.l.b16 %v5804
    %v6981 = vunpack.c.h.b16 %v5804
    %v6982 = vunpack.c.l.b16 %v5805
    %v6983 = vunpack.c.h.b16 %v5805
    %v6984 = vunpack.c.l.b16 %v5806
    %v6985 = vunpack.c.h.b16 %v5806
    %v6986 = vunpack.c.l.b16 %v5807
    %v6987 = vunpack.c.l.b16 %v5808
    %v6988 = vunpack.c.h.b16 %v5808
    %v6989 = vunpack.c.l.b16 %v5809
    %v6990 = vunpack.c.h.b16 %v5809
    %v6991 = vunpack.c.l.b16 %v5810
    %v6992 = vunpack.c.h.b16 %v5810
    %v6993 = vunpack.c.l.b16 %v5811
    %v6994 = vunpack.c.l.b16 %v5812
    %v6995 = vunpack.c.h.b16 %v5812
    %v6996 = vunpack.c.l.b16 %v5813
    %v6997 = vunpack.c.h.b16 %v5813
    %v6998 = vunpack.c.l.b16 %v5814
    %v6999 = vunpack.c.h.b16 %v5814
    %v7000 = vunpack.c.l.b16 %v5815
    %v7001 = vunpack.c.l.b16 %v5816
    %v7002 = vunpack.c.h.b16 %v5816
    %v7003 = vunpack.c.l.b16 %v5817
    %v7004 = vunpack.c.h.b16 %v5817
    %v7005 = vunpack.c.l.b16 %v5818
    %v7006 = vunpack.c.h.b16 %v5818
    %v7007 = vunpack.c.l.b16 %v5819
    %v7008 = vunpack.c.l.b16 %v5820
    %v7009 = vunpack.c.h.b16 %v5820
    %v7010 = vunpack.c.l.b16 %v5821
    %v7011 = vunpack.c.h.b16 %v5821
    %v7012 = vunpack.c.l.b16 %v5822
    %v7013 = vunpack.c.h.b16 %v5822
    %v7014 = vunpack.c.l.b16 %v5823
    %v7015 = vunpack.c.l.b16 %v5824
    %v7016 = vunpack.c.h.b16 %v5824
    %v7017 = vunpack.c.l.b16 %v5825
    %v7018 = vunpack.c.h.b16 %v5825
    %v7019 = vunpack.c.l.b16 %v5826
    %v7020 = vunpack.c.h.b16 %v5826
    %v7021 = vunpack.c.l.b16 %v5827
    %v7022 = vunpack.c.l.b16 %v5828
    %v7023 = vunpack.c.h.b16 %v5828
    %v7024 = vunpack.c.l.b16 %v5829
    %v7025 = vunpack.c.h.b16 %v5829
    %v7026 = vunpack.c.l.b16 %v5830
    %v7027 = vunpack.c.h.b16 %v5830
    %v7028 = vunpack.c.l.b16 %v5831
    %v7029 = vunpack.c.l.b16 %v5832
    %v7030 = vunpack.c.h.b16 %v5832
    %v7031 = vunpack.c.l.b16 %v5833
    %v7032 = vunpack.c.h.b16 %v5833
    %v7033 = vunpack.c.l.b16 %v5834
    %v7034 = vunpack.c.h.b16 %v5834
    %v7035 = vunpack.c.l.b16 %v5835
    %v7036 = vunpack.c.l.b16 %v5836
    %v7037 = vunpack.c.h.b16 %v5836
    %v7038 = vunpack.c.l.b16 %v5837
    %v7039 = vunpack.c.h.b16 %v5837
    %v7040 = vunpack.c.l.b16 %v5838
    %v7041 = vunpack.c.h.b16 %v5838
    %v7042 = vunpack.c.l.b16 %v5839
    %v7043 = vunpack.c.l.b16 %v5840
    %v7044 = vunpack.c.h.b16 %v5840
    %v7045 = vunpack.c.l.b16 %v5841
    %v7046 = vunpack.c.h.b16 %v5841
    %v7047 = vunpack.c.l.b16 %v5842
    %v7048 = vunpack.c.h.b16 %v5842
    %v7049 = vunpack.c.l.b16 %v5843
    %v7050 = vunpack.c.l.b16 %v5844
    %v7051 = vunpack.c.h.b16 %v5844
    %v7052 = vunpack.c.l.b16 %v5845
    %v7053 = vunpack.c.h.b16 %v5845
    %v7054 = vunpack.c.l.b16 %v5846
    %v7055 = vunpack.c.h.b16 %v5846
    %v7056 = vunpack.c.l.b16 %v5847
    %v7057 = vunpack.c.l.b16 %v5848
    %v7058 = vunpack.c.h.b16 %v5848
    %v7059 = vunpack.c.l.b16 %v5849
    %v7060 = vunpack.c.h.b16 %v5849
    %v7061 = vunpack.c.l.b16 %v5850
    %v7062 = vunpack.c.h.b16 %v5850
    %v7063 = vunpack.c.l.b16 %v5851
    %v7064 = vunpack.c.l.b16 %v5852
    %v7065 = vunpack.c.h.b16 %v5852
    %v7066 = vunpack.c.l.b16 %v5853
    %v7067 = vunpack.c.h.b16 %v5853
    %v7068 = vunpack.c.l.b16 %v5854
    %v7069 = vunpack.c.h.b16 %v5854
    %v7070 = vunpack.c.l.b16 %v5855
    %v7071 = vunpack.c.l.b16 %v5856
    %v7072 = vunpack.c.h.b16 %v5856
    %v7073 = vunpack.c.l.b16 %v5857
    %v7074 = vunpack.c.h.b16 %v5857
    %v7075 = vunpack.c.l.b16 %v5858
    %v7076 = vunpack.c.h.b16 %v5858
    %v7077 = vunpack.c.l.b16 %v5859
    %v7078 = vunpack.c.l.b16 %v5860
    %v7079 = vunpack.c.h.b16 %v5860
    %v7080 = vunpack.c.l.b16 %v5861
    %v7081 = vunpack.c.h.b16 %v5861
    %v7082 = vunpack.c.l.b16 %v5862
    %v7083 = vunpack.c.h.b16 %v5862
    %v7084 = vunpack.c.l.b16 %v5863
    %v7085 = vunpack.c.l.b16 %v5864
    %v7086 = vunpack.c.h.b16 %v5864
    %v7087 = vunpack.c.l.b16 %v5865
    %v7088 = vunpack.c.h.b16 %v5865
    %v7089 = vunpack.c.l.b16 %v5866
    %v7090 = vunpack.c.h.b16 %v5866
    %v7091 = vunpack.c.l.b16 %v5867
    %v7092 = vunpack.c.l.b16 %v5868
    %v7093 = vunpack.c.h.b16 %v5868
    %v7094 = vunpack.c.l.b16 %v5869
    %v7095 = vunpack.c.h.b16 %v5869
    %v7096 = vunpack.c.l.b16 %v5870
    %v7097 = vunpack.c.h.b16 %v5870
    %v7098 = vunpack.c.l.b16 %v5871
    %v7099 = vunpack.c.l.b16 %v5872
    %v7100 = vunpack.c.h.b16 %v5872
    %v7101 = vunpack.c.l.b16 %v5873
    %v7102 = vunpack.c.h.b16 %v5873
    %v7103 = vunpack.c.l.b16 %v5874
    %v7104 = vunpack.c.h.b16 %v5874
    %v7105 = vunpack.c.l.b16 %v5875
    %v7106 = vunpack.c.l.b16 %v5876
    %v7107 = vunpack.c.h.b16 %v5876
    %v7108 = vunpack.c.l.b16 %v5877
    %v7109 = vunpack.c.h.b16 %v5877
    %v7110 = vunpack.c.l.b16 %v5878
    %v7111 = vunpack.c.h.b16 %v5878
    %v7112 = vunpack.c.l.b16 %v5879
    %v7113 = vunpack.c.l.b16 %v5880
    %v7114 = vunpack.c.h.b16 %v5880
    %v7115 = vunpack.c.l.b16 %v5881
    %v7116 = vunpack.c.h.b16 %v5881
    %v7117 = vunpack.c.l.b16 %v5882
    %v7118 = vunpack.c.h.b16 %v5882
    %v7119 = vunpack.c.l.b16 %v5883
    %v7120 = vunpack.c.l.b16 %v5884
    %v7121 = vunpack.c.h.b16 %v5884
    %v7122 = vunpack.c.l.b16 %v5885
    %v7123 = vunpack.c.h.b16 %v5885
    %v7124 = vunpack.c.l.b16 %v5886
    %v7125 = vunpack.c.h.b16 %v5886
    %v7126 = vunpack.c.l.b16 %v5887
    %v7127 = vunpack.c.l.b16 %v5888
    %v7128 = vunpack.c.h.b16 %v5888
    %v7129 = vunpack.c.l.b16 %v5889
    %v7130 = vunpack.c.h.b16 %v5889
    %v7131 = vunpack.c.l.b16 %v5890
    %v7132 = vunpack.c.h.b16 %v5890
    %v7133 = vunpack.c.l.b16 %v5891
    %v7134 = vunpack.c.l.b16 %v5892
    %v7135 = vunpack.c.h.b16 %v5892
    %v7136 = vunpack.c.l.b16 %v5893
    %v7137 = vunpack.c.h.b16 %v5893
    %v7138 = vunpack.c.l.b16 %v5894
    %v7139 = vunpack.c.h.b16 %v5894
    %v7140 = vunpack.c.l.b16 %v5895
    %v7141 = vunpack.c.l.b16 %v5896
    %v7142 = vunpack.c.h.b16 %v5896
    %v7143 = vunpack.c.l.b16 %v5897
    %v7144 = vunpack.c.h.b16 %v5897
    %v7145 = vunpack.c.l.b16 %v5898
    %v7146 = vunpack.c.h.b16 %v5898
    %v7147 = vunpack.c.l.b16 %v5899
    %v7148 = vunpack.c.l.b16 %v5900
    %v7149 = vunpack.c.h.b16 %v5900
    %v7150 = vunpack.c.l.b16 %v5901
    %v7151 = vunpack.c.h.b16 %v5901
    %v7152 = vunpack.c.l.b16 %v5902
    %v7153 = vunpack.c.h.b16 %v5902
    %v7154 = vunpack.c.l.b16 %v5903
    %v7155 = vunpack.c.l.b16 %v5904
    %v7156 = vunpack.c.h.b16 %v5904
    %v7157 = vunpack.c.l.b16 %v5905
    %v7158 = vunpack.c.h.b16 %v5905
    %v7159 = vunpack.c.l.b16 %v5906
    %v7160 = vunpack.c.h.b16 %v5906
    %v7161 = vunpack.c.l.b16 %v5907
    %v7162 = vunpack.c.l.b16 %v5908
    %v7163 = vunpack.c.h.b16 %v5908
    %v7164 = vunpack.c.l.b16 %v5909
    %v7165 = vunpack.c.h.b16 %v5909
    %v7166 = vunpack.c.l.b16 %v5910
    %v7167 = vunpack.c.h.b16 %v5910
    %v7168 = vunpack.c.l.b16 %v5911
    %v7169 = vunpack.c.l.b16 %v5912
    %v7170 = vunpack.c.h.b16 %v5912
    %v7171 = vunpack.c.l.b16 %v5913
    %v7172 = vunpack.c.h.b16 %v5913
    %v7173 = vunpack.c.l.b16 %v5914
    %v7174 = vunpack.c.h.b16 %v5914
    %v7175 = vunpack.c.l.b16 %v5915
    %v7176 = vunpack.c.l.b16 %v5916
    %v7177 = vunpack.c.h.b16 %v5916
    %v7178 = vunpack.c.l.b16 %v5917
    %v7179 = vunpack.c.h.b16 %v5917
    %v7180 = vunpack.c.l.b16 %v5918
    %v7181 = vunpack.c.h.b16 %v5918
    %v7182 = vunpack.c.l.b16 %v5919
    %v7183 = vunpack.c.l.b16 %v5920
    %v7184 = vunpack.c.h.b16 %v5920
    %v7185 = vunpack.c.l.b16 %v5921
    %v7186 = vunpack.c.h.b16 %v5921
    %v7187 = vunpack.c.l.b16 %v5922
    %v7188 = vunpack.c.h.b16 %v5922
    %v7189 = vunpack.c.l.b16 %v5923
    %v7190 = vunpack.c.l.b16 %v5924
    %v7191 = vunpack.c.h.b16 %v5924
    %v7192 = vunpack.c.l.b16 %v5925
    %v7193 = vunpack.c.h.b16 %v5925
    %v7194 = vunpack.c.l.b16 %v5926
    %v7195 = vunpack.c.h.b16 %v5926
    %v7196 = vunpack.c.l.b16 %v5927
    %v7197 = vpack.c.b16 %v6420, %v6413
    %v7198 = vpack.c.b16 %v6421, %v6414
    %v7199 = vpack.c.b16 %v6422, %v6415
    %v7200 = vpack.c.b16 %v6423, %v6416
    %v7201 = vpack.c.b16 %v6424, %v6417
    %v7202 = vpack.c.b16 %v6425, %v6418
    %v7203 = vpack.c.b16 %v6426, %v6419
    %v7204 = vpack.c.b16 %v6434, %v6427
    %v7205 = vpack.c.b16 %v6435, %v6428
    %v7206 = vpack.c.b16 %v6436, %v6429
    %v7207 = vpack.c.b16 %v6437, %v6430
    %v7208 = vpack.c.b16 %v6438, %v6431
    %v7209 = vpack.c.b16 %v6439, %v6432
    %v7210 = vpack.c.b16 %v6440, %v6433
    %v7211 = vpack.c.b16 %v6448, %v6441
    %v7212 = vpack.c.b16 %v6449, %v6442
    %v7213 = vpack.c.b16 %v6450, %v6443
    %v7214 = vpack.c.b16 %v6451, %v6444
    %v7215 = vpack.c.b16 %v6452, %v6445
    %v7216 = vpack.c.b16 %v6453, %v6446
    %v7217 = vpack.c.b16 %v6454, %v6447
    %v7218 = vpack.c.b16 %v6462, %v6455
    %v7219 = vpack.c.b16 %v6463, %v6456
    %v7220 = vpack.c.b16 %v6464, %v6457
    %v7221 = vpack.c.b16 %v6465, %v6458
    %v7222 = vpack.c.b16 %v6466, %v6459
    %v7223 = vpack.c.b16 %v6467, %v6460
    %v7224 = vpack.c.b16 %v6468, %v6461
    %v7225 = vpack.c.b16 %v6476, %v6469
    %v7226 = vpack.c.b16 %v6477, %v6470
    %v7227 = vpack.c.b16 %v6478, %v6471
    %v7228 = vpack.c.b16 %v6479, %v6472
    %v7229 = vpack.c.b16 %v6480, %v6473
    %v7230 = vpack.c.b16 %v6481, %v6474
    %v7231 = vpack.c.b16 %v6482, %v6475
    %v7232 = vpack.c.b16 %v6490, %v6483
    %v7233 = vpack.c.b16 %v6491, %v6484
    %v7234 = vpack.c.b16 %v6492, %v6485
    %v7235 = vpack.c.b16 %v6493, %v6486
    %v7236 = vpack.c.b16 %v6494, %v6487
    %v7237 = vpack.c.b16 %v6495, %v6488
    %v7238 = vpack.c.b16 %v6496, %v6489
    %v7239 = vpack.c.b16 %v6504, %v6497
    %v7240 = vpack.c.b16 %v6505, %v6498
    %v7241 = vpack.c.b16 %v6506, %v6499
    %v7242 = vpack.c.b16 %v6507, %v6500
    %v7243 = vpack.c.b16 %v6508, %v6501
    %v7244 = vpack.c.b16 %v6509, %v6502
    %v7245 = vpack.c.b16 %v6510, %v6503
    %v7246 = vpack.c.b16 %v6518, %v6511
    %v7247 = vpack.c.b16 %v6519, %v6512
    %v7248 = vpack.c.b16 %v6520, %v6513
    %v7249 = vpack.c.b16 %v6521, %v6514
    %v7250 = vpack.c.b16 %v6522, %v6515
    %v7251 = vpack.c.b16 %v6523, %v6516
    %v7252 = vpack.c.b16 %v6524, %v6517
    %v7253 = vpack.c.b16 %v6532, %v6525
    %v7254 = vpack.c.b16 %v6533, %v6526
    %v7255 = vpack.c.b16 %v6534, %v6527
    %v7256 = vpack.c.b16 %v6535, %v6528
    %v7257 = vpack.c.b16 %v6536, %v6529
    %v7258 = vpack.c.b16 %v6537, %v6530
    %v7259 = vpack.c.b16 %v6538, %v6531
    %v7260 = vpack.c.b16 %v6546, %v6539
    %v7261 = vpack.c.b16 %v6547, %v6540
    %v7262 = vpack.c.b16 %v6548, %v6541
    %v7263 = vpack.c.b16 %v6549, %v6542
    %v7264 = vpack.c.b16 %v6550, %v6543
    %v7265 = vpack.c.b16 %v6551, %v6544
    %v7266 = vpack.c.b16 %v6552, %v6545
    %v7267 = vpack.c.b16 %v6560, %v6553
    %v7268 = vpack.c.b16 %v6561, %v6554
    %v7269 = vpack.c.b16 %v6562, %v6555
    %v7270 = vpack.c.b16 %v6563, %v6556
    %v7271 = vpack.c.b16 %v6564, %v6557
    %v7272 = vpack.c.b16 %v6565, %v6558
    %v7273 = vpack.c.b16 %v6566, %v6559
    %v7274 = vpack.c.b16 %v6574, %v6567
    %v7275 = vpack.c.b16 %v6575, %v6568
    %v7276 = vpack.c.b16 %v6576, %v6569
    %v7277 = vpack.c.b16 %v6577, %v6570
    %v7278 = vpack.c.b16 %v6578, %v6571
    %v7279 = vpack.c.b16 %v6579, %v6572
    %v7280 = vpack.c.b16 %v6580, %v6573
    %v7281 = vpack.c.b16 %v6588, %v6581
    %v7282 = vpack.c.b16 %v6589, %v6582
    %v7283 = vpack.c.b16 %v6590, %v6583
    %v7284 = vpack.c.b16 %v6591, %v6584
    %v7285 = vpack.c.b16 %v6592, %v6585
    %v7286 = vpack.c.b16 %v6593, %v6586
    %v7287 = vpack.c.b16 %v6594, %v6587
    %v7288 = vpack.c.b16 %v6602, %v6595
    %v7289 = vpack.c.b16 %v6603, %v6596
    %v7290 = vpack.c.b16 %v6604, %v6597
    %v7291 = vpack.c.b16 %v6605, %v6598
    %v7292 = vpack.c.b16 %v6606, %v6599
    %v7293 = vpack.c.b16 %v6607, %v6600
    %v7294 = vpack.c.b16 %v6608, %v6601
    %v7295 = vpack.c.b16 %v6616, %v6609
    %v7296 = vpack.c.b16 %v6617, %v6610
    %v7297 = vpack.c.b16 %v6618, %v6611
    %v7298 = vpack.c.b16 %v6619, %v6612
    %v7299 = vpack.c.b16 %v6620, %v6613
    %v7300 = vpack.c.b16 %v6621, %v6614
    %v7301 = vpack.c.b16 %v6622, %v6615
    %v7302 = vpack.c.b16 %v6630, %v6623
    %v7303 = vpack.c.b16 %v6631, %v6624
    %v7304 = vpack.c.b16 %v6632, %v6625
    %v7305 = vpack.c.b16 %v6633, %v6626
    %v7306 = vpack.c.b16 %v6634, %v6627
    %v7307 = vpack.c.b16 %v6635, %v6628
    %v7308 = vpack.c.b16 %v6636, %v6629
    %v7309 = vpack.c.b16 %v6644, %v6637
    %v7310 = vpack.c.b16 %v6645, %v6638
    %v7311 = vpack.c.b16 %v6646, %v6639
    %v7312 = vpack.c.b16 %v6647, %v6640
    %v7313 = vpack.c.b16 %v6648, %v6641
    %v7314 = vpack.c.b16 %v6649, %v6642
    %v7315 = vpack.c.b16 %v6650, %v6643
    %v7316 = vpack.c.b16 %v6658, %v6651
    %v7317 = vpack.c.b16 %v6659, %v6652
    %v7318 = vpack.c.b16 %v6660, %v6653
    %v7319 = vpack.c.b16 %v6661, %v6654
    %v7320 = vpack.c.b16 %v6662, %v6655
    %v7321 = vpack.c.b16 %v6663, %v6656
    %v7322 = vpack.c.b16 %v6664, %v6657
    %v7323 = vpack.c.b16 %v6672, %v6665
    %v7324 = vpack.c.b16 %v6673, %v6666
    %v7325 = vpack.c.b16 %v6674, %v6667
    %v7326 = vpack.c.b16 %v6675, %v6668
    %v7327 = vpack.c.b16 %v6676, %v6669
    %v7328 = vpack.c.b16 %v6677, %v6670
    %v7329 = vpack.c.b16 %v6678, %v6671
    %v7330 = vpack.c.b16 %v6686, %v6679
    %v7331 = vpack.c.b16 %v6687, %v6680
    %v7332 = vpack.c.b16 %v6688, %v6681
    %v7333 = vpack.c.b16 %v6689, %v6682
    %v7334 = vpack.c.b16 %v6690, %v6683
    %v7335 = vpack.c.b16 %v6691, %v6684
    %v7336 = vpack.c.b16 %v6692, %v6685
    %v7337 = vpack.c.b16 %v6700, %v6693
    %v7338 = vpack.c.b16 %v6701, %v6694
    %v7339 = vpack.c.b16 %v6702, %v6695
    %v7340 = vpack.c.b16 %v6703, %v6696
    %v7341 = vpack.c.b16 %v6704, %v6697
    %v7342 = vpack.c.b16 %v6705, %v6698
    %v7343 = vpack.c.b16 %v6706, %v6699
    %v7344 = vpack.c.b16 %v6714, %v6707
    %v7345 = vpack.c.b16 %v6715, %v6708
    %v7346 = vpack.c.b16 %v6716, %v6709
    %v7347 = vpack.c.b16 %v6717, %v6710
    %v7348 = vpack.c.b16 %v6718, %v6711
    %v7349 = vpack.c.b16 %v6719, %v6712
    %v7350 = vpack.c.b16 %v6720, %v6713
    %v7351 = vpack.c.b16 %v6728, %v6721
    %v7352 = vpack.c.b16 %v6729, %v6722
    %v7353 = vpack.c.b16 %v6730, %v6723
    %v7354 = vpack.c.b16 %v6731, %v6724
    %v7355 = vpack.c.b16 %v6732, %v6725
    %v7356 = vpack.c.b16 %v6733, %v6726
    %v7357 = vpack.c.b16 %v6734, %v6727
    %v7358 = vpack.c.b16 %v6742, %v6735
    %v7359 = vpack.c.b16 %v6743, %v6736
    %v7360 = vpack.c.b16 %v6744, %v6737
    %v7361 = vpack.c.b16 %v6745, %v6738
    %v7362 = vpack.c.b16 %v6746, %v6739
    %v7363 = vpack.c.b16 %v6747, %v6740
    %v7364 = vpack.c.b16 %v6748, %v6741
    %v7365 = vpack.c.b16 %v6756, %v6749
    %v7366 = vpack.c.b16 %v6757, %v6750
    %v7367 = vpack.c.b16 %v6758, %v6751
    %v7368 = vpack.c.b16 %v6759, %v6752
    %v7369 = vpack.c.b16 %v6760, %v6753
    %v7370 = vpack.c.b16 %v6761, %v6754
    %v7371 = vpack.c.b16 %v6762, %v6755
    %v7372 = vpack.c.b16 %v6770, %v6763
    %v7373 = vpack.c.b16 %v6771, %v6764
    %v7374 = vpack.c.b16 %v6772, %v6765
    %v7375 = vpack.c.b16 %v6773, %v6766
    %v7376 = vpack.c.b16 %v6774, %v6767
    %v7377 = vpack.c.b16 %v6775, %v6768
    %v7378 = vpack.c.b16 %v6776, %v6769
    %v7379 = vpack.c.b16 %v6784, %v6777
    %v7380 = vpack.c.b16 %v6785, %v6778
    %v7381 = vpack.c.b16 %v6786, %v6779
    %v7382 = vpack.c.b16 %v6787, %v6780
    %v7383 = vpack.c.b16 %v6788, %v6781
    %v7384 = vpack.c.b16 %v6789, %v6782
    %v7385 = vpack.c.b16 %v6790, %v6783
    %v7386 = vpack.c.b16 %v6798, %v6791
    %v7387 = vpack.c.b16 %v6799, %v6792
    %v7388 = vpack.c.b16 %v6800, %v6793
    %v7389 = vpack.c.b16 %v6801, %v6794
    %v7390 = vpack.c.b16 %v6802, %v6795
    %v7391 = vpack.c.b16 %v6803, %v6796
    %v7392 = vpack.c.b16 %v6804, %v6797
    %v7393 = vpack.c.b16 %v6812, %v6805
    %v7394 = vpack.c.b16 %v6813, %v6806
    %v7395 = vpack.c.b16 %v6814, %v6807
    %v7396 = vpack.c.b16 %v6815, %v6808
    %v7397 = vpack.c.b16 %v6816, %v6809
    %v7398 = vpack.c.b16 %v6817, %v6810
    %v7399 = vpack.c.b16 %v6818, %v6811
    %v7400 = vpack.c.b16 %v6826, %v6819
    %v7401 = vpack.c.b16 %v6827, %v6820
    %v7402 = vpack.c.b16 %v6828, %v6821
    %v7403 = vpack.c.b16 %v6829, %v6822
    %v7404 = vpack.c.b16 %v6830, %v6823
    %v7405 = vpack.c.b16 %v6831, %v6824
    %v7406 = vpack.c.b16 %v6832, %v6825
    %v7407 = vpack.c.b16 %v6840, %v6833
    %v7408 = vpack.c.b16 %v6841, %v6834
    %v7409 = vpack.c.b16 %v6842, %v6835
    %v7410 = vpack.c.b16 %v6843, %v6836
    %v7411 = vpack.c.b16 %v6844, %v6837
    %v7412 = vpack.c.b16 %v6845, %v6838
    %v7413 = vpack.c.b16 %v6846, %v6839
    %v7414 = vpack.c.b16 %v6854, %v6847
    %v7415 = vpack.c.b16 %v6855, %v6848
    %v7416 = vpack.c.b16 %v6856, %v6849
    %v7417 = vpack.c.b16 %v6857, %v6850
    %v7418 = vpack.c.b16 %v6858, %v6851
    %v7419 = vpack.c.b16 %v6859, %v6852
    %v7420 = vpack.c.b16 %v6860, %v6853
    %v7421 = vpack.c.b16 %v6868, %v6861
    %v7422 = vpack.c.b16 %v6869, %v6862
    %v7423 = vpack.c.b16 %v6870, %v6863
    %v7424 = vpack.c.b16 %v6871, %v6864
    %v7425 = vpack.c.b16 %v6872, %v6865
    %v7426 = vpack.c.b16 %v6873, %v6866
    %v7427 = vpack.c.b16 %v6874, %v6867
    %v7428 = vpack.c.b16 %v6882, %v6875
    %v7429 = vpack.c.b16 %v6883, %v6876
    %v7430 = vpack.c.b16 %v6884, %v6877
    %v7431 = vpack.c.b16 %v6885, %v6878
    %v7432 = vpack.c.b16 %v6886, %v6879
    %v7433 = vpack.c.b16 %v6887, %v6880
    %v7434 = vpack.c.b16 %v6888, %v6881
    %v7435 = vpack.c.b16 %v6896, %v6889
    %v7436 = vpack.c.b16 %v6897, %v6890
    %v7437 = vpack.c.b16 %v6898, %v6891
    %v7438 = vpack.c.b16 %v6899, %v6892
    %v7439 = vpack.c.b16 %v6900, %v6893
    %v7440 = vpack.c.b16 %v6901, %v6894
    %v7441 = vpack.c.b16 %v6902, %v6895
    %v7442 = vpack.c.b16 %v6910, %v6903
    %v7443 = vpack.c.b16 %v6911, %v6904
    %v7444 = vpack.c.b16 %v6912, %v6905
    %v7445 = vpack.c.b16 %v6913, %v6906
    %v7446 = vpack.c.b16 %v6914, %v6907
    %v7447 = vpack.c.b16 %v6915, %v6908
    %v7448 = vpack.c.b16 %v6916, %v6909
    %v7449 = vpack.c.b16 %v6924, %v6917
    %v7450 = vpack.c.b16 %v6925, %v6918
    %v7451 = vpack.c.b16 %v6926, %v6919
    %v7452 = vpack.c.b16 %v6927, %v6920
    %v7453 = vpack.c.b16 %v6928, %v6921
    %v7454 = vpack.c.b16 %v6929, %v6922
    %v7455 = vpack.c.b16 %v6930, %v6923
    %v7456 = vpack.c.b16 %v6938, %v6931
    %v7457 = vpack.c.b16 %v6939, %v6932
    %v7458 = vpack.c.b16 %v6940, %v6933
    %v7459 = vpack.c.b16 %v6941, %v6934
    %v7460 = vpack.c.b16 %v6942, %v6935
    %v7461 = vpack.c.b16 %v6943, %v6936
    %v7462 = vpack.c.b16 %v6944, %v6937
    %v7463 = vpack.c.b16 %v6952, %v6945
    %v7464 = vpack.c.b16 %v6953, %v6946
    %v7465 = vpack.c.b16 %v6954, %v6947
    %v7466 = vpack.c.b16 %v6955, %v6948
    %v7467 = vpack.c.b16 %v6956, %v6949
    %v7468 = vpack.c.b16 %v6957, %v6950
    %v7469 = vpack.c.b16 %v6958, %v6951
    %v7470 = vpack.c.b16 %v6966, %v6959
    %v7471 = vpack.c.b16 %v6967, %v6960
    %v7472 = vpack.c.b16 %v6968, %v6961
    %v7473 = vpack.c.b16 %v6969, %v6962
    %v7474 = vpack.c.b16 %v6970, %v6963
    %v7475 = vpack.c.b16 %v6971, %v6964
    %v7476 = vpack.c.b16 %v6972, %v6965
    %v7477 = vpack.c.b16 %v6980, %v6973
    %v7478 = vpack.c.b16 %v6981, %v6974
    %v7479 = vpack.c.b16 %v6982, %v6975
    %v7480 = vpack.c.b16 %v6983, %v6976
    %v7481 = vpack.c.b16 %v6984, %v6977
    %v7482 = vpack.c.b16 %v6985, %v6978
    %v7483 = vpack.c.b16 %v6986, %v6979
    %v7484 = vpack.c.b16 %v6994, %v6987
    %v7485 = vpack.c.b16 %v6995, %v6988
    %v7486 = vpack.c.b16 %v6996, %v6989
    %v7487 = vpack.c.b16 %v6997, %v6990
    %v7488 = vpack.c.b16 %v6998, %v6991
    %v7489 = vpack.c.b16 %v6999, %v6992
    %v7490 = vpack.c.b16 %v7000, %v6993
    %v7491 = vpack.c.b16 %v7008, %v7001
    %v7492 = vpack.c.b16 %v7009, %v7002
    %v7493 = vpack.c.b16 %v7010, %v7003
    %v7494 = vpack.c.b16 %v7011, %v7004
    %v7495 = vpack.c.b16 %v7012, %v7005
    %v7496 = vpack.c.b16 %v7013, %v7006
    %v7497 = vpack.c.b16 %v7014, %v7007
    %v7498 = vpack.c.b16 %v7022, %v7015
    %v7499 = vpack.c.b16 %v7023, %v7016
    %v7500 = vpack.c.b16 %v7024, %v7017
    %v7501 = vpack.c.b16 %v7025, %v7018
    %v7502 = vpack.c.b16 %v7026, %v7019
    %v7503 = vpack.c.b16 %v7027, %v7020
    %v7504 = vpack.c.b16 %v7028, %v7021
    %v7505 = vpack.c.b16 %v7036, %v7029
    %v7506 = vpack.c.b16 %v7037, %v7030
    %v7507 = vpack.c.b16 %v7038, %v7031
    %v7508 = vpack.c.b16 %v7039, %v7032
    %v7509 = vpack.c.b16 %v7040, %v7033
    %v7510 = vpack.c.b16 %v7041, %v7034
    %v7511 = vpack.c.b16 %v7042, %v7035
    %v7512 = vpack.c.b16 %v7050, %v7043
    %v7513 = vpack.c.b16 %v7051, %v7044
    %v7514 = vpack.c.b16 %v7052, %v7045
    %v7515 = vpack.c.b16 %v7053, %v7046
    %v7516 = vpack.c.b16 %v7054, %v7047
    %v7517 = vpack.c.b16 %v7055, %v7048
    %v7518 = vpack.c.b16 %v7056, %v7049
    %v7519 = vpack.c.b16 %v7064, %v7057
    %v7520 = vpack.c.b16 %v7065, %v7058
    %v7521 = vpack.c.b16 %v7066, %v7059
    %v7522 = vpack.c.b16 %v7067, %v7060
    %v7523 = vpack.c.b16 %v7068, %v7061
    %v7524 = vpack.c.b16 %v7069, %v7062
    %v7525 = vpack.c.b16 %v7070, %v7063
    %v7526 = vpack.c.b16 %v7078, %v7071
    %v7527 = vpack.c.b16 %v7079, %v7072
    %v7528 = vpack.c.b16 %v7080, %v7073
    %v7529 = vpack.c.b16 %v7081, %v7074
    %v7530 = vpack.c.b16 %v7082, %v7075
    %v7531 = vpack.c.b16 %v7083, %v7076
    %v7532 = vpack.c.b16 %v7084, %v7077
    %v7533 = vpack.c.b16 %v7092, %v7085
    %v7534 = vpack.c.b16 %v7093, %v7086
    %v7535 = vpack.c.b16 %v7094, %v7087
    %v7536 = vpack.c.b16 %v7095, %v7088
    %v7537 = vpack.c.b16 %v7096, %v7089
    %v7538 = vpack.c.b16 %v7097, %v7090
    %v7539 = vpack.c.b16 %v7098, %v7091
    %v7540 = vpack.c.b16 %v7106, %v7099
    %v7541 = vpack.c.b16 %v7107, %v7100
    %v7542 = vpack.c.b16 %v7108, %v7101
    %v7543 = vpack.c.b16 %v7109, %v7102
    %v7544 = vpack.c.b16 %v7110, %v7103
    %v7545 = vpack.c.b16 %v7111, %v7104
    %v7546 = vpack.c.b16 %v7112, %v7105
    %v7547 = vpack.c.b16 %v7120, %v7113
    %v7548 = vpack.c.b16 %v7121, %v7114
    %v7549 = vpack.c.b16 %v7122, %v7115
    %v7550 = vpack.c.b16 %v7123, %v7116
    %v7551 = vpack.c.b16 %v7124, %v7117
    %v7552 = vpack.c.b16 %v7125, %v7118
    %v7553 = vpack.c.b16 %v7126, %v7119
    %v7554 = vpack.c.b16 %v7134, %v7127
    %v7555 = vpack.c.b16 %v7135, %v7128
    %v7556 = vpack.c.b16 %v7136, %v7129
    %v7557 = vpack.c.b16 %v7137, %v7130
    %v7558 = vpack.c.b16 %v7138, %v7131
    %v7559 = vpack.c.b16 %v7139, %v7132
    %v7560 = vpack.c.b16 %v7140, %v7133
    %v7561 = vpack.c.b16 %v7148, %v7141
    %v7562 = vpack.c.b16 %v7149, %v7142
    %v7563 = vpack.c.b16 %v7150, %v7143
    %v7564 = vpack.c.b16 %v7151, %v7144
    %v7565 = vpack.c.b16 %v7152, %v7145
    %v7566 = vpack.c.b16 %v7153, %v7146
    %v7567 = vpack.c.b16 %v7154, %v7147
    %v7568 = vpack.c.b16 %v7162, %v7155
    %v7569 = vpack.c.b16 %v7163, %v7156
    %v7570 = vpack.c.b16 %v7164, %v7157
    %v7571 = vpack.c.b16 %v7165, %v7158
    %v7572 = vpack.c.b16 %v7166, %v7159
    %v7573 = vpack.c.b16 %v7167, %v7160
    %v7574 = vpack.c.b16 %v7168, %v7161
    %v7575 = vpack.c.b16 %v7176, %v7169
    %v7576 = vpack.c.b16 %v7177, %v7170
    %v7577 = vpack.c.b16 %v7178, %v7171
    %v7578 = vpack.c.b16 %v7179, %v7172
    %v7579 = vpack.c.b16 %v7180, %v7173
    %v7580 = vpack.c.b16 %v7181, %v7174
    %v7581 = vpack.c.b16 %v7182, %v7175
    %v7582 = vpack.c.b16 %v7190, %v7183
    %v7583 = vpack.c.b16 %v7191, %v7184
    %v7584 = vpack.c.b16 %v7192, %v7185
    %v7585 = vpack.c.b16 %v7193, %v7186
    %v7586 = vpack.c.b16 %v7194, %v7187
    %v7587 = vpack.c.b16 %v7195, %v7188
    %v7588 = vpack.c.b16 %v7196, %v7189
    %7981 = vmatprep.subr.bf16.mxu0 %v7247
    %7982 = vmatpush1.bf16.msra.mxu0 %v7246
    %7983 = vmatprep.subr.bf16.mxu0 %v7240
    %7984 = vmatpush1.bf16.msra.mxu0 %v7239
    %7985 = vmatprep.subr.bf16.mxu0 %v7233
    %7986 = vmatpush1.bf16.msra.mxu0 %v7232
    %7987 = vmatprep.subr.bf16.mxu0 %v7226
    %7988 = vmatpush1.bf16.msra.mxu0 %v7225
    %7989 = vmatprep.subr.bf16.mxu0 %v7219
    %7990 = vmatpush1.bf16.msra.mxu0 %v7218
    %7991 = vmatprep.subr.bf16.mxu0 %v7212
    %7992 = vmatpush1.bf16.msra.mxu0 %v7211
    %7993 = vmatprep.subr.bf16.mxu0 %v7205
    %7994 = vmatpush1.bf16.msra.mxu0 %v7204
    %7995 = vmatprep.subr.bf16.mxu0 %v7198
    %7996 = vmatpush1.bf16.msra.mxu0 %v7197
    %7997 = vmatprep.subr.bf16.mxu0 %v7303
    %7998 = vmatpush2.bf16.msra.mxu0 %v7302
    %7999 = vmatprep.subr.bf16.mxu0 %v7296
    %8000 = vmatpush2.bf16.msra.mxu0 %v7295
    %8001 = vmatprep.subr.bf16.mxu0 %v7289
    %8002 = vmatpush2.bf16.msra.mxu0 %v7288
    %8003 = vmatprep.subr.bf16.mxu0 %v7282
    %8004 = vmatpush2.bf16.msra.mxu0 %v7281
    %8005 = vmatprep.subr.bf16.mxu0 %v7275
    %8006 = vmatpush2.bf16.msra.mxu0 %v7274
    %8007 = vmatprep.subr.bf16.mxu0 %v7268
    %8008 = vmatpush2.bf16.msra.mxu0 %v7267
    %8009 = vmatprep.subr.bf16.mxu0 %v7261
    %8010 = vmatpush2.bf16.msra.mxu0 %v7260
    %8011 = vmatprep.subr.bf16.mxu0 %v7254
    %8012 = vmatpush2.bf16.msra.mxu0 %v7253
    %8013 = vmatprep.mubr.bf16.mxu0 %v5369
    %8014 = vmatmul.mubr.bf16.gmra.mxu0 %v5368
    %v8015 = vpop.f32.mrf.mxu0
    %v8016 = vadd.f32 %v5933, %v8015
    %v8017 = vpop.f32.mrf.mxu0
    %v8018 = vadd.f32 %v5937, %v8017
    %v8019 = vpop.f32.mrf.mxu0
    %v8020 = vadd.f32 %v5933, %v8019
    %v8021 = vpop.f32.mrf.mxu0
    %v8022 = vadd.f32 %v5937, %v8021
    %8023 = vmatprep.mubr.bf16.mxu0 %v5376
    %8024 = vmatmul.mubr.bf16.gmra.mxu0 %v5375
    %v8025 = vpop.f32.mrf.mxu0
    %v8026 = vadd.f32 %v5933, %v8025
    %v8027 = vpop.f32.mrf.mxu0
    %v8028 = vadd.f32 %v5937, %v8027
    %v8029 = vpop.f32.mrf.mxu0
    %v8030 = vadd.f32 %v5933, %v8029
    %v8031 = vpop.f32.mrf.mxu0
    %v8032 = vadd.f32 %v5937, %v8031
    %8033 = vmatprep.mubr.bf16.mxu0 %v5383
    %8034 = vmatmul.mubr.bf16.gmra.mxu0 %v5382
    %v8035 = vpop.f32.mrf.mxu0
    %v8036 = vadd.f32 %v5933, %v8035
    %v8037 = vpop.f32.mrf.mxu0
    %v8038 = vadd.f32 %v5937, %v8037
    %v8039 = vpop.f32.mrf.mxu0
    %v8040 = vadd.f32 %v5933, %v8039
    %v8041 = vpop.f32.mrf.mxu0
    %v8042 = vadd.f32 %v5937, %v8041
    %8043 = vmatprep.mubr.bf16.mxu0 %v5390
    %8044 = vmatmul.mubr.bf16.gmra.mxu0 %v5389
    %v8045 = vpop.f32.mrf.mxu0
    %v8046 = vadd.f32 %v5933, %v8045
    %v8047 = vpop.f32.mrf.mxu0
    %v8048 = vadd.f32 %v5937, %v8047
    %v8049 = vpop.f32.mrf.mxu0
    %v8050 = vadd.f32 %v5933, %v8049
    %v8051 = vpop.f32.mrf.mxu0
    %v8052 = vadd.f32 %v5937, %v8051
    %8053 = vmatprep.mubr.bf16.mxu0 %v5397
    %8054 = vmatmul.mubr.bf16.gmra.mxu0 %v5396
    %v8055 = vpop.f32.mrf.mxu0
    %v8056 = vadd.f32 %v5933, %v8055
    %v8057 = vpop.f32.mrf.mxu0
    %v8058 = vadd.f32 %v5937, %v8057
    %v8059 = vpop.f32.mrf.mxu0
    %v8060 = vadd.f32 %v5933, %v8059
    %v8061 = vpop.f32.mrf.mxu0
    %v8062 = vadd.f32 %v5937, %v8061
    %8063 = vmatprep.mubr.bf16.mxu0 %v5404
    %8064 = vmatmul.mubr.bf16.gmra.mxu0 %v5403
    %v8065 = vpop.f32.mrf.mxu0
    %v8066 = vadd.f32 %v5933, %v8065
    %v8067 = vpop.f32.mrf.mxu0
    %v8068 = vadd.f32 %v5937, %v8067
    %v8069 = vpop.f32.mrf.mxu0
    %v8070 = vadd.f32 %v5933, %v8069
    %v8071 = vpop.f32.mrf.mxu0
    %v8072 = vadd.f32 %v5937, %v8071
    %8073 = vmatprep.mubr.bf16.mxu0 %v5411
    %8074 = vmatmul.mubr.bf16.gmra.mxu0 %v5410
    %v8075 = vpop.f32.mrf.mxu0
    %v8076 = vadd.f32 %v5933, %v8075
    %v8077 = vpop.f32.mrf.mxu0
    %v8078 = vadd.f32 %v5937, %v8077
    %v8079 = vpop.f32.mrf.mxu0
    %v8080 = vadd.f32 %v5933, %v8079
    %v8081 = vpop.f32.mrf.mxu0
    %v8082 = vadd.f32 %v5937, %v8081
    %8083 = vmatprep.mubr.bf16.mxu0 %v5418
    %8084 = vmatmul.mubr.bf16.gmra.mxu0 %v5417
    %v8085 = vpop.f32.mrf.mxu0
    %v8086 = vadd.f32 %v5933, %v8085
    %v8087 = vpop.f32.mrf.mxu0
    %v8088 = vadd.f32 %v5937, %v8087
    %v8089 = vpop.f32.mrf.mxu0
    %v8090 = vadd.f32 %v5933, %v8089
    %v8091 = vpop.f32.mrf.mxu0
    %v8092 = vadd.f32 %v5937, %v8091
    %8093 = vmatprep.mubr.bf16.mxu0 %v5425
    %8094 = vmatmul.mubr.bf16.gmra.mxu0 %v5424
    %v8095 = vpop.f32.mrf.mxu0
    %v8096 = vadd.f32 %v5933, %v8095
    %v8097 = vpop.f32.mrf.mxu0
    %v8098 = vadd.f32 %v5937, %v8097
    %v8099 = vpop.f32.mrf.mxu0
    %v8100 = vadd.f32 %v5933, %v8099
    %v8101 = vpop.f32.mrf.mxu0
    %v8102 = vadd.f32 %v5937, %v8101
    %8103 = vmatprep.mubr.bf16.mxu0 %v5432
    %8104 = vmatmul.mubr.bf16.gmra.mxu0 %v5431
    %v8105 = vpop.f32.mrf.mxu0
    %v8106 = vadd.f32 %v5933, %v8105
    %v8107 = vpop.f32.mrf.mxu0
    %v8108 = vadd.f32 %v5937, %v8107
    %v8109 = vpop.f32.mrf.mxu0
    %v8110 = vadd.f32 %v5933, %v8109
    %v8111 = vpop.f32.mrf.mxu0
    %v8112 = vadd.f32 %v5937, %v8111
    %8113 = vmatprep.mubr.bf16.mxu0 %v5439
    %8114 = vmatmul.mubr.bf16.gmra.mxu0 %v5438
    %v8115 = vpop.f32.mrf.mxu0
    %v8116 = vadd.f32 %v5933, %v8115
    %v8117 = vpop.f32.mrf.mxu0
    %v8118 = vadd.f32 %v5937, %v8117
    %v8119 = vpop.f32.mrf.mxu0
    %v8120 = vadd.f32 %v5933, %v8119
    %v8121 = vpop.f32.mrf.mxu0
    %v8122 = vadd.f32 %v5937, %v8121
    %8123 = vmatprep.mubr.bf16.mxu0 %v5446
    %8124 = vmatmul.mubr.bf16.gmra.mxu0 %v5445
    %v8125 = vpop.f32.mrf.mxu0
    %v8126 = vadd.f32 %v5933, %v8125
    %v8127 = vpop.f32.mrf.mxu0
    %v8128 = vadd.f32 %v5937, %v8127
    %v8129 = vpop.f32.mrf.mxu0
    %v8130 = vadd.f32 %v5933, %v8129
    %v8131 = vpop.f32.mrf.mxu0
    %v8132 = vadd.f32 %v5937, %v8131
    %8133 = vmatprep.mubr.bf16.mxu0 %v5453
    %8134 = vmatmul.mubr.bf16.gmra.mxu0 %v5452
    %v8135 = vpop.f32.mrf.mxu0
    %v8136 = vadd.f32 %v5933, %v8135
    %v8137 = vpop.f32.mrf.mxu0
    %v8138 = vadd.f32 %v5937, %v8137
    %v8139 = vpop.f32.mrf.mxu0
    %v8140 = vadd.f32 %v5933, %v8139
    %v8141 = vpop.f32.mrf.mxu0
    %v8142 = vadd.f32 %v5937, %v8141
    %8143 = vmatprep.mubr.bf16.mxu0 %v5460
    %8144 = vmatmul.mubr.bf16.gmra.mxu0 %v5459
    %v8145 = vpop.f32.mrf.mxu0
    %v8146 = vadd.f32 %v5933, %v8145
    %v8147 = vpop.f32.mrf.mxu0
    %v8148 = vadd.f32 %v5937, %v8147
    %v8149 = vpop.f32.mrf.mxu0
    %v8150 = vadd.f32 %v5933, %v8149
    %v8151 = vpop.f32.mrf.mxu0
    %v8152 = vadd.f32 %v5937, %v8151
    %8153 = vmatprep.mubr.bf16.mxu0 %v5467
    %8154 = vmatmul.mubr.bf16.gmra.mxu0 %v5466
    %v8155 = vpop.f32.mrf.mxu0
    %v8156 = vadd.f32 %v5933, %v8155
    %v8157 = vpop.f32.mrf.mxu0
    %v8158 = vadd.f32 %v5937, %v8157
    %v8159 = vpop.f32.mrf.mxu0
    %v8160 = vadd.f32 %v5933, %v8159
    %v8161 = vpop.f32.mrf.mxu0
    %v8162 = vadd.f32 %v5937, %v8161
    %8163 = vmatprep.mubr.bf16.mxu0 %v5474
    %8164 = vmatmul.mubr.bf16.gmra.mxu0 %v5473
    %v8165 = vpop.f32.mrf.mxu0
    %v8166 = vadd.f32 %v5933, %v8165
    %v8167 = vpop.f32.mrf.mxu0
    %v8168 = vadd.f32 %v5937, %v8167
    %v8169 = vpop.f32.mrf.mxu0
    %v8170 = vadd.f32 %v5933, %v8169
    %v8171 = vpop.f32.mrf.mxu0
    %v8172 = vadd.f32 %v5937, %v8171
    %8173 = vdwg.mxu0
    %8174 = vmatprep.subr.bf16.mxu0 %v7359
    %8175 = vmatpush1.bf16.msra.mxu0 %v7358
    %8176 = vmatprep.subr.bf16.mxu0 %v7352
    %8177 = vmatpush1.bf16.msra.mxu0 %v7351
    %8178 = vmatprep.subr.bf16.mxu0 %v7345
    %8179 = vmatpush1.bf16.msra.mxu0 %v7344
    %8180 = vmatprep.subr.bf16.mxu0 %v7338
    %8181 = vmatpush1.bf16.msra.mxu0 %v7337
    %8182 = vmatprep.subr.bf16.mxu0 %v7331
    %8183 = vmatpush1.bf16.msra.mxu0 %v7330
    %8184 = vmatprep.subr.bf16.mxu0 %v7324
    %8185 = vmatpush1.bf16.msra.mxu0 %v7323
    %8186 = vmatprep.subr.bf16.mxu0 %v7317
    %8187 = vmatpush1.bf16.msra.mxu0 %v7316
    %8188 = vmatprep.subr.bf16.mxu0 %v7310
    %8189 = vmatpush1.bf16.msra.mxu0 %v7309
    %8190 = vmatprep.subr.bf16.mxu0 %v7415
    %8191 = vmatpush2.bf16.msra.mxu0 %v7414
    %8192 = vmatprep.subr.bf16.mxu0 %v7408
    %8193 = vmatpush2.bf16.msra.mxu0 %v7407
    %8194 = vmatprep.subr.bf16.mxu0 %v7401
    %8195 = vmatpush2.bf16.msra.mxu0 %v7400
    %8196 = vmatprep.subr.bf16.mxu0 %v7394
    %8197 = vmatpush2.bf16.msra.mxu0 %v7393
    %8198 = vmatprep.subr.bf16.mxu0 %v7387
    %8199 = vmatpush2.bf16.msra.mxu0 %v7386
    %8200 = vmatprep.subr.bf16.mxu0 %v7380
    %8201 = vmatpush2.bf16.msra.mxu0 %v7379
    %8202 = vmatprep.subr.bf16.mxu0 %v7373
    %8203 = vmatpush2.bf16.msra.mxu0 %v7372
    %8204 = vmatprep.subr.bf16.mxu0 %v7366
    %8205 = vmatpush2.bf16.msra.mxu0 %v7365
    %8206 = vmatprep.mubr.bf16.mxu0 %v5371
    %8207 = vmatmul.mubr.bf16.gmra.mxu0 %v5370
    %v8208 = vpop.f32.mrf.mxu0
    %v8209 = vadd.f32 %v8016, %v8208
    %v8210 = vpop.f32.mrf.mxu0
    %v8211 = vadd.f32 %v8018, %v8210
    %v8212 = vpop.f32.mrf.mxu0
    %v8213 = vadd.f32 %v8020, %v8212
    %v8214 = vpop.f32.mrf.mxu0
    %v8215 = vadd.f32 %v8022, %v8214
    %8216 = vmatprep.mubr.bf16.mxu0 %v5378
    %8217 = vmatmul.mubr.bf16.gmra.mxu0 %v5377
    %v8218 = vpop.f32.mrf.mxu0
    %v8219 = vadd.f32 %v8026, %v8218
    %v8220 = vpop.f32.mrf.mxu0
    %v8221 = vadd.f32 %v8028, %v8220
    %v8222 = vpop.f32.mrf.mxu0
    %v8223 = vadd.f32 %v8030, %v8222
    %v8224 = vpop.f32.mrf.mxu0
    %v8225 = vadd.f32 %v8032, %v8224
    %8226 = vmatprep.mubr.bf16.mxu0 %v5385
    %8227 = vmatmul.mubr.bf16.gmra.mxu0 %v5384
    %v8228 = vpop.f32.mrf.mxu0
    %v8229 = vadd.f32 %v8036, %v8228
    %v8230 = vpop.f32.mrf.mxu0
    %v8231 = vadd.f32 %v8038, %v8230
    %v8232 = vpop.f32.mrf.mxu0
    %v8233 = vadd.f32 %v8040, %v8232
    %v8234 = vpop.f32.mrf.mxu0
    %v8235 = vadd.f32 %v8042, %v8234
    %8236 = vmatprep.mubr.bf16.mxu0 %v5392
    %8237 = vmatmul.mubr.bf16.gmra.mxu0 %v5391
    %v8238 = vpop.f32.mrf.mxu0
    %v8239 = vadd.f32 %v8046, %v8238
    %v8240 = vpop.f32.mrf.mxu0
    %v8241 = vadd.f32 %v8048, %v8240
    %v8242 = vpop.f32.mrf.mxu0
    %v8243 = vadd.f32 %v8050, %v8242
    %v8244 = vpop.f32.mrf.mxu0
    %v8245 = vadd.f32 %v8052, %v8244
    %8246 = vmatprep.mubr.bf16.mxu0 %v5399
    %8247 = vmatmul.mubr.bf16.gmra.mxu0 %v5398
    %v8248 = vpop.f32.mrf.mxu0
    %v8249 = vadd.f32 %v8056, %v8248
    %v8250 = vpop.f32.mrf.mxu0
    %v8251 = vadd.f32 %v8058, %v8250
    %v8252 = vpop.f32.mrf.mxu0
    %v8253 = vadd.f32 %v8060, %v8252
    %v8254 = vpop.f32.mrf.mxu0
    %v8255 = vadd.f32 %v8062, %v8254
    %8256 = vmatprep.mubr.bf16.mxu0 %v5406
    %8257 = vmatmul.mubr.bf16.gmra.mxu0 %v5405
    %v8258 = vpop.f32.mrf.mxu0
    %v8259 = vadd.f32 %v8066, %v8258
    %v8260 = vpop.f32.mrf.mxu0
    %v8261 = vadd.f32 %v8068, %v8260
    %v8262 = vpop.f32.mrf.mxu0
    %v8263 = vadd.f32 %v8070, %v8262
    %v8264 = vpop.f32.mrf.mxu0
    %v8265 = vadd.f32 %v8072, %v8264
    %8266 = vmatprep.mubr.bf16.mxu0 %v5413
    %8267 = vmatmul.mubr.bf16.gmra.mxu0 %v5412
    %v8268 = vpop.f32.mrf.mxu0
    %v8269 = vadd.f32 %v8076, %v8268
    %v8270 = vpop.f32.mrf.mxu0
    %v8271 = vadd.f32 %v8078, %v8270
    %v8272 = vpop.f32.mrf.mxu0
    %v8273 = vadd.f32 %v8080, %v8272
    %v8274 = vpop.f32.mrf.mxu0
    %v8275 = vadd.f32 %v8082, %v8274
    %8276 = vmatprep.mubr.bf16.mxu0 %v5420
    %8277 = vmatmul.mubr.bf16.gmra.mxu0 %v5419
    %v8278 = vpop.f32.mrf.mxu0
    %v8279 = vadd.f32 %v8086, %v8278
    %v8280 = vpop.f32.mrf.mxu0
    %v8281 = vadd.f32 %v8088, %v8280
    %v8282 = vpop.f32.mrf.mxu0
    %v8283 = vadd.f32 %v8090, %v8282
    %v8284 = vpop.f32.mrf.mxu0
    %v8285 = vadd.f32 %v8092, %v8284
    %8286 = vmatprep.mubr.bf16.mxu0 %v5427
    %8287 = vmatmul.mubr.bf16.gmra.mxu0 %v5426
    %v8288 = vpop.f32.mrf.mxu0
    %v8289 = vadd.f32 %v8096, %v8288
    %v8290 = vpop.f32.mrf.mxu0
    %v8291 = vadd.f32 %v8098, %v8290
    %v8292 = vpop.f32.mrf.mxu0
    %v8293 = vadd.f32 %v8100, %v8292
    %v8294 = vpop.f32.mrf.mxu0
    %v8295 = vadd.f32 %v8102, %v8294
    %8296 = vmatprep.mubr.bf16.mxu0 %v5434
    %8297 = vmatmul.mubr.bf16.gmra.mxu0 %v5433
    %v8298 = vpop.f32.mrf.mxu0
    %v8299 = vadd.f32 %v8106, %v8298
    %v8300 = vpop.f32.mrf.mxu0
    %v8301 = vadd.f32 %v8108, %v8300
    %v8302 = vpop.f32.mrf.mxu0
    %v8303 = vadd.f32 %v8110, %v8302
    %v8304 = vpop.f32.mrf.mxu0
    %v8305 = vadd.f32 %v8112, %v8304
    %8306 = vmatprep.mubr.bf16.mxu0 %v5441
    %8307 = vmatmul.mubr.bf16.gmra.mxu0 %v5440
    %v8308 = vpop.f32.mrf.mxu0
    %v8309 = vadd.f32 %v8116, %v8308
    %v8310 = vpop.f32.mrf.mxu0
    %v8311 = vadd.f32 %v8118, %v8310
    %v8312 = vpop.f32.mrf.mxu0
    %v8313 = vadd.f32 %v8120, %v8312
    %v8314 = vpop.f32.mrf.mxu0
    %v8315 = vadd.f32 %v8122, %v8314
    %8316 = vmatprep.mubr.bf16.mxu0 %v5448
    %8317 = vmatmul.mubr.bf16.gmra.mxu0 %v5447
    %v8318 = vpop.f32.mrf.mxu0
    %v8319 = vadd.f32 %v8126, %v8318
    %v8320 = vpop.f32.mrf.mxu0
    %v8321 = vadd.f32 %v8128, %v8320
    %v8322 = vpop.f32.mrf.mxu0
    %v8323 = vadd.f32 %v8130, %v8322
    %v8324 = vpop.f32.mrf.mxu0
    %v8325 = vadd.f32 %v8132, %v8324
    %8326 = vmatprep.mubr.bf16.mxu0 %v5455
    %8327 = vmatmul.mubr.bf16.gmra.mxu0 %v5454
    %v8328 = vpop.f32.mrf.mxu0
    %v8329 = vadd.f32 %v8136, %v8328
    %v8330 = vpop.f32.mrf.mxu0
    %v8331 = vadd.f32 %v8138, %v8330
    %v8332 = vpop.f32.mrf.mxu0
    %v8333 = vadd.f32 %v8140, %v8332
    %v8334 = vpop.f32.mrf.mxu0
    %v8335 = vadd.f32 %v8142, %v8334
    %8336 = vmatprep.mubr.bf16.mxu0 %v5462
    %8337 = vmatmul.mubr.bf16.gmra.mxu0 %v5461
    %v8338 = vpop.f32.mrf.mxu0
    %v8339 = vadd.f32 %v8146, %v8338
    %v8340 = vpop.f32.mrf.mxu0
    %v8341 = vadd.f32 %v8148, %v8340
    %v8342 = vpop.f32.mrf.mxu0
    %v8343 = vadd.f32 %v8150, %v8342
    %v8344 = vpop.f32.mrf.mxu0
    %v8345 = vadd.f32 %v8152, %v8344
    %8346 = vmatprep.mubr.bf16.mxu0 %v5469
    %8347 = vmatmul.mubr.bf16.gmra.mxu0 %v5468
    %v8348 = vpop.f32.mrf.mxu0
    %v8349 = vadd.f32 %v8156, %v8348
    %v8350 = vpop.f32.mrf.mxu0
    %v8351 = vadd.f32 %v8158, %v8350
    %v8352 = vpop.f32.mrf.mxu0
    %v8353 = vadd.f32 %v8160, %v8352
    %v8354 = vpop.f32.mrf.mxu0
    %v8355 = vadd.f32 %v8162, %v8354
    %8356 = vmatprep.mubr.bf16.mxu0 %v5476
    %8357 = vmatmul.mubr.bf16.gmra.mxu0 %v5475
    %v8358 = vpop.f32.mrf.mxu0
    %v8359 = vadd.f32 %v8166, %v8358
    %v8360 = vpop.f32.mrf.mxu0
    %v8361 = vadd.f32 %v8168, %v8360
    %v8362 = vpop.f32.mrf.mxu0
    %v8363 = vadd.f32 %v8170, %v8362
    %v8364 = vpop.f32.mrf.mxu0
    %v8365 = vadd.f32 %v8172, %v8364
    %8366 = vdwg.mxu0
    %8367 = vmatprep.subr.bf16.mxu0 %v7471
    %8368 = vmatpush1.bf16.msra.mxu0 %v7470
    %8369 = vmatprep.subr.bf16.mxu0 %v7464
    %8370 = vmatpush1.bf16.msra.mxu0 %v7463
    %8371 = vmatprep.subr.bf16.mxu0 %v7457
    %8372 = vmatpush1.bf16.msra.mxu0 %v7456
    %8373 = vmatprep.subr.bf16.mxu0 %v7450
    %8374 = vmatpush1.bf16.msra.mxu0 %v7449
    %8375 = vmatprep.subr.bf16.mxu0 %v7443
    %8376 = vmatpush1.bf16.msra.mxu0 %v7442
    %8377 = vmatprep.subr.bf16.mxu0 %v7436
    %8378 = vmatpush1.bf16.msra.mxu0 %v7435
    %8379 = vmatprep.subr.bf16.mxu0 %v7429
    %8380 = vmatpush1.bf16.msra.mxu0 %v7428
    %8381 = vmatprep.subr.bf16.mxu0 %v7422
    %8382 = vmatpush1.bf16.msra.mxu0 %v7421
    %8383 = vmatprep.subr.bf16.mxu0 %v7527
    %8384 = vmatpush2.bf16.msra.mxu0 %v7526
    %8385 = vmatprep.subr.bf16.mxu0 %v7520
    %8386 = vmatpush2.bf16.msra.mxu0 %v7519
    %8387 = vmatprep.subr.bf16.mxu0 %v7513
    %8388 = vmatpush2.bf16.msra.mxu0 %v7512
    %8389 = vmatprep.subr.bf16.mxu0 %v7506
    %8390 = vmatpush2.bf16.msra.mxu0 %v7505
    %8391 = vmatprep.subr.bf16.mxu0 %v7499
    %8392 = vmatpush2.bf16.msra.mxu0 %v7498
    %8393 = vmatprep.subr.bf16.mxu0 %v7492
    %8394 = vmatpush2.bf16.msra.mxu0 %v7491
    %8395 = vmatprep.subr.bf16.mxu0 %v7485
    %8396 = vmatpush2.bf16.msra.mxu0 %v7484
    %8397 = vmatprep.subr.bf16.mxu0 %v7478
    %8398 = vmatpush2.bf16.msra.mxu0 %v7477
    %8399 = vmatprep.mubr.bf16.mxu0 %v5373
    %8400 = vmatmul.mubr.bf16.gmra.mxu0 %v5372
    %v8401 = vpop.f32.mrf.mxu0
    %v8402 = vadd.f32 %v8209, %v8401
    %v8403 = vpop.f32.mrf.mxu0
    %v8404 = vadd.f32 %v8211, %v8403
    %v8405 = vpop.f32.mrf.mxu0
    %v8406 = vadd.f32 %v8213, %v8405
    %v8407 = vpop.f32.mrf.mxu0
    %v8408 = vadd.f32 %v8215, %v8407
    %8409 = vmatprep.mubr.bf16.mxu0 %v5380
    %8410 = vmatmul.mubr.bf16.gmra.mxu0 %v5379
    %v8411 = vpop.f32.mrf.mxu0
    %v8412 = vadd.f32 %v8219, %v8411
    %v8413 = vpop.f32.mrf.mxu0
    %v8414 = vadd.f32 %v8221, %v8413
    %v8415 = vpop.f32.mrf.mxu0
    %v8416 = vadd.f32 %v8223, %v8415
    %v8417 = vpop.f32.mrf.mxu0
    %v8418 = vadd.f32 %v8225, %v8417
    %8419 = vmatprep.mubr.bf16.mxu0 %v5387
    %8420 = vmatmul.mubr.bf16.gmra.mxu0 %v5386
    %v8421 = vpop.f32.mrf.mxu0
    %v8422 = vadd.f32 %v8229, %v8421
    %v8423 = vpop.f32.mrf.mxu0
    %v8424 = vadd.f32 %v8231, %v8423
    %v8425 = vpop.f32.mrf.mxu0
    %v8426 = vadd.f32 %v8233, %v8425
    %v8427 = vpop.f32.mrf.mxu0
    %v8428 = vadd.f32 %v8235, %v8427
    %8429 = vmatprep.mubr.bf16.mxu0 %v5394
    %8430 = vmatmul.mubr.bf16.gmra.mxu0 %v5393
    %v8431 = vpop.f32.mrf.mxu0
    %v8432 = vadd.f32 %v8239, %v8431
    %v8433 = vpop.f32.mrf.mxu0
    %v8434 = vadd.f32 %v8241, %v8433
    %v8435 = vpop.f32.mrf.mxu0
    %v8436 = vadd.f32 %v8243, %v8435
    %v8437 = vpop.f32.mrf.mxu0
    %v8438 = vadd.f32 %v8245, %v8437
    %8439 = vmatprep.mubr.bf16.mxu0 %v5401
    %8440 = vmatmul.mubr.bf16.gmra.mxu0 %v5400
    %v8441 = vpop.f32.mrf.mxu0
    %v8442 = vadd.f32 %v8249, %v8441
    %v8443 = vpop.f32.mrf.mxu0
    %v8444 = vadd.f32 %v8251, %v8443
    %v8445 = vpop.f32.mrf.mxu0
    %v8446 = vadd.f32 %v8253, %v8445
    %v8447 = vpop.f32.mrf.mxu0
    %v8448 = vadd.f32 %v8255, %v8447
    %8449 = vmatprep.mubr.bf16.mxu0 %v5408
    %8450 = vmatmul.mubr.bf16.gmra.mxu0 %v5407
    %v8451 = vpop.f32.mrf.mxu0
    %v8452 = vadd.f32 %v8259, %v8451
    %v8453 = vpop.f32.mrf.mxu0
    %v8454 = vadd.f32 %v8261, %v8453
    %v8455 = vpop.f32.mrf.mxu0
    %v8456 = vadd.f32 %v8263, %v8455
    %v8457 = vpop.f32.mrf.mxu0
    %v8458 = vadd.f32 %v8265, %v8457
    %8459 = vmatprep.mubr.bf16.mxu0 %v5415
    %8460 = vmatmul.mubr.bf16.gmra.mxu0 %v5414
    %v8461 = vpop.f32.mrf.mxu0
    %v8462 = vadd.f32 %v8269, %v8461
    %v8463 = vpop.f32.mrf.mxu0
    %v8464 = vadd.f32 %v8271, %v8463
    %v8465 = vpop.f32.mrf.mxu0
    %v8466 = vadd.f32 %v8273, %v8465
    %v8467 = vpop.f32.mrf.mxu0
    %v8468 = vadd.f32 %v8275, %v8467
    %8469 = vmatprep.mubr.bf16.mxu0 %v5422
    %8470 = vmatmul.mubr.bf16.gmra.mxu0 %v5421
    %v8471 = vpop.f32.mrf.mxu0
    %v8472 = vadd.f32 %v8279, %v8471
    %v8473 = vpop.f32.mrf.mxu0
    %v8474 = vadd.f32 %v8281, %v8473
    %v8475 = vpop.f32.mrf.mxu0
    %v8476 = vadd.f32 %v8283, %v8475
    %v8477 = vpop.f32.mrf.mxu0
    %v8478 = vadd.f32 %v8285, %v8477
    %8479 = vmatprep.mubr.bf16.mxu0 %v5429
    %8480 = vmatmul.mubr.bf16.gmra.mxu0 %v5428
    %v8481 = vpop.f32.mrf.mxu0
    %v8482 = vadd.f32 %v8289, %v8481
    %v8483 = vpop.f32.mrf.mxu0
    %v8484 = vadd.f32 %v8291, %v8483
    %v8485 = vpop.f32.mrf.mxu0
    %v8486 = vadd.f32 %v8293, %v8485
    %v8487 = vpop.f32.mrf.mxu0
    %v8488 = vadd.f32 %v8295, %v8487
    %8489 = vmatprep.mubr.bf16.mxu0 %v5436
    %8490 = vmatmul.mubr.bf16.gmra.mxu0 %v5435
    %v8491 = vpop.f32.mrf.mxu0
    %v8492 = vadd.f32 %v8299, %v8491
    %v8493 = vpop.f32.mrf.mxu0
    %v8494 = vadd.f32 %v8301, %v8493
    %v8495 = vpop.f32.mrf.mxu0
    %v8496 = vadd.f32 %v8303, %v8495
    %v8497 = vpop.f32.mrf.mxu0
    %v8498 = vadd.f32 %v8305, %v8497
    %8499 = vmatprep.mubr.bf16.mxu0 %v5443
    %8500 = vmatmul.mubr.bf16.gmra.mxu0 %v5442
    %v8501 = vpop.f32.mrf.mxu0
    %v8502 = vadd.f32 %v8309, %v8501
    %v8503 = vpop.f32.mrf.mxu0
    %v8504 = vadd.f32 %v8311, %v8503
    %v8505 = vpop.f32.mrf.mxu0
    %v8506 = vadd.f32 %v8313, %v8505
    %v8507 = vpop.f32.mrf.mxu0
    %v8508 = vadd.f32 %v8315, %v8507
    %8509 = vmatprep.mubr.bf16.mxu0 %v5450
    %8510 = vmatmul.mubr.bf16.gmra.mxu0 %v5449
    %v8511 = vpop.f32.mrf.mxu0
    %v8512 = vadd.f32 %v8319, %v8511
    %v8513 = vpop.f32.mrf.mxu0
    %v8514 = vadd.f32 %v8321, %v8513
    %v8515 = vpop.f32.mrf.mxu0
    %v8516 = vadd.f32 %v8323, %v8515
    %v8517 = vpop.f32.mrf.mxu0
    %v8518 = vadd.f32 %v8325, %v8517
    %8519 = vmatprep.mubr.bf16.mxu0 %v5457
    %8520 = vmatmul.mubr.bf16.gmra.mxu0 %v5456
    %v8521 = vpop.f32.mrf.mxu0
    %v8522 = vadd.f32 %v8329, %v8521
    %v8523 = vpop.f32.mrf.mxu0
    %v8524 = vadd.f32 %v8331, %v8523
    %v8525 = vpop.f32.mrf.mxu0
    %v8526 = vadd.f32 %v8333, %v8525
    %v8527 = vpop.f32.mrf.mxu0
    %v8528 = vadd.f32 %v8335, %v8527
    %8529 = vmatprep.mubr.bf16.mxu0 %v5464
    %8530 = vmatmul.mubr.bf16.gmra.mxu0 %v5463
    %v8531 = vpop.f32.mrf.mxu0
    %v8532 = vadd.f32 %v8339, %v8531
    %v8533 = vpop.f32.mrf.mxu0
    %v8534 = vadd.f32 %v8341, %v8533
    %v8535 = vpop.f32.mrf.mxu0
    %v8536 = vadd.f32 %v8343, %v8535
    %v8537 = vpop.f32.mrf.mxu0
    %v8538 = vadd.f32 %v8345, %v8537
    %8539 = vmatprep.mubr.bf16.mxu0 %v5471
    %8540 = vmatmul.mubr.bf16.gmra.mxu0 %v5470
    %v8541 = vpop.f32.mrf.mxu0
    %v8542 = vadd.f32 %v8349, %v8541
    %v8543 = vpop.f32.mrf.mxu0
    %v8544 = vadd.f32 %v8351, %v8543
    %v8545 = vpop.f32.mrf.mxu0
    %v8546 = vadd.f32 %v8353, %v8545
    %v8547 = vpop.f32.mrf.mxu0
    %v8548 = vadd.f32 %v8355, %v8547
    %8549 = vmatprep.mubr.bf16.mxu0 %v5478
    %8550 = vmatmul.mubr.bf16.gmra.mxu0 %v5477
    %v8551 = vpop.f32.mrf.mxu0
    %v8552 = vadd.f32 %v8359, %v8551
    %v8553 = vpop.f32.mrf.mxu0
    %v8554 = vadd.f32 %v8361, %v8553
    %v8555 = vpop.f32.mrf.mxu0
    %v8556 = vadd.f32 %v8363, %v8555
    %v8557 = vpop.f32.mrf.mxu0
    %v8558 = vadd.f32 %v8365, %v8557
    %8559 = vdwg.mxu0
    %8560 = vmatprep.subr.bf16.mxu0 %v7583
    %8561 = vmatpush1.bf16.msra.mxu0 %v7582
    %8562 = vmatprep.subr.bf16.mxu0 %v7576
    %8563 = vmatpush1.bf16.msra.mxu0 %v7575
    %8564 = vmatprep.subr.bf16.mxu0 %v7569
    %8565 = vmatpush1.bf16.msra.mxu0 %v7568
    %8566 = vmatprep.subr.bf16.mxu0 %v7562
    %8567 = vmatpush1.bf16.msra.mxu0 %v7561
    %8568 = vmatprep.subr.bf16.mxu0 %v7555
    %8569 = vmatpush1.bf16.msra.mxu0 %v7554
    %8570 = vmatprep.subr.bf16.mxu0 %v7548
    %8571 = vmatpush1.bf16.msra.mxu0 %v7547
    %8572 = vmatprep.subr.bf16.mxu0 %v7541
    %8573 = vmatpush1.bf16.msra.mxu0 %v7540
    %8574 = vmatprep.subr.bf16.mxu0 %v7534
    %8575 = vmatpush1.bf16.msra.mxu0 %v7533
    %8576 = vmatprep.subr.bf16.mxu0 0
    %8577 = vmatpush2.bf16.msra.mxu0 0
    %8578 = vmatprep.subr.bf16.mxu0 0
    %8579 = vmatpush2.bf16.msra.mxu0 0
    %8580 = vmatprep.subr.bf16.mxu0 0
    %8581 = vmatpush2.bf16.msra.mxu0 0
    %8582 = vmatprep.subr.bf16.mxu0 0
    %8583 = vmatpush2.bf16.msra.mxu0 0
    %8584 = vmatprep.subr.bf16.mxu0 0
    %8585 = vmatpush2.bf16.msra.mxu0 0
    %8586 = vmatprep.subr.bf16.mxu0 0
    %8587 = vmatpush2.bf16.msra.mxu0 0
    %8588 = vmatprep.subr.bf16.mxu0 0
    %8589 = vmatpush2.bf16.msra.mxu0 0
    %8590 = vmatprep.subr.bf16.mxu0 0
    %8591 = vmatpush2.bf16.msra.mxu0 0
    %8592 = vmatprep.mubr.bf16.mxu0 0
    %8593 = vmatmul.mubr.bf16.gmra.mxu0 %v5374
    %v8594 = vpop.f32.mrf.mxu0
    %v8595 = vadd.f32 %v8402, %v8594
    %v8596 = vpop.f32.mrf.mxu0
    %v8597 = vadd.f32 %v8404, %v8596
    %v8598 = vpop.f32.mrf.mxu0
    %v8599 = vadd.f32 %v8406, %v8598
    %v8600 = vpop.f32.mrf.mxu0
    %v8601 = vadd.f32 %v8408, %v8600
    %8602 = vmatprep.mubr.bf16.mxu0 0
    %8603 = vmatmul.mubr.bf16.gmra.mxu0 %v5381
    %v8604 = vpop.f32.mrf.mxu0
    %v8605 = vadd.f32 %v8412, %v8604
    %v8606 = vpop.f32.mrf.mxu0
    %v8607 = vadd.f32 %v8414, %v8606
    %v8608 = vpop.f32.mrf.mxu0
    %v8609 = vadd.f32 %v8416, %v8608
    %v8610 = vpop.f32.mrf.mxu0
    %v8611 = vadd.f32 %v8418, %v8610
    %8612 = vmatprep.mubr.bf16.mxu0 0
    %8613 = vmatmul.mubr.bf16.gmra.mxu0 %v5388
    %v8614 = vpop.f32.mrf.mxu0
    %v8615 = vadd.f32 %v8422, %v8614
    %v8616 = vpop.f32.mrf.mxu0
    %v8617 = vadd.f32 %v8424, %v8616
    %v8618 = vpop.f32.mrf.mxu0
    %v8619 = vadd.f32 %v8426, %v8618
    %v8620 = vpop.f32.mrf.mxu0
    %v8621 = vadd.f32 %v8428, %v8620
    %8622 = vmatprep.mubr.bf16.mxu0 0
    %8623 = vmatmul.mubr.bf16.gmra.mxu0 %v5395
    %v8624 = vpop.f32.mrf.mxu0
    %v8625 = vadd.f32 %v8432, %v8624
    %v8626 = vpop.f32.mrf.mxu0
    %v8627 = vadd.f32 %v8434, %v8626
    %v8628 = vpop.f32.mrf.mxu0
    %v8629 = vadd.f32 %v8436, %v8628
    %v8630 = vpop.f32.mrf.mxu0
    %v8631 = vadd.f32 %v8438, %v8630
    %8632 = vmatprep.mubr.bf16.mxu0 0
    %8633 = vmatmul.mubr.bf16.gmra.mxu0 %v5402
    %v8634 = vpop.f32.mrf.mxu0
    %v8635 = vadd.f32 %v8442, %v8634
    %v8636 = vpop.f32.mrf.mxu0
    %v8637 = vadd.f32 %v8444, %v8636
    %v8638 = vpop.f32.mrf.mxu0
    %v8639 = vadd.f32 %v8446, %v8638
    %v8640 = vpop.f32.mrf.mxu0
    %v8641 = vadd.f32 %v8448, %v8640
    %8642 = vmatprep.mubr.bf16.mxu0 0
    %8643 = vmatmul.mubr.bf16.gmra.mxu0 %v5409
    %v8644 = vpop.f32.mrf.mxu0
    %v8645 = vadd.f32 %v8452, %v8644
    %v8646 = vpop.f32.mrf.mxu0
    %v8647 = vadd.f32 %v8454, %v8646
    %v8648 = vpop.f32.mrf.mxu0
    %v8649 = vadd.f32 %v8456, %v8648
    %v8650 = vpop.f32.mrf.mxu0
    %v8651 = vadd.f32 %v8458, %v8650
    %8652 = vmatprep.mubr.bf16.mxu0 0
    %8653 = vmatmul.mubr.bf16.gmra.mxu0 %v5416
    %v8654 = vpop.f32.mrf.mxu0
    %v8655 = vadd.f32 %v8462, %v8654
    %v8656 = vpop.f32.mrf.mxu0
    %v8657 = vadd.f32 %v8464, %v8656
    %v8658 = vpop.f32.mrf.mxu0
    %v8659 = vadd.f32 %v8466, %v8658
    %v8660 = vpop.f32.mrf.mxu0
    %v8661 = vadd.f32 %v8468, %v8660
    %8662 = vmatprep.mubr.bf16.mxu0 0
    %8663 = vmatmul.mubr.bf16.gmra.mxu0 %v5423
    %v8664 = vpop.f32.mrf.mxu0
    %v8665 = vadd.f32 %v8472, %v8664
    %v8666 = vpop.f32.mrf.mxu0
    %v8667 = vadd.f32 %v8474, %v8666
    %v8668 = vpop.f32.mrf.mxu0
    %v8669 = vadd.f32 %v8476, %v8668
    %v8670 = vpop.f32.mrf.mxu0
    %v8671 = vadd.f32 %v8478, %v8670
    %8672 = vmatprep.mubr.bf16.mxu0 0
    %8673 = vmatmul.mubr.bf16.gmra.mxu0 %v5430
    %v8674 = vpop.f32.mrf.mxu0
    %v8675 = vadd.f32 %v8482, %v8674
    %v8676 = vpop.f32.mrf.mxu0
    %v8677 = vadd.f32 %v8484, %v8676
    %v8678 = vpop.f32.mrf.mxu0
    %v8679 = vadd.f32 %v8486, %v8678
    %v8680 = vpop.f32.mrf.mxu0
    %v8681 = vadd.f32 %v8488, %v8680
    %8682 = vmatprep.mubr.bf16.mxu0 0
    %8683 = vmatmul.mubr.bf16.gmra.mxu0 %v5437
    %v8684 = vpop.f32.mrf.mxu0
    %v8685 = vadd.f32 %v8492, %v8684
    %v8686 = vpop.f32.mrf.mxu0
    %v8687 = vadd.f32 %v8494, %v8686
    %v8688 = vpop.f32.mrf.mxu0
    %v8689 = vadd.f32 %v8496, %v8688
    %v8690 = vpop.f32.mrf.mxu0
    %v8691 = vadd.f32 %v8498, %v8690
    %8692 = vmatprep.mubr.bf16.mxu0 0
    %8693 = vmatmul.mubr.bf16.gmra.mxu0 %v5444
    %v8694 = vpop.f32.mrf.mxu0
    %v8695 = vadd.f32 %v8502, %v8694
    %v8696 = vpop.f32.mrf.mxu0
    %v8697 = vadd.f32 %v8504, %v8696
    %v8698 = vpop.f32.mrf.mxu0
    %v8699 = vadd.f32 %v8506, %v8698
    %v8700 = vpop.f32.mrf.mxu0
    %v8701 = vadd.f32 %v8508, %v8700
    %8702 = vmatprep.mubr.bf16.mxu0 0
    %8703 = vmatmul.mubr.bf16.gmra.mxu0 %v5451
    %v8704 = vpop.f32.mrf.mxu0
    %v8705 = vadd.f32 %v8512, %v8704
    %v8706 = vpop.f32.mrf.mxu0
    %v8707 = vadd.f32 %v8514, %v8706
    %v8708 = vpop.f32.mrf.mxu0
    %v8709 = vadd.f32 %v8516, %v8708
    %v8710 = vpop.f32.mrf.mxu0
    %v8711 = vadd.f32 %v8518, %v8710
    %8712 = vmatprep.mubr.bf16.mxu0 0
    %8713 = vmatmul.mubr.bf16.gmra.mxu0 %v5458
    %v8714 = vpop.f32.mrf.mxu0
    %v8715 = vadd.f32 %v8522, %v8714
    %v8716 = vpop.f32.mrf.mxu0
    %v8717 = vadd.f32 %v8524, %v8716
    %v8718 = vpop.f32.mrf.mxu0
    %v8719 = vadd.f32 %v8526, %v8718
    %v8720 = vpop.f32.mrf.mxu0
    %v8721 = vadd.f32 %v8528, %v8720
    %8722 = vmatprep.mubr.bf16.mxu0 0
    %8723 = vmatmul.mubr.bf16.gmra.mxu0 %v5465
    %v8724 = vpop.f32.mrf.mxu0
    %v8725 = vadd.f32 %v8532, %v8724
    %v8726 = vpop.f32.mrf.mxu0
    %v8727 = vadd.f32 %v8534, %v8726
    %v8728 = vpop.f32.mrf.mxu0
    %v8729 = vadd.f32 %v8536, %v8728
    %v8730 = vpop.f32.mrf.mxu0
    %v8731 = vadd.f32 %v8538, %v8730
    %8732 = vmatprep.mubr.bf16.mxu0 0
    %8733 = vmatmul.mubr.bf16.gmra.mxu0 %v5472
    %v8734 = vpop.f32.mrf.mxu0
    %v8735 = vadd.f32 %v8542, %v8734
    %v8736 = vpop.f32.mrf.mxu0
    %v8737 = vadd.f32 %v8544, %v8736
    %v8738 = vpop.f32.mrf.mxu0
    %v8739 = vadd.f32 %v8546, %v8738
    %v8740 = vpop.f32.mrf.mxu0
    %v8741 = vadd.f32 %v8548, %v8740
    %8742 = vmatprep.mubr.bf16.mxu0 0
    %8743 = vmatmul.mubr.bf16.gmra.mxu0 %v5479
    %v8744 = vpop.f32.mrf.mxu0
    %v8745 = vadd.f32 %v8552, %v8744
    %v8746 = vpop.f32.mrf.mxu0
    %v8747 = vadd.f32 %v8554, %v8746
    %v8748 = vpop.f32.mrf.mxu0
    %v8749 = vadd.f32 %v8556, %v8748
    %v8750 = vpop.f32.mrf.mxu0
    %v8751 = vadd.f32 %v8558, %v8750
    %8752 = vdwg.mxu0
    %8753 = vmatprep.subr.bf16.mxu0 %v7249
    %8754 = vmatpush1.bf16.msra.mxu0 %v7248
    %8755 = vmatprep.subr.bf16.mxu0 %v7242
    %8756 = vmatpush1.bf16.msra.mxu0 %v7241
    %8757 = vmatprep.subr.bf16.mxu0 %v7235
    %8758 = vmatpush1.bf16.msra.mxu0 %v7234
    %8759 = vmatprep.subr.bf16.mxu0 %v7228
    %8760 = vmatpush1.bf16.msra.mxu0 %v7227
    %8761 = vmatprep.subr.bf16.mxu0 %v7221
    %8762 = vmatpush1.bf16.msra.mxu0 %v7220
    %8763 = vmatprep.subr.bf16.mxu0 %v7214
    %8764 = vmatpush1.bf16.msra.mxu0 %v7213
    %8765 = vmatprep.subr.bf16.mxu0 %v7207
    %8766 = vmatpush1.bf16.msra.mxu0 %v7206
    %8767 = vmatprep.subr.bf16.mxu0 %v7200
    %8768 = vmatpush1.bf16.msra.mxu0 %v7199
    %8769 = vmatprep.subr.bf16.mxu0 %v7305
    %8770 = vmatpush2.bf16.msra.mxu0 %v7304
    %8771 = vmatprep.subr.bf16.mxu0 %v7298
    %8772 = vmatpush2.bf16.msra.mxu0 %v7297
    %8773 = vmatprep.subr.bf16.mxu0 %v7291
    %8774 = vmatpush2.bf16.msra.mxu0 %v7290
    %8775 = vmatprep.subr.bf16.mxu0 %v7284
    %8776 = vmatpush2.bf16.msra.mxu0 %v7283
    %8777 = vmatprep.subr.bf16.mxu0 %v7277
    %8778 = vmatpush2.bf16.msra.mxu0 %v7276
    %8779 = vmatprep.subr.bf16.mxu0 %v7270
    %8780 = vmatpush2.bf16.msra.mxu0 %v7269
    %8781 = vmatprep.subr.bf16.mxu0 %v7263
    %8782 = vmatpush2.bf16.msra.mxu0 %v7262
    %8783 = vmatprep.subr.bf16.mxu0 %v7256
    %8784 = vmatpush2.bf16.msra.mxu0 %v7255
    %8785 = vmatprep.mubr.bf16.mxu0 %v5369
    %8786 = vmatmul.mubr.bf16.gmra.mxu0 %v5368
    %v8787 = vpop.f32.mrf.mxu0
    %v8788 = vadd.f32 %v5941, %v8787
    %v8789 = vpop.f32.mrf.mxu0
    %v8790 = vadd.f32 %v5945, %v8789
    %v8791 = vpop.f32.mrf.mxu0
    %v8792 = vadd.f32 %v5941, %v8791
    %v8793 = vpop.f32.mrf.mxu0
    %v8794 = vadd.f32 %v5945, %v8793
    %8795 = vmatprep.mubr.bf16.mxu0 %v5376
    %8796 = vmatmul.mubr.bf16.gmra.mxu0 %v5375
    %v8797 = vpop.f32.mrf.mxu0
    %v8798 = vadd.f32 %v5941, %v8797
    %v8799 = vpop.f32.mrf.mxu0
    %v8800 = vadd.f32 %v5945, %v8799
    %v8801 = vpop.f32.mrf.mxu0
    %v8802 = vadd.f32 %v5941, %v8801
    %v8803 = vpop.f32.mrf.mxu0
    %v8804 = vadd.f32 %v5945, %v8803
    %8805 = vmatprep.mubr.bf16.mxu0 %v5383
    %8806 = vmatmul.mubr.bf16.gmra.mxu0 %v5382
    %v8807 = vpop.f32.mrf.mxu0
    %v8808 = vadd.f32 %v5941, %v8807
    %v8809 = vpop.f32.mrf.mxu0
    %v8810 = vadd.f32 %v5945, %v8809
    %v8811 = vpop.f32.mrf.mxu0
    %v8812 = vadd.f32 %v5941, %v8811
    %v8813 = vpop.f32.mrf.mxu0
    %v8814 = vadd.f32 %v5945, %v8813
    %8815 = vmatprep.mubr.bf16.mxu0 %v5390
    %8816 = vmatmul.mubr.bf16.gmra.mxu0 %v5389
    %v8817 = vpop.f32.mrf.mxu0
    %v8818 = vadd.f32 %v5941, %v8817
    %v8819 = vpop.f32.mrf.mxu0
    %v8820 = vadd.f32 %v5945, %v8819
    %v8821 = vpop.f32.mrf.mxu0
    %v8822 = vadd.f32 %v5941, %v8821
    %v8823 = vpop.f32.mrf.mxu0
    %v8824 = vadd.f32 %v5945, %v8823
    %8825 = vmatprep.mubr.bf16.mxu0 %v5397
    %8826 = vmatmul.mubr.bf16.gmra.mxu0 %v5396
    %v8827 = vpop.f32.mrf.mxu0
    %v8828 = vadd.f32 %v5941, %v8827
    %v8829 = vpop.f32.mrf.mxu0
    %v8830 = vadd.f32 %v5945, %v8829
    %v8831 = vpop.f32.mrf.mxu0
    %v8832 = vadd.f32 %v5941, %v8831
    %v8833 = vpop.f32.mrf.mxu0
    %v8834 = vadd.f32 %v5945, %v8833
    %8835 = vmatprep.mubr.bf16.mxu0 %v5404
    %8836 = vmatmul.mubr.bf16.gmra.mxu0 %v5403
    %v8837 = vpop.f32.mrf.mxu0
    %v8838 = vadd.f32 %v5941, %v8837
    %v8839 = vpop.f32.mrf.mxu0
    %v8840 = vadd.f32 %v5945, %v8839
    %v8841 = vpop.f32.mrf.mxu0
    %v8842 = vadd.f32 %v5941, %v8841
    %v8843 = vpop.f32.mrf.mxu0
    %v8844 = vadd.f32 %v5945, %v8843
    %8845 = vmatprep.mubr.bf16.mxu0 %v5411
    %8846 = vmatmul.mubr.bf16.gmra.mxu0 %v5410
    %v8847 = vpop.f32.mrf.mxu0
    %v8848 = vadd.f32 %v5941, %v8847
    %v8849 = vpop.f32.mrf.mxu0
    %v8850 = vadd.f32 %v5945, %v8849
    %v8851 = vpop.f32.mrf.mxu0
    %v8852 = vadd.f32 %v5941, %v8851
    %v8853 = vpop.f32.mrf.mxu0
    %v8854 = vadd.f32 %v5945, %v8853
    %8855 = vmatprep.mubr.bf16.mxu0 %v5418
    %8856 = vmatmul.mubr.bf16.gmra.mxu0 %v5417
    %v8857 = vpop.f32.mrf.mxu0
    %v8858 = vadd.f32 %v5941, %v8857
    %v8859 = vpop.f32.mrf.mxu0
    %v8860 = vadd.f32 %v5945, %v8859
    %v8861 = vpop.f32.mrf.mxu0
    %v8862 = vadd.f32 %v5941, %v8861
    %v8863 = vpop.f32.mrf.mxu0
    %v8864 = vadd.f32 %v5945, %v8863
    %8865 = vmatprep.mubr.bf16.mxu0 %v5425
    %8866 = vmatmul.mubr.bf16.gmra.mxu0 %v5424
    %v8867 = vpop.f32.mrf.mxu0
    %v8868 = vadd.f32 %v5941, %v8867
    %v8869 = vpop.f32.mrf.mxu0
    %v8870 = vadd.f32 %v5945, %v8869
    %v8871 = vpop.f32.mrf.mxu0
    %v8872 = vadd.f32 %v5941, %v8871
    %v8873 = vpop.f32.mrf.mxu0
    %v8874 = vadd.f32 %v5945, %v8873
    %8875 = vmatprep.mubr.bf16.mxu0 %v5432
    %8876 = vmatmul.mubr.bf16.gmra.mxu0 %v5431
    %v8877 = vpop.f32.mrf.mxu0
    %v8878 = vadd.f32 %v5941, %v8877
    %v8879 = vpop.f32.mrf.mxu0
    %v8880 = vadd.f32 %v5945, %v8879
    %v8881 = vpop.f32.mrf.mxu0
    %v8882 = vadd.f32 %v5941, %v8881
    %v8883 = vpop.f32.mrf.mxu0
    %v8884 = vadd.f32 %v5945, %v8883
    %8885 = vmatprep.mubr.bf16.mxu0 %v5439
    %8886 = vmatmul.mubr.bf16.gmra.mxu0 %v5438
    %v8887 = vpop.f32.mrf.mxu0
    %v8888 = vadd.f32 %v5941, %v8887
    %v8889 = vpop.f32.mrf.mxu0
    %v8890 = vadd.f32 %v5945, %v8889
    %v8891 = vpop.f32.mrf.mxu0
    %v8892 = vadd.f32 %v5941, %v8891
    %v8893 = vpop.f32.mrf.mxu0
    %v8894 = vadd.f32 %v5945, %v8893
    %8895 = vmatprep.mubr.bf16.mxu0 %v5446
    %8896 = vmatmul.mubr.bf16.gmra.mxu0 %v5445
    %v8897 = vpop.f32.mrf.mxu0
    %v8898 = vadd.f32 %v5941, %v8897
    %v8899 = vpop.f32.mrf.mxu0
    %v8900 = vadd.f32 %v5945, %v8899
    %v8901 = vpop.f32.mrf.mxu0
    %v8902 = vadd.f32 %v5941, %v8901
    %v8903 = vpop.f32.mrf.mxu0
    %v8904 = vadd.f32 %v5945, %v8903
    %8905 = vmatprep.mubr.bf16.mxu0 %v5453
    %8906 = vmatmul.mubr.bf16.gmra.mxu0 %v5452
    %v8907 = vpop.f32.mrf.mxu0
    %v8908 = vadd.f32 %v5941, %v8907
    %v8909 = vpop.f32.mrf.mxu0
    %v8910 = vadd.f32 %v5945, %v8909
    %v8911 = vpop.f32.mrf.mxu0
    %v8912 = vadd.f32 %v5941, %v8911
    %v8913 = vpop.f32.mrf.mxu0
    %v8914 = vadd.f32 %v5945, %v8913
    %8915 = vmatprep.mubr.bf16.mxu0 %v5460
    %8916 = vmatmul.mubr.bf16.gmra.mxu0 %v5459
    %v8917 = vpop.f32.mrf.mxu0
    %v8918 = vadd.f32 %v5941, %v8917
    %v8919 = vpop.f32.mrf.mxu0
    %v8920 = vadd.f32 %v5945, %v8919
    %v8921 = vpop.f32.mrf.mxu0
    %v8922 = vadd.f32 %v5941, %v8921
    %v8923 = vpop.f32.mrf.mxu0
    %v8924 = vadd.f32 %v5945, %v8923
    %8925 = vmatprep.mubr.bf16.mxu0 %v5467
    %8926 = vmatmul.mubr.bf16.gmra.mxu0 %v5466
    %v8927 = vpop.f32.mrf.mxu0
    %v8928 = vadd.f32 %v5941, %v8927
    %v8929 = vpop.f32.mrf.mxu0
    %v8930 = vadd.f32 %v5945, %v8929
    %v8931 = vpop.f32.mrf.mxu0
    %v8932 = vadd.f32 %v5941, %v8931
    %v8933 = vpop.f32.mrf.mxu0
    %v8934 = vadd.f32 %v5945, %v8933
    %8935 = vmatprep.mubr.bf16.mxu0 %v5474
    %8936 = vmatmul.mubr.bf16.gmra.mxu0 %v5473
    %v8937 = vpop.f32.mrf.mxu0
    %v8938 = vadd.f32 %v5941, %v8937
    %v8939 = vpop.f32.mrf.mxu0
    %v8940 = vadd.f32 %v5945, %v8939
    %v8941 = vpop.f32.mrf.mxu0
    %v8942 = vadd.f32 %v5941, %v8941
    %v8943 = vpop.f32.mrf.mxu0
    %v8944 = vadd.f32 %v5945, %v8943
    %8945 = vdwg.mxu0
    %8946 = vmatprep.subr.bf16.mxu0 %v7361
    %8947 = vmatpush1.bf16.msra.mxu0 %v7360
    %8948 = vmatprep.subr.bf16.mxu0 %v7354
    %8949 = vmatpush1.bf16.msra.mxu0 %v7353
    %8950 = vmatprep.subr.bf16.mxu0 %v7347
    %8951 = vmatpush1.bf16.msra.mxu0 %v7346
    %8952 = vmatprep.subr.bf16.mxu0 %v7340
    %8953 = vmatpush1.bf16.msra.mxu0 %v7339
    %8954 = vmatprep.subr.bf16.mxu0 %v7333
    %8955 = vmatpush1.bf16.msra.mxu0 %v7332
    %8956 = vmatprep.subr.bf16.mxu0 %v7326
    %8957 = vmatpush1.bf16.msra.mxu0 %v7325
    %8958 = vmatprep.subr.bf16.mxu0 %v7319
    %8959 = vmatpush1.bf16.msra.mxu0 %v7318
    %8960 = vmatprep.subr.bf16.mxu0 %v7312
    %8961 = vmatpush1.bf16.msra.mxu0 %v7311
    %8962 = vmatprep.subr.bf16.mxu0 %v7417
    %8963 = vmatpush2.bf16.msra.mxu0 %v7416
    %8964 = vmatprep.subr.bf16.mxu0 %v7410
    %8965 = vmatpush2.bf16.msra.mxu0 %v7409
    %8966 = vmatprep.subr.bf16.mxu0 %v7403
    %8967 = vmatpush2.bf16.msra.mxu0 %v7402
    %8968 = vmatprep.subr.bf16.mxu0 %v7396
    %8969 = vmatpush2.bf16.msra.mxu0 %v7395
    %8970 = vmatprep.subr.bf16.mxu0 %v7389
    %8971 = vmatpush2.bf16.msra.mxu0 %v7388
    %8972 = vmatprep.subr.bf16.mxu0 %v7382
    %8973 = vmatpush2.bf16.msra.mxu0 %v7381
    %8974 = vmatprep.subr.bf16.mxu0 %v7375
    %8975 = vmatpush2.bf16.msra.mxu0 %v7374
    %8976 = vmatprep.subr.bf16.mxu0 %v7368
    %8977 = vmatpush2.bf16.msra.mxu0 %v7367
    %8978 = vmatprep.mubr.bf16.mxu0 %v5371
    %8979 = vmatmul.mubr.bf16.gmra.mxu0 %v5370
    %v8980 = vpop.f32.mrf.mxu0
    %v8981 = vadd.f32 %v8788, %v8980
    %v8982 = vpop.f32.mrf.mxu0
    %v8983 = vadd.f32 %v8790, %v8982
    %v8984 = vpop.f32.mrf.mxu0
    %v8985 = vadd.f32 %v8792, %v8984
    %v8986 = vpop.f32.mrf.mxu0
    %v8987 = vadd.f32 %v8794, %v8986
    %8988 = vmatprep.mubr.bf16.mxu0 %v5378
    %8989 = vmatmul.mubr.bf16.gmra.mxu0 %v5377
    %v8990 = vpop.f32.mrf.mxu0
    %v8991 = vadd.f32 %v8798, %v8990
    %v8992 = vpop.f32.mrf.mxu0
    %v8993 = vadd.f32 %v8800, %v8992
    %v8994 = vpop.f32.mrf.mxu0
    %v8995 = vadd.f32 %v8802, %v8994
    %v8996 = vpop.f32.mrf.mxu0
    %v8997 = vadd.f32 %v8804, %v8996
    %8998 = vmatprep.mubr.bf16.mxu0 %v5385
    %8999 = vmatmul.mubr.bf16.gmra.mxu0 %v5384
    %v9000 = vpop.f32.mrf.mxu0
    %v9001 = vadd.f32 %v8808, %v9000
    %v9002 = vpop.f32.mrf.mxu0
    %v9003 = vadd.f32 %v8810, %v9002
    %v9004 = vpop.f32.mrf.mxu0
    %v9005 = vadd.f32 %v8812, %v9004
    %v9006 = vpop.f32.mrf.mxu0
    %v9007 = vadd.f32 %v8814, %v9006
    %9008 = vmatprep.mubr.bf16.mxu0 %v5392
    %9009 = vmatmul.mubr.bf16.gmra.mxu0 %v5391
    %v9010 = vpop.f32.mrf.mxu0
    %v9011 = vadd.f32 %v8818, %v9010
    %v9012 = vpop.f32.mrf.mxu0
    %v9013 = vadd.f32 %v8820, %v9012
    %v9014 = vpop.f32.mrf.mxu0
    %v9015 = vadd.f32 %v8822, %v9014
    %v9016 = vpop.f32.mrf.mxu0
    %v9017 = vadd.f32 %v8824, %v9016
    %9018 = vmatprep.mubr.bf16.mxu0 %v5399
    %9019 = vmatmul.mubr.bf16.gmra.mxu0 %v5398
    %v9020 = vpop.f32.mrf.mxu0
    %v9021 = vadd.f32 %v8828, %v9020
    %v9022 = vpop.f32.mrf.mxu0
    %v9023 = vadd.f32 %v8830, %v9022
    %v9024 = vpop.f32.mrf.mxu0
    %v9025 = vadd.f32 %v8832, %v9024
    %v9026 = vpop.f32.mrf.mxu0
    %v9027 = vadd.f32 %v8834, %v9026
    %9028 = vmatprep.mubr.bf16.mxu0 %v5406
    %9029 = vmatmul.mubr.bf16.gmra.mxu0 %v5405
    %v9030 = vpop.f32.mrf.mxu0
    %v9031 = vadd.f32 %v8838, %v9030
    %v9032 = vpop.f32.mrf.mxu0
    %v9033 = vadd.f32 %v8840, %v9032
    %v9034 = vpop.f32.mrf.mxu0
    %v9035 = vadd.f32 %v8842, %v9034
    %v9036 = vpop.f32.mrf.mxu0
    %v9037 = vadd.f32 %v8844, %v9036
    %9038 = vmatprep.mubr.bf16.mxu0 %v5413
    %9039 = vmatmul.mubr.bf16.gmra.mxu0 %v5412
    %v9040 = vpop.f32.mrf.mxu0
    %v9041 = vadd.f32 %v8848, %v9040
    %v9042 = vpop.f32.mrf.mxu0
    %v9043 = vadd.f32 %v8850, %v9042
    %v9044 = vpop.f32.mrf.mxu0
    %v9045 = vadd.f32 %v8852, %v9044
    %v9046 = vpop.f32.mrf.mxu0
    %v9047 = vadd.f32 %v8854, %v9046
    %9048 = vmatprep.mubr.bf16.mxu0 %v5420
    %9049 = vmatmul.mubr.bf16.gmra.mxu0 %v5419
    %v9050 = vpop.f32.mrf.mxu0
    %v9051 = vadd.f32 %v8858, %v9050
    %v9052 = vpop.f32.mrf.mxu0
    %v9053 = vadd.f32 %v8860, %v9052
    %v9054 = vpop.f32.mrf.mxu0
    %v9055 = vadd.f32 %v8862, %v9054
    %v9056 = vpop.f32.mrf.mxu0
    %v9057 = vadd.f32 %v8864, %v9056
    %9058 = vmatprep.mubr.bf16.mxu0 %v5427
    %9059 = vmatmul.mubr.bf16.gmra.mxu0 %v5426
    %v9060 = vpop.f32.mrf.mxu0
    %v9061 = vadd.f32 %v8868, %v9060
    %v9062 = vpop.f32.mrf.mxu0
    %v9063 = vadd.f32 %v8870, %v9062
    %v9064 = vpop.f32.mrf.mxu0
    %v9065 = vadd.f32 %v8872, %v9064
    %v9066 = vpop.f32.mrf.mxu0
    %v9067 = vadd.f32 %v8874, %v9066
    %9068 = vmatprep.mubr.bf16.mxu0 %v5434
    %9069 = vmatmul.mubr.bf16.gmra.mxu0 %v5433
    %v9070 = vpop.f32.mrf.mxu0
    %v9071 = vadd.f32 %v8878, %v9070
    %v9072 = vpop.f32.mrf.mxu0
    %v9073 = vadd.f32 %v8880, %v9072
    %v9074 = vpop.f32.mrf.mxu0
    %v9075 = vadd.f32 %v8882, %v9074
    %v9076 = vpop.f32.mrf.mxu0
    %v9077 = vadd.f32 %v8884, %v9076
    %9078 = vmatprep.mubr.bf16.mxu0 %v5441
    %9079 = vmatmul.mubr.bf16.gmra.mxu0 %v5440
    %v9080 = vpop.f32.mrf.mxu0
    %v9081 = vadd.f32 %v8888, %v9080
    %v9082 = vpop.f32.mrf.mxu0
    %v9083 = vadd.f32 %v8890, %v9082
    %v9084 = vpop.f32.mrf.mxu0
    %v9085 = vadd.f32 %v8892, %v9084
    %v9086 = vpop.f32.mrf.mxu0
    %v9087 = vadd.f32 %v8894, %v9086
    %9088 = vmatprep.mubr.bf16.mxu0 %v5448
    %9089 = vmatmul.mubr.bf16.gmra.mxu0 %v5447
    %v9090 = vpop.f32.mrf.mxu0
    %v9091 = vadd.f32 %v8898, %v9090
    %v9092 = vpop.f32.mrf.mxu0
    %v9093 = vadd.f32 %v8900, %v9092
    %v9094 = vpop.f32.mrf.mxu0
    %v9095 = vadd.f32 %v8902, %v9094
    %v9096 = vpop.f32.mrf.mxu0
    %v9097 = vadd.f32 %v8904, %v9096
    %9098 = vmatprep.mubr.bf16.mxu0 %v5455
    %9099 = vmatmul.mubr.bf16.gmra.mxu0 %v5454
    %v9100 = vpop.f32.mrf.mxu0
    %v9101 = vadd.f32 %v8908, %v9100
    %v9102 = vpop.f32.mrf.mxu0
    %v9103 = vadd.f32 %v8910, %v9102
    %v9104 = vpop.f32.mrf.mxu0
    %v9105 = vadd.f32 %v8912, %v9104
    %v9106 = vpop.f32.mrf.mxu0
    %v9107 = vadd.f32 %v8914, %v9106
    %9108 = vmatprep.mubr.bf16.mxu0 %v5462
    %9109 = vmatmul.mubr.bf16.gmra.mxu0 %v5461
    %v9110 = vpop.f32.mrf.mxu0
    %v9111 = vadd.f32 %v8918, %v9110
    %v9112 = vpop.f32.mrf.mxu0
    %v9113 = vadd.f32 %v8920, %v9112
    %v9114 = vpop.f32.mrf.mxu0
    %v9115 = vadd.f32 %v8922, %v9114
    %v9116 = vpop.f32.mrf.mxu0
    %v9117 = vadd.f32 %v8924, %v9116
    %9118 = vmatprep.mubr.bf16.mxu0 %v5469
    %9119 = vmatmul.mubr.bf16.gmra.mxu0 %v5468
    %v9120 = vpop.f32.mrf.mxu0
    %v9121 = vadd.f32 %v8928, %v9120
    %v9122 = vpop.f32.mrf.mxu0
    %v9123 = vadd.f32 %v8930, %v9122
    %v9124 = vpop.f32.mrf.mxu0
    %v9125 = vadd.f32 %v8932, %v9124
    %v9126 = vpop.f32.mrf.mxu0
    %v9127 = vadd.f32 %v8934, %v9126
    %9128 = vmatprep.mubr.bf16.mxu0 %v5476
    %9129 = vmatmul.mubr.bf16.gmra.mxu0 %v5475
    %v9130 = vpop.f32.mrf.mxu0
    %v9131 = vadd.f32 %v8938, %v9130
    %v9132 = vpop.f32.mrf.mxu0
    %v9133 = vadd.f32 %v8940, %v9132
    %v9134 = vpop.f32.mrf.mxu0
    %v9135 = vadd.f32 %v8942, %v9134
    %v9136 = vpop.f32.mrf.mxu0
    %v9137 = vadd.f32 %v8944, %v9136
    %9138 = vdwg.mxu0
    %9139 = vmatprep.subr.bf16.mxu0 %v7473
    %9140 = vmatpush1.bf16.msra.mxu0 %v7472
    %9141 = vmatprep.subr.bf16.mxu0 %v7466
    %9142 = vmatpush1.bf16.msra.mxu0 %v7465
    %9143 = vmatprep.subr.bf16.mxu0 %v7459
    %9144 = vmatpush1.bf16.msra.mxu0 %v7458
    %9145 = vmatprep.subr.bf16.mxu0 %v7452
    %9146 = vmatpush1.bf16.msra.mxu0 %v7451
    %9147 = vmatprep.subr.bf16.mxu0 %v7445
    %9148 = vmatpush1.bf16.msra.mxu0 %v7444
    %9149 = vmatprep.subr.bf16.mxu0 %v7438
    %9150 = vmatpush1.bf16.msra.mxu0 %v7437
    %9151 = vmatprep.subr.bf16.mxu0 %v7431
    %9152 = vmatpush1.bf16.msra.mxu0 %v7430
    %9153 = vmatprep.subr.bf16.mxu0 %v7424
    %9154 = vmatpush1.bf16.msra.mxu0 %v7423
    %9155 = vmatprep.subr.bf16.mxu0 %v7529
    %9156 = vmatpush2.bf16.msra.mxu0 %v7528
    %9157 = vmatprep.subr.bf16.mxu0 %v7522
    %9158 = vmatpush2.bf16.msra.mxu0 %v7521
    %9159 = vmatprep.subr.bf16.mxu0 %v7515
    %9160 = vmatpush2.bf16.msra.mxu0 %v7514
    %9161 = vmatprep.subr.bf16.mxu0 %v7508
    %9162 = vmatpush2.bf16.msra.mxu0 %v7507
    %9163 = vmatprep.subr.bf16.mxu0 %v7501
    %9164 = vmatpush2.bf16.msra.mxu0 %v7500
    %9165 = vmatprep.subr.bf16.mxu0 %v7494
    %9166 = vmatpush2.bf16.msra.mxu0 %v7493
    %9167 = vmatprep.subr.bf16.mxu0 %v7487
    %9168 = vmatpush2.bf16.msra.mxu0 %v7486
    %9169 = vmatprep.subr.bf16.mxu0 %v7480
    %9170 = vmatpush2.bf16.msra.mxu0 %v7479
    %9171 = vmatprep.mubr.bf16.mxu0 %v5373
    %9172 = vmatmul.mubr.bf16.gmra.mxu0 %v5372
    %v9173 = vpop.f32.mrf.mxu0
    %v9174 = vadd.f32 %v8981, %v9173
    %v9175 = vpop.f32.mrf.mxu0
    %v9176 = vadd.f32 %v8983, %v9175
    %v9177 = vpop.f32.mrf.mxu0
    %v9178 = vadd.f32 %v8985, %v9177
    %v9179 = vpop.f32.mrf.mxu0
    %v9180 = vadd.f32 %v8987, %v9179
    %9181 = vmatprep.mubr.bf16.mxu0 %v5380
    %9182 = vmatmul.mubr.bf16.gmra.mxu0 %v5379
    %v9183 = vpop.f32.mrf.mxu0
    %v9184 = vadd.f32 %v8991, %v9183
    %v9185 = vpop.f32.mrf.mxu0
    %v9186 = vadd.f32 %v8993, %v9185
    %v9187 = vpop.f32.mrf.mxu0
    %v9188 = vadd.f32 %v8995, %v9187
    %v9189 = vpop.f32.mrf.mxu0
    %v9190 = vadd.f32 %v8997, %v9189
    %9191 = vmatprep.mubr.bf16.mxu0 %v5387
    %9192 = vmatmul.mubr.bf16.gmra.mxu0 %v5386
    %v9193 = vpop.f32.mrf.mxu0
    %v9194 = vadd.f32 %v9001, %v9193
    %v9195 = vpop.f32.mrf.mxu0
    %v9196 = vadd.f32 %v9003, %v9195
    %v9197 = vpop.f32.mrf.mxu0
    %v9198 = vadd.f32 %v9005, %v9197
    %v9199 = vpop.f32.mrf.mxu0
    %v9200 = vadd.f32 %v9007, %v9199
    %9201 = vmatprep.mubr.bf16.mxu0 %v5394
    %9202 = vmatmul.mubr.bf16.gmra.mxu0 %v5393
    %v9203 = vpop.f32.mrf.mxu0
    %v9204 = vadd.f32 %v9011, %v9203
    %v9205 = vpop.f32.mrf.mxu0
    %v9206 = vadd.f32 %v9013, %v9205
    %v9207 = vpop.f32.mrf.mxu0
    %v9208 = vadd.f32 %v9015, %v9207
    %v9209 = vpop.f32.mrf.mxu0
    %v9210 = vadd.f32 %v9017, %v9209
    %9211 = vmatprep.mubr.bf16.mxu0 %v5401
    %9212 = vmatmul.mubr.bf16.gmra.mxu0 %v5400
    %v9213 = vpop.f32.mrf.mxu0
    %v9214 = vadd.f32 %v9021, %v9213
    %v9215 = vpop.f32.mrf.mxu0
    %v9216 = vadd.f32 %v9023, %v9215
    %v9217 = vpop.f32.mrf.mxu0
    %v9218 = vadd.f32 %v9025, %v9217
    %v9219 = vpop.f32.mrf.mxu0
    %v9220 = vadd.f32 %v9027, %v9219
    %9221 = vmatprep.mubr.bf16.mxu0 %v5408
    %9222 = vmatmul.mubr.bf16.gmra.mxu0 %v5407
    %v9223 = vpop.f32.mrf.mxu0
    %v9224 = vadd.f32 %v9031, %v9223
    %v9225 = vpop.f32.mrf.mxu0
    %v9226 = vadd.f32 %v9033, %v9225
    %v9227 = vpop.f32.mrf.mxu0
    %v9228 = vadd.f32 %v9035, %v9227
    %v9229 = vpop.f32.mrf.mxu0
    %v9230 = vadd.f32 %v9037, %v9229
    %9231 = vmatprep.mubr.bf16.mxu0 %v5415
    %9232 = vmatmul.mubr.bf16.gmra.mxu0 %v5414
    %v9233 = vpop.f32.mrf.mxu0
    %v9234 = vadd.f32 %v9041, %v9233
    %v9235 = vpop.f32.mrf.mxu0
    %v9236 = vadd.f32 %v9043, %v9235
    %v9237 = vpop.f32.mrf.mxu0
    %v9238 = vadd.f32 %v9045, %v9237
    %v9239 = vpop.f32.mrf.mxu0
    %v9240 = vadd.f32 %v9047, %v9239
    %9241 = vmatprep.mubr.bf16.mxu0 %v5422
    %9242 = vmatmul.mubr.bf16.gmra.mxu0 %v5421
    %v9243 = vpop.f32.mrf.mxu0
    %v9244 = vadd.f32 %v9051, %v9243
    %v9245 = vpop.f32.mrf.mxu0
    %v9246 = vadd.f32 %v9053, %v9245
    %v9247 = vpop.f32.mrf.mxu0
    %v9248 = vadd.f32 %v9055, %v9247
    %v9249 = vpop.f32.mrf.mxu0
    %v9250 = vadd.f32 %v9057, %v9249
    %9251 = vmatprep.mubr.bf16.mxu0 %v5429
    %9252 = vmatmul.mubr.bf16.gmra.mxu0 %v5428
    %v9253 = vpop.f32.mrf.mxu0
    %v9254 = vadd.f32 %v9061, %v9253
    %v9255 = vpop.f32.mrf.mxu0
    %v9256 = vadd.f32 %v9063, %v9255
    %v9257 = vpop.f32.mrf.mxu0
    %v9258 = vadd.f32 %v9065, %v9257
    %v9259 = vpop.f32.mrf.mxu0
    %v9260 = vadd.f32 %v9067, %v9259
    %9261 = vmatprep.mubr.bf16.mxu0 %v5436
    %9262 = vmatmul.mubr.bf16.gmra.mxu0 %v5435
    %v9263 = vpop.f32.mrf.mxu0
    %v9264 = vadd.f32 %v9071, %v9263
    %v9265 = vpop.f32.mrf.mxu0
    %v9266 = vadd.f32 %v9073, %v9265
    %v9267 = vpop.f32.mrf.mxu0
    %v9268 = vadd.f32 %v9075, %v9267
    %v9269 = vpop.f32.mrf.mxu0
    %v9270 = vadd.f32 %v9077, %v9269
    %9271 = vmatprep.mubr.bf16.mxu0 %v5443
    %9272 = vmatmul.mubr.bf16.gmra.mxu0 %v5442
    %v9273 = vpop.f32.mrf.mxu0
    %v9274 = vadd.f32 %v9081, %v9273
    %v9275 = vpop.f32.mrf.mxu0
    %v9276 = vadd.f32 %v9083, %v9275
    %v9277 = vpop.f32.mrf.mxu0
    %v9278 = vadd.f32 %v9085, %v9277
    %v9279 = vpop.f32.mrf.mxu0
    %v9280 = vadd.f32 %v9087, %v9279
    %9281 = vmatprep.mubr.bf16.mxu0 %v5450
    %9282 = vmatmul.mubr.bf16.gmra.mxu0 %v5449
    %v9283 = vpop.f32.mrf.mxu0
    %v9284 = vadd.f32 %v9091, %v9283
    %v9285 = vpop.f32.mrf.mxu0
    %v9286 = vadd.f32 %v9093, %v9285
    %v9287 = vpop.f32.mrf.mxu0
    %v9288 = vadd.f32 %v9095, %v9287
    %v9289 = vpop.f32.mrf.mxu0
    %v9290 = vadd.f32 %v9097, %v9289
    %9291 = vmatprep.mubr.bf16.mxu0 %v5457
    %9292 = vmatmul.mubr.bf16.gmra.mxu0 %v5456
    %v9293 = vpop.f32.mrf.mxu0
    %v9294 = vadd.f32 %v9101, %v9293
    %v9295 = vpop.f32.mrf.mxu0
    %v9296 = vadd.f32 %v9103, %v9295
    %v9297 = vpop.f32.mrf.mxu0
    %v9298 = vadd.f32 %v9105, %v9297
    %v9299 = vpop.f32.mrf.mxu0
    %v9300 = vadd.f32 %v9107, %v9299
    %9301 = vmatprep.mubr.bf16.mxu0 %v5464
    %9302 = vmatmul.mubr.bf16.gmra.mxu0 %v5463
    %v9303 = vpop.f32.mrf.mxu0
    %v9304 = vadd.f32 %v9111, %v9303
    %v9305 = vpop.f32.mrf.mxu0
    %v9306 = vadd.f32 %v9113, %v9305
    %v9307 = vpop.f32.mrf.mxu0
    %v9308 = vadd.f32 %v9115, %v9307
    %v9309 = vpop.f32.mrf.mxu0
    %v9310 = vadd.f32 %v9117, %v9309
    %9311 = vmatprep.mubr.bf16.mxu0 %v5471
    %9312 = vmatmul.mubr.bf16.gmra.mxu0 %v5470
    %v9313 = vpop.f32.mrf.mxu0
    %v9314 = vadd.f32 %v9121, %v9313
    %v9315 = vpop.f32.mrf.mxu0
    %v9316 = vadd.f32 %v9123, %v9315
    %v9317 = vpop.f32.mrf.mxu0
    %v9318 = vadd.f32 %v9125, %v9317
    %v9319 = vpop.f32.mrf.mxu0
    %v9320 = vadd.f32 %v9127, %v9319
    %9321 = vmatprep.mubr.bf16.mxu0 %v5478
    %9322 = vmatmul.mubr.bf16.gmra.mxu0 %v5477
    %v9323 = vpop.f32.mrf.mxu0
    %v9324 = vadd.f32 %v9131, %v9323
    %v9325 = vpop.f32.mrf.mxu0
    %v9326 = vadd.f32 %v9133, %v9325
    %v9327 = vpop.f32.mrf.mxu0
    %v9328 = vadd.f32 %v9135, %v9327
    %v9329 = vpop.f32.mrf.mxu0
    %v9330 = vadd.f32 %v9137, %v9329
    %9331 = vdwg.mxu0
    %9332 = vmatprep.subr.bf16.mxu0 %v7585
    %9333 = vmatpush1.bf16.msra.mxu0 %v7584
    %9334 = vmatprep.subr.bf16.mxu0 %v7578
    %9335 = vmatpush1.bf16.msra.mxu0 %v7577
    %9336 = vmatprep.subr.bf16.mxu0 %v7571
    %9337 = vmatpush1.bf16.msra.mxu0 %v7570
    %9338 = vmatprep.subr.bf16.mxu0 %v7564
    %9339 = vmatpush1.bf16.msra.mxu0 %v7563
    %9340 = vmatprep.subr.bf16.mxu0 %v7557
    %9341 = vmatpush1.bf16.msra.mxu0 %v7556
    %9342 = vmatprep.subr.bf16.mxu0 %v7550
    %9343 = vmatpush1.bf16.msra.mxu0 %v7549
    %9344 = vmatprep.subr.bf16.mxu0 %v7543
    %9345 = vmatpush1.bf16.msra.mxu0 %v7542
    %9346 = vmatprep.subr.bf16.mxu0 %v7536
    %9347 = vmatpush1.bf16.msra.mxu0 %v7535
    %9348 = vmatprep.subr.bf16.mxu0 0
    %9349 = vmatpush2.bf16.msra.mxu0 0
    %9350 = vmatprep.subr.bf16.mxu0 0
    %9351 = vmatpush2.bf16.msra.mxu0 0
    %9352 = vmatprep.subr.bf16.mxu0 0
    %9353 = vmatpush2.bf16.msra.mxu0 0
    %9354 = vmatprep.subr.bf16.mxu0 0
    %9355 = vmatpush2.bf16.msra.mxu0 0
    %9356 = vmatprep.subr.bf16.mxu0 0
    %9357 = vmatpush2.bf16.msra.mxu0 0
    %9358 = vmatprep.subr.bf16.mxu0 0
    %9359 = vmatpush2.bf16.msra.mxu0 0
    %9360 = vmatprep.subr.bf16.mxu0 0
    %9361 = vmatpush2.bf16.msra.mxu0 0
    %9362 = vmatprep.subr.bf16.mxu0 0
    %9363 = vmatpush2.bf16.msra.mxu0 0
    %9364 = vmatprep.mubr.bf16.mxu0 0
    %9365 = vmatmul.mubr.bf16.gmra.mxu0 %v5374
    %v9366 = vpop.f32.mrf.mxu0
    %v9367 = vadd.f32 %v9174, %v9366
    %v9368 = vpop.f32.mrf.mxu0
    %v9369 = vadd.f32 %v9176, %v9368
    %v9370 = vpop.f32.mrf.mxu0
    %v9371 = vadd.f32 %v9178, %v9370
    %v9372 = vpop.f32.mrf.mxu0
    %v9373 = vadd.f32 %v9180, %v9372
    %9374 = vmatprep.mubr.bf16.mxu0 0
    %9375 = vmatmul.mubr.bf16.gmra.mxu0 %v5381
    %v9376 = vpop.f32.mrf.mxu0
    %v9377 = vadd.f32 %v9184, %v9376
    %v9378 = vpop.f32.mrf.mxu0
    %v9379 = vadd.f32 %v9186, %v9378
    %v9380 = vpop.f32.mrf.mxu0
    %v9381 = vadd.f32 %v9188, %v9380
    %v9382 = vpop.f32.mrf.mxu0
    %v9383 = vadd.f32 %v9190, %v9382
    %9384 = vmatprep.mubr.bf16.mxu0 0
    %9385 = vmatmul.mubr.bf16.gmra.mxu0 %v5388
    %v9386 = vpop.f32.mrf.mxu0
    %v9387 = vadd.f32 %v9194, %v9386
    %v9388 = vpop.f32.mrf.mxu0
    %v9389 = vadd.f32 %v9196, %v9388
    %v9390 = vpop.f32.mrf.mxu0
    %v9391 = vadd.f32 %v9198, %v9390
    %v9392 = vpop.f32.mrf.mxu0
    %v9393 = vadd.f32 %v9200, %v9392
    %9394 = vmatprep.mubr.bf16.mxu0 0
    %9395 = vmatmul.mubr.bf16.gmra.mxu0 %v5395
    %v9396 = vpop.f32.mrf.mxu0
    %v9397 = vadd.f32 %v9204, %v9396
    %v9398 = vpop.f32.mrf.mxu0
    %v9399 = vadd.f32 %v9206, %v9398
    %v9400 = vpop.f32.mrf.mxu0
    %v9401 = vadd.f32 %v9208, %v9400
    %v9402 = vpop.f32.mrf.mxu0
    %v9403 = vadd.f32 %v9210, %v9402
    %9404 = vmatprep.mubr.bf16.mxu0 0
    %9405 = vmatmul.mubr.bf16.gmra.mxu0 %v5402
    %v9406 = vpop.f32.mrf.mxu0
    %v9407 = vadd.f32 %v9214, %v9406
    %v9408 = vpop.f32.mrf.mxu0
    %v9409 = vadd.f32 %v9216, %v9408
    %v9410 = vpop.f32.mrf.mxu0
    %v9411 = vadd.f32 %v9218, %v9410
    %v9412 = vpop.f32.mrf.mxu0
    %v9413 = vadd.f32 %v9220, %v9412
    %9414 = vmatprep.mubr.bf16.mxu0 0
    %9415 = vmatmul.mubr.bf16.gmra.mxu0 %v5409
    %v9416 = vpop.f32.mrf.mxu0
    %v9417 = vadd.f32 %v9224, %v9416
    %v9418 = vpop.f32.mrf.mxu0
    %v9419 = vadd.f32 %v9226, %v9418
    %v9420 = vpop.f32.mrf.mxu0
    %v9421 = vadd.f32 %v9228, %v9420
    %v9422 = vpop.f32.mrf.mxu0
    %v9423 = vadd.f32 %v9230, %v9422
    %9424 = vmatprep.mubr.bf16.mxu0 0
    %9425 = vmatmul.mubr.bf16.gmra.mxu0 %v5416
    %v9426 = vpop.f32.mrf.mxu0
    %v9427 = vadd.f32 %v9234, %v9426
    %v9428 = vpop.f32.mrf.mxu0
    %v9429 = vadd.f32 %v9236, %v9428
    %v9430 = vpop.f32.mrf.mxu0
    %v9431 = vadd.f32 %v9238, %v9430
    %v9432 = vpop.f32.mrf.mxu0
    %v9433 = vadd.f32 %v9240, %v9432
    %9434 = vmatprep.mubr.bf16.mxu0 0
    %9435 = vmatmul.mubr.bf16.gmra.mxu0 %v5423
    %v9436 = vpop.f32.mrf.mxu0
    %v9437 = vadd.f32 %v9244, %v9436
    %v9438 = vpop.f32.mrf.mxu0
    %v9439 = vadd.f32 %v9246, %v9438
    %v9440 = vpop.f32.mrf.mxu0
    %v9441 = vadd.f32 %v9248, %v9440
    %v9442 = vpop.f32.mrf.mxu0
    %v9443 = vadd.f32 %v9250, %v9442
    %9444 = vmatprep.mubr.bf16.mxu0 0
    %9445 = vmatmul.mubr.bf16.gmra.mxu0 %v5430
    %v9446 = vpop.f32.mrf.mxu0
    %v9447 = vadd.f32 %v9254, %v9446
    %v9448 = vpop.f32.mrf.mxu0
    %v9449 = vadd.f32 %v9256, %v9448
    %v9450 = vpop.f32.mrf.mxu0
    %v9451 = vadd.f32 %v9258, %v9450
    %v9452 = vpop.f32.mrf.mxu0
    %v9453 = vadd.f32 %v9260, %v9452
    %9454 = vmatprep.mubr.bf16.mxu0 0
    %9455 = vmatmul.mubr.bf16.gmra.mxu0 %v5437
    %v9456 = vpop.f32.mrf.mxu0
    %v9457 = vadd.f32 %v9264, %v9456
    %v9458 = vpop.f32.mrf.mxu0
    %v9459 = vadd.f32 %v9266, %v9458
    %v9460 = vpop.f32.mrf.mxu0
    %v9461 = vadd.f32 %v9268, %v9460
    %v9462 = vpop.f32.mrf.mxu0
    %v9463 = vadd.f32 %v9270, %v9462
    %9464 = vmatprep.mubr.bf16.mxu0 0
    %9465 = vmatmul.mubr.bf16.gmra.mxu0 %v5444
    %v9466 = vpop.f32.mrf.mxu0
    %v9467 = vadd.f32 %v9274, %v9466
    %v9468 = vpop.f32.mrf.mxu0
    %v9469 = vadd.f32 %v9276, %v9468
    %v9470 = vpop.f32.mrf.mxu0
    %v9471 = vadd.f32 %v9278, %v9470
    %v9472 = vpop.f32.mrf.mxu0
    %v9473 = vadd.f32 %v9280, %v9472
    %9474 = vmatprep.mubr.bf16.mxu0 0
    %9475 = vmatmul.mubr.bf16.gmra.mxu0 %v5451
    %v9476 = vpop.f32.mrf.mxu0
    %v9477 = vadd.f32 %v9284, %v9476
    %v9478 = vpop.f32.mrf.mxu0
    %v9479 = vadd.f32 %v9286, %v9478
    %v9480 = vpop.f32.mrf.mxu0
    %v9481 = vadd.f32 %v9288, %v9480
    %v9482 = vpop.f32.mrf.mxu0
    %v9483 = vadd.f32 %v9290, %v9482
    %9484 = vmatprep.mubr.bf16.mxu0 0
    %9485 = vmatmul.mubr.bf16.gmra.mxu0 %v5458
    %v9486 = vpop.f32.mrf.mxu0
    %v9487 = vadd.f32 %v9294, %v9486
    %v9488 = vpop.f32.mrf.mxu0
    %v9489 = vadd.f32 %v9296, %v9488
    %v9490 = vpop.f32.mrf.mxu0
    %v9491 = vadd.f32 %v9298, %v9490
    %v9492 = vpop.f32.mrf.mxu0
    %v9493 = vadd.f32 %v9300, %v9492
    %9494 = vmatprep.mubr.bf16.mxu0 0
    %9495 = vmatmul.mubr.bf16.gmra.mxu0 %v5465
    %v9496 = vpop.f32.mrf.mxu0
    %v9497 = vadd.f32 %v9304, %v9496
    %v9498 = vpop.f32.mrf.mxu0
    %v9499 = vadd.f32 %v9306, %v9498
    %v9500 = vpop.f32.mrf.mxu0
    %v9501 = vadd.f32 %v9308, %v9500
    %v9502 = vpop.f32.mrf.mxu0
    %v9503 = vadd.f32 %v9310, %v9502
    %9504 = vmatprep.mubr.bf16.mxu0 0
    %9505 = vmatmul.mubr.bf16.gmra.mxu0 %v5472
    %v9506 = vpop.f32.mrf.mxu0
    %v9507 = vadd.f32 %v9314, %v9506
    %v9508 = vpop.f32.mrf.mxu0
    %v9509 = vadd.f32 %v9316, %v9508
    %v9510 = vpop.f32.mrf.mxu0
    %v9511 = vadd.f32 %v9318, %v9510
    %v9512 = vpop.f32.mrf.mxu0
    %v9513 = vadd.f32 %v9320, %v9512
    %9514 = vmatprep.mubr.bf16.mxu0 0
    %9515 = vmatmul.mubr.bf16.gmra.mxu0 %v5479
    %v9516 = vpop.f32.mrf.mxu0
    %v9517 = vadd.f32 %v9324, %v9516
    %v9518 = vpop.f32.mrf.mxu0
    %v9519 = vadd.f32 %v9326, %v9518
    %v9520 = vpop.f32.mrf.mxu0
    %v9521 = vadd.f32 %v9328, %v9520
    %v9522 = vpop.f32.mrf.mxu0
    %v9523 = vadd.f32 %v9330, %v9522
    %9524 = vdwg.mxu0
    %9525 = vmatprep.subr.bf16.mxu0 %v7251
    %9526 = vmatpush1.bf16.msra.mxu0 %v7250
    %9527 = vmatprep.subr.bf16.mxu0 %v7244
    %9528 = vmatpush1.bf16.msra.mxu0 %v7243
    %9529 = vmatprep.subr.bf16.mxu0 %v7237
    %9530 = vmatpush1.bf16.msra.mxu0 %v7236
    %9531 = vmatprep.subr.bf16.mxu0 %v7230
    %9532 = vmatpush1.bf16.msra.mxu0 %v7229
    %9533 = vmatprep.subr.bf16.mxu0 %v7223
    %9534 = vmatpush1.bf16.msra.mxu0 %v7222
    %9535 = vmatprep.subr.bf16.mxu0 %v7216
    %9536 = vmatpush1.bf16.msra.mxu0 %v7215
    %9537 = vmatprep.subr.bf16.mxu0 %v7209
    %9538 = vmatpush1.bf16.msra.mxu0 %v7208
    %9539 = vmatprep.subr.bf16.mxu0 %v7202
    %9540 = vmatpush1.bf16.msra.mxu0 %v7201
    %9541 = vmatprep.subr.bf16.mxu0 %v7307
    %9542 = vmatpush2.bf16.msra.mxu0 %v7306
    %9543 = vmatprep.subr.bf16.mxu0 %v7300
    %9544 = vmatpush2.bf16.msra.mxu0 %v7299
    %9545 = vmatprep.subr.bf16.mxu0 %v7293
    %9546 = vmatpush2.bf16.msra.mxu0 %v7292
    %9547 = vmatprep.subr.bf16.mxu0 %v7286
    %9548 = vmatpush2.bf16.msra.mxu0 %v7285
    %9549 = vmatprep.subr.bf16.mxu0 %v7279
    %9550 = vmatpush2.bf16.msra.mxu0 %v7278
    %9551 = vmatprep.subr.bf16.mxu0 %v7272
    %9552 = vmatpush2.bf16.msra.mxu0 %v7271
    %9553 = vmatprep.subr.bf16.mxu0 %v7265
    %9554 = vmatpush2.bf16.msra.mxu0 %v7264
    %9555 = vmatprep.subr.bf16.mxu0 %v7258
    %9556 = vmatpush2.bf16.msra.mxu0 %v7257
    %9557 = vmatprep.mubr.bf16.mxu0 %v5369
    %9558 = vmatmul.mubr.bf16.gmra.mxu0 %v5368
    %v9559 = vpop.f32.mrf.mxu0
    %v9560 = vadd.f32 %v5949, %v9559
    %v9561 = vpop.f32.mrf.mxu0
    %v9562 = vadd.f32 %v5953, %v9561
    %v9563 = vpop.f32.mrf.mxu0
    %v9564 = vadd.f32 %v5949, %v9563
    %v9565 = vpop.f32.mrf.mxu0
    %v9566 = vadd.f32 %v5953, %v9565
    %9567 = vmatprep.mubr.bf16.mxu0 %v5376
    %9568 = vmatmul.mubr.bf16.gmra.mxu0 %v5375
    %v9569 = vpop.f32.mrf.mxu0
    %v9570 = vadd.f32 %v5949, %v9569
    %v9571 = vpop.f32.mrf.mxu0
    %v9572 = vadd.f32 %v5953, %v9571
    %v9573 = vpop.f32.mrf.mxu0
    %v9574 = vadd.f32 %v5949, %v9573
    %v9575 = vpop.f32.mrf.mxu0
    %v9576 = vadd.f32 %v5953, %v9575
    %9577 = vmatprep.mubr.bf16.mxu0 %v5383
    %9578 = vmatmul.mubr.bf16.gmra.mxu0 %v5382
    %v9579 = vpop.f32.mrf.mxu0
    %v9580 = vadd.f32 %v5949, %v9579
    %v9581 = vpop.f32.mrf.mxu0
    %v9582 = vadd.f32 %v5953, %v9581
    %v9583 = vpop.f32.mrf.mxu0
    %v9584 = vadd.f32 %v5949, %v9583
    %v9585 = vpop.f32.mrf.mxu0
    %v9586 = vadd.f32 %v5953, %v9585
    %9587 = vmatprep.mubr.bf16.mxu0 %v5390
    %9588 = vmatmul.mubr.bf16.gmra.mxu0 %v5389
    %v9589 = vpop.f32.mrf.mxu0
    %v9590 = vadd.f32 %v5949, %v9589
    %v9591 = vpop.f32.mrf.mxu0
    %v9592 = vadd.f32 %v5953, %v9591
    %v9593 = vpop.f32.mrf.mxu0
    %v9594 = vadd.f32 %v5949, %v9593
    %v9595 = vpop.f32.mrf.mxu0
    %v9596 = vadd.f32 %v5953, %v9595
    %9597 = vmatprep.mubr.bf16.mxu0 %v5397
    %9598 = vmatmul.mubr.bf16.gmra.mxu0 %v5396
    %v9599 = vpop.f32.mrf.mxu0
    %v9600 = vadd.f32 %v5949, %v9599
    %v9601 = vpop.f32.mrf.mxu0
    %v9602 = vadd.f32 %v5953, %v9601
    %v9603 = vpop.f32.mrf.mxu0
    %v9604 = vadd.f32 %v5949, %v9603
    %v9605 = vpop.f32.mrf.mxu0
    %v9606 = vadd.f32 %v5953, %v9605
    %9607 = vmatprep.mubr.bf16.mxu0 %v5404
    %9608 = vmatmul.mubr.bf16.gmra.mxu0 %v5403
    %v9609 = vpop.f32.mrf.mxu0
    %v9610 = vadd.f32 %v5949, %v9609
    %v9611 = vpop.f32.mrf.mxu0
    %v9612 = vadd.f32 %v5953, %v9611
    %v9613 = vpop.f32.mrf.mxu0
    %v9614 = vadd.f32 %v5949, %v9613
    %v9615 = vpop.f32.mrf.mxu0
    %v9616 = vadd.f32 %v5953, %v9615
    %9617 = vmatprep.mubr.bf16.mxu0 %v5411
    %9618 = vmatmul.mubr.bf16.gmra.mxu0 %v5410
    %v9619 = vpop.f32.mrf.mxu0
    %v9620 = vadd.f32 %v5949, %v9619
    %v9621 = vpop.f32.mrf.mxu0
    %v9622 = vadd.f32 %v5953, %v9621
    %v9623 = vpop.f32.mrf.mxu0
    %v9624 = vadd.f32 %v5949, %v9623
    %v9625 = vpop.f32.mrf.mxu0
    %v9626 = vadd.f32 %v5953, %v9625
    %9627 = vmatprep.mubr.bf16.mxu0 %v5418
    %9628 = vmatmul.mubr.bf16.gmra.mxu0 %v5417
    %v9629 = vpop.f32.mrf.mxu0
    %v9630 = vadd.f32 %v5949, %v9629
    %v9631 = vpop.f32.mrf.mxu0
    %v9632 = vadd.f32 %v5953, %v9631
    %v9633 = vpop.f32.mrf.mxu0
    %v9634 = vadd.f32 %v5949, %v9633
    %v9635 = vpop.f32.mrf.mxu0
    %v9636 = vadd.f32 %v5953, %v9635
    %9637 = vmatprep.mubr.bf16.mxu0 %v5425
    %9638 = vmatmul.mubr.bf16.gmra.mxu0 %v5424
    %v9639 = vpop.f32.mrf.mxu0
    %v9640 = vadd.f32 %v5949, %v9639
    %v9641 = vpop.f32.mrf.mxu0
    %v9642 = vadd.f32 %v5953, %v9641
    %v9643 = vpop.f32.mrf.mxu0
    %v9644 = vadd.f32 %v5949, %v9643
    %v9645 = vpop.f32.mrf.mxu0
    %v9646 = vadd.f32 %v5953, %v9645
    %9647 = vmatprep.mubr.bf16.mxu0 %v5432
    %9648 = vmatmul.mubr.bf16.gmra.mxu0 %v5431
    %v9649 = vpop.f32.mrf.mxu0
    %v9650 = vadd.f32 %v5949, %v9649
    %v9651 = vpop.f32.mrf.mxu0
    %v9652 = vadd.f32 %v5953, %v9651
    %v9653 = vpop.f32.mrf.mxu0
    %v9654 = vadd.f32 %v5949, %v9653
    %v9655 = vpop.f32.mrf.mxu0
    %v9656 = vadd.f32 %v5953, %v9655
    %9657 = vmatprep.mubr.bf16.mxu0 %v5439
    %9658 = vmatmul.mubr.bf16.gmra.mxu0 %v5438
    %v9659 = vpop.f32.mrf.mxu0
    %v9660 = vadd.f32 %v5949, %v9659
    %v9661 = vpop.f32.mrf.mxu0
    %v9662 = vadd.f32 %v5953, %v9661
    %v9663 = vpop.f32.mrf.mxu0
    %v9664 = vadd.f32 %v5949, %v9663
    %v9665 = vpop.f32.mrf.mxu0
    %v9666 = vadd.f32 %v5953, %v9665
    %9667 = vmatprep.mubr.bf16.mxu0 %v5446
    %9668 = vmatmul.mubr.bf16.gmra.mxu0 %v5445
    %v9669 = vpop.f32.mrf.mxu0
    %v9670 = vadd.f32 %v5949, %v9669
    %v9671 = vpop.f32.mrf.mxu0
    %v9672 = vadd.f32 %v5953, %v9671
    %v9673 = vpop.f32.mrf.mxu0
    %v9674 = vadd.f32 %v5949, %v9673
    %v9675 = vpop.f32.mrf.mxu0
    %v9676 = vadd.f32 %v5953, %v9675
    %9677 = vmatprep.mubr.bf16.mxu0 %v5453
    %9678 = vmatmul.mubr.bf16.gmra.mxu0 %v5452
    %v9679 = vpop.f32.mrf.mxu0
    %v9680 = vadd.f32 %v5949, %v9679
    %v9681 = vpop.f32.mrf.mxu0
    %v9682 = vadd.f32 %v5953, %v9681
    %v9683 = vpop.f32.mrf.mxu0
    %v9684 = vadd.f32 %v5949, %v9683
    %v9685 = vpop.f32.mrf.mxu0
    %v9686 = vadd.f32 %v5953, %v9685
    %9687 = vmatprep.mubr.bf16.mxu0 %v5460
    %9688 = vmatmul.mubr.bf16.gmra.mxu0 %v5459
    %v9689 = vpop.f32.mrf.mxu0
    %v9690 = vadd.f32 %v5949, %v9689
    %v9691 = vpop.f32.mrf.mxu0
    %v9692 = vadd.f32 %v5953, %v9691
    %v9693 = vpop.f32.mrf.mxu0
    %v9694 = vadd.f32 %v5949, %v9693
    %v9695 = vpop.f32.mrf.mxu0
    %v9696 = vadd.f32 %v5953, %v9695
    %9697 = vmatprep.mubr.bf16.mxu0 %v5467
    %9698 = vmatmul.mubr.bf16.gmra.mxu0 %v5466
    %v9699 = vpop.f32.mrf.mxu0
    %v9700 = vadd.f32 %v5949, %v9699
    %v9701 = vpop.f32.mrf.mxu0
    %v9702 = vadd.f32 %v5953, %v9701
    %v9703 = vpop.f32.mrf.mxu0
    %v9704 = vadd.f32 %v5949, %v9703
    %v9705 = vpop.f32.mrf.mxu0
    %v9706 = vadd.f32 %v5953, %v9705
    %9707 = vmatprep.mubr.bf16.mxu0 %v5474
    %9708 = vmatmul.mubr.bf16.gmra.mxu0 %v5473
    %v9709 = vpop.f32.mrf.mxu0
    %v9710 = vadd.f32 %v5949, %v9709
    %v9711 = vpop.f32.mrf.mxu0
    %v9712 = vadd.f32 %v5953, %v9711
    %v9713 = vpop.f32.mrf.mxu0
    %v9714 = vadd.f32 %v5949, %v9713
    %v9715 = vpop.f32.mrf.mxu0
    %v9716 = vadd.f32 %v5953, %v9715
    %9717 = vdwg.mxu0
    %9718 = vmatprep.subr.bf16.mxu0 %v7363
    %9719 = vmatpush1.bf16.msra.mxu0 %v7362
    %9720 = vmatprep.subr.bf16.mxu0 %v7356
    %9721 = vmatpush1.bf16.msra.mxu0 %v7355
    %9722 = vmatprep.subr.bf16.mxu0 %v7349
    %9723 = vmatpush1.bf16.msra.mxu0 %v7348
    %9724 = vmatprep.subr.bf16.mxu0 %v7342
    %9725 = vmatpush1.bf16.msra.mxu0 %v7341
    %9726 = vmatprep.subr.bf16.mxu0 %v7335
    %9727 = vmatpush1.bf16.msra.mxu0 %v7334
    %9728 = vmatprep.subr.bf16.mxu0 %v7328
    %9729 = vmatpush1.bf16.msra.mxu0 %v7327
    %9730 = vmatprep.subr.bf16.mxu0 %v7321
    %9731 = vmatpush1.bf16.msra.mxu0 %v7320
    %9732 = vmatprep.subr.bf16.mxu0 %v7314
    %9733 = vmatpush1.bf16.msra.mxu0 %v7313
    %9734 = vmatprep.subr.bf16.mxu0 %v7419
    %9735 = vmatpush2.bf16.msra.mxu0 %v7418
    %9736 = vmatprep.subr.bf16.mxu0 %v7412
    %9737 = vmatpush2.bf16.msra.mxu0 %v7411
    %9738 = vmatprep.subr.bf16.mxu0 %v7405
    %9739 = vmatpush2.bf16.msra.mxu0 %v7404
    %9740 = vmatprep.subr.bf16.mxu0 %v7398
    %9741 = vmatpush2.bf16.msra.mxu0 %v7397
    %9742 = vmatprep.subr.bf16.mxu0 %v7391
    %9743 = vmatpush2.bf16.msra.mxu0 %v7390
    %9744 = vmatprep.subr.bf16.mxu0 %v7384
    %9745 = vmatpush2.bf16.msra.mxu0 %v7383
    %9746 = vmatprep.subr.bf16.mxu0 %v7377
    %9747 = vmatpush2.bf16.msra.mxu0 %v7376
    %9748 = vmatprep.subr.bf16.mxu0 %v7370
    %9749 = vmatpush2.bf16.msra.mxu0 %v7369
    %9750 = vmatprep.mubr.bf16.mxu0 %v5371
    %9751 = vmatmul.mubr.bf16.gmra.mxu0 %v5370
    %v9752 = vpop.f32.mrf.mxu0
    %v9753 = vadd.f32 %v9560, %v9752
    %v9754 = vpop.f32.mrf.mxu0
    %v9755 = vadd.f32 %v9562, %v9754
    %v9756 = vpop.f32.mrf.mxu0
    %v9757 = vadd.f32 %v9564, %v9756
    %v9758 = vpop.f32.mrf.mxu0
    %v9759 = vadd.f32 %v9566, %v9758
    %9760 = vmatprep.mubr.bf16.mxu0 %v5378
    %9761 = vmatmul.mubr.bf16.gmra.mxu0 %v5377
    %v9762 = vpop.f32.mrf.mxu0
    %v9763 = vadd.f32 %v9570, %v9762
    %v9764 = vpop.f32.mrf.mxu0
    %v9765 = vadd.f32 %v9572, %v9764
    %v9766 = vpop.f32.mrf.mxu0
    %v9767 = vadd.f32 %v9574, %v9766
    %v9768 = vpop.f32.mrf.mxu0
    %v9769 = vadd.f32 %v9576, %v9768
    %9770 = vmatprep.mubr.bf16.mxu0 %v5385
    %9771 = vmatmul.mubr.bf16.gmra.mxu0 %v5384
    %v9772 = vpop.f32.mrf.mxu0
    %v9773 = vadd.f32 %v9580, %v9772
    %v9774 = vpop.f32.mrf.mxu0
    %v9775 = vadd.f32 %v9582, %v9774
    %v9776 = vpop.f32.mrf.mxu0
    %v9777 = vadd.f32 %v9584, %v9776
    %v9778 = vpop.f32.mrf.mxu0
    %v9779 = vadd.f32 %v9586, %v9778
    %9780 = vmatprep.mubr.bf16.mxu0 %v5392
    %9781 = vmatmul.mubr.bf16.gmra.mxu0 %v5391
    %v9782 = vpop.f32.mrf.mxu0
    %v9783 = vadd.f32 %v9590, %v9782
    %v9784 = vpop.f32.mrf.mxu0
    %v9785 = vadd.f32 %v9592, %v9784
    %v9786 = vpop.f32.mrf.mxu0
    %v9787 = vadd.f32 %v9594, %v9786
    %v9788 = vpop.f32.mrf.mxu0
    %v9789 = vadd.f32 %v9596, %v9788
    %9790 = vmatprep.mubr.bf16.mxu0 %v5399
    %9791 = vmatmul.mubr.bf16.gmra.mxu0 %v5398
    %v9792 = vpop.f32.mrf.mxu0
    %v9793 = vadd.f32 %v9600, %v9792
    %v9794 = vpop.f32.mrf.mxu0
    %v9795 = vadd.f32 %v9602, %v9794
    %v9796 = vpop.f32.mrf.mxu0
    %v9797 = vadd.f32 %v9604, %v9796
    %v9798 = vpop.f32.mrf.mxu0
    %v9799 = vadd.f32 %v9606, %v9798
    %9800 = vmatprep.mubr.bf16.mxu0 %v5406
    %9801 = vmatmul.mubr.bf16.gmra.mxu0 %v5405
    %v9802 = vpop.f32.mrf.mxu0
    %v9803 = vadd.f32 %v9610, %v9802
    %v9804 = vpop.f32.mrf.mxu0
    %v9805 = vadd.f32 %v9612, %v9804
    %v9806 = vpop.f32.mrf.mxu0
    %v9807 = vadd.f32 %v9614, %v9806
    %v9808 = vpop.f32.mrf.mxu0
    %v9809 = vadd.f32 %v9616, %v9808
    %9810 = vmatprep.mubr.bf16.mxu0 %v5413
    %9811 = vmatmul.mubr.bf16.gmra.mxu0 %v5412
    %v9812 = vpop.f32.mrf.mxu0
    %v9813 = vadd.f32 %v9620, %v9812
    %v9814 = vpop.f32.mrf.mxu0
    %v9815 = vadd.f32 %v9622, %v9814
    %v9816 = vpop.f32.mrf.mxu0
    %v9817 = vadd.f32 %v9624, %v9816
    %v9818 = vpop.f32.mrf.mxu0
    %v9819 = vadd.f32 %v9626, %v9818
    %9820 = vmatprep.mubr.bf16.mxu0 %v5420
    %9821 = vmatmul.mubr.bf16.gmra.mxu0 %v5419
    %v9822 = vpop.f32.mrf.mxu0
    %v9823 = vadd.f32 %v9630, %v9822
    %v9824 = vpop.f32.mrf.mxu0
    %v9825 = vadd.f32 %v9632, %v9824
    %v9826 = vpop.f32.mrf.mxu0
    %v9827 = vadd.f32 %v9634, %v9826
    %v9828 = vpop.f32.mrf.mxu0
    %v9829 = vadd.f32 %v9636, %v9828
    %9830 = vmatprep.mubr.bf16.mxu0 %v5427
    %9831 = vmatmul.mubr.bf16.gmra.mxu0 %v5426
    %v9832 = vpop.f32.mrf.mxu0
    %v9833 = vadd.f32 %v9640, %v9832
    %v9834 = vpop.f32.mrf.mxu0
    %v9835 = vadd.f32 %v9642, %v9834
    %v9836 = vpop.f32.mrf.mxu0
    %v9837 = vadd.f32 %v9644, %v9836
    %v9838 = vpop.f32.mrf.mxu0
    %v9839 = vadd.f32 %v9646, %v9838
    %9840 = vmatprep.mubr.bf16.mxu0 %v5434
    %9841 = vmatmul.mubr.bf16.gmra.mxu0 %v5433
    %v9842 = vpop.f32.mrf.mxu0
    %v9843 = vadd.f32 %v9650, %v9842
    %v9844 = vpop.f32.mrf.mxu0
    %v9845 = vadd.f32 %v9652, %v9844
    %v9846 = vpop.f32.mrf.mxu0
    %v9847 = vadd.f32 %v9654, %v9846
    %v9848 = vpop.f32.mrf.mxu0
    %v9849 = vadd.f32 %v9656, %v9848
    %9850 = vmatprep.mubr.bf16.mxu0 %v5441
    %9851 = vmatmul.mubr.bf16.gmra.mxu0 %v5440
    %v9852 = vpop.f32.mrf.mxu0
    %v9853 = vadd.f32 %v9660, %v9852
    %v9854 = vpop.f32.mrf.mxu0
    %v9855 = vadd.f32 %v9662, %v9854
    %v9856 = vpop.f32.mrf.mxu0
    %v9857 = vadd.f32 %v9664, %v9856
    %v9858 = vpop.f32.mrf.mxu0
    %v9859 = vadd.f32 %v9666, %v9858
    %9860 = vmatprep.mubr.bf16.mxu0 %v5448
    %9861 = vmatmul.mubr.bf16.gmra.mxu0 %v5447
    %v9862 = vpop.f32.mrf.mxu0
    %v9863 = vadd.f32 %v9670, %v9862
    %v9864 = vpop.f32.mrf.mxu0
    %v9865 = vadd.f32 %v9672, %v9864
    %v9866 = vpop.f32.mrf.mxu0
    %v9867 = vadd.f32 %v9674, %v9866
    %v9868 = vpop.f32.mrf.mxu0
    %v9869 = vadd.f32 %v9676, %v9868
    %9870 = vmatprep.mubr.bf16.mxu0 %v5455
    %9871 = vmatmul.mubr.bf16.gmra.mxu0 %v5454
    %v9872 = vpop.f32.mrf.mxu0
    %v9873 = vadd.f32 %v9680, %v9872
    %v9874 = vpop.f32.mrf.mxu0
    %v9875 = vadd.f32 %v9682, %v9874
    %v9876 = vpop.f32.mrf.mxu0
    %v9877 = vadd.f32 %v9684, %v9876
    %v9878 = vpop.f32.mrf.mxu0
    %v9879 = vadd.f32 %v9686, %v9878
    %9880 = vmatprep.mubr.bf16.mxu0 %v5462
    %9881 = vmatmul.mubr.bf16.gmra.mxu0 %v5461
    %v9882 = vpop.f32.mrf.mxu0
    %v9883 = vadd.f32 %v9690, %v9882
    %v9884 = vpop.f32.mrf.mxu0
    %v9885 = vadd.f32 %v9692, %v9884
    %v9886 = vpop.f32.mrf.mxu0
    %v9887 = vadd.f32 %v9694, %v9886
    %v9888 = vpop.f32.mrf.mxu0
    %v9889 = vadd.f32 %v9696, %v9888
    %9890 = vmatprep.mubr.bf16.mxu0 %v5469
    %9891 = vmatmul.mubr.bf16.gmra.mxu0 %v5468
    %v9892 = vpop.f32.mrf.mxu0
    %v9893 = vadd.f32 %v9700, %v9892
    %v9894 = vpop.f32.mrf.mxu0
    %v9895 = vadd.f32 %v9702, %v9894
    %v9896 = vpop.f32.mrf.mxu0
    %v9897 = vadd.f32 %v9704, %v9896
    %v9898 = vpop.f32.mrf.mxu0
    %v9899 = vadd.f32 %v9706, %v9898
    %9900 = vmatprep.mubr.bf16.mxu0 %v5476
    %9901 = vmatmul.mubr.bf16.gmra.mxu0 %v5475
    %v9902 = vpop.f32.mrf.mxu0
    %v9903 = vadd.f32 %v9710, %v9902
    %v9904 = vpop.f32.mrf.mxu0
    %v9905 = vadd.f32 %v9712, %v9904
    %v9906 = vpop.f32.mrf.mxu0
    %v9907 = vadd.f32 %v9714, %v9906
    %v9908 = vpop.f32.mrf.mxu0
    %v9909 = vadd.f32 %v9716, %v9908
    %9910 = vdwg.mxu0
    %9911 = vmatprep.subr.bf16.mxu0 %v7475
    %9912 = vmatpush1.bf16.msra.mxu0 %v7474
    %9913 = vmatprep.subr.bf16.mxu0 %v7468
    %9914 = vmatpush1.bf16.msra.mxu0 %v7467
    %9915 = vmatprep.subr.bf16.mxu0 %v7461
    %9916 = vmatpush1.bf16.msra.mxu0 %v7460
    %9917 = vmatprep.subr.bf16.mxu0 %v7454
    %9918 = vmatpush1.bf16.msra.mxu0 %v7453
    %9919 = vmatprep.subr.bf16.mxu0 %v7447
    %9920 = vmatpush1.bf16.msra.mxu0 %v7446
    %9921 = vmatprep.subr.bf16.mxu0 %v7440
    %9922 = vmatpush1.bf16.msra.mxu0 %v7439
    %9923 = vmatprep.subr.bf16.mxu0 %v7433
    %9924 = vmatpush1.bf16.msra.mxu0 %v7432
    %9925 = vmatprep.subr.bf16.mxu0 %v7426
    %9926 = vmatpush1.bf16.msra.mxu0 %v7425
    %9927 = vmatprep.subr.bf16.mxu0 %v7531
    %9928 = vmatpush2.bf16.msra.mxu0 %v7530
    %9929 = vmatprep.subr.bf16.mxu0 %v7524
    %9930 = vmatpush2.bf16.msra.mxu0 %v7523
    %9931 = vmatprep.subr.bf16.mxu0 %v7517
    %9932 = vmatpush2.bf16.msra.mxu0 %v7516
    %9933 = vmatprep.subr.bf16.mxu0 %v7510
    %9934 = vmatpush2.bf16.msra.mxu0 %v7509
    %9935 = vmatprep.subr.bf16.mxu0 %v7503
    %9936 = vmatpush2.bf16.msra.mxu0 %v7502
    %9937 = vmatprep.subr.bf16.mxu0 %v7496
    %9938 = vmatpush2.bf16.msra.mxu0 %v7495
    %9939 = vmatprep.subr.bf16.mxu0 %v7489
    %9940 = vmatpush2.bf16.msra.mxu0 %v7488
    %9941 = vmatprep.subr.bf16.mxu0 %v7482
    %9942 = vmatpush2.bf16.msra.mxu0 %v7481
    %9943 = vmatprep.mubr.bf16.mxu0 %v5373
    %9944 = vmatmul.mubr.bf16.gmra.mxu0 %v5372
    %v9945 = vpop.f32.mrf.mxu0
    %v9946 = vadd.f32 %v9753, %v9945
    %v9947 = vpop.f32.mrf.mxu0
    %v9948 = vadd.f32 %v9755, %v9947
    %v9949 = vpop.f32.mrf.mxu0
    %v9950 = vadd.f32 %v9757, %v9949
    %v9951 = vpop.f32.mrf.mxu0
    %v9952 = vadd.f32 %v9759, %v9951
    %9953 = vmatprep.mubr.bf16.mxu0 %v5380
    %9954 = vmatmul.mubr.bf16.gmra.mxu0 %v5379
    %v9955 = vpop.f32.mrf.mxu0
    %v9956 = vadd.f32 %v9763, %v9955
    %v9957 = vpop.f32.mrf.mxu0
    %v9958 = vadd.f32 %v9765, %v9957
    %v9959 = vpop.f32.mrf.mxu0
    %v9960 = vadd.f32 %v9767, %v9959
    %v9961 = vpop.f32.mrf.mxu0
    %v9962 = vadd.f32 %v9769, %v9961
    %9963 = vmatprep.mubr.bf16.mxu0 %v5387
    %9964 = vmatmul.mubr.bf16.gmra.mxu0 %v5386
    %v9965 = vpop.f32.mrf.mxu0
    %v9966 = vadd.f32 %v9773, %v9965
    %v9967 = vpop.f32.mrf.mxu0
    %v9968 = vadd.f32 %v9775, %v9967
    %v9969 = vpop.f32.mrf.mxu0
    %v9970 = vadd.f32 %v9777, %v9969
    %v9971 = vpop.f32.mrf.mxu0
    %v9972 = vadd.f32 %v9779, %v9971
    %9973 = vmatprep.mubr.bf16.mxu0 %v5394
    %9974 = vmatmul.mubr.bf16.gmra.mxu0 %v5393
    %v9975 = vpop.f32.mrf.mxu0
    %v9976 = vadd.f32 %v9783, %v9975
    %v9977 = vpop.f32.mrf.mxu0
    %v9978 = vadd.f32 %v9785, %v9977
    %v9979 = vpop.f32.mrf.mxu0
    %v9980 = vadd.f32 %v9787, %v9979
    %v9981 = vpop.f32.mrf.mxu0
    %v9982 = vadd.f32 %v9789, %v9981
    %9983 = vmatprep.mubr.bf16.mxu0 %v5401
    %9984 = vmatmul.mubr.bf16.gmra.mxu0 %v5400
    %v9985 = vpop.f32.mrf.mxu0
    %v9986 = vadd.f32 %v9793, %v9985
    %v9987 = vpop.f32.mrf.mxu0
    %v9988 = vadd.f32 %v9795, %v9987
    %v9989 = vpop.f32.mrf.mxu0
    %v9990 = vadd.f32 %v9797, %v9989
    %v9991 = vpop.f32.mrf.mxu0
    %v9992 = vadd.f32 %v9799, %v9991
    %9993 = vmatprep.mubr.bf16.mxu0 %v5408
    %9994 = vmatmul.mubr.bf16.gmra.mxu0 %v5407
    %v9995 = vpop.f32.mrf.mxu0
    %v9996 = vadd.f32 %v9803, %v9995
    %v9997 = vpop.f32.mrf.mxu0
    %v9998 = vadd.f32 %v9805, %v9997
    %v9999 = vpop.f32.mrf.mxu0
    %v10000 = vadd.f32 %v9807, %v9999
    %v10001 = vpop.f32.mrf.mxu0
    %v10002 = vadd.f32 %v9809, %v10001
    %10003 = vmatprep.mubr.bf16.mxu0 %v5415
    %10004 = vmatmul.mubr.bf16.gmra.mxu0 %v5414
    %v10005 = vpop.f32.mrf.mxu0
    %v10006 = vadd.f32 %v9813, %v10005
    %v10007 = vpop.f32.mrf.mxu0
    %v10008 = vadd.f32 %v9815, %v10007
    %v10009 = vpop.f32.mrf.mxu0
    %v10010 = vadd.f32 %v9817, %v10009
    %v10011 = vpop.f32.mrf.mxu0
    %v10012 = vadd.f32 %v9819, %v10011
    %10013 = vmatprep.mubr.bf16.mxu0 %v5422
    %10014 = vmatmul.mubr.bf16.gmra.mxu0 %v5421
    %v10015 = vpop.f32.mrf.mxu0
    %v10016 = vadd.f32 %v9823, %v10015
    %v10017 = vpop.f32.mrf.mxu0
    %v10018 = vadd.f32 %v9825, %v10017
    %v10019 = vpop.f32.mrf.mxu0
    %v10020 = vadd.f32 %v9827, %v10019
    %v10021 = vpop.f32.mrf.mxu0
    %v10022 = vadd.f32 %v9829, %v10021
    %10023 = vmatprep.mubr.bf16.mxu0 %v5429
    %10024 = vmatmul.mubr.bf16.gmra.mxu0 %v5428
    %v10025 = vpop.f32.mrf.mxu0
    %v10026 = vadd.f32 %v9833, %v10025
    %v10027 = vpop.f32.mrf.mxu0
    %v10028 = vadd.f32 %v9835, %v10027
    %v10029 = vpop.f32.mrf.mxu0
    %v10030 = vadd.f32 %v9837, %v10029
    %v10031 = vpop.f32.mrf.mxu0
    %v10032 = vadd.f32 %v9839, %v10031
    %10033 = vmatprep.mubr.bf16.mxu0 %v5436
    %10034 = vmatmul.mubr.bf16.gmra.mxu0 %v5435
    %v10035 = vpop.f32.mrf.mxu0
    %v10036 = vadd.f32 %v9843, %v10035
    %v10037 = vpop.f32.mrf.mxu0
    %v10038 = vadd.f32 %v9845, %v10037
    %v10039 = vpop.f32.mrf.mxu0
    %v10040 = vadd.f32 %v9847, %v10039
    %v10041 = vpop.f32.mrf.mxu0
    %v10042 = vadd.f32 %v9849, %v10041
    %10043 = vmatprep.mubr.bf16.mxu0 %v5443
    %10044 = vmatmul.mubr.bf16.gmra.mxu0 %v5442
    %v10045 = vpop.f32.mrf.mxu0
    %v10046 = vadd.f32 %v9853, %v10045
    %v10047 = vpop.f32.mrf.mxu0
    %v10048 = vadd.f32 %v9855, %v10047
    %v10049 = vpop.f32.mrf.mxu0
    %v10050 = vadd.f32 %v9857, %v10049
    %v10051 = vpop.f32.mrf.mxu0
    %v10052 = vadd.f32 %v9859, %v10051
    %10053 = vmatprep.mubr.bf16.mxu0 %v5450
    %10054 = vmatmul.mubr.bf16.gmra.mxu0 %v5449
    %v10055 = vpop.f32.mrf.mxu0
    %v10056 = vadd.f32 %v9863, %v10055
    %v10057 = vpop.f32.mrf.mxu0
    %v10058 = vadd.f32 %v9865, %v10057
    %v10059 = vpop.f32.mrf.mxu0
    %v10060 = vadd.f32 %v9867, %v10059
    %v10061 = vpop.f32.mrf.mxu0
    %v10062 = vadd.f32 %v9869, %v10061
    %10063 = vmatprep.mubr.bf16.mxu0 %v5457
    %10064 = vmatmul.mubr.bf16.gmra.mxu0 %v5456
    %v10065 = vpop.f32.mrf.mxu0
    %v10066 = vadd.f32 %v9873, %v10065
    %v10067 = vpop.f32.mrf.mxu0
    %v10068 = vadd.f32 %v9875, %v10067
    %v10069 = vpop.f32.mrf.mxu0
    %v10070 = vadd.f32 %v9877, %v10069
    %v10071 = vpop.f32.mrf.mxu0
    %v10072 = vadd.f32 %v9879, %v10071
    %10073 = vmatprep.mubr.bf16.mxu0 %v5464
    %10074 = vmatmul.mubr.bf16.gmra.mxu0 %v5463
    %v10075 = vpop.f32.mrf.mxu0
    %v10076 = vadd.f32 %v9883, %v10075
    %v10077 = vpop.f32.mrf.mxu0
    %v10078 = vadd.f32 %v9885, %v10077
    %v10079 = vpop.f32.mrf.mxu0
    %v10080 = vadd.f32 %v9887, %v10079
    %v10081 = vpop.f32.mrf.mxu0
    %v10082 = vadd.f32 %v9889, %v10081
    %10083 = vmatprep.mubr.bf16.mxu0 %v5471
    %10084 = vmatmul.mubr.bf16.gmra.mxu0 %v5470
    %v10085 = vpop.f32.mrf.mxu0
    %v10086 = vadd.f32 %v9893, %v10085
    %v10087 = vpop.f32.mrf.mxu0
    %v10088 = vadd.f32 %v9895, %v10087
    %v10089 = vpop.f32.mrf.mxu0
    %v10090 = vadd.f32 %v9897, %v10089
    %v10091 = vpop.f32.mrf.mxu0
    %v10092 = vadd.f32 %v9899, %v10091
    %10093 = vmatprep.mubr.bf16.mxu0 %v5478
    %10094 = vmatmul.mubr.bf16.gmra.mxu0 %v5477
    %v10095 = vpop.f32.mrf.mxu0
    %v10096 = vadd.f32 %v9903, %v10095
    %v10097 = vpop.f32.mrf.mxu0
    %v10098 = vadd.f32 %v9905, %v10097
    %v10099 = vpop.f32.mrf.mxu0
    %v10100 = vadd.f32 %v9907, %v10099
    %v10101 = vpop.f32.mrf.mxu0
    %v10102 = vadd.f32 %v9909, %v10101
    %10103 = vdwg.mxu0
    %10104 = vmatprep.subr.bf16.mxu0 %v7587
    %10105 = vmatpush1.bf16.msra.mxu0 %v7586
    %10106 = vmatprep.subr.bf16.mxu0 %v7580
    %10107 = vmatpush1.bf16.msra.mxu0 %v7579
    %10108 = vmatprep.subr.bf16.mxu0 %v7573
    %10109 = vmatpush1.bf16.msra.mxu0 %v7572
    %10110 = vmatprep.subr.bf16.mxu0 %v7566
    %10111 = vmatpush1.bf16.msra.mxu0 %v7565
    %10112 = vmatprep.subr.bf16.mxu0 %v7559
    %10113 = vmatpush1.bf16.msra.mxu0 %v7558
    %10114 = vmatprep.subr.bf16.mxu0 %v7552
    %10115 = vmatpush1.bf16.msra.mxu0 %v7551
    %10116 = vmatprep.subr.bf16.mxu0 %v7545
    %10117 = vmatpush1.bf16.msra.mxu0 %v7544
    %10118 = vmatprep.subr.bf16.mxu0 %v7538
    %10119 = vmatpush1.bf16.msra.mxu0 %v7537
    %10120 = vmatprep.subr.bf16.mxu0 0
    %10121 = vmatpush2.bf16.msra.mxu0 0
    %10122 = vmatprep.subr.bf16.mxu0 0
    %10123 = vmatpush2.bf16.msra.mxu0 0
    %10124 = vmatprep.subr.bf16.mxu0 0
    %10125 = vmatpush2.bf16.msra.mxu0 0
    %10126 = vmatprep.subr.bf16.mxu0 0
    %10127 = vmatpush2.bf16.msra.mxu0 0
    %10128 = vmatprep.subr.bf16.mxu0 0
    %10129 = vmatpush2.bf16.msra.mxu0 0
    %10130 = vmatprep.subr.bf16.mxu0 0
    %10131 = vmatpush2.bf16.msra.mxu0 0
    %10132 = vmatprep.subr.bf16.mxu0 0
    %10133 = vmatpush2.bf16.msra.mxu0 0
    %10134 = vmatprep.subr.bf16.mxu0 0
    %10135 = vmatpush2.bf16.msra.mxu0 0
    %10136 = vmatprep.mubr.bf16.mxu0 0
    %10137 = vmatmul.mubr.bf16.gmra.mxu0 %v5374
    %v10138 = vpop.f32.mrf.mxu0
    %v10139 = vadd.f32 %v9946, %v10138
    %v10140 = vpop.f32.mrf.mxu0
    %v10141 = vadd.f32 %v9948, %v10140
    %v10142 = vpop.f32.mrf.mxu0
    %v10143 = vadd.f32 %v9950, %v10142
    %v10144 = vpop.f32.mrf.mxu0
    %v10145 = vadd.f32 %v9952, %v10144
    %10146 = vmatprep.mubr.bf16.mxu0 0
    %10147 = vmatmul.mubr.bf16.gmra.mxu0 %v5381
    %v10148 = vpop.f32.mrf.mxu0
    %v10149 = vadd.f32 %v9956, %v10148
    %v10150 = vpop.f32.mrf.mxu0
    %v10151 = vadd.f32 %v9958, %v10150
    %v10152 = vpop.f32.mrf.mxu0
    %v10153 = vadd.f32 %v9960, %v10152
    %v10154 = vpop.f32.mrf.mxu0
    %v10155 = vadd.f32 %v9962, %v10154
    %10156 = vmatprep.mubr.bf16.mxu0 0
    %10157 = vmatmul.mubr.bf16.gmra.mxu0 %v5388
    %v10158 = vpop.f32.mrf.mxu0
    %v10159 = vadd.f32 %v9966, %v10158
    %v10160 = vpop.f32.mrf.mxu0
    %v10161 = vadd.f32 %v9968, %v10160
    %v10162 = vpop.f32.mrf.mxu0
    %v10163 = vadd.f32 %v9970, %v10162
    %v10164 = vpop.f32.mrf.mxu0
    %v10165 = vadd.f32 %v9972, %v10164
    %10166 = vmatprep.mubr.bf16.mxu0 0
    %10167 = vmatmul.mubr.bf16.gmra.mxu0 %v5395
    %v10168 = vpop.f32.mrf.mxu0
    %v10169 = vadd.f32 %v9976, %v10168
    %v10170 = vpop.f32.mrf.mxu0
    %v10171 = vadd.f32 %v9978, %v10170
    %v10172 = vpop.f32.mrf.mxu0
    %v10173 = vadd.f32 %v9980, %v10172
    %v10174 = vpop.f32.mrf.mxu0
    %v10175 = vadd.f32 %v9982, %v10174
    %10176 = vmatprep.mubr.bf16.mxu0 0
    %10177 = vmatmul.mubr.bf16.gmra.mxu0 %v5402
    %v10178 = vpop.f32.mrf.mxu0
    %v10179 = vadd.f32 %v9986, %v10178
    %v10180 = vpop.f32.mrf.mxu0
    %v10181 = vadd.f32 %v9988, %v10180
    %v10182 = vpop.f32.mrf.mxu0
    %v10183 = vadd.f32 %v9990, %v10182
    %v10184 = vpop.f32.mrf.mxu0
    %v10185 = vadd.f32 %v9992, %v10184
    %10186 = vmatprep.mubr.bf16.mxu0 0
    %10187 = vmatmul.mubr.bf16.gmra.mxu0 %v5409
    %v10188 = vpop.f32.mrf.mxu0
    %v10189 = vadd.f32 %v9996, %v10188
    %v10190 = vpop.f32.mrf.mxu0
    %v10191 = vadd.f32 %v9998, %v10190
    %v10192 = vpop.f32.mrf.mxu0
    %v10193 = vadd.f32 %v10000, %v10192
    %v10194 = vpop.f32.mrf.mxu0
    %v10195 = vadd.f32 %v10002, %v10194
    %10196 = vmatprep.mubr.bf16.mxu0 0
    %10197 = vmatmul.mubr.bf16.gmra.mxu0 %v5416
    %v10198 = vpop.f32.mrf.mxu0
    %v10199 = vadd.f32 %v10006, %v10198
    %v10200 = vpop.f32.mrf.mxu0
    %v10201 = vadd.f32 %v10008, %v10200
    %v10202 = vpop.f32.mrf.mxu0
    %v10203 = vadd.f32 %v10010, %v10202
    %v10204 = vpop.f32.mrf.mxu0
    %v10205 = vadd.f32 %v10012, %v10204
    %10206 = vmatprep.mubr.bf16.mxu0 0
    %10207 = vmatmul.mubr.bf16.gmra.mxu0 %v5423
    %v10208 = vpop.f32.mrf.mxu0
    %v10209 = vadd.f32 %v10016, %v10208
    %v10210 = vpop.f32.mrf.mxu0
    %v10211 = vadd.f32 %v10018, %v10210
    %v10212 = vpop.f32.mrf.mxu0
    %v10213 = vadd.f32 %v10020, %v10212
    %v10214 = vpop.f32.mrf.mxu0
    %v10215 = vadd.f32 %v10022, %v10214
    %10216 = vmatprep.mubr.bf16.mxu0 0
    %10217 = vmatmul.mubr.bf16.gmra.mxu0 %v5430
    %v10218 = vpop.f32.mrf.mxu0
    %v10219 = vadd.f32 %v10026, %v10218
    %v10220 = vpop.f32.mrf.mxu0
    %v10221 = vadd.f32 %v10028, %v10220
    %v10222 = vpop.f32.mrf.mxu0
    %v10223 = vadd.f32 %v10030, %v10222
    %v10224 = vpop.f32.mrf.mxu0
    %v10225 = vadd.f32 %v10032, %v10224
    %10226 = vmatprep.mubr.bf16.mxu0 0
    %10227 = vmatmul.mubr.bf16.gmra.mxu0 %v5437
    %v10228 = vpop.f32.mrf.mxu0
    %v10229 = vadd.f32 %v10036, %v10228
    %v10230 = vpop.f32.mrf.mxu0
    %v10231 = vadd.f32 %v10038, %v10230
    %v10232 = vpop.f32.mrf.mxu0
    %v10233 = vadd.f32 %v10040, %v10232
    %v10234 = vpop.f32.mrf.mxu0
    %v10235 = vadd.f32 %v10042, %v10234
    %10236 = vmatprep.mubr.bf16.mxu0 0
    %10237 = vmatmul.mubr.bf16.gmra.mxu0 %v5444
    %v10238 = vpop.f32.mrf.mxu0
    %v10239 = vadd.f32 %v10046, %v10238
    %v10240 = vpop.f32.mrf.mxu0
    %v10241 = vadd.f32 %v10048, %v10240
    %v10242 = vpop.f32.mrf.mxu0
    %v10243 = vadd.f32 %v10050, %v10242
    %v10244 = vpop.f32.mrf.mxu0
    %v10245 = vadd.f32 %v10052, %v10244
    %10246 = vmatprep.mubr.bf16.mxu0 0
    %10247 = vmatmul.mubr.bf16.gmra.mxu0 %v5451
    %v10248 = vpop.f32.mrf.mxu0
    %v10249 = vadd.f32 %v10056, %v10248
    %v10250 = vpop.f32.mrf.mxu0
    %v10251 = vadd.f32 %v10058, %v10250
    %v10252 = vpop.f32.mrf.mxu0
    %v10253 = vadd.f32 %v10060, %v10252
    %v10254 = vpop.f32.mrf.mxu0
    %v10255 = vadd.f32 %v10062, %v10254
    %10256 = vmatprep.mubr.bf16.mxu0 0
    %10257 = vmatmul.mubr.bf16.gmra.mxu0 %v5458
    %v10258 = vpop.f32.mrf.mxu0
    %v10259 = vadd.f32 %v10066, %v10258
    %v10260 = vpop.f32.mrf.mxu0
    %v10261 = vadd.f32 %v10068, %v10260
    %v10262 = vpop.f32.mrf.mxu0
    %v10263 = vadd.f32 %v10070, %v10262
    %v10264 = vpop.f32.mrf.mxu0
    %v10265 = vadd.f32 %v10072, %v10264
    %10266 = vmatprep.mubr.bf16.mxu0 0
    %10267 = vmatmul.mubr.bf16.gmra.mxu0 %v5465
    %v10268 = vpop.f32.mrf.mxu0
    %v10269 = vadd.f32 %v10076, %v10268
    %v10270 = vpop.f32.mrf.mxu0
    %v10271 = vadd.f32 %v10078, %v10270
    %v10272 = vpop.f32.mrf.mxu0
    %v10273 = vadd.f32 %v10080, %v10272
    %v10274 = vpop.f32.mrf.mxu0
    %v10275 = vadd.f32 %v10082, %v10274
    %10276 = vmatprep.mubr.bf16.mxu0 0
    %10277 = vmatmul.mubr.bf16.gmra.mxu0 %v5472
    %v10278 = vpop.f32.mrf.mxu0
    %v10279 = vadd.f32 %v10086, %v10278
    %v10280 = vpop.f32.mrf.mxu0
    %v10281 = vadd.f32 %v10088, %v10280
    %v10282 = vpop.f32.mrf.mxu0
    %v10283 = vadd.f32 %v10090, %v10282
    %v10284 = vpop.f32.mrf.mxu0
    %v10285 = vadd.f32 %v10092, %v10284
    %10286 = vmatprep.mubr.bf16.mxu0 0
    %10287 = vmatmul.mubr.bf16.gmra.mxu0 %v5479
    %v10288 = vpop.f32.mrf.mxu0
    %v10289 = vadd.f32 %v10096, %v10288
    %v10290 = vpop.f32.mrf.mxu0
    %v10291 = vadd.f32 %v10098, %v10290
    %v10292 = vpop.f32.mrf.mxu0
    %v10293 = vadd.f32 %v10100, %v10292
    %v10294 = vpop.f32.mrf.mxu0
    %v10295 = vadd.f32 %v10102, %v10294
    %10296 = vdwg.mxu0
    %10297 = vmatprep.subr.bf16.mxu0 0
    %10298 = vmatpush1.bf16.msra.mxu0 %v7252
    %10299 = vmatprep.subr.bf16.mxu0 0
    %10300 = vmatpush1.bf16.msra.mxu0 %v7245
    %10301 = vmatprep.subr.bf16.mxu0 0
    %10302 = vmatpush1.bf16.msra.mxu0 %v7238
    %10303 = vmatprep.subr.bf16.mxu0 0
    %10304 = vmatpush1.bf16.msra.mxu0 %v7231
    %10305 = vmatprep.subr.bf16.mxu0 0
    %10306 = vmatpush1.bf16.msra.mxu0 %v7224
    %10307 = vmatprep.subr.bf16.mxu0 0
    %10308 = vmatpush1.bf16.msra.mxu0 %v7217
    %10309 = vmatprep.subr.bf16.mxu0 0
    %10310 = vmatpush1.bf16.msra.mxu0 %v7210
    %10311 = vmatprep.subr.bf16.mxu0 0
    %10312 = vmatpush1.bf16.msra.mxu0 %v7203
    %10313 = vmatprep.subr.bf16.mxu0 0
    %10314 = vmatpush2.bf16.msra.mxu0 %v7308
    %10315 = vmatprep.subr.bf16.mxu0 0
    %10316 = vmatpush2.bf16.msra.mxu0 %v7301
    %10317 = vmatprep.subr.bf16.mxu0 0
    %10318 = vmatpush2.bf16.msra.mxu0 %v7294
    %10319 = vmatprep.subr.bf16.mxu0 0
    %10320 = vmatpush2.bf16.msra.mxu0 %v7287
    %10321 = vmatprep.subr.bf16.mxu0 0
    %10322 = vmatpush2.bf16.msra.mxu0 %v7280
    %10323 = vmatprep.subr.bf16.mxu0 0
    %10324 = vmatpush2.bf16.msra.mxu0 %v7273
    %10325 = vmatprep.subr.bf16.mxu0 0
    %10326 = vmatpush2.bf16.msra.mxu0 %v7266
    %10327 = vmatprep.subr.bf16.mxu0 0
    %10328 = vmatpush2.bf16.msra.mxu0 %v7259
    %10329 = vmatprep.mubr.bf16.mxu0 %v5369
    %10330 = vmatmul.mubr.bf16.gmra.mxu0 %v5368
    %v10331 = vpop.f32.mrf.mxu0
    %v10332 = vadd.f32 %v5957, %v10331
    %v10333 = vpop.f32.mrf.mxu0
    %v10334 = vpop.f32.mrf.mxu0
    %v10335 = vadd.f32 %v5957, %v10334
    %v10336 = vpop.f32.mrf.mxu0
    %10337 = vmatprep.mubr.bf16.mxu0 %v5376
    %10338 = vmatmul.mubr.bf16.gmra.mxu0 %v5375
    %v10339 = vpop.f32.mrf.mxu0
    %v10340 = vadd.f32 %v5957, %v10339
    %v10341 = vpop.f32.mrf.mxu0
    %v10342 = vpop.f32.mrf.mxu0
    %v10343 = vadd.f32 %v5957, %v10342
    %v10344 = vpop.f32.mrf.mxu0
    %10345 = vmatprep.mubr.bf16.mxu0 %v5383
    %10346 = vmatmul.mubr.bf16.gmra.mxu0 %v5382
    %v10347 = vpop.f32.mrf.mxu0
    %v10348 = vadd.f32 %v5957, %v10347
    %v10349 = vpop.f32.mrf.mxu0
    %v10350 = vpop.f32.mrf.mxu0
    %v10351 = vadd.f32 %v5957, %v10350
    %v10352 = vpop.f32.mrf.mxu0
    %10353 = vmatprep.mubr.bf16.mxu0 %v5390
    %10354 = vmatmul.mubr.bf16.gmra.mxu0 %v5389
    %v10355 = vpop.f32.mrf.mxu0
    %v10356 = vadd.f32 %v5957, %v10355
    %v10357 = vpop.f32.mrf.mxu0
    %v10358 = vpop.f32.mrf.mxu0
    %v10359 = vadd.f32 %v5957, %v10358
    %v10360 = vpop.f32.mrf.mxu0
    %10361 = vmatprep.mubr.bf16.mxu0 %v5397
    %10362 = vmatmul.mubr.bf16.gmra.mxu0 %v5396
    %v10363 = vpop.f32.mrf.mxu0
    %v10364 = vadd.f32 %v5957, %v10363
    %v10365 = vpop.f32.mrf.mxu0
    %v10366 = vpop.f32.mrf.mxu0
    %v10367 = vadd.f32 %v5957, %v10366
    %v10368 = vpop.f32.mrf.mxu0
    %10369 = vmatprep.mubr.bf16.mxu0 %v5404
    %10370 = vmatmul.mubr.bf16.gmra.mxu0 %v5403
    %v10371 = vpop.f32.mrf.mxu0
    %v10372 = vadd.f32 %v5957, %v10371
    %v10373 = vpop.f32.mrf.mxu0
    %v10374 = vpop.f32.mrf.mxu0
    %v10375 = vadd.f32 %v5957, %v10374
    %v10376 = vpop.f32.mrf.mxu0
    %10377 = vmatprep.mubr.bf16.mxu0 %v5411
    %10378 = vmatmul.mubr.bf16.gmra.mxu0 %v5410
    %v10379 = vpop.f32.mrf.mxu0
    %v10380 = vadd.f32 %v5957, %v10379
    %v10381 = vpop.f32.mrf.mxu0
    %v10382 = vpop.f32.mrf.mxu0
    %v10383 = vadd.f32 %v5957, %v10382
    %v10384 = vpop.f32.mrf.mxu0
    %10385 = vmatprep.mubr.bf16.mxu0 %v5418
    %10386 = vmatmul.mubr.bf16.gmra.mxu0 %v5417
    %v10387 = vpop.f32.mrf.mxu0
    %v10388 = vadd.f32 %v5957, %v10387
    %v10389 = vpop.f32.mrf.mxu0
    %v10390 = vpop.f32.mrf.mxu0
    %v10391 = vadd.f32 %v5957, %v10390
    %v10392 = vpop.f32.mrf.mxu0
    %10393 = vmatprep.mubr.bf16.mxu0 %v5425
    %10394 = vmatmul.mubr.bf16.gmra.mxu0 %v5424
    %v10395 = vpop.f32.mrf.mxu0
    %v10396 = vadd.f32 %v5957, %v10395
    %v10397 = vpop.f32.mrf.mxu0
    %v10398 = vpop.f32.mrf.mxu0
    %v10399 = vadd.f32 %v5957, %v10398
    %v10400 = vpop.f32.mrf.mxu0
    %10401 = vmatprep.mubr.bf16.mxu0 %v5432
    %10402 = vmatmul.mubr.bf16.gmra.mxu0 %v5431
    %v10403 = vpop.f32.mrf.mxu0
    %v10404 = vadd.f32 %v5957, %v10403
    %v10405 = vpop.f32.mrf.mxu0
    %v10406 = vpop.f32.mrf.mxu0
    %v10407 = vadd.f32 %v5957, %v10406
    %v10408 = vpop.f32.mrf.mxu0
    %10409 = vmatprep.mubr.bf16.mxu0 %v5439
    %10410 = vmatmul.mubr.bf16.gmra.mxu0 %v5438
    %v10411 = vpop.f32.mrf.mxu0
    %v10412 = vadd.f32 %v5957, %v10411
    %v10413 = vpop.f32.mrf.mxu0
    %v10414 = vpop.f32.mrf.mxu0
    %v10415 = vadd.f32 %v5957, %v10414
    %v10416 = vpop.f32.mrf.mxu0
    %10417 = vmatprep.mubr.bf16.mxu0 %v5446
    %10418 = vmatmul.mubr.bf16.gmra.mxu0 %v5445
    %v10419 = vpop.f32.mrf.mxu0
    %v10420 = vadd.f32 %v5957, %v10419
    %v10421 = vpop.f32.mrf.mxu0
    %v10422 = vpop.f32.mrf.mxu0
    %v10423 = vadd.f32 %v5957, %v10422
    %v10424 = vpop.f32.mrf.mxu0
    %10425 = vmatprep.mubr.bf16.mxu0 %v5453
    %10426 = vmatmul.mubr.bf16.gmra.mxu0 %v5452
    %v10427 = vpop.f32.mrf.mxu0
    %v10428 = vadd.f32 %v5957, %v10427
    %v10429 = vpop.f32.mrf.mxu0
    %v10430 = vpop.f32.mrf.mxu0
    %v10431 = vadd.f32 %v5957, %v10430
    %v10432 = vpop.f32.mrf.mxu0
    %10433 = vmatprep.mubr.bf16.mxu0 %v5460
    %10434 = vmatmul.mubr.bf16.gmra.mxu0 %v5459
    %v10435 = vpop.f32.mrf.mxu0
    %v10436 = vadd.f32 %v5957, %v10435
    %v10437 = vpop.f32.mrf.mxu0
    %v10438 = vpop.f32.mrf.mxu0
    %v10439 = vadd.f32 %v5957, %v10438
    %v10440 = vpop.f32.mrf.mxu0
    %10441 = vmatprep.mubr.bf16.mxu0 %v5467
    %10442 = vmatmul.mubr.bf16.gmra.mxu0 %v5466
    %v10443 = vpop.f32.mrf.mxu0
    %v10444 = vadd.f32 %v5957, %v10443
    %v10445 = vpop.f32.mrf.mxu0
    %v10446 = vpop.f32.mrf.mxu0
    %v10447 = vadd.f32 %v5957, %v10446
    %v10448 = vpop.f32.mrf.mxu0
    %10449 = vmatprep.mubr.bf16.mxu0 %v5474
    %10450 = vmatmul.mubr.bf16.gmra.mxu0 %v5473
    %v10451 = vpop.f32.mrf.mxu0
    %v10452 = vadd.f32 %v5957, %v10451
    %v10453 = vpop.f32.mrf.mxu0
    %v10454 = vpop.f32.mrf.mxu0
    %v10455 = vadd.f32 %v5957, %v10454
    %v10456 = vpop.f32.mrf.mxu0
    %10457 = vdwg.mxu0
    %10458 = vmatprep.subr.bf16.mxu0 0
    %10459 = vmatpush1.bf16.msra.mxu0 %v7364
    %10460 = vmatprep.subr.bf16.mxu0 0
    %10461 = vmatpush1.bf16.msra.mxu0 %v7357
    %10462 = vmatprep.subr.bf16.mxu0 0
    %10463 = vmatpush1.bf16.msra.mxu0 %v7350
    %10464 = vmatprep.subr.bf16.mxu0 0
    %10465 = vmatpush1.bf16.msra.mxu0 %v7343
    %10466 = vmatprep.subr.bf16.mxu0 0
    %10467 = vmatpush1.bf16.msra.mxu0 %v7336
    %10468 = vmatprep.subr.bf16.mxu0 0
    %10469 = vmatpush1.bf16.msra.mxu0 %v7329
    %10470 = vmatprep.subr.bf16.mxu0 0
    %10471 = vmatpush1.bf16.msra.mxu0 %v7322
    %10472 = vmatprep.subr.bf16.mxu0 0
    %10473 = vmatpush1.bf16.msra.mxu0 %v7315
    %10474 = vmatprep.subr.bf16.mxu0 0
    %10475 = vmatpush2.bf16.msra.mxu0 %v7420
    %10476 = vmatprep.subr.bf16.mxu0 0
    %10477 = vmatpush2.bf16.msra.mxu0 %v7413
    %10478 = vmatprep.subr.bf16.mxu0 0
    %10479 = vmatpush2.bf16.msra.mxu0 %v7406
    %10480 = vmatprep.subr.bf16.mxu0 0
    %10481 = vmatpush2.bf16.msra.mxu0 %v7399
    %10482 = vmatprep.subr.bf16.mxu0 0
    %10483 = vmatpush2.bf16.msra.mxu0 %v7392
    %10484 = vmatprep.subr.bf16.mxu0 0
    %10485 = vmatpush2.bf16.msra.mxu0 %v7385
    %10486 = vmatprep.subr.bf16.mxu0 0
    %10487 = vmatpush2.bf16.msra.mxu0 %v7378
    %10488 = vmatprep.subr.bf16.mxu0 0
    %10489 = vmatpush2.bf16.msra.mxu0 %v7371
    %10490 = vmatprep.mubr.bf16.mxu0 %v5371
    %10491 = vmatmul.mubr.bf16.gmra.mxu0 %v5370
    %v10492 = vpop.f32.mrf.mxu0
    %v10493 = vadd.f32 %v10332, %v10492
    %v10494 = vpop.f32.mrf.mxu0
    %v10495 = vpop.f32.mrf.mxu0
    %v10496 = vadd.f32 %v10335, %v10495
    %v10497 = vpop.f32.mrf.mxu0
    %10498 = vmatprep.mubr.bf16.mxu0 %v5378
    %10499 = vmatmul.mubr.bf16.gmra.mxu0 %v5377
    %v10500 = vpop.f32.mrf.mxu0
    %v10501 = vadd.f32 %v10340, %v10500
    %v10502 = vpop.f32.mrf.mxu0
    %v10503 = vpop.f32.mrf.mxu0
    %v10504 = vadd.f32 %v10343, %v10503
    %v10505 = vpop.f32.mrf.mxu0
    %10506 = vmatprep.mubr.bf16.mxu0 %v5385
    %10507 = vmatmul.mubr.bf16.gmra.mxu0 %v5384
    %v10508 = vpop.f32.mrf.mxu0
    %v10509 = vadd.f32 %v10348, %v10508
    %v10510 = vpop.f32.mrf.mxu0
    %v10511 = vpop.f32.mrf.mxu0
    %v10512 = vadd.f32 %v10351, %v10511
    %v10513 = vpop.f32.mrf.mxu0
    %10514 = vmatprep.mubr.bf16.mxu0 %v5392
    %10515 = vmatmul.mubr.bf16.gmra.mxu0 %v5391
    %v10516 = vpop.f32.mrf.mxu0
    %v10517 = vadd.f32 %v10356, %v10516
    %v10518 = vpop.f32.mrf.mxu0
    %v10519 = vpop.f32.mrf.mxu0
    %v10520 = vadd.f32 %v10359, %v10519
    %v10521 = vpop.f32.mrf.mxu0
    %10522 = vmatprep.mubr.bf16.mxu0 %v5399
    %10523 = vmatmul.mubr.bf16.gmra.mxu0 %v5398
    %v10524 = vpop.f32.mrf.mxu0
    %v10525 = vadd.f32 %v10364, %v10524
    %v10526 = vpop.f32.mrf.mxu0
    %v10527 = vpop.f32.mrf.mxu0
    %v10528 = vadd.f32 %v10367, %v10527
    %v10529 = vpop.f32.mrf.mxu0
    %10530 = vmatprep.mubr.bf16.mxu0 %v5406
    %10531 = vmatmul.mubr.bf16.gmra.mxu0 %v5405
    %v10532 = vpop.f32.mrf.mxu0
    %v10533 = vadd.f32 %v10372, %v10532
    %v10534 = vpop.f32.mrf.mxu0
    %v10535 = vpop.f32.mrf.mxu0
    %v10536 = vadd.f32 %v10375, %v10535
    %v10537 = vpop.f32.mrf.mxu0
    %10538 = vmatprep.mubr.bf16.mxu0 %v5413
    %10539 = vmatmul.mubr.bf16.gmra.mxu0 %v5412
    %v10540 = vpop.f32.mrf.mxu0
    %v10541 = vadd.f32 %v10380, %v10540
    %v10542 = vpop.f32.mrf.mxu0
    %v10543 = vpop.f32.mrf.mxu0
    %v10544 = vadd.f32 %v10383, %v10543
    %v10545 = vpop.f32.mrf.mxu0
    %10546 = vmatprep.mubr.bf16.mxu0 %v5420
    %10547 = vmatmul.mubr.bf16.gmra.mxu0 %v5419
    %v10548 = vpop.f32.mrf.mxu0
    %v10549 = vadd.f32 %v10388, %v10548
    %v10550 = vpop.f32.mrf.mxu0
    %v10551 = vpop.f32.mrf.mxu0
    %v10552 = vadd.f32 %v10391, %v10551
    %v10553 = vpop.f32.mrf.mxu0
    %10554 = vmatprep.mubr.bf16.mxu0 %v5427
    %10555 = vmatmul.mubr.bf16.gmra.mxu0 %v5426
    %v10556 = vpop.f32.mrf.mxu0
    %v10557 = vadd.f32 %v10396, %v10556
    %v10558 = vpop.f32.mrf.mxu0
    %v10559 = vpop.f32.mrf.mxu0
    %v10560 = vadd.f32 %v10399, %v10559
    %v10561 = vpop.f32.mrf.mxu0
    %10562 = vmatprep.mubr.bf16.mxu0 %v5434
    %10563 = vmatmul.mubr.bf16.gmra.mxu0 %v5433
    %v10564 = vpop.f32.mrf.mxu0
    %v10565 = vadd.f32 %v10404, %v10564
    %v10566 = vpop.f32.mrf.mxu0
    %v10567 = vpop.f32.mrf.mxu0
    %v10568 = vadd.f32 %v10407, %v10567
    %v10569 = vpop.f32.mrf.mxu0
    %10570 = vmatprep.mubr.bf16.mxu0 %v5441
    %10571 = vmatmul.mubr.bf16.gmra.mxu0 %v5440
    %v10572 = vpop.f32.mrf.mxu0
    %v10573 = vadd.f32 %v10412, %v10572
    %v10574 = vpop.f32.mrf.mxu0
    %v10575 = vpop.f32.mrf.mxu0
    %v10576 = vadd.f32 %v10415, %v10575
    %v10577 = vpop.f32.mrf.mxu0
    %10578 = vmatprep.mubr.bf16.mxu0 %v5448
    %10579 = vmatmul.mubr.bf16.gmra.mxu0 %v5447
    %v10580 = vpop.f32.mrf.mxu0
    %v10581 = vadd.f32 %v10420, %v10580
    %v10582 = vpop.f32.mrf.mxu0
    %v10583 = vpop.f32.mrf.mxu0
    %v10584 = vadd.f32 %v10423, %v10583
    %v10585 = vpop.f32.mrf.mxu0
    %10586 = vmatprep.mubr.bf16.mxu0 %v5455
    %10587 = vmatmul.mubr.bf16.gmra.mxu0 %v5454
    %v10588 = vpop.f32.mrf.mxu0
    %v10589 = vadd.f32 %v10428, %v10588
    %v10590 = vpop.f32.mrf.mxu0
    %v10591 = vpop.f32.mrf.mxu0
    %v10592 = vadd.f32 %v10431, %v10591
    %v10593 = vpop.f32.mrf.mxu0
    %10594 = vmatprep.mubr.bf16.mxu0 %v5462
    %10595 = vmatmul.mubr.bf16.gmra.mxu0 %v5461
    %v10596 = vpop.f32.mrf.mxu0
    %v10597 = vadd.f32 %v10436, %v10596
    %v10598 = vpop.f32.mrf.mxu0
    %v10599 = vpop.f32.mrf.mxu0
    %v10600 = vadd.f32 %v10439, %v10599
    %v10601 = vpop.f32.mrf.mxu0
    %10602 = vmatprep.mubr.bf16.mxu0 %v5469
    %10603 = vmatmul.mubr.bf16.gmra.mxu0 %v5468
    %v10604 = vpop.f32.mrf.mxu0
    %v10605 = vadd.f32 %v10444, %v10604
    %v10606 = vpop.f32.mrf.mxu0
    %v10607 = vpop.f32.mrf.mxu0
    %v10608 = vadd.f32 %v10447, %v10607
    %v10609 = vpop.f32.mrf.mxu0
    %10610 = vmatprep.mubr.bf16.mxu0 %v5476
    %10611 = vmatmul.mubr.bf16.gmra.mxu0 %v5475
    %v10612 = vpop.f32.mrf.mxu0
    %v10613 = vadd.f32 %v10452, %v10612
    %v10614 = vpop.f32.mrf.mxu0
    %v10615 = vpop.f32.mrf.mxu0
    %v10616 = vadd.f32 %v10455, %v10615
    %v10617 = vpop.f32.mrf.mxu0
    %10618 = vdwg.mxu0
    %10619 = vmatprep.subr.bf16.mxu0 0
    %10620 = vmatpush1.bf16.msra.mxu0 %v7476
    %10621 = vmatprep.subr.bf16.mxu0 0
    %10622 = vmatpush1.bf16.msra.mxu0 %v7469
    %10623 = vmatprep.subr.bf16.mxu0 0
    %10624 = vmatpush1.bf16.msra.mxu0 %v7462
    %10625 = vmatprep.subr.bf16.mxu0 0
    %10626 = vmatpush1.bf16.msra.mxu0 %v7455
    %10627 = vmatprep.subr.bf16.mxu0 0
    %10628 = vmatpush1.bf16.msra.mxu0 %v7448
    %10629 = vmatprep.subr.bf16.mxu0 0
    %10630 = vmatpush1.bf16.msra.mxu0 %v7441
    %10631 = vmatprep.subr.bf16.mxu0 0
    %10632 = vmatpush1.bf16.msra.mxu0 %v7434
    %10633 = vmatprep.subr.bf16.mxu0 0
    %10634 = vmatpush1.bf16.msra.mxu0 %v7427
    %10635 = vmatprep.subr.bf16.mxu0 0
    %10636 = vmatpush2.bf16.msra.mxu0 %v7532
    %10637 = vmatprep.subr.bf16.mxu0 0
    %10638 = vmatpush2.bf16.msra.mxu0 %v7525
    %10639 = vmatprep.subr.bf16.mxu0 0
    %10640 = vmatpush2.bf16.msra.mxu0 %v7518
    %10641 = vmatprep.subr.bf16.mxu0 0
    %10642 = vmatpush2.bf16.msra.mxu0 %v7511
    %10643 = vmatprep.subr.bf16.mxu0 0
    %10644 = vmatpush2.bf16.msra.mxu0 %v7504
    %10645 = vmatprep.subr.bf16.mxu0 0
    %10646 = vmatpush2.bf16.msra.mxu0 %v7497
    %10647 = vmatprep.subr.bf16.mxu0 0
    %10648 = vmatpush2.bf16.msra.mxu0 %v7490
    %10649 = vmatprep.subr.bf16.mxu0 0
    %10650 = vmatpush2.bf16.msra.mxu0 %v7483
    %10651 = vmatprep.mubr.bf16.mxu0 %v5373
    %10652 = vmatmul.mubr.bf16.gmra.mxu0 %v5372
    %v10653 = vpop.f32.mrf.mxu0
    %v10654 = vadd.f32 %v10493, %v10653
    %v10655 = vpop.f32.mrf.mxu0
    %v10656 = vpop.f32.mrf.mxu0
    %v10657 = vadd.f32 %v10496, %v10656
    %v10658 = vpop.f32.mrf.mxu0
    %10659 = vmatprep.mubr.bf16.mxu0 %v5380
    %10660 = vmatmul.mubr.bf16.gmra.mxu0 %v5379
    %v10661 = vpop.f32.mrf.mxu0
    %v10662 = vadd.f32 %v10501, %v10661
    %v10663 = vpop.f32.mrf.mxu0
    %v10664 = vpop.f32.mrf.mxu0
    %v10665 = vadd.f32 %v10504, %v10664
    %v10666 = vpop.f32.mrf.mxu0
    %10667 = vmatprep.mubr.bf16.mxu0 %v5387
    %10668 = vmatmul.mubr.bf16.gmra.mxu0 %v5386
    %v10669 = vpop.f32.mrf.mxu0
    %v10670 = vadd.f32 %v10509, %v10669
    %v10671 = vpop.f32.mrf.mxu0
    %v10672 = vpop.f32.mrf.mxu0
    %v10673 = vadd.f32 %v10512, %v10672
    %v10674 = vpop.f32.mrf.mxu0
    %10675 = vmatprep.mubr.bf16.mxu0 %v5394
    %10676 = vmatmul.mubr.bf16.gmra.mxu0 %v5393
    %v10677 = vpop.f32.mrf.mxu0
    %v10678 = vadd.f32 %v10517, %v10677
    %v10679 = vpop.f32.mrf.mxu0
    %v10680 = vpop.f32.mrf.mxu0
    %v10681 = vadd.f32 %v10520, %v10680
    %v10682 = vpop.f32.mrf.mxu0
    %10683 = vmatprep.mubr.bf16.mxu0 %v5401
    %10684 = vmatmul.mubr.bf16.gmra.mxu0 %v5400
    %v10685 = vpop.f32.mrf.mxu0
    %v10686 = vadd.f32 %v10525, %v10685
    %v10687 = vpop.f32.mrf.mxu0
    %v10688 = vpop.f32.mrf.mxu0
    %v10689 = vadd.f32 %v10528, %v10688
    %v10690 = vpop.f32.mrf.mxu0
    %10691 = vmatprep.mubr.bf16.mxu0 %v5408
    %10692 = vmatmul.mubr.bf16.gmra.mxu0 %v5407
    %v10693 = vpop.f32.mrf.mxu0
    %v10694 = vadd.f32 %v10533, %v10693
    %v10695 = vpop.f32.mrf.mxu0
    %v10696 = vpop.f32.mrf.mxu0
    %v10697 = vadd.f32 %v10536, %v10696
    %v10698 = vpop.f32.mrf.mxu0
    %10699 = vmatprep.mubr.bf16.mxu0 %v5415
    %10700 = vmatmul.mubr.bf16.gmra.mxu0 %v5414
    %v10701 = vpop.f32.mrf.mxu0
    %v10702 = vadd.f32 %v10541, %v10701
    %v10703 = vpop.f32.mrf.mxu0
    %v10704 = vpop.f32.mrf.mxu0
    %v10705 = vadd.f32 %v10544, %v10704
    %v10706 = vpop.f32.mrf.mxu0
    %10707 = vmatprep.mubr.bf16.mxu0 %v5422
    %10708 = vmatmul.mubr.bf16.gmra.mxu0 %v5421
    %v10709 = vpop.f32.mrf.mxu0
    %v10710 = vadd.f32 %v10549, %v10709
    %v10711 = vpop.f32.mrf.mxu0
    %v10712 = vpop.f32.mrf.mxu0
    %v10713 = vadd.f32 %v10552, %v10712
    %v10714 = vpop.f32.mrf.mxu0
    %10715 = vmatprep.mubr.bf16.mxu0 %v5429
    %10716 = vmatmul.mubr.bf16.gmra.mxu0 %v5428
    %v10717 = vpop.f32.mrf.mxu0
    %v10718 = vadd.f32 %v10557, %v10717
    %v10719 = vpop.f32.mrf.mxu0
    %v10720 = vpop.f32.mrf.mxu0
    %v10721 = vadd.f32 %v10560, %v10720
    %v10722 = vpop.f32.mrf.mxu0
    %10723 = vmatprep.mubr.bf16.mxu0 %v5436
    %10724 = vmatmul.mubr.bf16.gmra.mxu0 %v5435
    %v10725 = vpop.f32.mrf.mxu0
    %v10726 = vadd.f32 %v10565, %v10725
    %v10727 = vpop.f32.mrf.mxu0
    %v10728 = vpop.f32.mrf.mxu0
    %v10729 = vadd.f32 %v10568, %v10728
    %v10730 = vpop.f32.mrf.mxu0
    %10731 = vmatprep.mubr.bf16.mxu0 %v5443
    %10732 = vmatmul.mubr.bf16.gmra.mxu0 %v5442
    %v10733 = vpop.f32.mrf.mxu0
    %v10734 = vadd.f32 %v10573, %v10733
    %v10735 = vpop.f32.mrf.mxu0
    %v10736 = vpop.f32.mrf.mxu0
    %v10737 = vadd.f32 %v10576, %v10736
    %v10738 = vpop.f32.mrf.mxu0
    %10739 = vmatprep.mubr.bf16.mxu0 %v5450
    %10740 = vmatmul.mubr.bf16.gmra.mxu0 %v5449
    %v10741 = vpop.f32.mrf.mxu0
    %v10742 = vadd.f32 %v10581, %v10741
    %v10743 = vpop.f32.mrf.mxu0
    %v10744 = vpop.f32.mrf.mxu0
    %v10745 = vadd.f32 %v10584, %v10744
    %v10746 = vpop.f32.mrf.mxu0
    %10747 = vmatprep.mubr.bf16.mxu0 %v5457
    %10748 = vmatmul.mubr.bf16.gmra.mxu0 %v5456
    %v10749 = vpop.f32.mrf.mxu0
    %v10750 = vadd.f32 %v10589, %v10749
    %v10751 = vpop.f32.mrf.mxu0
    %v10752 = vpop.f32.mrf.mxu0
    %v10753 = vadd.f32 %v10592, %v10752
    %v10754 = vpop.f32.mrf.mxu0
    %10755 = vmatprep.mubr.bf16.mxu0 %v5464
    %10756 = vmatmul.mubr.bf16.gmra.mxu0 %v5463
    %v10757 = vpop.f32.mrf.mxu0
    %v10758 = vadd.f32 %v10597, %v10757
    %v10759 = vpop.f32.mrf.mxu0
    %v10760 = vpop.f32.mrf.mxu0
    %v10761 = vadd.f32 %v10600, %v10760
    %v10762 = vpop.f32.mrf.mxu0
    %10763 = vmatprep.mubr.bf16.mxu0 %v5471
    %10764 = vmatmul.mubr.bf16.gmra.mxu0 %v5470
    %v10765 = vpop.f32.mrf.mxu0
    %v10766 = vadd.f32 %v10605, %v10765
    %v10767 = vpop.f32.mrf.mxu0
    %v10768 = vpop.f32.mrf.mxu0
    %v10769 = vadd.f32 %v10608, %v10768
    %v10770 = vpop.f32.mrf.mxu0
    %10771 = vmatprep.mubr.bf16.mxu0 %v5478
    %10772 = vmatmul.mubr.bf16.gmra.mxu0 %v5477
    %v10773 = vpop.f32.mrf.mxu0
    %v10774 = vadd.f32 %v10613, %v10773
    %v10775 = vpop.f32.mrf.mxu0
    %v10776 = vpop.f32.mrf.mxu0
    %v10777 = vadd.f32 %v10616, %v10776
    %v10778 = vpop.f32.mrf.mxu0
    %10779 = vdwg.mxu0
    %10780 = vmatprep.subr.bf16.mxu0 0
    %10781 = vmatpush1.bf16.msra.mxu0 %v7588
    %10782 = vmatprep.subr.bf16.mxu0 0
    %10783 = vmatpush1.bf16.msra.mxu0 %v7581
    %10784 = vmatprep.subr.bf16.mxu0 0
    %10785 = vmatpush1.bf16.msra.mxu0 %v7574
    %10786 = vmatprep.subr.bf16.mxu0 0
    %10787 = vmatpush1.bf16.msra.mxu0 %v7567
    %10788 = vmatprep.subr.bf16.mxu0 0
    %10789 = vmatpush1.bf16.msra.mxu0 %v7560
    %10790 = vmatprep.subr.bf16.mxu0 0
    %10791 = vmatpush1.bf16.msra.mxu0 %v7553
    %10792 = vmatprep.subr.bf16.mxu0 0
    %10793 = vmatpush1.bf16.msra.mxu0 %v7546
    %10794 = vmatprep.subr.bf16.mxu0 0
    %10795 = vmatpush1.bf16.msra.mxu0 %v7539
    %10796 = vmatprep.subr.bf16.mxu0 0
    %10797 = vmatpush2.bf16.msra.mxu0 0
    %10798 = vmatprep.subr.bf16.mxu0 0
    %10799 = vmatpush2.bf16.msra.mxu0 0
    %10800 = vmatprep.subr.bf16.mxu0 0
    %10801 = vmatpush2.bf16.msra.mxu0 0
    %10802 = vmatprep.subr.bf16.mxu0 0
    %10803 = vmatpush2.bf16.msra.mxu0 0
    %10804 = vmatprep.subr.bf16.mxu0 0
    %10805 = vmatpush2.bf16.msra.mxu0 0
    %10806 = vmatprep.subr.bf16.mxu0 0
    %10807 = vmatpush2.bf16.msra.mxu0 0
    %10808 = vmatprep.subr.bf16.mxu0 0
    %10809 = vmatpush2.bf16.msra.mxu0 0
    %10810 = vmatprep.subr.bf16.mxu0 0
    %10811 = vmatpush2.bf16.msra.mxu0 0
    %10812 = vmatprep.mubr.bf16.mxu0 0
    %10813 = vmatmul.mubr.bf16.gmra.mxu0 %v5374
    %v10814 = vpop.f32.mrf.mxu0
    %v10815 = vadd.f32 %v10654, %v10814
    %v10816 = vpop.f32.mrf.mxu0
    %v10817 = vpop.f32.mrf.mxu0
    %v10818 = vadd.f32 %v10657, %v10817
    %v10819 = vpop.f32.mrf.mxu0
    %10820 = vmatprep.mubr.bf16.mxu0 0
    %10821 = vmatmul.mubr.bf16.gmra.mxu0 %v5381
    %v10822 = vpop.f32.mrf.mxu0
    %v10823 = vadd.f32 %v10662, %v10822
    %v10824 = vpop.f32.mrf.mxu0
    %v10825 = vpop.f32.mrf.mxu0
    %v10826 = vadd.f32 %v10665, %v10825
    %v10827 = vpop.f32.mrf.mxu0
    %10828 = vmatprep.mubr.bf16.mxu0 0
    %10829 = vmatmul.mubr.bf16.gmra.mxu0 %v5388
    %v10830 = vpop.f32.mrf.mxu0
    %v10831 = vadd.f32 %v10670, %v10830
    %v10832 = vpop.f32.mrf.mxu0
    %v10833 = vpop.f32.mrf.mxu0
    %v10834 = vadd.f32 %v10673, %v10833
    %v10835 = vpop.f32.mrf.mxu0
    %10836 = vmatprep.mubr.bf16.mxu0 0
    %10837 = vmatmul.mubr.bf16.gmra.mxu0 %v5395
    %v10838 = vpop.f32.mrf.mxu0
    %v10839 = vadd.f32 %v10678, %v10838
    %v10840 = vpop.f32.mrf.mxu0
    %v10841 = vpop.f32.mrf.mxu0
    %v10842 = vadd.f32 %v10681, %v10841
    %v10843 = vpop.f32.mrf.mxu0
    %10844 = vmatprep.mubr.bf16.mxu0 0
    %10845 = vmatmul.mubr.bf16.gmra.mxu0 %v5402
    %v10846 = vpop.f32.mrf.mxu0
    %v10847 = vadd.f32 %v10686, %v10846
    %v10848 = vpop.f32.mrf.mxu0
    %v10849 = vpop.f32.mrf.mxu0
    %v10850 = vadd.f32 %v10689, %v10849
    %v10851 = vpop.f32.mrf.mxu0
    %10852 = vmatprep.mubr.bf16.mxu0 0
    %10853 = vmatmul.mubr.bf16.gmra.mxu0 %v5409
    %v10854 = vpop.f32.mrf.mxu0
    %v10855 = vadd.f32 %v10694, %v10854
    %v10856 = vpop.f32.mrf.mxu0
    %v10857 = vpop.f32.mrf.mxu0
    %v10858 = vadd.f32 %v10697, %v10857
    %v10859 = vpop.f32.mrf.mxu0
    %10860 = vmatprep.mubr.bf16.mxu0 0
    %10861 = vmatmul.mubr.bf16.gmra.mxu0 %v5416
    %v10862 = vpop.f32.mrf.mxu0
    %v10863 = vadd.f32 %v10702, %v10862
    %v10864 = vpop.f32.mrf.mxu0
    %v10865 = vpop.f32.mrf.mxu0
    %v10866 = vadd.f32 %v10705, %v10865
    %v10867 = vpop.f32.mrf.mxu0
    %10868 = vmatprep.mubr.bf16.mxu0 0
    %10869 = vmatmul.mubr.bf16.gmra.mxu0 %v5423
    %v10870 = vpop.f32.mrf.mxu0
    %v10871 = vadd.f32 %v10710, %v10870
    %v10872 = vpop.f32.mrf.mxu0
    %v10873 = vpop.f32.mrf.mxu0
    %v10874 = vadd.f32 %v10713, %v10873
    %v10875 = vpop.f32.mrf.mxu0
    %10876 = vmatprep.mubr.bf16.mxu0 0
    %10877 = vmatmul.mubr.bf16.gmra.mxu0 %v5430
    %v10878 = vpop.f32.mrf.mxu0
    %v10879 = vadd.f32 %v10718, %v10878
    %v10880 = vpop.f32.mrf.mxu0
    %v10881 = vpop.f32.mrf.mxu0
    %v10882 = vadd.f32 %v10721, %v10881
    %v10883 = vpop.f32.mrf.mxu0
    %10884 = vmatprep.mubr.bf16.mxu0 0
    %10885 = vmatmul.mubr.bf16.gmra.mxu0 %v5437
    %v10886 = vpop.f32.mrf.mxu0
    %v10887 = vadd.f32 %v10726, %v10886
    %v10888 = vpop.f32.mrf.mxu0
    %v10889 = vpop.f32.mrf.mxu0
    %v10890 = vadd.f32 %v10729, %v10889
    %v10891 = vpop.f32.mrf.mxu0
    %10892 = vmatprep.mubr.bf16.mxu0 0
    %10893 = vmatmul.mubr.bf16.gmra.mxu0 %v5444
    %v10894 = vpop.f32.mrf.mxu0
    %v10895 = vadd.f32 %v10734, %v10894
    %v10896 = vpop.f32.mrf.mxu0
    %v10897 = vpop.f32.mrf.mxu0
    %v10898 = vadd.f32 %v10737, %v10897
    %v10899 = vpop.f32.mrf.mxu0
    %10900 = vmatprep.mubr.bf16.mxu0 0
    %10901 = vmatmul.mubr.bf16.gmra.mxu0 %v5451
    %v10902 = vpop.f32.mrf.mxu0
    %v10903 = vadd.f32 %v10742, %v10902
    %v10904 = vpop.f32.mrf.mxu0
    %v10905 = vpop.f32.mrf.mxu0
    %v10906 = vadd.f32 %v10745, %v10905
    %v10907 = vpop.f32.mrf.mxu0
    %10908 = vmatprep.mubr.bf16.mxu0 0
    %10909 = vmatmul.mubr.bf16.gmra.mxu0 %v5458
    %v10910 = vpop.f32.mrf.mxu0
    %v10911 = vadd.f32 %v10750, %v10910
    %v10912 = vpop.f32.mrf.mxu0
    %v10913 = vpop.f32.mrf.mxu0
    %v10914 = vadd.f32 %v10753, %v10913
    %v10915 = vpop.f32.mrf.mxu0
    %10916 = vmatprep.mubr.bf16.mxu0 0
    %10917 = vmatmul.mubr.bf16.gmra.mxu0 %v5465
    %v10918 = vpop.f32.mrf.mxu0
    %v10919 = vadd.f32 %v10758, %v10918
    %v10920 = vpop.f32.mrf.mxu0
    %v10921 = vpop.f32.mrf.mxu0
    %v10922 = vadd.f32 %v10761, %v10921
    %v10923 = vpop.f32.mrf.mxu0
    %10924 = vmatprep.mubr.bf16.mxu0 0
    %10925 = vmatmul.mubr.bf16.gmra.mxu0 %v5472
    %v10926 = vpop.f32.mrf.mxu0
    %v10927 = vadd.f32 %v10766, %v10926
    %v10928 = vpop.f32.mrf.mxu0
    %v10929 = vpop.f32.mrf.mxu0
    %v10930 = vadd.f32 %v10769, %v10929
    %v10931 = vpop.f32.mrf.mxu0
    %10932 = vmatprep.mubr.bf16.mxu0 0
    %10933 = vmatmul.mubr.bf16.gmra.mxu0 %v5479
    %v10934 = vpop.f32.mrf.mxu0
    %v10935 = vadd.f32 %v10774, %v10934
    %v10936 = vpop.f32.mrf.mxu0
    %v10937 = vpop.f32.mrf.mxu0
    %v10938 = vadd.f32 %v10777, %v10937
    %v10939 = vpop.f32.mrf.mxu0
    %10940 = vdwg.mxu0
    %v10941 = vtanh.pop %v8595
    %v10942 = vtanh.pop %v8597
    %v10943 = vtanh.pop %v9367
    %v10944 = vtanh.pop %v9369
    %v10945 = vtanh.pop %v10139
    %v10946 = vtanh.pop %v10141
    %v10947 = vtanh.pop %v10815
    %v10948 = vtanh.pop %v8599
    %v10949 = vtanh.pop %v8601
    %v10950 = vtanh.pop %v9371
    %v10951 = vtanh.pop %v9373
    %v10952 = vtanh.pop %v10143
    %v10953 = vtanh.pop %v10145
    %v10954 = vtanh.pop %v10818
    %v10955 = vtanh.pop %v8605
    %v10956 = vtanh.pop %v8607
    %v10957 = vtanh.pop %v9377
    %v10958 = vtanh.pop %v9379
    %v10959 = vtanh.pop %v10149
    %v10960 = vtanh.pop %v10151
    %v10961 = vtanh.pop %v10823
    %v10962 = vtanh.pop %v8609
    %v10963 = vtanh.pop %v8611
    %v10964 = vtanh.pop %v9381
    %v10965 = vtanh.pop %v9383
    %v10966 = vtanh.pop %v10153
    %v10967 = vtanh.pop %v10155
    %v10968 = vtanh.pop %v10826
    %v10969 = vtanh.pop %v8615
    %v10970 = vtanh.pop %v8617
    %v10971 = vtanh.pop %v9387
    %v10972 = vtanh.pop %v9389
    %v10973 = vtanh.pop %v10159
    %v10974 = vtanh.pop %v10161
    %v10975 = vtanh.pop %v10831
    %v10976 = vtanh.pop %v8619
    %v10977 = vtanh.pop %v8621
    %v10978 = vtanh.pop %v9391
    %v10979 = vtanh.pop %v9393
    %v10980 = vtanh.pop %v10163
    %v10981 = vtanh.pop %v10165
    %v10982 = vtanh.pop %v10834
    %v10983 = vtanh.pop %v8625
    %v10984 = vtanh.pop %v8627
    %v10985 = vtanh.pop %v9397
    %v10986 = vtanh.pop %v9399
    %v10987 = vtanh.pop %v10169
    %v10988 = vtanh.pop %v10171
    %v10989 = vtanh.pop %v10839
    %v10990 = vtanh.pop %v8629
    %v10991 = vtanh.pop %v8631
    %v10992 = vtanh.pop %v9401
    %v10993 = vtanh.pop %v9403
    %v10994 = vtanh.pop %v10173
    %v10995 = vtanh.pop %v10175
    %v10996 = vtanh.pop %v10842
    %v10997 = vtanh.pop %v8635
    %v10998 = vtanh.pop %v8637
    %v10999 = vtanh.pop %v9407
    %v11000 = vtanh.pop %v9409
    %v11001 = vtanh.pop %v10179
    %v11002 = vtanh.pop %v10181
    %v11003 = vtanh.pop %v10847
    %v11004 = vtanh.pop %v8639
    %v11005 = vtanh.pop %v8641
    %v11006 = vtanh.pop %v9411
    %v11007 = vtanh.pop %v9413
    %v11008 = vtanh.pop %v10183
    %v11009 = vtanh.pop %v10185
    %v11010 = vtanh.pop %v10850
    %v11011 = vtanh.pop %v8645
    %v11012 = vtanh.pop %v8647
    %v11013 = vtanh.pop %v9417
    %v11014 = vtanh.pop %v9419
    %v11015 = vtanh.pop %v10189
    %v11016 = vtanh.pop %v10191
    %v11017 = vtanh.pop %v10855
    %v11018 = vtanh.pop %v8649
    %v11019 = vtanh.pop %v8651
    %v11020 = vtanh.pop %v9421
    %v11021 = vtanh.pop %v9423
    %v11022 = vtanh.pop %v10193
    %v11023 = vtanh.pop %v10195
    %v11024 = vtanh.pop %v10858
    %v11025 = vtanh.pop %v8655
    %v11026 = vtanh.pop %v8657
    %v11027 = vtanh.pop %v9427
    %v11028 = vtanh.pop %v9429
    %v11029 = vtanh.pop %v10199
    %v11030 = vtanh.pop %v10201
    %v11031 = vtanh.pop %v10863
    %v11032 = vtanh.pop %v8659
    %v11033 = vtanh.pop %v8661
    %v11034 = vtanh.pop %v9431
    %v11035 = vtanh.pop %v9433
    %v11036 = vtanh.pop %v10203
    %v11037 = vtanh.pop %v10205
    %v11038 = vtanh.pop %v10866
    %v11039 = vtanh.pop %v8665
    %v11040 = vtanh.pop %v8667
    %v11041 = vtanh.pop %v9437
    %v11042 = vtanh.pop %v9439
    %v11043 = vtanh.pop %v10209
    %v11044 = vtanh.pop %v10211
    %v11045 = vtanh.pop %v10871
    %v11046 = vtanh.pop %v8669
    %v11047 = vtanh.pop %v8671
    %v11048 = vtanh.pop %v9441
    %v11049 = vtanh.pop %v9443
    %v11050 = vtanh.pop %v10213
    %v11051 = vtanh.pop %v10215
    %v11052 = vtanh.pop %v10874
    %v11053 = vtanh.pop %v8675
    %v11054 = vtanh.pop %v8677
    %v11055 = vtanh.pop %v9447
    %v11056 = vtanh.pop %v9449
    %v11057 = vtanh.pop %v10219
    %v11058 = vtanh.pop %v10221
    %v11059 = vtanh.pop %v10879
    %v11060 = vtanh.pop %v8679
    %v11061 = vtanh.pop %v8681
    %v11062 = vtanh.pop %v9451
    %v11063 = vtanh.pop %v9453
    %v11064 = vtanh.pop %v10223
    %v11065 = vtanh.pop %v10225
    %v11066 = vtanh.pop %v10882
    %v11067 = vtanh.pop %v8685
    %v11068 = vtanh.pop %v8687
    %v11069 = vtanh.pop %v9457
    %v11070 = vtanh.pop %v9459
    %v11071 = vtanh.pop %v10229
    %v11072 = vtanh.pop %v10231
    %v11073 = vtanh.pop %v10887
    %v11074 = vtanh.pop %v8689
    %v11075 = vtanh.pop %v8691
    %v11076 = vtanh.pop %v9461
    %v11077 = vtanh.pop %v9463
    %v11078 = vtanh.pop %v10233
    %v11079 = vtanh.pop %v10235
    %v11080 = vtanh.pop %v10890
    %v11081 = vtanh.pop %v8695
    %v11082 = vtanh.pop %v8697
    %v11083 = vtanh.pop %v9467
    %v11084 = vtanh.pop %v9469
    %v11085 = vtanh.pop %v10239
    %v11086 = vtanh.pop %v10241
    %v11087 = vtanh.pop %v10895
    %v11088 = vtanh.pop %v8699
    %v11089 = vtanh.pop %v8701
    %v11090 = vtanh.pop %v9471
    %v11091 = vtanh.pop %v9473
    %v11092 = vtanh.pop %v10243
    %v11093 = vtanh.pop %v10245
    %v11094 = vtanh.pop %v10898
    %v11095 = vtanh.pop %v8705
    %v11096 = vtanh.pop %v8707
    %v11097 = vtanh.pop %v9477
    %v11098 = vtanh.pop %v9479
    %v11099 = vtanh.pop %v10249
    %v11100 = vtanh.pop %v10251
    %v11101 = vtanh.pop %v10903
    %v11102 = vtanh.pop %v8709
    %v11103 = vtanh.pop %v8711
    %v11104 = vtanh.pop %v9481
    %v11105 = vtanh.pop %v9483
    %v11106 = vtanh.pop %v10253
    %v11107 = vtanh.pop %v10255
    %v11108 = vtanh.pop %v10906
    %v11109 = vtanh.pop %v8715
    %v11110 = vtanh.pop %v8717
    %v11111 = vtanh.pop %v9487
    %v11112 = vtanh.pop %v9489
    %v11113 = vtanh.pop %v10259
    %v11114 = vtanh.pop %v10261
    %v11115 = vtanh.pop %v10911
    %v11116 = vtanh.pop %v8719
    %v11117 = vtanh.pop %v8721
    %v11118 = vtanh.pop %v9491
    %v11119 = vtanh.pop %v9493
    %v11120 = vtanh.pop %v10263
    %v11121 = vtanh.pop %v10265
    %v11122 = vtanh.pop %v10914
    %v11123 = vtanh.pop %v8725
    %v11124 = vtanh.pop %v8727
    %v11125 = vtanh.pop %v9497
    %v11126 = vtanh.pop %v9499
    %v11127 = vtanh.pop %v10269
    %v11128 = vtanh.pop %v10271
    %v11129 = vtanh.pop %v10919
    %v11130 = vtanh.pop %v8729
    %v11131 = vtanh.pop %v8731
    %v11132 = vtanh.pop %v9501
    %v11133 = vtanh.pop %v9503
    %v11134 = vtanh.pop %v10273
    %v11135 = vtanh.pop %v10275
    %v11136 = vtanh.pop %v10922
    %v11137 = vtanh.pop %v8735
    %v11138 = vtanh.pop %v8737
    %v11139 = vtanh.pop %v9507
    %v11140 = vtanh.pop %v9509
    %v11141 = vtanh.pop %v10279
    %v11142 = vtanh.pop %v10281
    %v11143 = vtanh.pop %v10927
    %v11144 = vtanh.pop %v8739
    %v11145 = vtanh.pop %v8741
    %v11146 = vtanh.pop %v9511
    %v11147 = vtanh.pop %v9513
    %v11148 = vtanh.pop %v10283
    %v11149 = vtanh.pop %v10285
    %v11150 = vtanh.pop %v10930
    %v11151 = vtanh.pop %v8745
    %v11152 = vtanh.pop %v8747
    %v11153 = vtanh.pop %v9517
    %v11154 = vtanh.pop %v9519
    %v11155 = vtanh.pop %v10289
    %v11156 = vtanh.pop %v10291
    %v11157 = vtanh.pop %v10935
    %v11158 = vtanh.pop %v8749
    %v11159 = vtanh.pop %v8751
    %v11160 = vtanh.pop %v9521
    %v11161 = vtanh.pop %v9523
    %v11162 = vtanh.pop %v10293
    %v11163 = vtanh.pop %v10295
    %v11164 = vtanh.pop %v10938
    %v11165 = vpack.c.bf16 %v10948, %v10941
    %v11166 = vpack.c.bf16 %v10949, %v10942
    %v11167 = vpack.c.bf16 %v10950, %v10943
    %v11168 = vpack.c.bf16 %v10951, %v10944
    %v11169 = vpack.c.bf16 %v10952, %v10945
    %v11170 = vpack.c.bf16 %v10953, %v10946
    %v11171 = vpack.c.bf16 %v10954, %v10947
    %v11172 = vpack.c.bf16 %v10962, %v10955
    %v11173 = vpack.c.bf16 %v10963, %v10956
    %v11174 = vpack.c.bf16 %v10964, %v10957
    %v11175 = vpack.c.bf16 %v10965, %v10958
    %v11176 = vpack.c.bf16 %v10966, %v10959
    %v11177 = vpack.c.bf16 %v10967, %v10960
    %v11178 = vpack.c.bf16 %v10968, %v10961
    %v11179 = vpack.c.bf16 %v10976, %v10969
    %v11180 = vpack.c.bf16 %v10977, %v10970
    %v11181 = vpack.c.bf16 %v10978, %v10971
    %v11182 = vpack.c.bf16 %v10979, %v10972
    %v11183 = vpack.c.bf16 %v10980, %v10973
    %v11184 = vpack.c.bf16 %v10981, %v10974
    %v11185 = vpack.c.bf16 %v10982, %v10975
    %v11186 = vpack.c.bf16 %v10990, %v10983
    %v11187 = vpack.c.bf16 %v10991, %v10984
    %v11188 = vpack.c.bf16 %v10992, %v10985
    %v11189 = vpack.c.bf16 %v10993, %v10986
    %v11190 = vpack.c.bf16 %v10994, %v10987
    %v11191 = vpack.c.bf16 %v10995, %v10988
    %v11192 = vpack.c.bf16 %v10996, %v10989
    %v11193 = vpack.c.bf16 %v11004, %v10997
    %v11194 = vpack.c.bf16 %v11005, %v10998
    %v11195 = vpack.c.bf16 %v11006, %v10999
    %v11196 = vpack.c.bf16 %v11007, %v11000
    %v11197 = vpack.c.bf16 %v11008, %v11001
    %v11198 = vpack.c.bf16 %v11009, %v11002
    %v11199 = vpack.c.bf16 %v11010, %v11003
    %v11200 = vpack.c.bf16 %v11018, %v11011
    %v11201 = vpack.c.bf16 %v11019, %v11012
    %v11202 = vpack.c.bf16 %v11020, %v11013
    %v11203 = vpack.c.bf16 %v11021, %v11014
    %v11204 = vpack.c.bf16 %v11022, %v11015
    %v11205 = vpack.c.bf16 %v11023, %v11016
    %v11206 = vpack.c.bf16 %v11024, %v11017
    %v11207 = vpack.c.bf16 %v11032, %v11025
    %v11208 = vpack.c.bf16 %v11033, %v11026
    %v11209 = vpack.c.bf16 %v11034, %v11027
    %v11210 = vpack.c.bf16 %v11035, %v11028
    %v11211 = vpack.c.bf16 %v11036, %v11029
    %v11212 = vpack.c.bf16 %v11037, %v11030
    %v11213 = vpack.c.bf16 %v11038, %v11031
    %v11214 = vpack.c.bf16 %v11046, %v11039
    %v11215 = vpack.c.bf16 %v11047, %v11040
    %v11216 = vpack.c.bf16 %v11048, %v11041
    %v11217 = vpack.c.bf16 %v11049, %v11042
    %v11218 = vpack.c.bf16 %v11050, %v11043
    %v11219 = vpack.c.bf16 %v11051, %v11044
    %v11220 = vpack.c.bf16 %v11052, %v11045
    %v11221 = vpack.c.bf16 %v11060, %v11053
    %v11222 = vpack.c.bf16 %v11061, %v11054
    %v11223 = vpack.c.bf16 %v11062, %v11055
    %v11224 = vpack.c.bf16 %v11063, %v11056
    %v11225 = vpack.c.bf16 %v11064, %v11057
    %v11226 = vpack.c.bf16 %v11065, %v11058
    %v11227 = vpack.c.bf16 %v11066, %v11059
    %v11228 = vpack.c.bf16 %v11074, %v11067
    %v11229 = vpack.c.bf16 %v11075, %v11068
    %v11230 = vpack.c.bf16 %v11076, %v11069
    %v11231 = vpack.c.bf16 %v11077, %v11070
    %v11232 = vpack.c.bf16 %v11078, %v11071
    %v11233 = vpack.c.bf16 %v11079, %v11072
    %v11234 = vpack.c.bf16 %v11080, %v11073
    %v11235 = vpack.c.bf16 %v11088, %v11081
    %v11236 = vpack.c.bf16 %v11089, %v11082
    %v11237 = vpack.c.bf16 %v11090, %v11083
    %v11238 = vpack.c.bf16 %v11091, %v11084
    %v11239 = vpack.c.bf16 %v11092, %v11085
    %v11240 = vpack.c.bf16 %v11093, %v11086
    %v11241 = vpack.c.bf16 %v11094, %v11087
    %v11242 = vpack.c.bf16 %v11102, %v11095
    %v11243 = vpack.c.bf16 %v11103, %v11096
    %v11244 = vpack.c.bf16 %v11104, %v11097
    %v11245 = vpack.c.bf16 %v11105, %v11098
    %v11246 = vpack.c.bf16 %v11106, %v11099
    %v11247 = vpack.c.bf16 %v11107, %v11100
    %v11248 = vpack.c.bf16 %v11108, %v11101
    %v11249 = vpack.c.bf16 %v11116, %v11109
    %v11250 = vpack.c.bf16 %v11117, %v11110
    %v11251 = vpack.c.bf16 %v11118, %v11111
    %v11252 = vpack.c.bf16 %v11119, %v11112
    %v11253 = vpack.c.bf16 %v11120, %v11113
    %v11254 = vpack.c.bf16 %v11121, %v11114
    %v11255 = vpack.c.bf16 %v11122, %v11115
    %v11256 = vpack.c.bf16 %v11130, %v11123
    %v11257 = vpack.c.bf16 %v11131, %v11124
    %v11258 = vpack.c.bf16 %v11132, %v11125
    %v11259 = vpack.c.bf16 %v11133, %v11126
    %v11260 = vpack.c.bf16 %v11134, %v11127
    %v11261 = vpack.c.bf16 %v11135, %v11128
    %v11262 = vpack.c.bf16 %v11136, %v11129
    %v11263 = vpack.c.bf16 %v11144, %v11137
    %v11264 = vpack.c.bf16 %v11145, %v11138
    %v11265 = vpack.c.bf16 %v11146, %v11139
    %v11266 = vpack.c.bf16 %v11147, %v11140
    %v11267 = vpack.c.bf16 %v11148, %v11141
    %v11268 = vpack.c.bf16 %v11149, %v11142
    %v11269 = vpack.c.bf16 %v11150, %v11143
    %v11270 = vpack.c.bf16 %v11158, %v11151
    %v11271 = vpack.c.bf16 %v11159, %v11152
    %v11272 = vpack.c.bf16 %v11160, %v11153
    %v11273 = vpack.c.bf16 %v11161, %v11154
    %v11274 = vpack.c.bf16 %v11162, %v11155
    %v11275 = vpack.c.bf16 %v11163, %v11156
    %v11276 = vpack.c.bf16 %v11164, %v11157
    %v11389 = vunpack.c.l.b16 %v11165
    %v11390 = vunpack.c.l.b16 %v11166
    %v11391 = vunpack.c.l.b16 %v11167
    %v11392 = vunpack.c.l.b16 %v11168
    %v11393 = vunpack.c.l.b16 %v11169
    %v11394 = vunpack.c.l.b16 %v11170
    %v11395 = vunpack.c.l.b16 %v11171
    %v11396 = vunpack.c.h.b16 %v11165
    %v11397 = vunpack.c.h.b16 %v11166
    %v11398 = vunpack.c.h.b16 %v11167
    %v11399 = vunpack.c.h.b16 %v11168
    %v11400 = vunpack.c.h.b16 %v11169
    %v11401 = vunpack.c.h.b16 %v11170
    %v11402 = vunpack.c.h.b16 %v11171
    %v11403 = vunpack.c.l.b16 %v11172
    %v11404 = vunpack.c.l.b16 %v11173
    %v11405 = vunpack.c.l.b16 %v11174
    %v11406 = vunpack.c.l.b16 %v11175
    %v11407 = vunpack.c.l.b16 %v11176
    %v11408 = vunpack.c.l.b16 %v11177
    %v11409 = vunpack.c.l.b16 %v11178
    %v11410 = vunpack.c.h.b16 %v11172
    %v11411 = vunpack.c.h.b16 %v11173
    %v11412 = vunpack.c.h.b16 %v11174
    %v11413 = vunpack.c.h.b16 %v11175
    %v11414 = vunpack.c.h.b16 %v11176
    %v11415 = vunpack.c.h.b16 %v11177
    %v11416 = vunpack.c.h.b16 %v11178
    %v11417 = vunpack.c.l.b16 %v11179
    %v11418 = vunpack.c.l.b16 %v11180
    %v11419 = vunpack.c.l.b16 %v11181
    %v11420 = vunpack.c.l.b16 %v11182
    %v11421 = vunpack.c.l.b16 %v11183
    %v11422 = vunpack.c.l.b16 %v11184
    %v11423 = vunpack.c.l.b16 %v11185
    %v11424 = vunpack.c.h.b16 %v11179
    %v11425 = vunpack.c.h.b16 %v11180
    %v11426 = vunpack.c.h.b16 %v11181
    %v11427 = vunpack.c.h.b16 %v11182
    %v11428 = vunpack.c.h.b16 %v11183
    %v11429 = vunpack.c.h.b16 %v11184
    %v11430 = vunpack.c.h.b16 %v11185
    %v11431 = vunpack.c.l.b16 %v11186
    %v11432 = vunpack.c.l.b16 %v11187
    %v11433 = vunpack.c.l.b16 %v11188
    %v11434 = vunpack.c.l.b16 %v11189
    %v11435 = vunpack.c.l.b16 %v11190
    %v11436 = vunpack.c.l.b16 %v11191
    %v11437 = vunpack.c.l.b16 %v11192
    %v11438 = vunpack.c.h.b16 %v11186
    %v11439 = vunpack.c.h.b16 %v11187
    %v11440 = vunpack.c.h.b16 %v11188
    %v11441 = vunpack.c.h.b16 %v11189
    %v11442 = vunpack.c.h.b16 %v11190
    %v11443 = vunpack.c.h.b16 %v11191
    %v11444 = vunpack.c.h.b16 %v11192
    %v11445 = vunpack.c.l.b16 %v11193
    %v11446 = vunpack.c.l.b16 %v11194
    %v11447 = vunpack.c.l.b16 %v11195
    %v11448 = vunpack.c.l.b16 %v11196
    %v11449 = vunpack.c.l.b16 %v11197
    %v11450 = vunpack.c.l.b16 %v11198
    %v11451 = vunpack.c.l.b16 %v11199
    %v11452 = vunpack.c.h.b16 %v11193
    %v11453 = vunpack.c.h.b16 %v11194
    %v11454 = vunpack.c.h.b16 %v11195
    %v11455 = vunpack.c.h.b16 %v11196
    %v11456 = vunpack.c.h.b16 %v11197
    %v11457 = vunpack.c.h.b16 %v11198
    %v11458 = vunpack.c.h.b16 %v11199
    %v11459 = vunpack.c.l.b16 %v11200
    %v11460 = vunpack.c.l.b16 %v11201
    %v11461 = vunpack.c.l.b16 %v11202
    %v11462 = vunpack.c.l.b16 %v11203
    %v11463 = vunpack.c.l.b16 %v11204
    %v11464 = vunpack.c.l.b16 %v11205
    %v11465 = vunpack.c.l.b16 %v11206
    %v11466 = vunpack.c.h.b16 %v11200
    %v11467 = vunpack.c.h.b16 %v11201
    %v11468 = vunpack.c.h.b16 %v11202
    %v11469 = vunpack.c.h.b16 %v11203
    %v11470 = vunpack.c.h.b16 %v11204
    %v11471 = vunpack.c.h.b16 %v11205
    %v11472 = vunpack.c.h.b16 %v11206
    %v11473 = vunpack.c.l.b16 %v11207
    %v11474 = vunpack.c.l.b16 %v11208
    %v11475 = vunpack.c.l.b16 %v11209
    %v11476 = vunpack.c.l.b16 %v11210
    %v11477 = vunpack.c.l.b16 %v11211
    %v11478 = vunpack.c.l.b16 %v11212
    %v11479 = vunpack.c.l.b16 %v11213
    %v11480 = vunpack.c.h.b16 %v11207
    %v11481 = vunpack.c.h.b16 %v11208
    %v11482 = vunpack.c.h.b16 %v11209
    %v11483 = vunpack.c.h.b16 %v11210
    %v11484 = vunpack.c.h.b16 %v11211
    %v11485 = vunpack.c.h.b16 %v11212
    %v11486 = vunpack.c.h.b16 %v11213
    %v11487 = vunpack.c.l.b16 %v11214
    %v11488 = vunpack.c.l.b16 %v11215
    %v11489 = vunpack.c.l.b16 %v11216
    %v11490 = vunpack.c.l.b16 %v11217
    %v11491 = vunpack.c.l.b16 %v11218
    %v11492 = vunpack.c.l.b16 %v11219
    %v11493 = vunpack.c.l.b16 %v11220
    %v11494 = vunpack.c.h.b16 %v11214
    %v11495 = vunpack.c.h.b16 %v11215
    %v11496 = vunpack.c.h.b16 %v11216
    %v11497 = vunpack.c.h.b16 %v11217
    %v11498 = vunpack.c.h.b16 %v11218
    %v11499 = vunpack.c.h.b16 %v11219
    %v11500 = vunpack.c.h.b16 %v11220
    %v11501 = vunpack.c.l.b16 %v11221
    %v11502 = vunpack.c.l.b16 %v11222
    %v11503 = vunpack.c.l.b16 %v11223
    %v11504 = vunpack.c.l.b16 %v11224
    %v11505 = vunpack.c.l.b16 %v11225
    %v11506 = vunpack.c.l.b16 %v11226
    %v11507 = vunpack.c.l.b16 %v11227
    %v11508 = vunpack.c.h.b16 %v11221
    %v11509 = vunpack.c.h.b16 %v11222
    %v11510 = vunpack.c.h.b16 %v11223
    %v11511 = vunpack.c.h.b16 %v11224
    %v11512 = vunpack.c.h.b16 %v11225
    %v11513 = vunpack.c.h.b16 %v11226
    %v11514 = vunpack.c.h.b16 %v11227
    %v11515 = vunpack.c.l.b16 %v11228
    %v11516 = vunpack.c.l.b16 %v11229
    %v11517 = vunpack.c.l.b16 %v11230
    %v11518 = vunpack.c.l.b16 %v11231
    %v11519 = vunpack.c.l.b16 %v11232
    %v11520 = vunpack.c.l.b16 %v11233
    %v11521 = vunpack.c.l.b16 %v11234
    %v11522 = vunpack.c.h.b16 %v11228
    %v11523 = vunpack.c.h.b16 %v11229
    %v11524 = vunpack.c.h.b16 %v11230
    %v11525 = vunpack.c.h.b16 %v11231
    %v11526 = vunpack.c.h.b16 %v11232
    %v11527 = vunpack.c.h.b16 %v11233
    %v11528 = vunpack.c.h.b16 %v11234
    %v11529 = vunpack.c.l.b16 %v11235
    %v11530 = vunpack.c.l.b16 %v11236
    %v11531 = vunpack.c.l.b16 %v11237
    %v11532 = vunpack.c.l.b16 %v11238
    %v11533 = vunpack.c.l.b16 %v11239
    %v11534 = vunpack.c.l.b16 %v11240
    %v11535 = vunpack.c.l.b16 %v11241
    %v11536 = vunpack.c.h.b16 %v11235
    %v11537 = vunpack.c.h.b16 %v11236
    %v11538 = vunpack.c.h.b16 %v11237
    %v11539 = vunpack.c.h.b16 %v11238
    %v11540 = vunpack.c.h.b16 %v11239
    %v11541 = vunpack.c.h.b16 %v11240
    %v11542 = vunpack.c.h.b16 %v11241
    %v11543 = vunpack.c.l.b16 %v11242
    %v11544 = vunpack.c.l.b16 %v11243
    %v11545 = vunpack.c.l.b16 %v11244
    %v11546 = vunpack.c.l.b16 %v11245
    %v11547 = vunpack.c.l.b16 %v11246
    %v11548 = vunpack.c.l.b16 %v11247
    %v11549 = vunpack.c.l.b16 %v11248
    %v11550 = vunpack.c.h.b16 %v11242
    %v11551 = vunpack.c.h.b16 %v11243
    %v11552 = vunpack.c.h.b16 %v11244
    %v11553 = vunpack.c.h.b16 %v11245
    %v11554 = vunpack.c.h.b16 %v11246
    %v11555 = vunpack.c.h.b16 %v11247
    %v11556 = vunpack.c.h.b16 %v11248
    %v11557 = vunpack.c.l.b16 %v11249
    %v11558 = vunpack.c.l.b16 %v11250
    %v11559 = vunpack.c.l.b16 %v11251
    %v11560 = vunpack.c.l.b16 %v11252
    %v11561 = vunpack.c.l.b16 %v11253
    %v11562 = vunpack.c.l.b16 %v11254
    %v11563 = vunpack.c.l.b16 %v11255
    %v11564 = vunpack.c.h.b16 %v11249
    %v11565 = vunpack.c.h.b16 %v11250
    %v11566 = vunpack.c.h.b16 %v11251
    %v11567 = vunpack.c.h.b16 %v11252
    %v11568 = vunpack.c.h.b16 %v11253
    %v11569 = vunpack.c.h.b16 %v11254
    %v11570 = vunpack.c.h.b16 %v11255
    %v11571 = vunpack.c.l.b16 %v11256
    %v11572 = vunpack.c.l.b16 %v11257
    %v11573 = vunpack.c.l.b16 %v11258
    %v11574 = vunpack.c.l.b16 %v11259
    %v11575 = vunpack.c.l.b16 %v11260
    %v11576 = vunpack.c.l.b16 %v11261
    %v11577 = vunpack.c.l.b16 %v11262
    %v11578 = vunpack.c.h.b16 %v11256
    %v11579 = vunpack.c.h.b16 %v11257
    %v11580 = vunpack.c.h.b16 %v11258
    %v11581 = vunpack.c.h.b16 %v11259
    %v11582 = vunpack.c.h.b16 %v11260
    %v11583 = vunpack.c.h.b16 %v11261
    %v11584 = vunpack.c.h.b16 %v11262
    %v11585 = vunpack.c.l.b16 %v11263
    %v11586 = vunpack.c.l.b16 %v11264
    %v11587 = vunpack.c.l.b16 %v11265
    %v11588 = vunpack.c.l.b16 %v11266
    %v11589 = vunpack.c.l.b16 %v11267
    %v11590 = vunpack.c.l.b16 %v11268
    %v11591 = vunpack.c.l.b16 %v11269
    %v11592 = vunpack.c.h.b16 %v11263
    %v11593 = vunpack.c.h.b16 %v11264
    %v11594 = vunpack.c.h.b16 %v11265
    %v11595 = vunpack.c.h.b16 %v11266
    %v11596 = vunpack.c.h.b16 %v11267
    %v11597 = vunpack.c.h.b16 %v11268
    %v11598 = vunpack.c.h.b16 %v11269
    %v11599 = vunpack.c.l.b16 %v11270
    %v11600 = vunpack.c.l.b16 %v11271
    %v11601 = vunpack.c.l.b16 %v11272
    %v11602 = vunpack.c.l.b16 %v11273
    %v11603 = vunpack.c.l.b16 %v11274
    %v11604 = vunpack.c.l.b16 %v11275
    %v11605 = vunpack.c.l.b16 %v11276
    %v11606 = vunpack.c.h.b16 %v11270
    %v11607 = vunpack.c.h.b16 %v11271
    %v11608 = vunpack.c.h.b16 %v11272
    %v11609 = vunpack.c.h.b16 %v11273
    %v11610 = vunpack.c.h.b16 %v11274
    %v11611 = vunpack.c.h.b16 %v11275
    %v11612 = vunpack.c.h.b16 %v11276
    %v11613 = vpack.c.b16 %v11390, %v11389
    %v11614 = vpack.c.b16 %v11392, %v11391
    %v11615 = vpack.c.b16 %v11394, %v11393
    %v11616 = vpack.c.b16 %v11395, %v11395
    %v11617 = vpack.c.b16 %v11397, %v11396
    %v11618 = vpack.c.b16 %v11399, %v11398
    %v11619 = vpack.c.b16 %v11401, %v11400
    %v11620 = vpack.c.b16 %v11402, %v11402
    %v11621 = vpack.c.b16 %v11404, %v11403
    %v11622 = vpack.c.b16 %v11406, %v11405
    %v11623 = vpack.c.b16 %v11408, %v11407
    %v11624 = vpack.c.b16 %v11409, %v11409
    %v11625 = vpack.c.b16 %v11411, %v11410
    %v11626 = vpack.c.b16 %v11413, %v11412
    %v11627 = vpack.c.b16 %v11415, %v11414
    %v11628 = vpack.c.b16 %v11416, %v11416
    %v11629 = vpack.c.b16 %v11418, %v11417
    %v11630 = vpack.c.b16 %v11420, %v11419
    %v11631 = vpack.c.b16 %v11422, %v11421
    %v11632 = vpack.c.b16 %v11423, %v11423
    %v11633 = vpack.c.b16 %v11425, %v11424
    %v11634 = vpack.c.b16 %v11427, %v11426
    %v11635 = vpack.c.b16 %v11429, %v11428
    %v11636 = vpack.c.b16 %v11430, %v11430
    %v11637 = vpack.c.b16 %v11432, %v11431
    %v11638 = vpack.c.b16 %v11434, %v11433
    %v11639 = vpack.c.b16 %v11436, %v11435
    %v11640 = vpack.c.b16 %v11437, %v11437
    %v11641 = vpack.c.b16 %v11439, %v11438
    %v11642 = vpack.c.b16 %v11441, %v11440
    %v11643 = vpack.c.b16 %v11443, %v11442
    %v11644 = vpack.c.b16 %v11444, %v11444
    %v11645 = vpack.c.b16 %v11446, %v11445
    %v11646 = vpack.c.b16 %v11448, %v11447
    %v11647 = vpack.c.b16 %v11450, %v11449
    %v11648 = vpack.c.b16 %v11451, %v11451
    %v11649 = vpack.c.b16 %v11453, %v11452
    %v11650 = vpack.c.b16 %v11455, %v11454
    %v11651 = vpack.c.b16 %v11457, %v11456
    %v11652 = vpack.c.b16 %v11458, %v11458
    %v11653 = vpack.c.b16 %v11460, %v11459
    %v11654 = vpack.c.b16 %v11462, %v11461
    %v11655 = vpack.c.b16 %v11464, %v11463
    %v11656 = vpack.c.b16 %v11465, %v11465
    %v11657 = vpack.c.b16 %v11467, %v11466
    %v11658 = vpack.c.b16 %v11469, %v11468
    %v11659 = vpack.c.b16 %v11471, %v11470
    %v11660 = vpack.c.b16 %v11472, %v11472
    %v11661 = vpack.c.b16 %v11474, %v11473
    %v11662 = vpack.c.b16 %v11476, %v11475
    %v11663 = vpack.c.b16 %v11478, %v11477
    %v11664 = vpack.c.b16 %v11479, %v11479
    %v11665 = vpack.c.b16 %v11481, %v11480
    %v11666 = vpack.c.b16 %v11483, %v11482
    %v11667 = vpack.c.b16 %v11485, %v11484
    %v11668 = vpack.c.b16 %v11486, %v11486
    %v11669 = vpack.c.b16 %v11488, %v11487
    %v11670 = vpack.c.b16 %v11490, %v11489
    %v11671 = vpack.c.b16 %v11492, %v11491
    %v11672 = vpack.c.b16 %v11493, %v11493
    %v11673 = vpack.c.b16 %v11495, %v11494
    %v11674 = vpack.c.b16 %v11497, %v11496
    %v11675 = vpack.c.b16 %v11499, %v11498
    %v11676 = vpack.c.b16 %v11500, %v11500
    %v11677 = vpack.c.b16 %v11502, %v11501
    %v11678 = vpack.c.b16 %v11504, %v11503
    %v11679 = vpack.c.b16 %v11506, %v11505
    %v11680 = vpack.c.b16 %v11507, %v11507
    %v11681 = vpack.c.b16 %v11509, %v11508
    %v11682 = vpack.c.b16 %v11511, %v11510
    %v11683 = vpack.c.b16 %v11513, %v11512
    %v11684 = vpack.c.b16 %v11514, %v11514
    %v11685 = vpack.c.b16 %v11516, %v11515
    %v11686 = vpack.c.b16 %v11518, %v11517
    %v11687 = vpack.c.b16 %v11520, %v11519
    %v11688 = vpack.c.b16 %v11521, %v11521
    %v11689 = vpack.c.b16 %v11523, %v11522
    %v11690 = vpack.c.b16 %v11525, %v11524
    %v11691 = vpack.c.b16 %v11527, %v11526
    %v11692 = vpack.c.b16 %v11528, %v11528
    %v11693 = vpack.c.b16 %v11530, %v11529
    %v11694 = vpack.c.b16 %v11532, %v11531
    %v11695 = vpack.c.b16 %v11534, %v11533
    %v11696 = vpack.c.b16 %v11535, %v11535
    %v11697 = vpack.c.b16 %v11537, %v11536
    %v11698 = vpack.c.b16 %v11539, %v11538
    %v11699 = vpack.c.b16 %v11541, %v11540
    %v11700 = vpack.c.b16 %v11542, %v11542
    %v11701 = vpack.c.b16 %v11544, %v11543
    %v11702 = vpack.c.b16 %v11546, %v11545
    %v11703 = vpack.c.b16 %v11548, %v11547
    %v11704 = vpack.c.b16 %v11549, %v11549
    %v11705 = vpack.c.b16 %v11551, %v11550
    %v11706 = vpack.c.b16 %v11553, %v11552
    %v11707 = vpack.c.b16 %v11555, %v11554
    %v11708 = vpack.c.b16 %v11556, %v11556
    %v11709 = vpack.c.b16 %v11558, %v11557
    %v11710 = vpack.c.b16 %v11560, %v11559
    %v11711 = vpack.c.b16 %v11562, %v11561
    %v11712 = vpack.c.b16 %v11563, %v11563
    %v11713 = vpack.c.b16 %v11565, %v11564
    %v11714 = vpack.c.b16 %v11567, %v11566
    %v11715 = vpack.c.b16 %v11569, %v11568
    %v11716 = vpack.c.b16 %v11570, %v11570
    %v11717 = vpack.c.b16 %v11572, %v11571
    %v11718 = vpack.c.b16 %v11574, %v11573
    %v11719 = vpack.c.b16 %v11576, %v11575
    %v11720 = vpack.c.b16 %v11577, %v11577
    %v11721 = vpack.c.b16 %v11579, %v11578
    %v11722 = vpack.c.b16 %v11581, %v11580
    %v11723 = vpack.c.b16 %v11583, %v11582
    %v11724 = vpack.c.b16 %v11584, %v11584
    %v11725 = vpack.c.b16 %v11586, %v11585
    %v11726 = vpack.c.b16 %v11588, %v11587
    %v11727 = vpack.c.b16 %v11590, %v11589
    %v11728 = vpack.c.b16 %v11591, %v11591
    %v11729 = vpack.c.b16 %v11593, %v11592
    %v11730 = vpack.c.b16 %v11595, %v11594
    %v11731 = vpack.c.b16 %v11597, %v11596
    %v11732 = vpack.c.b16 %v11598, %v11598
    %v11733 = vpack.c.b16 %v11600, %v11599
    %v11734 = vpack.c.b16 %v11602, %v11601
    %v11735 = vpack.c.b16 %v11604, %v11603
    %v11736 = vpack.c.b16 %v11605, %v11605
    %v11737 = vpack.c.b16 %v11607, %v11606
    %v11738 = vpack.c.b16 %v11609, %v11608
    %v11739 = vpack.c.b16 %v11611, %v11610
    %v11740 = vpack.c.b16 %v11612, %v11612
    %11869 = vst [vmem:[#allocation19] sm:$0xff] %v11613
    %11870 = vst [vmem:[#allocation19 + $0x8] sm:$0xff] %v11614
    %11871 = vst [vmem:[#allocation19 + $0x10] sm:$0xff] %v11615
    %11872 = vst [vmem:[#allocation19 + $0x18] sm:$0xf] %v11616
    %11873 = vst [vmem:[#allocation19 + $0x1c] sm:$0xff] %v11617
    %11874 = vst [vmem:[#allocation19 + $0x24] sm:$0xff] %v11618
    %11875 = vst [vmem:[#allocation19 + $0x2c] sm:$0xff] %v11619
    %11876 = vst [vmem:[#allocation19 + $0x34] sm:$0xf] %v11620
    %11877 = vst [vmem:[#allocation19 + $0x38] sm:$0xff] %v11621
    %11878 = vst [vmem:[#allocation19 + $0x40] sm:$0xff] %v11622
    %11879 = vst [vmem:[#allocation19 + $0x48] sm:$0xff] %v11623
    %11880 = vst [vmem:[#allocation19 + $0x50] sm:$0xf] %v11624
    %11881 = vst [vmem:[#allocation19 + $0x54] sm:$0xff] %v11625
    %11882 = vst [vmem:[#allocation19 + $0x5c] sm:$0xff] %v11626
    %11883 = vst [vmem:[#allocation19 + $0x64] sm:$0xff] %v11627
    %11884 = vst [vmem:[#allocation19 + $0x6c] sm:$0xf] %v11628
    %11885 = vst [vmem:[#allocation19 + $0x70] sm:$0xff] %v11629
    %11886 = vst [vmem:[#allocation19 + $0x78] sm:$0xff] %v11630
    %11887 = vst [vmem:[#allocation19 + $0x80] sm:$0xff] %v11631
    %11888 = vst [vmem:[#allocation19 + $0x88] sm:$0xf] %v11632
    %11889 = vst [vmem:[#allocation19 + $0x8c] sm:$0xff] %v11633
    %11890 = vst [vmem:[#allocation19 + $0x94] sm:$0xff] %v11634
    %11891 = vst [vmem:[#allocation19 + $0x9c] sm:$0xff] %v11635
    %11892 = vst [vmem:[#allocation19 + $0xa4] sm:$0xf] %v11636
    %11893 = vst [vmem:[#allocation19 + $0xa8] sm:$0xff] %v11637
    %11894 = vst [vmem:[#allocation19 + $0xb0] sm:$0xff] %v11638
    %11895 = vst [vmem:[#allocation19 + $0xb8] sm:$0xff] %v11639
    %11896 = vst [vmem:[#allocation19 + $0xc0] sm:$0xf] %v11640
    %11897 = vst [vmem:[#allocation19 + $0xc4] sm:$0xff] %v11641
    %11898 = vst [vmem:[#allocation19 + $0xcc] sm:$0xff] %v11642
    %11899 = vst [vmem:[#allocation19 + $0xd4] sm:$0xff] %v11643
    %11900 = vst [vmem:[#allocation19 + $0xdc] sm:$0xf] %v11644
    %11901 = vst [vmem:[#allocation19 + $0xe0] sm:$0xff] %v11645
    %11902 = vst [vmem:[#allocation19 + $0xe8] sm:$0xff] %v11646
    %11903 = vst [vmem:[#allocation19 + $0xf0] sm:$0xff] %v11647
    %11904 = vst [vmem:[#allocation19 + $0xf8] sm:$0xf] %v11648
    %11905 = vst [vmem:[#allocation19 + $0xfc] sm:$0xff] %v11649
    %11906 = vst [vmem:[#allocation19 + $0x104] sm:$0xff] %v11650
    %11907 = vst [vmem:[#allocation19 + $0x10c] sm:$0xff] %v11651
    %11908 = vst [vmem:[#allocation19 + $0x114] sm:$0xf] %v11652
    %11909 = vst [vmem:[#allocation19 + $0x118] sm:$0xff] %v11653
    %11910 = vst [vmem:[#allocation19 + $0x120] sm:$0xff] %v11654
    %11911 = vst [vmem:[#allocation19 + $0x128] sm:$0xff] %v11655
    %11912 = vst [vmem:[#allocation19 + $0x130] sm:$0xf] %v11656
    %11913 = vst [vmem:[#allocation19 + $0x134] sm:$0xff] %v11657
    %11914 = vst [vmem:[#allocation19 + $0x13c] sm:$0xff] %v11658
    %11915 = vst [vmem:[#allocation19 + $0x144] sm:$0xff] %v11659
    %11916 = vst [vmem:[#allocation19 + $0x14c] sm:$0xf] %v11660
    %11917 = vst [vmem:[#allocation19 + $0x150] sm:$0xff] %v11661
    %11918 = vst [vmem:[#allocation19 + $0x158] sm:$0xff] %v11662
    %11919 = vst [vmem:[#allocation19 + $0x160] sm:$0xff] %v11663
    %11920 = vst [vmem:[#allocation19 + $0x168] sm:$0xf] %v11664
    %11921 = vst [vmem:[#allocation19 + $0x16c] sm:$0xff] %v11665
    %11922 = vst [vmem:[#allocation19 + $0x174] sm:$0xff] %v11666
    %11923 = vst [vmem:[#allocation19 + $0x17c] sm:$0xff] %v11667
    %11924 = vst [vmem:[#allocation19 + $0x184] sm:$0xf] %v11668
    %11925 = vst [vmem:[#allocation19 + $0x188] sm:$0xff] %v11669
    %11926 = vst [vmem:[#allocation19 + $0x190] sm:$0xff] %v11670
    %11927 = vst [vmem:[#allocation19 + $0x198] sm:$0xff] %v11671
    %11928 = vst [vmem:[#allocation19 + $0x1a0] sm:$0xf] %v11672
    %11929 = vst [vmem:[#allocation19 + $0x1a4] sm:$0xff] %v11673
    %11930 = vst [vmem:[#allocation19 + $0x1ac] sm:$0xff] %v11674
    %11931 = vst [vmem:[#allocation19 + $0x1b4] sm:$0xff] %v11675
    %11932 = vst [vmem:[#allocation19 + $0x1bc] sm:$0xf] %v11676
    %11933 = vst [vmem:[#allocation19 + $0x1c0] sm:$0xff] %v11677
    %11934 = vst [vmem:[#allocation19 + $0x1c8] sm:$0xff] %v11678
    %11935 = vst [vmem:[#allocation19 + $0x1d0] sm:$0xff] %v11679
    %11936 = vst [vmem:[#allocation19 + $0x1d8] sm:$0xf] %v11680
    %11937 = vst [vmem:[#allocation19 + $0x1dc] sm:$0xff] %v11681
    %11938 = vst [vmem:[#allocation19 + $0x1e4] sm:$0xff] %v11682
    %11939 = vst [vmem:[#allocation19 + $0x1ec] sm:$0xff] %v11683
    %11940 = vst [vmem:[#allocation19 + $0x1f4] sm:$0xf] %v11684
    %11941 = vst [vmem:[#allocation19 + $0x1f8] sm:$0xff] %v11685
    %11942 = vst [vmem:[#allocation19 + $0x200] sm:$0xff] %v11686
    %11943 = vst [vmem:[#allocation19 + $0x208] sm:$0xff] %v11687
    %11944 = vst [vmem:[#allocation19 + $0x210] sm:$0xf] %v11688
    %11945 = vst [vmem:[#allocation19 + $0x214] sm:$0xff] %v11689
    %11946 = vst [vmem:[#allocation19 + $0x21c] sm:$0xff] %v11690
    %11947 = vst [vmem:[#allocation19 + $0x224] sm:$0xff] %v11691
    %11948 = vst [vmem:[#allocation19 + $0x22c] sm:$0xf] %v11692
    %11949 = vst [vmem:[#allocation19 + $0x230] sm:$0xff] %v11693
    %11950 = vst [vmem:[#allocation19 + $0x238] sm:$0xff] %v11694
    %11951 = vst [vmem:[#allocation19 + $0x240] sm:$0xff] %v11695
    %11952 = vst [vmem:[#allocation19 + $0x248] sm:$0xf] %v11696
    %11953 = vst [vmem:[#allocation19 + $0x24c] sm:$0xff] %v11697
    %11954 = vst [vmem:[#allocation19 + $0x254] sm:$0xff] %v11698
    %11955 = vst [vmem:[#allocation19 + $0x25c] sm:$0xff] %v11699
    %11956 = vst [vmem:[#allocation19 + $0x264] sm:$0xf] %v11700
    %11957 = vst [vmem:[#allocation19 + $0x268] sm:$0xff] %v11701
    %11958 = vst [vmem:[#allocation19 + $0x270] sm:$0xff] %v11702
    %11959 = vst [vmem:[#allocation19 + $0x278] sm:$0xff] %v11703
    %11960 = vst [vmem:[#allocation19 + $0x280] sm:$0xf] %v11704
    %11961 = vst [vmem:[#allocation19 + $0x284] sm:$0xff] %v11705
    %11962 = vst [vmem:[#allocation19 + $0x28c] sm:$0xff] %v11706
    %11963 = vst [vmem:[#allocation19 + $0x294] sm:$0xff] %v11707
    %11964 = vst [vmem:[#allocation19 + $0x29c] sm:$0xf] %v11708
    %11965 = vst [vmem:[#allocation19 + $0x2a0] sm:$0xff] %v11709
    %11966 = vst [vmem:[#allocation19 + $0x2a8] sm:$0xff] %v11710
    %11967 = vst [vmem:[#allocation19 + $0x2b0] sm:$0xff] %v11711
    %11968 = vst [vmem:[#allocation19 + $0x2b8] sm:$0xf] %v11712
    %11969 = vst [vmem:[#allocation19 + $0x2bc] sm:$0xff] %v11713
    %11970 = vst [vmem:[#allocation19 + $0x2c4] sm:$0xff] %v11714
    %11971 = vst [vmem:[#allocation19 + $0x2cc] sm:$0xff] %v11715
    %11972 = vst [vmem:[#allocation19 + $0x2d4] sm:$0xf] %v11716
    %11973 = vst [vmem:[#allocation19 + $0x2d8] sm:$0xff] %v11717
    %11974 = vst [vmem:[#allocation19 + $0x2e0] sm:$0xff] %v11718
    %11975 = vst [vmem:[#allocation19 + $0x2e8] sm:$0xff] %v11719
    %11976 = vst [vmem:[#allocation19 + $0x2f0] sm:$0xf] %v11720
    %11977 = vst [vmem:[#allocation19 + $0x2f4] sm:$0xff] %v11721
    %11978 = vst [vmem:[#allocation19 + $0x2fc] sm:$0xff] %v11722
    %11979 = vst [vmem:[#allocation19 + $0x304] sm:$0xff] %v11723
    %11980 = vst [vmem:[#allocation19 + $0x30c] sm:$0xf] %v11724
    %11981 = vst [vmem:[#allocation19 + $0x310] sm:$0xff] %v11725
    %11982 = vst [vmem:[#allocation19 + $0x318] sm:$0xff] %v11726
    %11983 = vst [vmem:[#allocation19 + $0x320] sm:$0xff] %v11727
    %11984 = vst [vmem:[#allocation19 + $0x328] sm:$0xf] %v11728
    %11985 = vst [vmem:[#allocation19 + $0x32c] sm:$0xff] %v11729
    %11986 = vst [vmem:[#allocation19 + $0x334] sm:$0xff] %v11730
    %11987 = vst [vmem:[#allocation19 + $0x33c] sm:$0xff] %v11731
    %11988 = vst [vmem:[#allocation19 + $0x344] sm:$0xf] %v11732
    %11989 = vst [vmem:[#allocation19 + $0x348] sm:$0xff] %v11733
    %11990 = vst [vmem:[#allocation19 + $0x350] sm:$0xff] %v11734
    %11991 = vst [vmem:[#allocation19 + $0x358] sm:$0xff] %v11735
    %11992 = vst [vmem:[#allocation19 + $0x360] sm:$0xf] %v11736
    %11993 = vst [vmem:[#allocation19 + $0x364] sm:$0xff] %v11737
    %11994 = vst [vmem:[#allocation19 + $0x36c] sm:$0xff] %v11738
    %11995 = vst [vmem:[#allocation19 + $0x374] sm:$0xff] %v11739
    %11996 = vst [vmem:[#allocation19 + $0x37c] sm:$0xf] %v11740
    // Predicated region
    $region82: #{tpu_custom_call.1} parent=1 // pred_check
      _
    $region83: #{tpu_custom_call.1} parent=1 // pred_check_branch
      %11998 = sbr.rel (0) target = $region85
    $region84: #{tpu_custom_call.1} parent=1 // pred_region
      %s12000 = ssub.s32 14336, 14336
      %12001 = vsyncadd [#allocation4], %s12000
      %s12002 = sshll.u32 [#allocation19], 4
      %s12003 = int_to_ptr.vmem [resolvable:$true] %s12002
      %12008 = dma.vmem_to_hbm [thread:$0]  %s12003, 14336, %s10, [#allocation4], 448, 448, 28
    $region85: #{tpu_custom_call.1} parent=1 // pred_fallthru
      _
    // Predicated region
    $region86: #{tpu_custom_call.1} parent=1 // pred_check
      _
    $region87: #{tpu_custom_call.1} parent=1 // pred_check_branch
      %12010 = sbr.rel (0) target = $region89
    $region88: #{tpu_custom_call.1} parent=1 // pred_region
      %12011 = dma.done [#allocation4], 14336
    $region89: #{tpu_custom_call.1} parent=1 // pred_fallthru
      _
    %12012 = vsyncpa [#allocation3], 1
    %12013 = vsyncpa [#allocation6], 1
    %12014 = vsyncpa [#allocation9], 1
    %12015 = vsyncpa [#allocation12], 1
    %12016 = vsyncpa [#allocation15], 1
    %12017 = vsyncpa [#allocation18], 1
    %12018 = vsyncpa [#allocation4], 1

</llo_original>
